<compile_context>
chip_gen: v7x
topology: tpu7x:2x2x1
jax: 0.10.0
libtpu: 0.0.40
codegen_flags: <defaults>
</compile_context>

<pallas_src>
import math
import functools

import jax
import jax.numpy as jnp
from jax.experimental import pallas as pl
from jax.experimental.pallas import tpu as pltpu

_EPS_NORM = 1e-8   # gvp._norm_no_nan eps
_EPS_LN = 1e-5     # nn.LayerNorm eps

_NUM_RESIDUE_TYPES = 22
_EMBED_DIM = 32
_DEFAULT_V_DIM = (100, 16)
_DEFAULT_E_DIM = (32, 1)
_NUM_RBF = 16

# Max rows per grid step.  512-row tiles keep every fused kernel's working set
# at a few MiB (bf16 weights + f32 activations, double-buffered) — far under
# the 32 MiB scoped default and v7x's 64 MiB VMEM — while filling the MXU and
# amortizing the ~600-cycle per-step overhead.
_MAX_ROW_TILE = 512

_GVP_KEYS_V = ('wh', 'ws_s', 'ws_n', 'bs', 'wv', 'wg', 'bg')   # vo > 0
_GVP_KEYS_S = ('wh', 'ws_s', 'ws_n', 'bs')                     # vo == 0


def _round_up(n, m):
    return ((n + m - 1) // m) * m


def _tile_and_pad(n):
    """Pick a row tile (multiple of 8, <=_MAX_ROW_TILE) giving >=2 grid steps
    when possible (v7x has 2 TensorCores; a 1-step grid idles one of them)."""
    n8 = _round_up(max(n, 8), 8)
    if n8 <= 8:
        return 8, 8
    half = _round_up((n8 + 1) // 2, 8)
    t = min(_MAX_ROW_TILE, half)
    return t, _round_up(n8, t)


def _cparams():
    return pltpu.CompilerParams(dimension_semantics=("parallel",))


def _full_spec(a):
    # constant index_map -> block stays resident across grid steps (weights)
    nd = a.ndim
    return pl.BlockSpec(a.shape, lambda i, _nd=nd: (0,) * _nd)


def _flat_gvp(p):
    keys = _GVP_KEYS_V if 'wv' in p else _GVP_KEYS_S
    return [p[k] for k in keys]


# ---------------------------------------------------------------------------
# In-kernel building blocks
# ---------------------------------------------------------------------------

def _read_gvp(refs, start, has_vo):
    keys = _GVP_KEYS_V if has_vo else _GVP_KEYS_S
    w = {k: refs[start + off][...] for off, k in enumerate(keys)}
    return w, start + len(keys)


def _bf16(x):
    return x.astype(jnp.bfloat16)


def _ln_scalar(s, g, b):
    mu = jnp.mean(s, axis=-1, keepdims=True)
    var = jnp.mean(jnp.square(s - mu), axis=-1, keepdims=True)
    return (s - mu) * jax.lax.rsqrt(var + _EPS_LN) * g + b


def _ln_vector(v):
    """gvp.LayerNorm vector branch on (T, 3C) component-major layout."""
    c = v.shape[1] // 3
    v2 = v * v
    vn2 = jnp.maximum(v2[:, 0:c] + v2[:, c:2 * c] + v2[:, 2 * c:3 * c],
                      _EPS_NORM)                                # (T, C)
    msq = jnp.mean(vn2, axis=-1, keepdims=True)                 # (T, 1)
    return v * jax.lax.rsqrt(msq)


def _gvp_apply(s, v, w, relu_scalar):
    """One GVP (vector_gate=True, vector_act=None) on loaded tiles.

    s: (T, si) f32.  v: (T, 3*vi) f32 component-major.  Weights ('wh','wv')
    are pre-expanded block-diagonal bf16, so each projection is one lane-dense
    MXU matmul; MXU operands are bf16, accumulation f32.
    """
    h = w['wh'].shape[1] // 3
    vh = jnp.dot(_bf16(v), w['wh'],
                 preferred_element_type=jnp.float32)            # (T, 3h) f32
    vh2 = vh * vh
    vn = jnp.sqrt(jnp.maximum(vh2[:, 0:h] + vh2[:, h:2 * h] + vh2[:, 2 * h:3 * h],
                              _EPS_NORM))                       # (T, h)
    s_new = (jnp.dot(_bf16(s), w['ws_s'], preferred_element_type=jnp.float32)
             + jnp.dot(_bf16(vn), w['ws_n'], preferred_element_type=jnp.float32)
             + w['bs'])                                          # (T, so)
    v_new = None
    if 'wv' in w:
        vflat = jnp.dot(_bf16(vh), w['wv'],
                        preferred_element_type=jnp.float32)      # (T, 3vo)
        gate = jax.nn.sigmoid(
            jnp.dot(_bf16(s_new), w['wg'],
                    preferred_element_type=jnp.float32) + w['bg'])  # (T, vo)
        v_new = vflat * jnp.concatenate([gate, gate, gate], axis=-1)
    if relu_scalar:
        s_new = jnp.maximum(s_new, 0.0)
    return s_new, v_new


# ---------------------------------------------------------------------------
# Fused Pallas kernels
# ---------------------------------------------------------------------------

def _wv_kernel(s_ref, g_ref, b_ref, w_ref, bias_ref, o_ref):
    """W_v = LayerNorm(32) + GVP((32,0)->(100,16)); vi=0 => plain linear."""
    s = _ln_scalar(s_ref[...], g_ref[...], b_ref[...])
    o_ref[...] = jnp.dot(_bf16(s), w_ref[...],
                         preferred_element_type=jnp.float32) + bias_ref[...]


def _we_kernel(*refs):
    """W_e = LayerNorm((16,1)) + GVP((16,1)->(32,1), activations=(None,None))."""
    s_ref, v_ref, g_ref, b_ref = refs[:4]
    w, idx = _read_gvp(refs, 4, True)
    s_out_ref, v_out_ref = refs[idx], refs[idx + 1]
    s = _ln_scalar(s_ref[...], g_ref[...], b_ref[...])
    v = _ln_vector(v_ref[...])
    s, v = _gvp_apply(s, v, w, relu_scalar=False)
    s_out_ref[...] = s
    v_out_ref[...] = v


def _msg_kernel(*refs):
    """GVPConv message: build the 232/99-wide message rows in VMEM (no HBM
    concat), run the 3 chained GVPs, mask padded edges to zero."""
    hss_ref, es_ref, hsd_ref, hvs_ref, ev_ref, hvd_ref, valid_ref = refs[:7]
    w0, idx = _read_gvp(refs, 7, True)
    w1, idx = _read_gvp(refs, idx, True)
    w2, idx = _read_gvp(refs, idx, True)
    s_out_ref, v_out_ref = refs[idx], refs[idx + 1]

    s = jnp.concatenate([hss_ref[...], es_ref[...], hsd_ref[...]], axis=-1)
    v = jnp.concatenate([hvs_ref[...], ev_ref[...], hvd_ref[...]], axis=-1)
    s, v = _gvp_apply(s, v, w0, relu_scalar=True)
    s, v = _gvp_apply(s, v, w1, relu_scalar=True)
    s, v = _gvp_apply(s, v, w2, relu_scalar=False)

    valid = valid_ref[...]                       # (T, 1): 0 for padded edges
    s_out_ref[...] = s * valid
    v_out_ref[...] = v * valid


def _node_update_kernel(*refs):
    """(residual + mean-div + LN0) -> FF GVP x2 -> (residual + LN1), fused."""
    hs_ref, hv_ref, as_ref, av_ref, ic_ref, g0_ref, b0_ref = refs[:7]
    w0, idx = _read_gvp(refs, 7, True)
    w1, idx = _read_gvp(refs, idx, True)
    g1_ref, b1_ref = refs[idx], refs[idx + 1]
    s_out_ref, v_out_ref = refs[idx + 2], refs[idx + 3]

    inv_c = ic_ref[...]                                        # (T, 1)
    s = hs_ref[...] + as_ref[...] * inv_c
    v = hv_ref[...] + av_ref[...] * inv_c
    s = _ln_scalar(s, g0_ref[...], b0_ref[...])
    v = _ln_vector(v)

    ds, dv = _gvp_apply(s, v, w0, relu_scalar=True)            # (T,400),(T,96)
    ds, dv = _gvp_apply(ds, dv, w1, relu_scalar=False)         # (T,100),(T,48)

    s_out_ref[...] = _ln_scalar(s + ds, g1_ref[...], b1_ref[...])
    v_out_ref[...] = _ln_vector(v + dv)


def _wout_kernel(*refs):
    """W_out = LayerNorm((100,16)) + GVP((100,16)->(100,0), relu)."""
    s_ref, v_ref, g_ref, b_ref = refs[:4]
    w, idx = _read_gvp(refs, 4, False)
    o_ref = refs[idx]
    s = _ln_scalar(s_ref[...], g_ref[...], b_ref[...])
    v = _ln_vector(v_ref[...])
    s, _ = _gvp_apply(s, v, w, relu_scalar=True)
    o_ref[...] = s


# ---------------------------------------------------------------------------
# Pallas wrappers (rows already padded to a multiple of `tile`)
# ---------------------------------------------------------------------------

def _row(tile, c):
    return pl.BlockSpec((tile, c), lambda i: (i, 0))


def wv_forward(h_s, ln, gvp_p, tile):
    n, si = h_s.shape
    so = gvp_p['ws_s'].shape[1]
    g, b = ln
    return pl.pallas_call(
        _wv_kernel,
        out_shape=jax.ShapeDtypeStruct((n, so), jnp.float32),
        grid=(n // tile,),
        in_specs=[_row(tile, si), _full_spec(g), _full_spec(b),
                  _full_spec(gvp_p['ws_s']), _full_spec(gvp_p['bs'])],
        out_specs=_row(tile, so),
        compiler_params=_cparams(),
    )(h_s, g, b, gvp_p['ws_s'], gvp_p['bs'])


def edge_embed_forward(e_s, e_v, ln, gvp_p, tile):
    e_pad, es = e_s.shape
    ev3 = e_v.shape[1]
    so = gvp_p['ws_s'].shape[1]
    vo3 = gvp_p['wv'].shape[1]
    g, b = ln
    wts = _flat_gvp(gvp_p)
    return pl.pallas_call(
        _we_kernel,
        out_shape=(jax.ShapeDtypeStruct((e_pad, so), jnp.float32),
                   jax.ShapeDtypeStruct((e_pad, vo3), jnp.float32)),
        grid=(e_pad // tile,),
        in_specs=[_row(tile, es), _row(tile, ev3), _full_spec(g), _full_spec(b)]
                 + [_full_spec(w) for w in wts],
        out_specs=(_row(tile, so), _row(tile, vo3)),
        compiler_params=_cparams(),
    )(e_s, e_v, g, b, *wts)


def msg_forward(hss, e_s, hsd, hvs, e_v, hvd, valid, gvps, tile):
    e_pad, ns = hss.shape
    nv3 = hvs.shape[1]
    es = e_s.shape[1]
    ev3 = e_v.shape[1]
    so = gvps[2]['ws_s'].shape[1]
    vo3 = gvps[2]['wv'].shape[1]
    wts = []
    for p in gvps:
        wts += _flat_gvp(p)
    return pl.pallas_call(
        _msg_kernel,
        out_shape=(jax.ShapeDtypeStruct((e_pad, so), jnp.float32),
                   jax.ShapeDtypeStruct((e_pad, vo3), jnp.float32)),
        grid=(e_pad // tile,),
        in_specs=[_row(tile, ns), _row(tile, es), _row(tile, ns),
                  _row(tile, nv3), _row(tile, ev3), _row(tile, nv3),
                  _row(tile, 1)]
                 + [_full_spec(w) for w in wts],
        out_specs=(_row(tile, so), _row(tile, vo3)),
        compiler_params=_cparams(),
    )(hss, e_s, hsd, hvs, e_v, hvd, valid, *wts)


def node_update_forward(h_s, h_v, agg_s, agg_v, inv_c, layer, tile):
    n_pad, ns = h_s.shape
    nv3 = h_v.shape[1]
    g0, b0 = layer['norm0']
    g1, b1 = layer['norm1']
    w0, w1 = _flat_gvp(layer['ff'][0]), _flat_gvp(layer['ff'][1])
    in_specs = ([_row(tile, ns), _row(tile, nv3), _row(tile, ns),
                 _row(tile, nv3), _row(tile, 1),
                 _full_spec(g0), _full_spec(b0)]
                + [_full_spec(w) for w in w0] + [_full_spec(w) for w in w1]
                + [_full_spec(g1), _full_spec(b1)])
    args = [h_s, h_v, agg_s, agg_v, inv_c, g0, b0] + w0 + w1 + [g1, b1]
    return pl.pallas_call(
        _node_update_kernel,
        out_shape=(jax.ShapeDtypeStruct((n_pad, ns), jnp.float32),
                   jax.ShapeDtypeStruct((n_pad, nv3), jnp.float32)),
        grid=(n_pad // tile,),
        in_specs=in_specs,
        out_specs=(_row(tile, ns), _row(tile, nv3)),
        compiler_params=_cparams(),
    )(*args)


def wout_forward(h_s, h_v, ln, gvp_p, tile):
    n_pad, ns = h_s.shape
    nv3 = h_v.shape[1]
    so = gvp_p['ws_s'].shape[1]
    g, b = ln
    wts = _flat_gvp(gvp_p)
    return pl.pallas_call(
        _wout_kernel,
        out_shape=jax.ShapeDtypeStruct((n_pad, so), jnp.float32),
        grid=(n_pad // tile,),
        in_specs=[_row(tile, ns), _row(tile, nv3), _full_spec(g), _full_spec(b)]
                 + [_full_spec(w) for w in wts],
        out_specs=_row(tile, so),
        compiler_params=_cparams(),
    )(h_s, h_v, g, b, *wts)


# ---------------------------------------------------------------------------
# Parameter init (deterministic, torch-Linear-style uniform bounds)
# ---------------------------------------------------------------------------

def _uniform(key, shape, fan_in):
    bound = 1.0 / math.sqrt(fan_in)
    return jax.random.uniform(key, shape, jnp.float32, -bound, bound)


def _expand_block_diag(w):
    """(vi, h) -> (3vi, 3h) block-diag: same map applied to x/y/z components."""
    vi, h = w.shape
    out = jnp.zeros((3 * vi, 3 * h), jnp.float32)
    for c in range(3):
        out = out.at[c * vi:(c + 1) * vi, c * h:(c + 1) * h].set(w)
    return out


def _expand_wh_msg(wh, nv, ev):
    """Expand the first message GVP's wh for the in-kernel vector concat
    layout [src(3nv) | e(3ev) | dst(3nv)], each block component-major."""
    vi, h = wh.shape           # vi = 2*nv + ev, rows ordered [src nv, e ev, dst nv]
    out = jnp.zeros((3 * vi, 3 * h), jnp.float32)
    off_e, off_d = 3 * nv, 3 * nv + 3 * ev
    for c in range(3):
        out = out.at[c * nv:(c + 1) * nv, c * h:(c + 1) * h].set(wh[:nv])
        out = out.at[off_e + c * ev:off_e + (c + 1) * ev,
                     c * h:(c + 1) * h].set(wh[nv:nv + ev])
        out = out.at[off_d + c * nv:off_d + (c + 1) * nv,
                     c * h:(c + 1) * h].set(wh[nv + ev:])
    return out


def _init_gvp(key, si, vi, so, vo, msg_input=False, nv=16, ev=1):
    """GVP(in=(si,vi), out=(so,vo), vector_gate=True), vi > 0.  Matrices bf16,
    biases f32; wh/wv pre-expanded to the block-diagonal lane layout."""
    h = max(vi, vo)
    k = jax.random.split(key, 7)
    wh = _uniform(k[0], (vi, h), vi)
    wh_big = _expand_wh_msg(wh, nv, ev) if msg_input else _expand_block_diag(wh)
    p = {
        'wh': wh_big.astype(jnp.bfloat16),
        'ws_s': _uniform(k[1], (si, so), si + h).astype(jnp.bfloat16),
        'ws_n': _uniform(k[2], (h, so), si + h).astype(jnp.bfloat16),
        'bs': _uniform(k[3], (so,), si + h).reshape(1, -1),
    }
    if vo:
        wv = _uniform(k[4], (h, vo), h)
        p['wv'] = _expand_block_diag(wv).astype(jnp.bfloat16)
        p['wg'] = _uniform(k[5], (so, vo), so).astype(jnp.bfloat16)
        p['bg'] = _uniform(k[6], (vo,), so).reshape(1, -1)
    return p


def _init_ln(dim):
    return jnp.ones((1, dim), jnp.float32), jnp.zeros((1, dim), jnp.float32)


def init_params(key):
    ns, nv = _DEFAULT_V_DIM
    es, ev = _DEFAULT_E_DIM
    ks = jax.random.split(key, 8)
    params = {
        'embed': jax.random.normal(ks[0], (_NUM_RESIDUE_TYPES, _EMBED_DIM), jnp.float32),
        'Wv_ln': _init_ln(_EMBED_DIM),
        # GVP((32,0)->(100,16)): vi=0 => pure linear on scalars, vectors are zeros
        'Wv_gvp': {
            'ws_s': _uniform(jax.random.fold_in(ks[1], 0), (_EMBED_DIM, ns),
                             _EMBED_DIM).astype(jnp.bfloat16),
            'bs': _uniform(jax.random.fold_in(ks[1], 1), (ns,), _EMBED_DIM).reshape(1, -1),
        },
        'We_ln': _init_ln(_NUM_RBF),
        'We_gvp': _init_gvp(ks[2], _NUM_RBF, ev, es, ev),
        'Wout_ln': _init_ln(ns),
        'Wout_gvp': _init_gvp(ks[3], ns, nv, ns, 0),
        'dense1': (_uniform(jax.random.fold_in(ks[4], 0), (ns, 2 * ns), ns),
                   _uniform(jax.random.fold_in(ks[4], 1), (2 * ns,), ns)),
        'dense2': (_uniform(jax.random.fold_in(ks[5], 0), (2 * ns, 1), 2 * ns),
                   _uniform(jax.random.fold_in(ks[5], 1), (1,), 2 * ns)),
    }
    layers = []
    for li in range(5):
        k = jax.random.split(jax.random.fold_in(ks[6], li), 5)
        layers.append({
            'msg': [_init_gvp(k[0], 2 * ns + es, 2 * nv + ev, ns, nv,
                              msg_input=True, nv=nv, ev=ev),
                    _init_gvp(k[1], ns, nv, ns, nv),
                    _init_gvp(k[2], ns, nv, ns, nv)],
            'norm0': _init_ln(ns),
            'ff': [_init_gvp(k[3], ns, nv, 4 * ns, 2 * nv),
                   _init_gvp(k[4], 4 * ns, 2 * nv, ns, nv)],
            'norm1': _init_ln(ns),
        })
    params['layers'] = layers
    return params


# ---------------------------------------------------------------------------
# Model forward (inference mode)
# ---------------------------------------------------------------------------

def base_model_forward(params, atoms, edge_index, edge_s, edge_v, batch_id,
                       num_graphs, scatter_mean=True, dense=True):
    ns, nv = _DEFAULT_V_DIM
    n = atoms.shape[0]
    e = edge_s.shape[0]
    ev_dim = edge_v.shape[1]

    t_n, n_pad = _tile_and_pad(n)
    t_e, e_pad = _tile_and_pad(e)

    # ---- pad once; padded shapes persist through all 5 layers (no per-layer
    # pad/slice HBM copies). Padded edges carry valid=0 and are zeroed inside
    # the message kernel so they never pollute the mean aggregation.
    atoms_p = jnp.pad(atoms, (0, n_pad - n))
    src = jnp.pad(edge_index[0], (0, e_pad - e))
    dst = jnp.pad(edge_index[1], (0, e_pad - e))
    valid = jnp.pad(jnp.ones((e,), jnp.float32), (0, e_pad - e))
    e_s = jnp.pad(edge_s, ((0, e_pad - e), (0, 0)))
    # torch layout (E, ev, 3) -> lane-dense component-major (E, 3*ev)
    e_v = jnp.transpose(edge_v, (0, 2, 1)).reshape(e, 3 * ev_dim)
    e_v = jnp.pad(e_v, ((0, e_pad - e), (0, 0)))

    # pre-sort edges by target node so segment_sum gets sorted-scatter hints
    order = jnp.argsort(dst)
    src, dst, valid = src[order], dst[order], valid[order]
    e_s, e_v = e_s[order], e_v[order]
    valid_col = valid[:, None]

    # per-node in-degree over real edges only; computed once for all layers
    counts = jax.ops.segment_sum(valid, dst, num_segments=n_pad,
                                 indices_are_sorted=True)
    inv_c = (1.0 / jnp.maximum(counts, 1.0))[:, None]

    # embedding lookup (glue)
    h_s = params['embed'][atoms_p]                               # (N_pad, 32)

    # W_v = LayerNorm(32) + GVP((32,0)->(100,16)); vi=0 => vector output is zeros
    h_s = wv_forward(h_s, params['Wv_ln'], params['Wv_gvp'], t_n)
    h_v = jnp.zeros((n_pad, 3 * nv), jnp.float32)

    # W_e = LayerNorm((16,1)) + GVP((16,1)->(32,1)), fused
    e_s, e_v = edge_embed_forward(e_s, e_v, params['We_ln'], params['We_gvp'], t_e)

    # 5 GVPConvLayers
    for layer in params['layers']:
        # TODO(synk): per-edge src/dst row gather is data-dependent and stays in
        # plain JAX; a fully fused in-kernel gather would need per-row HBM DMAs.
        hss, hsd = h_s[src], h_s[dst]
        hvs, hvd = h_v[src], h_v[dst]
        # message = 3 chained GVPs; 232/99-wide rows built in VMEM, not HBM
        m_s, m_v = msg_forward(hss, e_s, hsd, hvs, e_v, hvd, valid_col,
                               layer['msg'], t_e)
        # mean-aggregation over edge targets (sorted, no transposes needed)
        agg_s = jax.ops.segment_sum(m_s, dst, num_segments=n_pad,
                                    indices_are_sorted=True)
        agg_v = jax.ops.segment_sum(m_v, dst, num_segments=n_pad,
                                    indices_are_sorted=True)
        # residual + LN0 + FF GVPs + residual + LN1, fused (Dropout = identity,
        # 1/count folded into the kernel)
        h_s, h_v = node_update_forward(h_s, h_v, agg_s, agg_v, inv_c, layer, t_n)

    # W_out = LayerNorm((100,16)) + GVP((100,16)->(100,0), relu), fused
    out = wout_forward(h_s, h_v, params['Wout_ln'], params['Wout_gvp'], t_n)
    out = out[:n]

    if scatter_mean:
        # TODO(synk): per-graph mean (torch_scatter.scatter_mean) is data-dependent; plain JAX.
        cnt = jnp.maximum(
            jax.ops.segment_sum(jnp.ones((n,), jnp.float32), batch_id,
                                num_segments=num_graphs), 1.0)
        out = jax.ops.segment_sum(out, batch_id, num_segments=num_graphs) / cnt[:, None]

    if dense:
        # tiny (num_graphs, 100) head: plain XLA matmuls. Dropout is identity.
        w1, b1 = params['dense1']
        w2, b2 = params['dense2']
        out = jnp.maximum(jnp.dot(out, w1) + b1, 0.0)
        out = (jnp.dot(out, w2) + b2)[..., 0]
    return out


# ---------------------------------------------------------------------------
# Demo
# ---------------------------------------------------------------------------

if __name__ == "__main__":
    key = jax.random.PRNGKey(0)
    kp, ka, ke1, ke2, kes, kev = jax.random.split(key, 6)
    params = init_params(kp)

    N, E, num_graphs = 32, 64, 2
    atoms = jax.random.randint(ka, (N,), 0, _NUM_RESIDUE_TYPES).astype(jnp.int32)

    # edges stay within each graph (nodes 0..15 -> graph 0, 16..31 -> graph 1)
    half = E // 2
    ei0 = jax.random.randint(ke1, (2, half), 0, N // 2)
    ei1 = jax.random.randint(ke2, (2, half), N // 2, N)
    edge_index = jnp.concatenate([ei0, ei1], axis=1).astype(jnp.int32)   # (2, E)

    edge_s = jax.random.normal(kes, (E, _NUM_RBF), jnp.float32)          # (E, 16)
    edge_v = jax.random.normal(kev, (E, 1, 3), jnp.float32)              # torch layout (E, nv, 3)

    batch_id = jnp.concatenate(
        [jnp.zeros((N // 2,), jnp.int32), jnp.ones((N // 2,), jnp.int32)])

    fwd = jax.jit(functools.partial(base_model_forward, num_graphs=num_graphs))
    out = fwd(params, atoms, edge_index, edge_s, edge_v, batch_id)
    jax.block_until_ready(out)
    assert out.shape == (num_graphs,) and out.dtype == jnp.float32
    assert bool(jnp.all(jnp.isfinite(out)))
    print("KERNEL_OK")
</pallas_src>

<mosaic_0001>
module attributes {stable_mosaic.version = 11 : i64} {
  func.func private @main(%arg0: i32) attributes {dimension_semantics = [#tpu.dimension_semantics<core_parallel>], iteration_bounds = array<i64: 2>, tpu.core_type = #tpu.core_type<sc_scalar_subcore>, window_params = []} {
    return
  }
}

module attributes {stable_mosaic.version = 11 : i64} {
  func.func private @main(%arg0: i32) attributes {dimension_semantics = [#tpu.dimension_semantics<core_parallel>], iteration_bounds = array<i64: 2>, tpu.core_type = #tpu.core_type<sc_scalar_subcore>, window_params = []} {
    return
  }
}

module attributes {stable_mosaic.version = 11 : i64} {
  func.func @_wv_kernel(%arg0: i32, %arg1: memref<16x32xf32, #tpu.memory_space<vmem>>, %arg2: memref<1x32xf32, #tpu.memory_space<vmem>>, %arg3: memref<1x32xf32, #tpu.memory_space<vmem>>, %arg4: memref<32x100xbf16, #tpu.memory_space<vmem>>, %arg5: memref<1x100xf32, #tpu.memory_space<vmem>>, %arg6: memref<16x100xf32, #tpu.memory_space<vmem>>) attributes {dimension_semantics = [#tpu.dimension_semantics<parallel>], iteration_bounds = array<i64: 2>, scalar_prefetch = 0 : i64, scratch_operands = 0 : i64, tpu.core_type = #tpu.core_type<tc>, window_params = [{transform_indices = @transform_0, window_bounds = array<i64: 16, 32>}, {pipeline_mode = #tpu.pipeline_mode<synchronous>, transform_indices = @transform_1, window_bounds = array<i64: 1, 32>}, {pipeline_mode = #tpu.pipeline_mode<synchronous>, transform_indices = @transform_2, window_bounds = array<i64: 1, 32>}, {pipeline_mode = #tpu.pipeline_mode<synchronous>, transform_indices = @transform_3, window_bounds = array<i64: 32, 100>}, {pipeline_mode = #tpu.pipeline_mode<synchronous>, transform_indices = @transform_4, window_bounds = array<i64: 1, 100>}, {transform_indices = @transform_5, window_bounds = array<i64: 16, 100>}]} {
    %c0 = arith.constant 0 : index
    %c0_0 = arith.constant 0 : index
    %0 = vector.load %arg1[%c0, %c0_0] : memref<16x32xf32, #tpu.memory_space<vmem>>, vector<16x32xf32>
    %c0_1 = arith.constant 0 : index
    %c0_2 = arith.constant 0 : index
    %1 = vector.load %arg2[%c0_1, %c0_2] : memref<1x32xf32, #tpu.memory_space<vmem>>, vector<1x32xf32>
    %c0_3 = arith.constant 0 : index
    %c0_4 = arith.constant 0 : index
    %2 = vector.load %arg3[%c0_3, %c0_4] : memref<1x32xf32, #tpu.memory_space<vmem>>, vector<1x32xf32>
    %cst = arith.constant dense<0.000000e+00> : vector<16xf32>
    %3 = vector.multi_reduction <add>, %0, %cst [1] : vector<16x32xf32> to vector<16xf32>
    %4 = vector.shape_cast %3 : vector<16xf32> to vector<16x1xf32>
    %cst_5 = arith.constant 3.200000e+01 : f32
    %5 = vector.broadcast %cst_5 : f32 to vector<16x1xf32>
    %6 = arith.divf %4, %5 : vector<16x1xf32>
    %7 = vector.broadcast %6 : vector<16x1xf32> to vector<16x32xf32>
    %8 = arith.subf %0, %7 : vector<16x32xf32>
    %9 = arith.mulf %8, %8 : vector<16x32xf32>
    %cst_6 = arith.constant dense<0.000000e+00> : vector<16xf32>
    %10 = vector.multi_reduction <add>, %9, %cst_6 [1] : vector<16x32xf32> to vector<16xf32>
    %11 = vector.shape_cast %10 : vector<16xf32> to vector<16x1xf32>
    %cst_7 = arith.constant 3.200000e+01 : f32
    %12 = vector.broadcast %cst_7 : f32 to vector<16x1xf32>
    %13 = arith.divf %11, %12 : vector<16x1xf32>
    %14 = vector.broadcast %6 : vector<16x1xf32> to vector<16x32xf32>
    %15 = arith.subf %0, %14 : vector<16x32xf32>
    %cst_8 = arith.constant 9.99999974E-6 : f32
    %16 = vector.broadcast %cst_8 : f32 to vector<16x1xf32>
    %17 = arith.addf %13, %16 : vector<16x1xf32>
    %18 = math.rsqrt %17 : vector<16x1xf32>
    %19 = vector.broadcast %18 : vector<16x1xf32> to vector<16x32xf32>
    %20 = arith.mulf %15, %19 : vector<16x32xf32>
    %21 = vector.broadcast %1 : vector<1x32xf32> to vector<16x32xf32>
    %22 = arith.mulf %20, %21 : vector<16x32xf32>
    %23 = vector.broadcast %2 : vector<1x32xf32> to vector<16x32xf32>
    %24 = arith.addf %22, %23 : vector<16x32xf32>
    %25 = arith.truncf %24 : vector<16x32xf32> to vector<16x32xbf16>
    %c0_9 = arith.constant 0 : index
    %c0_10 = arith.constant 0 : index
    %26 = vector.load %arg4[%c0_9, %c0_10] : memref<32x100xbf16, #tpu.memory_space<vmem>>, vector<32x100xbf16>
    %cst_11 = arith.constant dense<0.000000e+00> : vector<16x100xf32>
    %27 = tpu.matmul %25, %26, %cst_11 {dimension_numbers = #tpu.dot_dimension_numbers<[1], [0], [0], [1], [0, 0, 1, 1], [], []>} : vector<16x32xbf16>, vector<32x100xbf16>, vector<16x100xf32> -> vector<16x100xf32>
    %c0_12 = arith.constant 0 : index
    %c0_13 = arith.constant 0 : index
    %28 = vector.load %arg5[%c0_12, %c0_13] : memref<1x100xf32, #tpu.memory_space<vmem>>, vector<1x100xf32>
    %29 = vector.broadcast %28 : vector<1x100xf32> to vector<16x100xf32>
    %30 = arith.addf %27, %29 : vector<16x100xf32>
    %c0_14 = arith.constant 0 : index
    %c0_15 = arith.constant 0 : index
    %31 = vector.load %arg6[%c0_14, %c0_15] : memref<16x100xf32, #tpu.memory_space<vmem>>, vector<16x100xf32>
    tpu.vector_store %arg6[%c0_14, %c0_15], %30 {strides = array<i32>} : memref<16x100xf32, #tpu.memory_space<vmem>>, vector<16x100xf32>,
    return
  }
  func.func @transform_0(%arg0: i32) -> (i32, i32) {
    %c0_i32 = arith.constant 0 : i32
    %c0_i32_0 = arith.constant 0 : i32
    return %arg0, %c0_i32 : i32, i32
  }
  func.func @transform_1(%arg0: i32) -> (i32, i32) {
    %c0_i32 = arith.constant 0 : i32
    %c0_i32_0 = arith.constant 0 : i32
    %c0_i32_1 = arith.constant 0 : i32
    return %c0_i32, %c0_i32_0 : i32, i32
  }
  func.func @transform_2(%arg0: i32) -> (i32, i32) {
    %c0_i32 = arith.constant 0 : i32
    %c0_i32_0 = arith.constant 0 : i32
    %c0_i32_1 = arith.constant 0 : i32
    return %c0_i32, %c0_i32_0 : i32, i32
  }
  func.func @transform_3(%arg0: i32) -> (i32, i32) {
    %c0_i32 = arith.constant 0 : i32
    %c0_i32_0 = arith.constant 0 : i32
    %c0_i32_1 = arith.constant 0 : i32
    return %c0_i32, %c0_i32_0 : i32, i32
  }
  func.func @transform_4(%arg0: i32) -> (i32, i32) {
    %c0_i32 = arith.constant 0 : i32
    %c0_i32_0 = arith.constant 0 : i32
    %c0_i32_1 = arith.constant 0 : i32
    return %c0_i32, %c0_i32_0 : i32, i32
  }
  func.func @transform_5(%arg0: i32) -> (i32, i32) {
    %c0_i32 = arith.constant 0 : i32
    %c0_i32_0 = arith.constant 0 : i32
    return %arg0, %c0_i32 : i32, i32
  }
}

module attributes {stable_mosaic.version = 11 : i64} {
  func.func @_we_kernel(%arg0: i32, %arg1: memref<32x16xf32, #tpu.memory_space<vmem>>, %arg2: memref<32x3xf32, #tpu.memory_space<vmem>>, %arg3: memref<1x16xf32, #tpu.memory_space<vmem>>, %arg4: memref<1x16xf32, #tpu.memory_space<vmem>>, %arg5: memref<3x3xbf16, #tpu.memory_space<vmem>>, %arg6: memref<16x32xbf16, #tpu.memory_space<vmem>>, %arg7: memref<1x32xbf16, #tpu.memory_space<vmem>>, %arg8: memref<1x32xf32, #tpu.memory_space<vmem>>, %arg9: memref<3x3xbf16, #tpu.memory_space<vmem>>, %arg10: memref<32x1xbf16, #tpu.memory_space<vmem>>, %arg11: memref<1x1xf32, #tpu.memory_space<vmem>>, %arg12: memref<32x32xf32, #tpu.memory_space<vmem>>, %arg13: memref<32x3xf32, #tpu.memory_space<vmem>>) attributes {dimension_semantics = [#tpu.dimension_semantics<parallel>], iteration_bounds = array<i64: 2>, scalar_prefetch = 0 : i64, scratch_operands = 0 : i64, tpu.core_type = #tpu.core_type<tc>, window_params = [{transform_indices = @transform_0, window_bounds = array<i64: 32, 16>}, {transform_indices = @transform_1, window_bounds = array<i64: 32, 3>}, {pipeline_mode = #tpu.pipeline_mode<synchronous>, transform_indices = @transform_2, window_bounds = array<i64: 1, 16>}, {pipeline_mode = #tpu.pipeline_mode<synchronous>, transform_indices = @transform_3, window_bounds = array<i64: 1, 16>}, {pipeline_mode = #tpu.pipeline_mode<synchronous>, transform_indices = @transform_4, window_bounds = array<i64: 3, 3>}, {pipeline_mode = #tpu.pipeline_mode<synchronous>, transform_indices = @transform_5, window_bounds = array<i64: 16, 32>}, {pipeline_mode = #tpu.pipeline_mode<synchronous>, transform_indices = @transform_6, window_bounds = array<i64: 1, 32>}, {pipeline_mode = #tpu.pipeline_mode<synchronous>, transform_indices = @transform_7, window_bounds = array<i64: 1, 32>}, {pipeline_mode = #tpu.pipeline_mode<synchronous>, transform_indices = @transform_8, window_bounds = array<i64: 3, 3>}, {pipeline_mode = #tpu.pipeline_mode<synchronous>, transform_indices = @transform_9, window_bounds = array<i64: 32, 1>}, {pipeline_mode = #tpu.pipeline_mode<synchronous>, transform_indices = @transform_10, window_bounds = array<i64: 1, 1>}, {transform_indices = @transform_11, window_bounds = array<i64: 32, 32>}, {transform_indices = @transform_12, window_bounds = array<i64: 32, 3>}]} {
    %c0 = arith.constant 0 : index
    %c0_0 = arith.constant 0 : index
    %0 = vector.load %arg5[%c0, %c0_0] : memref<3x3xbf16, #tpu.memory_space<vmem>>, vector<3x3xbf16>
    %c0_1 = arith.constant 0 : index
    %c0_2 = arith.constant 0 : index
    %1 = vector.load %arg6[%c0_1, %c0_2] : memref<16x32xbf16, #tpu.memory_space<vmem>>, vector<16x32xbf16>
    %c0_3 = arith.constant 0 : index
    %c0_4 = arith.constant 0 : index
    %2 = vector.load %arg7[%c0_3, %c0_4] : memref<1x32xbf16, #tpu.memory_space<vmem>>, vector<1x32xbf16>
    %c0_5 = arith.constant 0 : index
    %c0_6 = arith.constant 0 : index
    %3 = vector.load %arg8[%c0_5, %c0_6] : memref<1x32xf32, #tpu.memory_space<vmem>>, vector<1x32xf32>
    %c0_7 = arith.constant 0 : index
    %c0_8 = arith.constant 0 : index
    %4 = vector.load %arg9[%c0_7, %c0_8] : memref<3x3xbf16, #tpu.memory_space<vmem>>, vector<3x3xbf16>
    %c0_9 = arith.constant 0 : index
    %c0_10 = arith.constant 0 : index
    %5 = vector.load %arg10[%c0_9, %c0_10] : memref<32x1xbf16, #tpu.memory_space<vmem>>, vector<32x1xbf16>
    %c0_11 = arith.constant 0 : index
    %c0_12 = arith.constant 0 : index
    %6 = vector.load %arg11[%c0_11, %c0_12] : memref<1x1xf32, #tpu.memory_space<vmem>>, vector<1x1xf32>
    %c0_13 = arith.constant 0 : index
    %c0_14 = arith.constant 0 : index
    %7 = vector.load %arg1[%c0_13, %c0_14] : memref<32x16xf32, #tpu.memory_space<vmem>>, vector<32x16xf32>
    %c0_15 = arith.constant 0 : index
    %c0_16 = arith.constant 0 : index
    %8 = vector.load %arg3[%c0_15, %c0_16] : memref<1x16xf32, #tpu.memory_space<vmem>>, vector<1x16xf32>
    %c0_17 = arith.constant 0 : index
    %c0_18 = arith.constant 0 : index
    %9 = vector.load %arg4[%c0_17, %c0_18] : memref<1x16xf32, #tpu.memory_space<vmem>>, vector<1x16xf32>
    %cst = arith.constant dense<0.000000e+00> : vector<32xf32>
    %10 = vector.multi_reduction <add>, %7, %cst [1] : vector<32x16xf32> to vector<32xf32>
    %11 = vector.shape_cast %10 : vector<32xf32> to vector<32x1xf32>
    %cst_19 = arith.constant 1.600000e+01 : f32
    %12 = vector.broadcast %cst_19 : f32 to vector<32x1xf32>
    %13 = arith.divf %11, %12 : vector<32x1xf32>
    %14 = vector.broadcast %13 : vector<32x1xf32> to vector<32x16xf32>
    %15 = arith.subf %7, %14 : vector<32x16xf32>
    %16 = arith.mulf %15, %15 : vector<32x16xf32>
    %cst_20 = arith.constant dense<0.000000e+00> : vector<32xf32>
    %17 = vector.multi_reduction <add>, %16, %cst_20 [1] : vector<32x16xf32> to vector<32xf32>
    %18 = vector.shape_cast %17 : vector<32xf32> to vector<32x1xf32>
    %cst_21 = arith.constant 1.600000e+01 : f32
    %19 = vector.broadcast %cst_21 : f32 to vector<32x1xf32>
    %20 = arith.divf %18, %19 : vector<32x1xf32>
    %21 = vector.broadcast %13 : vector<32x1xf32> to vector<32x16xf32>
    %22 = arith.subf %7, %21 : vector<32x16xf32>
    %cst_22 = arith.constant 9.99999974E-6 : f32
    %23 = vector.broadcast %cst_22 : f32 to vector<32x1xf32>
    %24 = arith.addf %20, %23 : vector<32x1xf32>
    %25 = math.rsqrt %24 : vector<32x1xf32>
    %26 = vector.broadcast %25 : vector<32x1xf32> to vector<32x16xf32>
    %27 = arith.mulf %22, %26 : vector<32x16xf32>
    %28 = vector.broadcast %8 : vector<1x16xf32> to vector<32x16xf32>
    %29 = arith.mulf %27, %28 : vector<32x16xf32>
    %30 = vector.broadcast %9 : vector<1x16xf32> to vector<32x16xf32>
    %31 = arith.addf %29, %30 : vector<32x16xf32>
    %c0_23 = arith.constant 0 : index
    %c0_24 = arith.constant 0 : index
    %32 = vector.load %arg2[%c0_23, %c0_24] : memref<32x3xf32, #tpu.memory_space<vmem>>, vector<32x3xf32>
    %33 = arith.mulf %32, %32 : vector<32x3xf32>
    %34 = vector.extract_strided_slice %33 {offsets = [0, 0], sizes = [32, 1], strides = [1, 1]} : vector<32x3xf32> to vector<32x1xf32>
    %35 = vector.extract_strided_slice %33 {offsets = [0, 1], sizes = [32, 1], strides = [1, 1]} : vector<32x3xf32> to vector<32x1xf32>
    %36 = arith.addf %34, %35 : vector<32x1xf32>
    %37 = vector.extract_strided_slice %33 {offsets = [0, 2], sizes = [32, 1], strides = [1, 1]} : vector<32x3xf32> to vector<32x1xf32>
    %38 = arith.addf %36, %37 : vector<32x1xf32>
    %cst_25 = arith.constant 9.99999993E-9 : f32
    %39 = vector.broadcast %cst_25 : f32 to vector<32x1xf32>
    %40 = arith.maximumf %38, %39 : vector<32x1xf32>
    %cst_26 = arith.constant dense<0.000000e+00> : vector<32xf32>
    %41 = vector.multi_reduction <add>, %40, %cst_26 [1] : vector<32x1xf32> to vector<32xf32>
    %42 = vector.shape_cast %41 : vector<32xf32> to vector<32x1xf32>
    %cst_27 = arith.constant 1.000000e+00 : f32
    %43 = vector.broadcast %cst_27 : f32 to vector<32x1xf32>
    %44 = arith.divf %42, %43 : vector<32x1xf32>
    %45 = math.rsqrt %44 : vector<32x1xf32>
    %46 = vector.broadcast %45 : vector<32x1xf32> to vector<32x3xf32>
    %47 = arith.mulf %32, %46 : vector<32x3xf32>
    %48 = arith.truncf %47 : vector<32x3xf32> to vector<32x3xbf16>
    %cst_28 = arith.constant dense<0.000000e+00> : vector<32x3xf32>
    %49 = tpu.matmul %48, %0, %cst_28 {dimension_numbers = #tpu.dot_dimension_numbers<[1], [0], [0], [1], [0, 0, 1, 1], [], []>} : vector<32x3xbf16>, vector<3x3xbf16>, vector<32x3xf32> -> vector<32x3xf32>
    %50 = arith.mulf %49, %49 : vector<32x3xf32>
    %51 = vector.extract_strided_slice %50 {offsets = [0, 0], sizes = [32, 1], strides = [1, 1]} : vector<32x3xf32> to vector<32x1xf32>
    %52 = vector.extract_strided_slice %50 {offsets = [0, 1], sizes = [32, 1], strides = [1, 1]} : vector<32x3xf32> to vector<32x1xf32>
    %53 = arith.addf %51, %52 : vector<32x1xf32>
    %54 = vector.extract_strided_slice %50 {offsets = [0, 2], sizes = [32, 1], strides = [1, 1]} : vector<32x3xf32> to vector<32x1xf32>
    %55 = arith.addf %53, %54 : vector<32x1xf32>
    %cst_29 = arith.constant 9.99999993E-9 : f32
    %56 = vector.broadcast %cst_29 : f32 to vector<32x1xf32>
    %57 = arith.maximumf %55, %56 : vector<32x1xf32>
    %58 = math.sqrt %57 : vector<32x1xf32>
    %59 = arith.truncf %31 : vector<32x16xf32> to vector<32x16xbf16>
    %cst_30 = arith.constant dense<0.000000e+00> : vector<32x32xf32>
    %60 = tpu.matmul %59, %1, %cst_30 {dimension_numbers = #tpu.dot_dimension_numbers<[1], [0], [0], [1], [0, 0, 1, 1], [], []>} : vector<32x16xbf16>, vector<16x32xbf16>, vector<32x32xf32> -> vector<32x32xf32>
    %61 = arith.truncf %58 : vector<32x1xf32> to vector<32x1xbf16>
    %cst_31 = arith.constant dense<0.000000e+00> : vector<32x32xf32>
    %62 = tpu.matmul %61, %2, %cst_31 {dimension_numbers = #tpu.dot_dimension_numbers<[1], [0], [0], [1], [0, 0, 1, 1], [], []>} : vector<32x1xbf16>, vector<1x32xbf16>, vector<32x32xf32> -> vector<32x32xf32>
    %63 = arith.addf %60, %62 : vector<32x32xf32>
    %64 = vector.broadcast %3 : vector<1x32xf32> to vector<32x32xf32>
    %65 = arith.addf %63, %64 : vector<32x32xf32>
    %66 = arith.truncf %49 : vector<32x3xf32> to vector<32x3xbf16>
    %cst_32 = arith.constant dense<0.000000e+00> : vector<32x3xf32>
    %67 = tpu.matmul %66, %4, %cst_32 {dimension_numbers = #tpu.dot_dimension_numbers<[1], [0], [0], [1], [0, 0, 1, 1], [], []>} : vector<32x3xbf16>, vector<3x3xbf16>, vector<32x3xf32> -> vector<32x3xf32>
    %68 = arith.truncf %65 : vector<32x32xf32> to vector<32x32xbf16>
    %cst_33 = arith.constant dense<0.000000e+00> : vector<32x1xf32>
    %69 = tpu.matmul %68, %5, %cst_33 {dimension_numbers = #tpu.dot_dimension_numbers<[1], [0], [0], [1], [0, 0, 1, 1], [], []>} : vector<32x32xbf16>, vector<32x1xbf16>, vector<32x1xf32> -> vector<32x1xf32>
    %70 = vector.broadcast %6 : vector<1x1xf32> to vector<32x1xf32>
    %71 = arith.addf %69, %70 : vector<32x1xf32>
    %72 = arith.negf %71 : vector<32x1xf32>
    %73 = math.exp %72 : vector<32x1xf32>
    %cst_34 = arith.constant 1.000000e+00 : f32
    %74 = vector.broadcast %cst_34 : f32 to vector<32x1xf32>
    %75 = arith.addf %74, %73 : vector<32x1xf32>
    %76 = arith.divf %74, %75 : vector<32x1xf32>
    %77 = tpu.concatenate %76, %76, %76 in 1 : vector<32x1xf32>, vector<32x1xf32>, vector<32x1xf32> -> vector<32x3xf32>
    %78 = arith.mulf %67, %77 : vector<32x3xf32>
    %c0_35 = arith.constant 0 : index
    %c0_36 = arith.constant 0 : index
    %79 = vector.load %arg12[%c0_35, %c0_36] : memref<32x32xf32, #tpu.memory_space<vmem>>, vector<32x32xf32>
    tpu.vector_store %arg12[%c0_35, %c0_36], %65 {strides = array<i32>} : memref<32x32xf32, #tpu.memory_space<vmem>>, vector<32x32xf32>,
    %c0_37 = arith.constant 0 : index
    %c0_38 = arith.constant 0 : index
    %80 = vector.load %arg13[%c0_37, %c0_38] : memref<32x3xf32, #tpu.memory_space<vmem>>, vector<32x3xf32>
    tpu.vector_store %arg13[%c0_37, %c0_38], %78 {strides = array<i32>} : memref<32x3xf32, #tpu.memory_space<vmem>>, vector<32x3xf32>,
    return
  }
  func.func @transform_0(%arg0: i32) -> (i32, i32) {
    %c0_i32 = arith.constant 0 : i32
    %c0_i32_0 = arith.constant 0 : i32
    return %arg0, %c0_i32 : i32, i32
  }
  func.func @transform_1(%arg0: i32) -> (i32, i32) {
    %c0_i32 = arith.constant 0 : i32
    %c0_i32_0 = arith.constant 0 : i32
    return %arg0, %c0_i32 : i32, i32
  }
  func.func @transform_2(%arg0: i32) -> (i32, i32) {
    %c0_i32 = arith.constant 0 : i32
    %c0_i32_0 = arith.constant 0 : i32
    %c0_i32_1 = arith.constant 0 : i32
    return %c0_i32, %c0_i32_0 : i32, i32
  }
  func.func @transform_3(%arg0: i32) -> (i32, i32) {
    %c0_i32 = arith.constant 0 : i32
    %c0_i32_0 = arith.constant 0 : i32
    %c0_i32_1 = arith.constant 0 : i32
    return %c0_i32, %c0_i32_0 : i32, i32
  }
  func.func @transform_4(%arg0: i32) -> (i32, i32) {
    %c0_i32 = arith.constant 0 : i32
    %c0_i32_0 = arith.constant 0 : i32
    %c0_i32_1 = arith.constant 0 : i32
    return %c0_i32, %c0_i32_0 : i32, i32
  }
  func.func @transform_5(%arg0: i32) -> (i32, i32) {
    %c0_i32 = arith.constant 0 : i32
    %c0_i32_0 = arith.constant 0 : i32
    %c0_i32_1 = arith.constant 0 : i32
    return %c0_i32, %c0_i32_0 : i32, i32
  }
  func.func @transform_6(%arg0: i32) -> (i32, i32) {
    %c0_i32 = arith.constant 0 : i32
    %c0_i32_0 = arith.constant 0 : i32
    %c0_i32_1 = arith.constant 0 : i32
    return %c0_i32, %c0_i32_0 : i32, i32
  }
  func.func @transform_7(%arg0: i32) -> (i32, i32) {
    %c0_i32 = arith.constant 0 : i32
    %c0_i32_0 = arith.constant 0 : i32
    %c0_i32_1 = arith.constant 0 : i32
    return %c0_i32, %c0_i32_0 : i32, i32
  }
  func.func @transform_8(%arg0: i32) -> (i32, i32) {
    %c0_i32 = arith.constant 0 : i32
    %c0_i32_0 = arith.constant 0 : i32
    %c0_i32_1 = arith.constant 0 : i32
    return %c0_i32, %c0_i32_0 : i32, i32
  }
  func.func @transform_9(%arg0: i32) -> (i32, i32) {
    %c0_i32 = arith.constant 0 : i32
    %c0_i32_0 = arith.constant 0 : i32
    %c0_i32_1 = arith.constant 0 : i32
    return %c0_i32, %c0_i32_0 : i32, i32
  }
  func.func @transform_10(%arg0: i32) -> (i32, i32) {
    %c0_i32 = arith.constant 0 : i32
    %c0_i32_0 = arith.constant 0 : i32
    %c0_i32_1 = arith.constant 0 : i32
    return %c0_i32, %c0_i32_0 : i32, i32
  }
  func.func @transform_11(%arg0: i32) -> (i32, i32) {
    %c0_i32 = arith.constant 0 : i32
    %c0_i32_0 = arith.constant 0 : i32
    return %arg0, %c0_i32 : i32, i32
  }
  func.func @transform_12(%arg0: i32) -> (i32, i32) {
    %c0_i32 = arith.constant 0 : i32
    %c0_i32_0 = arith.constant 0 : i32
    return %arg0, %c0_i32 : i32, i32
  }
}

module attributes {stable_mosaic.version = 11 : i64} {
  func.func @_msg_kernel(%arg0: i32, %arg1: memref<32x100xf32, #tpu.memory_space<vmem>>, %arg2: memref<32x32xf32, #tpu.memory_space<vmem>>, %arg3: memref<32x100xf32, #tpu.memory_space<vmem>>, %arg4: memref<32x48xf32, #tpu.memory_space<vmem>>, %arg5: memref<32x3xf32, #tpu.memory_space<vmem>>, %arg6: memref<32x48xf32, #tpu.memory_space<vmem>>, %arg7: memref<32x1xf32, #tpu.memory_space<vmem>>, %arg8: memref<99x99xbf16, #tpu.memory_space<vmem>>, %arg9: memref<232x100xbf16, #tpu.memory_space<vmem>>, %arg10: memref<33x100xbf16, #tpu.memory_space<vmem>>, %arg11: memref<1x100xf32, #tpu.memory_space<vmem>>, %arg12: memref<99x48xbf16, #tpu.memory_space<vmem>>, %arg13: memref<100x16xbf16, #tpu.memory_space<vmem>>, %arg14: memref<1x16xf32, #tpu.memory_space<vmem>>, %arg15: memref<48x48xbf16, #tpu.memory_space<vmem>>, %arg16: memref<100x100xbf16, #tpu.memory_space<vmem>>, %arg17: memref<16x100xbf16, #tpu.memory_space<vmem>>, %arg18: memref<1x100xf32, #tpu.memory_space<vmem>>, %arg19: memref<48x48xbf16, #tpu.memory_space<vmem>>, %arg20: memref<100x16xbf16, #tpu.memory_space<vmem>>, %arg21: memref<1x16xf32, #tpu.memory_space<vmem>>, %arg22: memref<48x48xbf16, #tpu.memory_space<vmem>>, %arg23: memref<100x100xbf16, #tpu.memory_space<vmem>>, %arg24: memref<16x100xbf16, #tpu.memory_space<vmem>>, %arg25: memref<1x100xf32, #tpu.memory_space<vmem>>, %arg26: memref<48x48xbf16, #tpu.memory_space<vmem>>, %arg27: memref<100x16xbf16, #tpu.memory_space<vmem>>, %arg28: memref<1x16xf32, #tpu.memory_space<vmem>>, %arg29: memref<32x100xf32, #tpu.memory_space<vmem>>, %arg30: memref<32x48xf32, #tpu.memory_space<vmem>>) attributes {dimension_semantics = [#tpu.dimension_semantics<parallel>], iteration_bounds = array<i64: 2>, scalar_prefetch = 0 : i64, scratch_operands = 0 : i64, tpu.core_type = #tpu.core_type<tc>, window_params = [{transform_indices = @transform_0, window_bounds = array<i64: 32, 100>}, {transform_indices = @transform_1, window_bounds = array<i64: 32, 32>}, {transform_indices = @transform_2, window_bounds = array<i64: 32, 100>}, {transform_indices = @transform_3, window_bounds = array<i64: 32, 48>}, {transform_indices = @transform_4, window_bounds = array<i64: 32, 3>}, {transform_indices = @transform_5, window_bounds = array<i64: 32, 48>}, {transform_indices = @transform_6, window_bounds = array<i64: 32, 1>}, {pipeline_mode = #tpu.pipeline_mode<synchronous>, transform_indices = @transform_7, window_bounds = array<i64: 99, 99>}, {pipeline_mode = #tpu.pipeline_mode<synchronous>, transform_indices = @transform_8, window_bounds = array<i64: 232, 100>}, {pipeline_mode = #tpu.pipeline_mode<synchronous>, transform_indices = @transform_9, window_bounds = array<i64: 33, 100>}, {pipeline_mode = #tpu.pipeline_mode<synchronous>, transform_indices = @transform_10, window_bounds = array<i64: 1, 100>}, {pipeline_mode = #tpu.pipeline_mode<synchronous>, transform_indices = @transform_11, window_bounds = array<i64: 99, 48>}, {pipeline_mode = #tpu.pipeline_mode<synchronous>, transform_indices = @transform_12, window_bounds = array<i64: 100, 16>}, {pipeline_mode = #tpu.pipeline_mode<synchronous>, transform_indices = @transform_13, window_bounds = array<i64: 1, 16>}, {pipeline_mode = #tpu.pipeline_mode<synchronous>, transform_indices = @transform_14, window_bounds = array<i64: 48, 48>}, {pipeline_mode = #tpu.pipeline_mode<synchronous>, transform_indices = @transform_15, window_bounds = array<i64: 100, 100>}, {pipeline_mode = #tpu.pipeline_mode<synchronous>, transform_indices = @transform_16, window_bounds = array<i64: 16, 100>}, {pipeline_mode = #tpu.pipeline_mode<synchronous>, transform_indices = @transform_17, window_bounds = array<i64: 1, 100>}, {pipeline_mode = #tpu.pipeline_mode<synchronous>, transform_indices = @transform_18, window_bounds = array<i64: 48, 48>}, {pipeline_mode = #tpu.pipeline_mode<synchronous>, transform_indices = @transform_19, window_bounds = array<i64: 100, 16>}, {pipeline_mode = #tpu.pipeline_mode<synchronous>, transform_indices = @transform_20, window_bounds = array<i64: 1, 16>}, {pipeline_mode = #tpu.pipeline_mode<synchronous>, transform_indices = @transform_21, window_bounds = array<i64: 48, 48>}, {pipeline_mode = #tpu.pipeline_mode<synchronous>, transform_indices = @transform_22, window_bounds = array<i64: 100, 100>}, {pipeline_mode = #tpu.pipeline_mode<synchronous>, transform_indices = @transform_23, window_bounds = array<i64: 16, 100>}, {pipeline_mode = #tpu.pipeline_mode<synchronous>, transform_indices = @transform_24, window_bounds = array<i64: 1, 100>}, {pipeline_mode = #tpu.pipeline_mode<synchronous>, transform_indices = @transform_25, window_bounds = array<i64: 48, 48>}, {pipeline_mode = #tpu.pipeline_mode<synchronous>, transform_indices = @transform_26, window_bounds = array<i64: 100, 16>}, {pipeline_mode = #tpu.pipeline_mode<synchronous>, transform_indices = @transform_27, window_bounds = array<i64: 1, 16>}, {transform_indices = @transform_28, window_bounds = array<i64: 32, 100>}, {transform_indices = @transform_29, window_bounds = array<i64: 32, 48>}]} {
    %c0 = arith.constant 0 : index
    %c0_0 = arith.constant 0 : index
    %0 = vector.load %arg8[%c0, %c0_0] : memref<99x99xbf16, #tpu.memory_space<vmem>>, vector<99x99xbf16>
    %c0_1 = arith.constant 0 : index
    %c0_2 = arith.constant 0 : index
    %1 = vector.load %arg9[%c0_1, %c0_2] : memref<232x100xbf16, #tpu.memory_space<vmem>>, vector<232x100xbf16>
    %c0_3 = arith.constant 0 : index
    %c0_4 = arith.constant 0 : index
    %2 = vector.load %arg10[%c0_3, %c0_4] : memref<33x100xbf16, #tpu.memory_space<vmem>>, vector<33x100xbf16>
    %c0_5 = arith.constant 0 : index
    %c0_6 = arith.constant 0 : index
    %3 = vector.load %arg11[%c0_5, %c0_6] : memref<1x100xf32, #tpu.memory_space<vmem>>, vector<1x100xf32>
    %c0_7 = arith.constant 0 : index
    %c0_8 = arith.constant 0 : index
    %4 = vector.load %arg12[%c0_7, %c0_8] : memref<99x48xbf16, #tpu.memory_space<vmem>>, vector<99x48xbf16>
    %c0_9 = arith.constant 0 : index
    %c0_10 = arith.constant 0 : index
    %5 = vector.load %arg13[%c0_9, %c0_10] : memref<100x16xbf16, #tpu.memory_space<vmem>>, vector<100x16xbf16>
    %c0_11 = arith.constant 0 : index
    %c0_12 = arith.constant 0 : index
    %6 = vector.load %arg14[%c0_11, %c0_12] : memref<1x16xf32, #tpu.memory_space<vmem>>, vector<1x16xf32>
    %c0_13 = arith.constant 0 : index
    %c0_14 = arith.constant 0 : index
    %7 = vector.load %arg15[%c0_13, %c0_14] : memref<48x48xbf16, #tpu.memory_space<vmem>>, vector<48x48xbf16>
    %c0_15 = arith.constant 0 : index
    %c0_16 = arith.constant 0 : index
    %8 = vector.load %arg16[%c0_15, %c0_16] : memref<100x100xbf16, #tpu.memory_space<vmem>>, vector<100x100xbf16>
    %c0_17 = arith.constant 0 : index
    %c0_18 = arith.constant 0 : index
    %9 = vector.load %arg17[%c0_17, %c0_18] : memref<16x100xbf16, #tpu.memory_space<vmem>>, vector<16x100xbf16>
    %c0_19 = arith.constant 0 : index
    %c0_20 = arith.constant 0 : index
    %10 = vector.load %arg18[%c0_19, %c0_20] : memref<1x100xf32, #tpu.memory_space<vmem>>, vector<1x100xf32>
    %c0_21 = arith.constant 0 : index
    %c0_22 = arith.constant 0 : index
    %11 = vector.load %arg19[%c0_21, %c0_22] : memref<48x48xbf16, #tpu.memory_space<vmem>>, vector<48x48xbf16>
    %c0_23 = arith.constant 0 : index
    %c0_24 = arith.constant 0 : index
    %12 = vector.load %arg20[%c0_23, %c0_24] : memref<100x16xbf16, #tpu.memory_space<vmem>>, vector<100x16xbf16>
    %c0_25 = arith.constant 0 : index
    %c0_26 = arith.constant 0 : index
    %13 = vector.load %arg21[%c0_25, %c0_26] : memref<1x16xf32, #tpu.memory_space<vmem>>, vector<1x16xf32>
    %c0_27 = arith.constant 0 : index
    %c0_28 = arith.constant 0 : index
    %14 = vector.load %arg22[%c0_27, %c0_28] : memref<48x48xbf16, #tpu.memory_space<vmem>>, vector<48x48xbf16>
    %c0_29 = arith.constant 0 : index
    %c0_30 = arith.constant 0 : index
    %15 = vector.load %arg23[%c0_29, %c0_30] : memref<100x100xbf16, #tpu.memory_space<vmem>>, vector<100x100xbf16>
    %c0_31 = arith.constant 0 : index
    %c0_32 = arith.constant 0 : index
    %16 = vector.load %arg24[%c0_31, %c0_32] : memref<16x100xbf16, #tpu.memory_space<vmem>>, vector<16x100xbf16>
    %c0_33 = arith.constant 0 : index
    %c0_34 = arith.constant 0 : index
    %17 = vector.load %arg25[%c0_33, %c0_34] : memref<1x100xf32, #tpu.memory_space<vmem>>, vector<1x100xf32>
    %c0_35 = arith.constant 0 : index
    %c0_36 = arith.constant 0 : index
    %18 = vector.load %arg26[%c0_35, %c0_36] : memref<48x48xbf16, #tpu.memory_space<vmem>>, vector<48x48xbf16>
    %c0_37 = arith.constant 0 : index
    %c0_38 = arith.constant 0 : index
    %19 = vector.load %arg27[%c0_37, %c0_38] : memref<100x16xbf16, #tpu.memory_space<vmem>>, vector<100x16xbf16>
    %c0_39 = arith.constant 0 : index
    %c0_40 = arith.constant 0 : index
    %20 = vector.load %arg28[%c0_39, %c0_40] : memref<1x16xf32, #tpu.memory_space<vmem>>, vector<1x16xf32>
    %c0_41 = arith.constant 0 : index
    %c0_42 = arith.constant 0 : index
    %21 = vector.load %arg1[%c0_41, %c0_42] : memref<32x100xf32, #tpu.memory_space<vmem>>, vector<32x100xf32>
    %c0_43 = arith.constant 0 : index
    %c0_44 = arith.constant 0 : index
    %22 = vector.load %arg2[%c0_43, %c0_44] : memref<32x32xf32, #tpu.memory_space<vmem>>, vector<32x32xf32>
    %c0_45 = arith.constant 0 : index
    %c0_46 = arith.constant 0 : index
    %23 = vector.load %arg3[%c0_45, %c0_46] : memref<32x100xf32, #tpu.memory_space<vmem>>, vector<32x100xf32>
    %24 = tpu.concatenate %21, %22, %23 in 1 : vector<32x100xf32>, vector<32x32xf32>, vector<32x100xf32> -> vector<32x232xf32>
    %c0_47 = arith.constant 0 : index
    %c0_48 = arith.constant 0 : index
    %25 = vector.load %arg4[%c0_47, %c0_48] : memref<32x48xf32, #tpu.memory_space<vmem>>, vector<32x48xf32>
    %c0_49 = arith.constant 0 : index
    %c0_50 = arith.constant 0 : index
    %26 = vector.load %arg5[%c0_49, %c0_50] : memref<32x3xf32, #tpu.memory_space<vmem>>, vector<32x3xf32>
    %c0_51 = arith.constant 0 : index
    %c0_52 = arith.constant 0 : index
    %27 = vector.load %arg6[%c0_51, %c0_52] : memref<32x48xf32, #tpu.memory_space<vmem>>, vector<32x48xf32>
    %28 = tpu.concatenate %25, %26, %27 in 1 : vector<32x48xf32>, vector<32x3xf32>, vector<32x48xf32> -> vector<32x99xf32>
    %29 = arith.truncf %28 : vector<32x99xf32> to vector<32x99xbf16>
    %cst = arith.constant dense<0.000000e+00> : vector<32x99xf32>
    %30 = tpu.matmul %29, %0, %cst {dimension_numbers = #tpu.dot_dimension_numbers<[1], [0], [0], [1], [0, 0, 1, 1], [], []>} : vector<32x99xbf16>, vector<99x99xbf16>, vector<32x99xf32> -> vector<32x99xf32>
    %31 = arith.mulf %30, %30 : vector<32x99xf32>
    %32 = vector.extract_strided_slice %31 {offsets = [0, 0], sizes = [32, 33], strides = [1, 1]} : vector<32x99xf32> to vector<32x33xf32>
    %33 = vector.extract_strided_slice %31 {offsets = [0, 33], sizes = [32, 33], strides = [1, 1]} : vector<32x99xf32> to vector<32x33xf32>
    %34 = arith.addf %32, %33 : vector<32x33xf32>
    %35 = vector.extract_strided_slice %31 {offsets = [0, 66], sizes = [32, 33], strides = [1, 1]} : vector<32x99xf32> to vector<32x33xf32>
    %36 = arith.addf %34, %35 : vector<32x33xf32>
    %cst_53 = arith.constant 9.99999993E-9 : f32
    %37 = vector.broadcast %cst_53 : f32 to vector<32x33xf32>
    %38 = arith.maximumf %36, %37 : vector<32x33xf32>
    %39 = math.sqrt %38 : vector<32x33xf32>
    %40 = arith.truncf %24 : vector<32x232xf32> to vector<32x232xbf16>
    %cst_54 = arith.constant dense<0.000000e+00> : vector<32x100xf32>
    %41 = tpu.matmul %40, %1, %cst_54 {dimension_numbers = #tpu.dot_dimension_numbers<[1], [0], [0], [1], [0, 0, 1, 1], [], []>} : vector<32x232xbf16>, vector<232x100xbf16>, vector<32x100xf32> -> vector<32x100xf32>
    %42 = arith.truncf %39 : vector<32x33xf32> to vector<32x33xbf16>
    %cst_55 = arith.constant dense<0.000000e+00> : vector<32x100xf32>
    %43 = tpu.matmul %42, %2, %cst_55 {dimension_numbers = #tpu.dot_dimension_numbers<[1], [0], [0], [1], [0, 0, 1, 1], [], []>} : vector<32x33xbf16>, vector<33x100xbf16>, vector<32x100xf32> -> vector<32x100xf32>
    %44 = arith.addf %41, %43 : vector<32x100xf32>
    %45 = vector.broadcast %3 : vector<1x100xf32> to vector<32x100xf32>
    %46 = arith.addf %44, %45 : vector<32x100xf32>
    %47 = arith.truncf %30 : vector<32x99xf32> to vector<32x99xbf16>
    %cst_56 = arith.constant dense<0.000000e+00> : vector<32x48xf32>
    %48 = tpu.matmul %47, %4, %cst_56 {dimension_numbers = #tpu.dot_dimension_numbers<[1], [0], [0], [1], [0, 0, 1, 1], [], []>} : vector<32x99xbf16>, vector<99x48xbf16>, vector<32x48xf32> -> vector<32x48xf32>
    %49 = arith.truncf %46 : vector<32x100xf32> to vector<32x100xbf16>
    %cst_57 = arith.constant dense<0.000000e+00> : vector<32x16xf32>
    %50 = tpu.matmul %49, %5, %cst_57 {dimension_numbers = #tpu.dot_dimension_numbers<[1], [0], [0], [1], [0, 0, 1, 1], [], []>} : vector<32x100xbf16>, vector<100x16xbf16>, vector<32x16xf32> -> vector<32x16xf32>
    %51 = vector.broadcast %6 : vector<1x16xf32> to vector<32x16xf32>
    %52 = arith.addf %50, %51 : vector<32x16xf32>
    %53 = arith.negf %52 : vector<32x16xf32>
    %54 = math.exp %53 : vector<32x16xf32>
    %cst_58 = arith.constant 1.000000e+00 : f32
    %55 = vector.broadcast %cst_58 : f32 to vector<32x16xf32>
    %56 = arith.addf %55, %54 : vector<32x16xf32>
    %57 = arith.divf %55, %56 : vector<32x16xf32>
    %58 = tpu.concatenate %57, %57, %57 in 1 : vector<32x16xf32>, vector<32x16xf32>, vector<32x16xf32> -> vector<32x48xf32>
    %59 = arith.mulf %48, %58 : vector<32x48xf32>
    %cst_59 = arith.constant 0.000000e+00 : f32
    %60 = vector.broadcast %cst_59 : f32 to vector<32x100xf32>
    %61 = arith.maximumf %46, %60 : vector<32x100xf32>
    %62 = arith.truncf %59 : vector<32x48xf32> to vector<32x48xbf16>
    %cst_60 = arith.constant dense<0.000000e+00> : vector<32x48xf32>
    %63 = tpu.matmul %62, %7, %cst_60 {dimension_numbers = #tpu.dot_dimension_numbers<[1], [0], [0], [1], [0, 0, 1, 1], [], []>} : vector<32x48xbf16>, vector<48x48xbf16>, vector<32x48xf32> -> vector<32x48xf32>
    %64 = arith.mulf %63, %63 : vector<32x48xf32>
    %65 = vector.extract_strided_slice %64 {offsets = [0, 0], sizes = [32, 16], strides = [1, 1]} : vector<32x48xf32> to vector<32x16xf32>
    %66 = vector.extract_strided_slice %64 {offsets = [0, 16], sizes = [32, 16], strides = [1, 1]} : vector<32x48xf32> to vector<32x16xf32>
    %67 = arith.addf %65, %66 : vector<32x16xf32>
    %68 = vector.extract_strided_slice %64 {offsets = [0, 32], sizes = [32, 16], strides = [1, 1]} : vector<32x48xf32> to vector<32x16xf32>
    %69 = arith.addf %67, %68 : vector<32x16xf32>
    %cst_61 = arith.constant 9.99999993E-9 : f32
    %70 = vector.broadcast %cst_61 : f32 to vector<32x16xf32>
    %71 = arith.maximumf %69, %70 : vector<32x16xf32>
    %72 = math.sqrt %71 : vector<32x16xf32>
    %73 = arith.truncf %61 : vector<32x100xf32> to vector<32x100xbf16>
    %cst_62 = arith.constant dense<0.000000e+00> : vector<32x100xf32>
    %74 = tpu.matmul %73, %8, %cst_62 {dimension_numbers = #tpu.dot_dimension_numbers<[1], [0], [0], [1], [0, 0, 1, 1], [], []>} : vector<32x100xbf16>, vector<100x100xbf16>, vector<32x100xf32> -> vector<32x100xf32>
    %75 = arith.truncf %72 : vector<32x16xf32> to vector<32x16xbf16>
    %cst_63 = arith.constant dense<0.000000e+00> : vector<32x100xf32>
    %76 = tpu.matmul %75, %9, %cst_63 {dimension_numbers = #tpu.dot_dimension_numbers<[1], [0], [0], [1], [0, 0, 1, 1], [], []>} : vector<32x16xbf16>, vector<16x100xbf16>, vector<32x100xf32> -> vector<32x100xf32>
    %77 = arith.addf %74, %76 : vector<32x100xf32>
    %78 = vector.broadcast %10 : vector<1x100xf32> to vector<32x100xf32>
    %79 = arith.addf %77, %78 : vector<32x100xf32>
    %80 = arith.truncf %63 : vector<32x48xf32> to vector<32x48xbf16>
    %cst_64 = arith.constant dense<0.000000e+00> : vector<32x48xf32>
    %81 = tpu.matmul %80, %11, %cst_64 {dimension_numbers = #tpu.dot_dimension_numbers<[1], [0], [0], [1], [0, 0, 1, 1], [], []>} : vector<32x48xbf16>, vector<48x48xbf16>, vector<32x48xf32> -> vector<32x48xf32>
    %82 = arith.truncf %79 : vector<32x100xf32> to vector<32x100xbf16>
    %cst_65 = arith.constant dense<0.000000e+00> : vector<32x16xf32>
    %83 = tpu.matmul %82, %12, %cst_65 {dimension_numbers = #tpu.dot_dimension_numbers<[1], [0], [0], [1], [0, 0, 1, 1], [], []>} : vector<32x100xbf16>, vector<100x16xbf16>, vector<32x16xf32> -> vector<32x16xf32>
    %84 = vector.broadcast %13 : vector<1x16xf32> to vector<32x16xf32>
    %85 = arith.addf %83, %84 : vector<32x16xf32>
    %86 = arith.negf %85 : vector<32x16xf32>
    %87 = math.exp %86 : vector<32x16xf32>
    %cst_66 = arith.constant 1.000000e+00 : f32
    %88 = vector.broadcast %cst_66 : f32 to vector<32x16xf32>
    %89 = arith.addf %88, %87 : vector<32x16xf32>
    %90 = arith.divf %88, %89 : vector<32x16xf32>
    %91 = tpu.concatenate %90, %90, %90 in 1 : vector<32x16xf32>, vector<32x16xf32>, vector<32x16xf32> -> vector<32x48xf32>
    %92 = arith.mulf %81, %91 : vector<32x48xf32>
    %cst_67 = arith.constant 0.000000e+00 : f32
    %93 = vector.broadcast %cst_67 : f32 to vector<32x100xf32>
    %94 = arith.maximumf %79, %93 : vector<32x100xf32>
    %95 = arith.truncf %92 : vector<32x48xf32> to vector<32x48xbf16>
    %cst_68 = arith.constant dense<0.000000e+00> : vector<32x48xf32>
    %96 = tpu.matmul %95, %14, %cst_68 {dimension_numbers = #tpu.dot_dimension_numbers<[1], [0], [0], [1], [0, 0, 1, 1], [], []>} : vector<32x48xbf16>, vector<48x48xbf16>, vector<32x48xf32> -> vector<32x48xf32>
    %97 = arith.mulf %96, %96 : vector<32x48xf32>
    %98 = vector.extract_strided_slice %97 {offsets = [0, 0], sizes = [32, 16], strides = [1, 1]} : vector<32x48xf32> to vector<32x16xf32>
    %99 = vector.extract_strided_slice %97 {offsets = [0, 16], sizes = [32, 16], strides = [1, 1]} : vector<32x48xf32> to vector<32x16xf32>
    %100 = arith.addf %98, %99 : vector<32x16xf32>
    %101 = vector.extract_strided_slice %97 {offsets = [0, 32], sizes = [32, 16], strides = [1, 1]} : vector<32x48xf32> to vector<32x16xf32>
    %102 = arith.addf %100, %101 : vector<32x16xf32>
    %cst_69 = arith.constant 9.99999993E-9 : f32
    %103 = vector.broadcast %cst_69 : f32 to vector<32x16xf32>
    %104 = arith.maximumf %102, %103 : vector<32x16xf32>
    %105 = math.sqrt %104 : vector<32x16xf32>
    %106 = arith.truncf %94 : vector<32x100xf32> to vector<32x100xbf16>
    %cst_70 = arith.constant dense<0.000000e+00> : vector<32x100xf32>
    %107 = tpu.matmul %106, %15, %cst_70 {dimension_numbers = #tpu.dot_dimension_numbers<[1], [0], [0], [1], [0, 0, 1, 1], [], []>} : vector<32x100xbf16>, vector<100x100xbf16>, vector<32x100xf32> -> vector<32x100xf32>
    %108 = arith.truncf %105 : vector<32x16xf32> to vector<32x16xbf16>
    %cst_71 = arith.constant dense<0.000000e+00> : vector<32x100xf32>
    %109 = tpu.matmul %108, %16, %cst_71 {dimension_numbers = #tpu.dot_dimension_numbers<[1], [0], [0], [1], [0, 0, 1, 1], [], []>} : vector<32x16xbf16>, vector<16x100xbf16>, vector<32x100xf32> -> vector<32x100xf32>
    %110 = arith.addf %107, %109 : vector<32x100xf32>
    %111 = vector.broadcast %17 : vector<1x100xf32> to vector<32x100xf32>
    %112 = arith.addf %110, %111 : vector<32x100xf32>
    %113 = arith.truncf %96 : vector<32x48xf32> to vector<32x48xbf16>
    %cst_72 = arith.constant dense<0.000000e+00> : vector<32x48xf32>
    %114 = tpu.matmul %113, %18, %cst_72 {dimension_numbers = #tpu.dot_dimension_numbers<[1], [0], [0], [1], [0, 0, 1, 1], [], []>} : vector<32x48xbf16>, vector<48x48xbf16>, vector<32x48xf32> -> vector<32x48xf32>
    %115 = arith.truncf %112 : vector<32x100xf32> to vector<32x100xbf16>
    %cst_73 = arith.constant dense<0.000000e+00> : vector<32x16xf32>
    %116 = tpu.matmul %115, %19, %cst_73 {dimension_numbers = #tpu.dot_dimension_numbers<[1], [0], [0], [1], [0, 0, 1, 1], [], []>} : vector<32x100xbf16>, vector<100x16xbf16>, vector<32x16xf32> -> vector<32x16xf32>
    %117 = vector.broadcast %20 : vector<1x16xf32> to vector<32x16xf32>
    %118 = arith.addf %116, %117 : vector<32x16xf32>
    %119 = arith.negf %118 : vector<32x16xf32>
    %120 = math.exp %119 : vector<32x16xf32>
    %cst_74 = arith.constant 1.000000e+00 : f32
    %121 = vector.broadcast %cst_74 : f32 to vector<32x16xf32>
    %122 = arith.addf %121, %120 : vector<32x16xf32>
    %123 = arith.divf %121, %122 : vector<32x16xf32>
    %124 = tpu.concatenate %123, %123, %123 in 1 : vector<32x16xf32>, vector<32x16xf32>, vector<32x16xf32> -> vector<32x48xf32>
    %125 = arith.mulf %114, %124 : vector<32x48xf32>
    %c0_75 = arith.constant 0 : index
    %c0_76 = arith.constant 0 : index
    %126 = vector.load %arg7[%c0_75, %c0_76] : memref<32x1xf32, #tpu.memory_space<vmem>>, vector<32x1xf32>
    %127 = vector.broadcast %126 : vector<32x1xf32> to vector<32x100xf32>
    %128 = arith.mulf %112, %127 : vector<32x100xf32>
    %c0_77 = arith.constant 0 : index
    %c0_78 = arith.constant 0 : index
    %129 = vector.load %arg29[%c0_77, %c0_78] : memref<32x100xf32, #tpu.memory_space<vmem>>, vector<32x100xf32>
    tpu.vector_store %arg29[%c0_77, %c0_78], %128 {strides = array<i32>} : memref<32x100xf32, #tpu.memory_space<vmem>>, vector<32x100xf32>,
    %130 = vector.broadcast %126 : vector<32x1xf32> to vector<32x48xf32>
    %131 = arith.mulf %125, %130 : vector<32x48xf32>
    %c0_79 = arith.constant 0 : index
    %c0_80 = arith.constant 0 : index
    %132 = vector.load %arg30[%c0_79, %c0_80] : memref<32x48xf32, #tpu.memory_space<vmem>>, vector<32x48xf32>
    tpu.vector_store %arg30[%c0_79, %c0_80], %131 {strides = array<i32>} : memref<32x48xf32, #tpu.memory_space<vmem>>, vector<32x48xf32>,
    return
  }
  func.func @transform_0(%arg0: i32) -> (i32, i32) {
    %c0_i32 = arith.constant 0 : i32
    %c0_i32_0 = arith.constant 0 : i32
    return %arg0, %c0_i32 : i32, i32
  }
  func.func @transform_1(%arg0: i32) -> (i32, i32) {
    %c0_i32 = arith.constant 0 : i32
    %c0_i32_0 = arith.constant 0 : i32
    return %arg0, %c0_i32 : i32, i32
  }
  func.func @transform_2(%arg0: i32) -> (i32, i32) {
    %c0_i32 = arith.constant 0 : i32
    %c0_i32_0 = arith.constant 0 : i32
    return %arg0, %c0_i32 : i32, i32
  }
  func.func @transform_3(%arg0: i32) -> (i32, i32) {
    %c0_i32 = arith.constant 0 : i32
    %c0_i32_0 = arith.constant 0 : i32
    return %arg0, %c0_i32 : i32, i32
  }
  func.func @transform_4(%arg0: i32) -> (i32, i32) {
    %c0_i32 = arith.constant 0 : i32
    %c0_i32_0 = arith.constant 0 : i32
    return %arg0, %c0_i32 : i32, i32
  }
  func.func @transform_5(%arg0: i32) -> (i32, i32) {
    %c0_i32 = arith.constant 0 : i32
    %c0_i32_0 = arith.constant 0 : i32
    return %arg0, %c0_i32 : i32, i32
  }
  func.func @transform_6(%arg0: i32) -> (i32, i32) {
    %c0_i32 = arith.constant 0 : i32
    %c0_i32_0 = arith.constant 0 : i32
    return %arg0, %c0_i32 : i32, i32
  }
  func.func @transform_7(%arg0: i32) -> (i32, i32) {
    %c0_i32 = arith.constant 0 : i32
    %c0_i32_0 = arith.constant 0 : i32
    %c0_i32_1 = arith.constant 0 : i32
    return %c0_i32, %c0_i32_0 : i32, i32
  }
  func.func @transform_8(%arg0: i32) -> (i32, i32) {
    %c0_i32 = arith.constant 0 : i32
    %c0_i32_0 = arith.constant 0 : i32
    %c0_i32_1 = arith.constant 0 : i32
    return %c0_i32, %c0_i32_0 : i32, i32
  }
  func.func @transform_9(%arg0: i32) -> (i32, i32) {
    %c0_i32 = arith.constant 0 : i32
    %c0_i32_0 = arith.constant 0 : i32
    %c0_i32_1 = arith.constant 0 : i32
    return %c0_i32, %c0_i32_0 : i32, i32
  }
  func.func @transform_10(%arg0: i32) -> (i32, i32) {
    %c0_i32 = arith.constant 0 : i32
    %c0_i32_0 = arith.constant 0 : i32
    %c0_i32_1 = arith.constant 0 : i32
    return %c0_i32, %c0_i32_0 : i32, i32
  }
  func.func @transform_11(%arg0: i32) -> (i32, i32) {
    %c0_i32 = arith.constant 0 : i32
    %c0_i32_0 = arith.constant 0 : i32
    %c0_i32_1 = arith.constant 0 : i32
    return %c0_i32, %c0_i32_0 : i32, i32
  }
  func.func @transform_12(%arg0: i32) -> (i32, i32) {
    %c0_i32 = arith.constant 0 : i32
    %c0_i32_0 = arith.constant 0 : i32
    %c0_i32_1 = arith.constant 0 : i32
    return %c0_i32, %c0_i32_0 : i32, i32
  }
  func.func @transform_13(%arg0: i32) -> (i32, i32) {
    %c0_i32 = arith.constant 0 : i32
    %c0_i32_0 = arith.constant 0 : i32
    %c0_i32_1 = arith.constant 0 : i32
    return %c0_i32, %c0_i32_0 : i32, i32
  }
  func.func @transform_14(%arg0: i32) -> (i32, i32) {
    %c0_i32 = arith.constant 0 : i32
    %c0_i32_0 = arith.constant 0 : i32
    %c0_i32_1 = arith.constant 0 : i32
    return %c0_i32, %c0_i32_0 : i32, i32
  }
  func.func @transform_15(%arg0: i32) -> (i32, i32) {
    %c0_i32 = arith.constant 0 : i32
    %c0_i32_0 = arith.constant 0 : i32
    %c0_i32_1 = arith.constant 0 : i32
    return %c0_i32, %c0_i32_0 : i32, i32
  }
  func.func @transform_16(%arg0: i32) -> (i32, i32) {
    %c0_i32 = arith.constant 0 : i32
    %c0_i32_0 = arith.constant 0 : i32
    %c0_i32_1 = arith.constant 0 : i32
    return %c0_i32, %c0_i32_0 : i32, i32
  }
  func.func @transform_17(%arg0: i32) -> (i32, i32) {
    %c0_i32 = arith.constant 0 : i32
    %c0_i32_0 = arith.constant 0 : i32
    %c0_i32_1 = arith.constant 0 : i32
    return %c0_i32, %c0_i32_0 : i32, i32
  }
  func.func @transform_18(%arg0: i32) -> (i32, i32) {
    %c0_i32 = arith.constant 0 : i32
    %c0_i32_0 = arith.constant 0 : i32
    %c0_i32_1 = arith.constant 0 : i32
    return %c0_i32, %c0_i32_0 : i32, i32
  }
  func.func @transform_19(%arg0: i32) -> (i32, i32) {
    %c0_i32 = arith.constant 0 : i32
    %c0_i32_0 = arith.constant 0 : i32
    %c0_i32_1 = arith.constant 0 : i32
    return %c0_i32, %c0_i32_0 : i32, i32
  }
  func.func @transform_20(%arg0: i32) -> (i32, i32) {
    %c0_i32 = arith.constant 0 : i32
    %c0_i32_0 = arith.constant 0 : i32
    %c0_i32_1 = arith.constant 0 : i32
    return %c0_i32, %c0_i32_0 : i32, i32
  }
  func.func @transform_21(%arg0: i32) -> (i32, i32) {
    %c0_i32 = arith.constant 0 : i32
    %c0_i32_0 = arith.constant 0 : i32
    %c0_i32_1 = arith.constant 0 : i32
    return %c0_i32, %c0_i32_0 : i32, i32
  }
  func.func @transform_22(%arg0: i32) -> (i32, i32) {
    %c0_i32 = arith.constant 0 : i32
    %c0_i32_0 = arith.constant 0 : i32
    %c0_i32_1 = arith.constant 0 : i32
    return %c0_i32, %c0_i32_0 : i32, i32
  }
  func.func @transform_23(%arg0: i32) -> (i32, i32) {
    %c0_i32 = arith.constant 0 : i32
    %c0_i32_0 = arith.constant 0 : i32
    %c0_i32_1 = arith.constant 0 : i32
    return %c0_i32, %c0_i32_0 : i32, i32
  }
  func.func @transform_24(%arg0: i32) -> (i32, i32) {
    %c0_i32 = arith.constant 0 : i32
    %c0_i32_0 = arith.constant 0 : i32
    %c0_i32_1 = arith.constant 0 : i32
    return %c0_i32, %c0_i32_0 : i32, i32
  }
  func.func @transform_25(%arg0: i32) -> (i32, i32) {
    %c0_i32 = arith.constant 0 : i32
    %c0_i32_0 = arith.constant 0 : i32
    %c0_i32_1 = arith.constant 0 : i32
    return %c0_i32, %c0_i32_0 : i32, i32
  }
  func.func @transform_26(%arg0: i32) -> (i32, i32) {
    %c0_i32 = arith.constant 0 : i32
    %c0_i32_0 = arith.constant 0 : i32
    %c0_i32_1 = arith.constant 0 : i32
    return %c0_i32, %c0_i32_0 : i32, i32
  }
  func.func @transform_27(%arg0: i32) -> (i32, i32) {
    %c0_i32 = arith.constant 0 : i32
    %c0_i32_0 = arith.constant 0 : i32
    %c0_i32_1 = arith.constant 0 : i32
    return %c0_i32, %c0_i32_0 : i32, i32
  }
  func.func @transform_28(%arg0: i32) -> (i32, i32) {
    %c0_i32 = arith.constant 0 : i32
    %c0_i32_0 = arith.constant 0 : i32
    return %arg0, %c0_i32 : i32, i32
  }
  func.func @transform_29(%arg0: i32) -> (i32, i32) {
    %c0_i32 = arith.constant 0 : i32
    %c0_i32_0 = arith.constant 0 : i32
    return %arg0, %c0_i32 : i32, i32
  }
}

module attributes {stable_mosaic.version = 11 : i64} {
  func.func @_node_update_kernel(%arg0: i32, %arg1: memref<16x100xf32, #tpu.memory_space<vmem>>, %arg2: memref<16x48xf32, #tpu.memory_space<vmem>>, %arg3: memref<16x100xf32, #tpu.memory_space<vmem>>, %arg4: memref<16x48xf32, #tpu.memory_space<vmem>>, %arg5: memref<16x1xf32, #tpu.memory_space<vmem>>, %arg6: memref<1x100xf32, #tpu.memory_space<vmem>>, %arg7: memref<1x100xf32, #tpu.memory_space<vmem>>, %arg8: memref<48x96xbf16, #tpu.memory_space<vmem>>, %arg9: memref<100x400xbf16, #tpu.memory_space<vmem>>, %arg10: memref<32x400xbf16, #tpu.memory_space<vmem>>, %arg11: memref<1x400xf32, #tpu.memory_space<vmem>>, %arg12: memref<96x96xbf16, #tpu.memory_space<vmem>>, %arg13: memref<400x32xbf16, #tpu.memory_space<vmem>>, %arg14: memref<1x32xf32, #tpu.memory_space<vmem>>, %arg15: memref<96x96xbf16, #tpu.memory_space<vmem>>, %arg16: memref<400x100xbf16, #tpu.memory_space<vmem>>, %arg17: memref<32x100xbf16, #tpu.memory_space<vmem>>, %arg18: memref<1x100xf32, #tpu.memory_space<vmem>>, %arg19: memref<96x48xbf16, #tpu.memory_space<vmem>>, %arg20: memref<100x16xbf16, #tpu.memory_space<vmem>>, %arg21: memref<1x16xf32, #tpu.memory_space<vmem>>, %arg22: memref<1x100xf32, #tpu.memory_space<vmem>>, %arg23: memref<1x100xf32, #tpu.memory_space<vmem>>, %arg24: memref<16x100xf32, #tpu.memory_space<vmem>>, %arg25: memref<16x48xf32, #tpu.memory_space<vmem>>) attributes {dimension_semantics = [#tpu.dimension_semantics<parallel>], iteration_bounds = array<i64: 2>, scalar_prefetch = 0 : i64, scratch_operands = 0 : i64, tpu.core_type = #tpu.core_type<tc>, window_params = [{transform_indices = @transform_0, window_bounds = array<i64: 16, 100>}, {transform_indices = @transform_1, window_bounds = array<i64: 16, 48>}, {transform_indices = @transform_2, window_bounds = array<i64: 16, 100>}, {transform_indices = @transform_3, window_bounds = array<i64: 16, 48>}, {transform_indices = @transform_4, window_bounds = array<i64: 16, 1>}, {pipeline_mode = #tpu.pipeline_mode<synchronous>, transform_indices = @transform_5, window_bounds = array<i64: 1, 100>}, {pipeline_mode = #tpu.pipeline_mode<synchronous>, transform_indices = @transform_6, window_bounds = array<i64: 1, 100>}, {pipeline_mode = #tpu.pipeline_mode<synchronous>, transform_indices = @transform_7, window_bounds = array<i64: 48, 96>}, {pipeline_mode = #tpu.pipeline_mode<synchronous>, transform_indices = @transform_8, window_bounds = array<i64: 100, 400>}, {pipeline_mode = #tpu.pipeline_mode<synchronous>, transform_indices = @transform_9, window_bounds = array<i64: 32, 400>}, {pipeline_mode = #tpu.pipeline_mode<synchronous>, transform_indices = @transform_10, window_bounds = array<i64: 1, 400>}, {pipeline_mode = #tpu.pipeline_mode<synchronous>, transform_indices = @transform_11, window_bounds = array<i64: 96, 96>}, {pipeline_mode = #tpu.pipeline_mode<synchronous>, transform_indices = @transform_12, window_bounds = array<i64: 400, 32>}, {pipeline_mode = #tpu.pipeline_mode<synchronous>, transform_indices = @transform_13, window_bounds = array<i64: 1, 32>}, {pipeline_mode = #tpu.pipeline_mode<synchronous>, transform_indices = @transform_14, window_bounds = array<i64: 96, 96>}, {pipeline_mode = #tpu.pipeline_mode<synchronous>, transform_indices = @transform_15, window_bounds = array<i64: 400, 100>}, {pipeline_mode = #tpu.pipeline_mode<synchronous>, transform_indices = @transform_16, window_bounds = array<i64: 32, 100>}, {pipeline_mode = #tpu.pipeline_mode<synchronous>, transform_indices = @transform_17, window_bounds = array<i64: 1, 100>}, {pipeline_mode = #tpu.pipeline_mode<synchronous>, transform_indices = @transform_18, window_bounds = array<i64: 96, 48>}, {pipeline_mode = #tpu.pipeline_mode<synchronous>, transform_indices = @transform_19, window_bounds = array<i64: 100, 16>}, {pipeline_mode = #tpu.pipeline_mode<synchronous>, transform_indices = @transform_20, window_bounds = array<i64: 1, 16>}, {pipeline_mode = #tpu.pipeline_mode<synchronous>, transform_indices = @transform_21, window_bounds = array<i64: 1, 100>}, {pipeline_mode = #tpu.pipeline_mode<synchronous>, transform_indices = @transform_22, window_bounds = array<i64: 1, 100>}, {transform_indices = @transform_23, window_bounds = array<i64: 16, 100>}, {transform_indices = @transform_24, window_bounds = array<i64: 16, 48>}]} {
    %c0 = arith.constant 0 : index
    %c0_0 = arith.constant 0 : index
    %0 = vector.load %arg8[%c0, %c0_0] : memref<48x96xbf16, #tpu.memory_space<vmem>>, vector<48x96xbf16>
    %c0_1 = arith.constant 0 : index
    %c0_2 = arith.constant 0 : index
    %1 = vector.load %arg9[%c0_1, %c0_2] : memref<100x400xbf16, #tpu.memory_space<vmem>>, vector<100x400xbf16>
    %c0_3 = arith.constant 0 : index
    %c0_4 = arith.constant 0 : index
    %2 = vector.load %arg10[%c0_3, %c0_4] : memref<32x400xbf16, #tpu.memory_space<vmem>>, vector<32x400xbf16>
    %c0_5 = arith.constant 0 : index
    %c0_6 = arith.constant 0 : index
    %3 = vector.load %arg11[%c0_5, %c0_6] : memref<1x400xf32, #tpu.memory_space<vmem>>, vector<1x400xf32>
    %c0_7 = arith.constant 0 : index
    %c0_8 = arith.constant 0 : index
    %4 = vector.load %arg12[%c0_7, %c0_8] : memref<96x96xbf16, #tpu.memory_space<vmem>>, vector<96x96xbf16>
    %c0_9 = arith.constant 0 : index
    %c0_10 = arith.constant 0 : index
    %5 = vector.load %arg13[%c0_9, %c0_10] : memref<400x32xbf16, #tpu.memory_space<vmem>>, vector<400x32xbf16>
    %c0_11 = arith.constant 0 : index
    %c0_12 = arith.constant 0 : index
    %6 = vector.load %arg14[%c0_11, %c0_12] : memref<1x32xf32, #tpu.memory_space<vmem>>, vector<1x32xf32>
    %c0_13 = arith.constant 0 : index
    %c0_14 = arith.constant 0 : index
    %7 = vector.load %arg15[%c0_13, %c0_14] : memref<96x96xbf16, #tpu.memory_space<vmem>>, vector<96x96xbf16>
    %c0_15 = arith.constant 0 : index
    %c0_16 = arith.constant 0 : index
    %8 = vector.load %arg16[%c0_15, %c0_16] : memref<400x100xbf16, #tpu.memory_space<vmem>>, vector<400x100xbf16>
    %c0_17 = arith.constant 0 : index
    %c0_18 = arith.constant 0 : index
    %9 = vector.load %arg17[%c0_17, %c0_18] : memref<32x100xbf16, #tpu.memory_space<vmem>>, vector<32x100xbf16>
    %c0_19 = arith.constant 0 : index
    %c0_20 = arith.constant 0 : index
    %10 = vector.load %arg18[%c0_19, %c0_20] : memref<1x100xf32, #tpu.memory_space<vmem>>, vector<1x100xf32>
    %c0_21 = arith.constant 0 : index
    %c0_22 = arith.constant 0 : index
    %11 = vector.load %arg19[%c0_21, %c0_22] : memref<96x48xbf16, #tpu.memory_space<vmem>>, vector<96x48xbf16>
    %c0_23 = arith.constant 0 : index
    %c0_24 = arith.constant 0 : index
    %12 = vector.load %arg20[%c0_23, %c0_24] : memref<100x16xbf16, #tpu.memory_space<vmem>>, vector<100x16xbf16>
    %c0_25 = arith.constant 0 : index
    %c0_26 = arith.constant 0 : index
    %13 = vector.load %arg21[%c0_25, %c0_26] : memref<1x16xf32, #tpu.memory_space<vmem>>, vector<1x16xf32>
    %c0_27 = arith.constant 0 : index
    %c0_28 = arith.constant 0 : index
    %14 = vector.load %arg5[%c0_27, %c0_28] : memref<16x1xf32, #tpu.memory_space<vmem>>, vector<16x1xf32>
    %c0_29 = arith.constant 0 : index
    %c0_30 = arith.constant 0 : index
    %15 = vector.load %arg1[%c0_29, %c0_30] : memref<16x100xf32, #tpu.memory_space<vmem>>, vector<16x100xf32>
    %c0_31 = arith.constant 0 : index
    %c0_32 = arith.constant 0 : index
    %16 = vector.load %arg3[%c0_31, %c0_32] : memref<16x100xf32, #tpu.memory_space<vmem>>, vector<16x100xf32>
    %17 = vector.broadcast %14 : vector<16x1xf32> to vector<16x100xf32>
    %18 = arith.mulf %16, %17 : vector<16x100xf32>
    %19 = arith.addf %15, %18 : vector<16x100xf32>
    %c0_33 = arith.constant 0 : index
    %c0_34 = arith.constant 0 : index
    %20 = vector.load %arg2[%c0_33, %c0_34] : memref<16x48xf32, #tpu.memory_space<vmem>>, vector<16x48xf32>
    %c0_35 = arith.constant 0 : index
    %c0_36 = arith.constant 0 : index
    %21 = vector.load %arg4[%c0_35, %c0_36] : memref<16x48xf32, #tpu.memory_space<vmem>>, vector<16x48xf32>
    %22 = vector.broadcast %14 : vector<16x1xf32> to vector<16x48xf32>
    %23 = arith.mulf %21, %22 : vector<16x48xf32>
    %24 = arith.addf %20, %23 : vector<16x48xf32>
    %c0_37 = arith.constant 0 : index
    %c0_38 = arith.constant 0 : index
    %25 = vector.load %arg6[%c0_37, %c0_38] : memref<1x100xf32, #tpu.memory_space<vmem>>, vector<1x100xf32>
    %c0_39 = arith.constant 0 : index
    %c0_40 = arith.constant 0 : index
    %26 = vector.load %arg7[%c0_39, %c0_40] : memref<1x100xf32, #tpu.memory_space<vmem>>, vector<1x100xf32>
    %cst = arith.constant dense<0.000000e+00> : vector<16xf32>
    %27 = vector.multi_reduction <add>, %19, %cst [1] : vector<16x100xf32> to vector<16xf32>
    %28 = vector.shape_cast %27 : vector<16xf32> to vector<16x1xf32>
    %cst_41 = arith.constant 1.000000e+02 : f32
    %29 = vector.broadcast %cst_41 : f32 to vector<16x1xf32>
    %30 = arith.divf %28, %29 : vector<16x1xf32>
    %31 = vector.broadcast %30 : vector<16x1xf32> to vector<16x100xf32>
    %32 = arith.subf %19, %31 : vector<16x100xf32>
    %33 = arith.mulf %32, %32 : vector<16x100xf32>
    %cst_42 = arith.constant dense<0.000000e+00> : vector<16xf32>
    %34 = vector.multi_reduction <add>, %33, %cst_42 [1] : vector<16x100xf32> to vector<16xf32>
    %35 = vector.shape_cast %34 : vector<16xf32> to vector<16x1xf32>
    %cst_43 = arith.constant 1.000000e+02 : f32
    %36 = vector.broadcast %cst_43 : f32 to vector<16x1xf32>
    %37 = arith.divf %35, %36 : vector<16x1xf32>
    %38 = vector.broadcast %30 : vector<16x1xf32> to vector<16x100xf32>
    %39 = arith.subf %19, %38 : vector<16x100xf32>
    %cst_44 = arith.constant 9.99999974E-6 : f32
    %40 = vector.broadcast %cst_44 : f32 to vector<16x1xf32>
    %41 = arith.addf %37, %40 : vector<16x1xf32>
    %42 = math.rsqrt %41 : vector<16x1xf32>
    %43 = vector.broadcast %42 : vector<16x1xf32> to vector<16x100xf32>
    %44 = arith.mulf %39, %43 : vector<16x100xf32>
    %45 = vector.broadcast %25 : vector<1x100xf32> to vector<16x100xf32>
    %46 = arith.mulf %44, %45 : vector<16x100xf32>
    %47 = vector.broadcast %26 : vector<1x100xf32> to vector<16x100xf32>
    %48 = arith.addf %46, %47 : vector<16x100xf32>
    %49 = arith.mulf %24, %24 : vector<16x48xf32>
    %50 = vector.extract_strided_slice %49 {offsets = [0, 0], sizes = [16, 16], strides = [1, 1]} : vector<16x48xf32> to vector<16x16xf32>
    %51 = vector.extract_strided_slice %49 {offsets = [0, 16], sizes = [16, 16], strides = [1, 1]} : vector<16x48xf32> to vector<16x16xf32>
    %52 = arith.addf %50, %51 : vector<16x16xf32>
    %53 = vector.extract_strided_slice %49 {offsets = [0, 32], sizes = [16, 16], strides = [1, 1]} : vector<16x48xf32> to vector<16x16xf32>
    %54 = arith.addf %52, %53 : vector<16x16xf32>
    %cst_45 = arith.constant 9.99999993E-9 : f32
    %55 = vector.broadcast %cst_45 : f32 to vector<16x16xf32>
    %56 = arith.maximumf %54, %55 : vector<16x16xf32>
    %cst_46 = arith.constant dense<0.000000e+00> : vector<16xf32>
    %57 = vector.multi_reduction <add>, %56, %cst_46 [1] : vector<16x16xf32> to vector<16xf32>
    %58 = vector.shape_cast %57 : vector<16xf32> to vector<16x1xf32>
    %cst_47 = arith.constant 1.600000e+01 : f32
    %59 = vector.broadcast %cst_47 : f32 to vector<16x1xf32>
    %60 = arith.divf %58, %59 : vector<16x1xf32>
    %61 = math.rsqrt %60 : vector<16x1xf32>
    %62 = vector.broadcast %61 : vector<16x1xf32> to vector<16x48xf32>
    %63 = arith.mulf %24, %62 : vector<16x48xf32>
    %64 = arith.truncf %63 : vector<16x48xf32> to vector<16x48xbf16>
    %cst_48 = arith.constant dense<0.000000e+00> : vector<16x96xf32>
    %65 = tpu.matmul %64, %0, %cst_48 {dimension_numbers = #tpu.dot_dimension_numbers<[1], [0], [0], [1], [0, 0, 1, 1], [], []>} : vector<16x48xbf16>, vector<48x96xbf16>, vector<16x96xf32> -> vector<16x96xf32>
    %66 = arith.mulf %65, %65 : vector<16x96xf32>
    %67 = vector.extract_strided_slice %66 {offsets = [0, 0], sizes = [16, 32], strides = [1, 1]} : vector<16x96xf32> to vector<16x32xf32>
    %68 = vector.extract_strided_slice %66 {offsets = [0, 32], sizes = [16, 32], strides = [1, 1]} : vector<16x96xf32> to vector<16x32xf32>
    %69 = arith.addf %67, %68 : vector<16x32xf32>
    %70 = vector.extract_strided_slice %66 {offsets = [0, 64], sizes = [16, 32], strides = [1, 1]} : vector<16x96xf32> to vector<16x32xf32>
    %71 = arith.addf %69, %70 : vector<16x32xf32>
    %cst_49 = arith.constant 9.99999993E-9 : f32
    %72 = vector.broadcast %cst_49 : f32 to vector<16x32xf32>
    %73 = arith.maximumf %71, %72 : vector<16x32xf32>
    %74 = math.sqrt %73 : vector<16x32xf32>
    %75 = arith.truncf %48 : vector<16x100xf32> to vector<16x100xbf16>
    %cst_50 = arith.constant dense<0.000000e+00> : vector<16x400xf32>
    %76 = tpu.matmul %75, %1, %cst_50 {dimension_numbers = #tpu.dot_dimension_numbers<[1], [0], [0], [1], [0, 0, 1, 1], [], []>} : vector<16x100xbf16>, vector<100x400xbf16>, vector<16x400xf32> -> vector<16x400xf32>
    %77 = arith.truncf %74 : vector<16x32xf32> to vector<16x32xbf16>
    %cst_51 = arith.constant dense<0.000000e+00> : vector<16x400xf32>
    %78 = tpu.matmul %77, %2, %cst_51 {dimension_numbers = #tpu.dot_dimension_numbers<[1], [0], [0], [1], [0, 0, 1, 1], [], []>} : vector<16x32xbf16>, vector<32x400xbf16>, vector<16x400xf32> -> vector<16x400xf32>
    %79 = arith.addf %76, %78 : vector<16x400xf32>
    %80 = vector.broadcast %3 : vector<1x400xf32> to vector<16x400xf32>
    %81 = arith.addf %79, %80 : vector<16x400xf32>
    %82 = arith.truncf %65 : vector<16x96xf32> to vector<16x96xbf16>
    %cst_52 = arith.constant dense<0.000000e+00> : vector<16x96xf32>
    %83 = tpu.matmul %82, %4, %cst_52 {dimension_numbers = #tpu.dot_dimension_numbers<[1], [0], [0], [1], [0, 0, 1, 1], [], []>} : vector<16x96xbf16>, vector<96x96xbf16>, vector<16x96xf32> -> vector<16x96xf32>
    %84 = arith.truncf %81 : vector<16x400xf32> to vector<16x400xbf16>
    %cst_53 = arith.constant dense<0.000000e+00> : vector<16x32xf32>
    %85 = tpu.matmul %84, %5, %cst_53 {dimension_numbers = #tpu.dot_dimension_numbers<[1], [0], [0], [1], [0, 0, 1, 1], [], []>} : vector<16x400xbf16>, vector<400x32xbf16>, vector<16x32xf32> -> vector<16x32xf32>
    %86 = vector.broadcast %6 : vector<1x32xf32> to vector<16x32xf32>
    %87 = arith.addf %85, %86 : vector<16x32xf32>
    %88 = arith.negf %87 : vector<16x32xf32>
    %89 = math.exp %88 : vector<16x32xf32>
    %cst_54 = arith.constant 1.000000e+00 : f32
    %90 = vector.broadcast %cst_54 : f32 to vector<16x32xf32>
    %91 = arith.addf %90, %89 : vector<16x32xf32>
    %92 = arith.divf %90, %91 : vector<16x32xf32>
    %93 = tpu.concatenate %92, %92, %92 in 1 : vector<16x32xf32>, vector<16x32xf32>, vector<16x32xf32> -> vector<16x96xf32>
    %94 = arith.mulf %83, %93 : vector<16x96xf32>
    %cst_55 = arith.constant 0.000000e+00 : f32
    %95 = vector.broadcast %cst_55 : f32 to vector<16x400xf32>
    %96 = arith.maximumf %81, %95 : vector<16x400xf32>
    %97 = arith.truncf %94 : vector<16x96xf32> to vector<16x96xbf16>
    %cst_56 = arith.constant dense<0.000000e+00> : vector<16x96xf32>
    %98 = tpu.matmul %97, %7, %cst_56 {dimension_numbers = #tpu.dot_dimension_numbers<[1], [0], [0], [1], [0, 0, 1, 1], [], []>} : vector<16x96xbf16>, vector<96x96xbf16>, vector<16x96xf32> -> vector<16x96xf32>
    %99 = arith.mulf %98, %98 : vector<16x96xf32>
    %100 = vector.extract_strided_slice %99 {offsets = [0, 0], sizes = [16, 32], strides = [1, 1]} : vector<16x96xf32> to vector<16x32xf32>
    %101 = vector.extract_strided_slice %99 {offsets = [0, 32], sizes = [16, 32], strides = [1, 1]} : vector<16x96xf32> to vector<16x32xf32>
    %102 = arith.addf %100, %101 : vector<16x32xf32>
    %103 = vector.extract_strided_slice %99 {offsets = [0, 64], sizes = [16, 32], strides = [1, 1]} : vector<16x96xf32> to vector<16x32xf32>
    %104 = arith.addf %102, %103 : vector<16x32xf32>
    %cst_57 = arith.constant 9.99999993E-9 : f32
    %105 = vector.broadcast %cst_57 : f32 to vector<16x32xf32>
    %106 = arith.maximumf %104, %105 : vector<16x32xf32>
    %107 = math.sqrt %106 : vector<16x32xf32>
    %108 = arith.truncf %96 : vector<16x400xf32> to vector<16x400xbf16>
    %cst_58 = arith.constant dense<0.000000e+00> : vector<16x100xf32>
    %109 = tpu.matmul %108, %8, %cst_58 {dimension_numbers = #tpu.dot_dimension_numbers<[1], [0], [0], [1], [0, 0, 1, 1], [], []>} : vector<16x400xbf16>, vector<400x100xbf16>, vector<16x100xf32> -> vector<16x100xf32>
    %110 = arith.truncf %107 : vector<16x32xf32> to vector<16x32xbf16>
    %cst_59 = arith.constant dense<0.000000e+00> : vector<16x100xf32>
    %111 = tpu.matmul %110, %9, %cst_59 {dimension_numbers = #tpu.dot_dimension_numbers<[1], [0], [0], [1], [0, 0, 1, 1], [], []>} : vector<16x32xbf16>, vector<32x100xbf16>, vector<16x100xf32> -> vector<16x100xf32>
    %112 = arith.addf %109, %111 : vector<16x100xf32>
    %113 = vector.broadcast %10 : vector<1x100xf32> to vector<16x100xf32>
    %114 = arith.addf %112, %113 : vector<16x100xf32>
    %115 = arith.truncf %98 : vector<16x96xf32> to vector<16x96xbf16>
    %cst_60 = arith.constant dense<0.000000e+00> : vector<16x48xf32>
    %116 = tpu.matmul %115, %11, %cst_60 {dimension_numbers = #tpu.dot_dimension_numbers<[1], [0], [0], [1], [0, 0, 1, 1], [], []>} : vector<16x96xbf16>, vector<96x48xbf16>, vector<16x48xf32> -> vector<16x48xf32>
    %117 = arith.truncf %114 : vector<16x100xf32> to vector<16x100xbf16>
    %cst_61 = arith.constant dense<0.000000e+00> : vector<16x16xf32>
    %118 = tpu.matmul %117, %12, %cst_61 {dimension_numbers = #tpu.dot_dimension_numbers<[1], [0], [0], [1], [0, 0, 1, 1], [], []>} : vector<16x100xbf16>, vector<100x16xbf16>, vector<16x16xf32> -> vector<16x16xf32>
    %119 = vector.broadcast %13 : vector<1x16xf32> to vector<16x16xf32>
    %120 = arith.addf %118, %119 : vector<16x16xf32>
    %121 = arith.negf %120 : vector<16x16xf32>
    %122 = math.exp %121 : vector<16x16xf32>
    %cst_62 = arith.constant 1.000000e+00 : f32
    %123 = vector.broadcast %cst_62 : f32 to vector<16x16xf32>
    %124 = arith.addf %123, %122 : vector<16x16xf32>
    %125 = arith.divf %123, %124 : vector<16x16xf32>
    %126 = tpu.concatenate %125, %125, %125 in 1 : vector<16x16xf32>, vector<16x16xf32>, vector<16x16xf32> -> vector<16x48xf32>
    %127 = arith.mulf %116, %126 : vector<16x48xf32>
    %128 = arith.addf %48, %114 : vector<16x100xf32>
    %c0_63 = arith.constant 0 : index
    %c0_64 = arith.constant 0 : index
    %129 = vector.load %arg22[%c0_63, %c0_64] : memref<1x100xf32, #tpu.memory_space<vmem>>, vector<1x100xf32>
    %c0_65 = arith.constant 0 : index
    %c0_66 = arith.constant 0 : index
    %130 = vector.load %arg23[%c0_65, %c0_66] : memref<1x100xf32, #tpu.memory_space<vmem>>, vector<1x100xf32>
    %cst_67 = arith.constant dense<0.000000e+00> : vector<16xf32>
    %131 = vector.multi_reduction <add>, %128, %cst_67 [1] : vector<16x100xf32> to vector<16xf32>
    %132 = vector.shape_cast %131 : vector<16xf32> to vector<16x1xf32>
    %cst_68 = arith.constant 1.000000e+02 : f32
    %133 = vector.broadcast %cst_68 : f32 to vector<16x1xf32>
    %134 = arith.divf %132, %133 : vector<16x1xf32>
    %135 = vector.broadcast %134 : vector<16x1xf32> to vector<16x100xf32>
    %136 = arith.subf %128, %135 : vector<16x100xf32>
    %137 = arith.mulf %136, %136 : vector<16x100xf32>
    %cst_69 = arith.constant dense<0.000000e+00> : vector<16xf32>
    %138 = vector.multi_reduction <add>, %137, %cst_69 [1] : vector<16x100xf32> to vector<16xf32>
    %139 = vector.shape_cast %138 : vector<16xf32> to vector<16x1xf32>
    %cst_70 = arith.constant 1.000000e+02 : f32
    %140 = vector.broadcast %cst_70 : f32 to vector<16x1xf32>
    %141 = arith.divf %139, %140 : vector<16x1xf32>
    %142 = vector.broadcast %134 : vector<16x1xf32> to vector<16x100xf32>
    %143 = arith.subf %128, %142 : vector<16x100xf32>
    %cst_71 = arith.constant 9.99999974E-6 : f32
    %144 = vector.broadcast %cst_71 : f32 to vector<16x1xf32>
    %145 = arith.addf %141, %144 : vector<16x1xf32>
    %146 = math.rsqrt %145 : vector<16x1xf32>
    %147 = vector.broadcast %146 : vector<16x1xf32> to vector<16x100xf32>
    %148 = arith.mulf %143, %147 : vector<16x100xf32>
    %149 = vector.broadcast %129 : vector<1x100xf32> to vector<16x100xf32>
    %150 = arith.mulf %148, %149 : vector<16x100xf32>
    %151 = vector.broadcast %130 : vector<1x100xf32> to vector<16x100xf32>
    %152 = arith.addf %150, %151 : vector<16x100xf32>
    %c0_72 = arith.constant 0 : index
    %c0_73 = arith.constant 0 : index
    %153 = vector.load %arg24[%c0_72, %c0_73] : memref<16x100xf32, #tpu.memory_space<vmem>>, vector<16x100xf32>
    tpu.vector_store %arg24[%c0_72, %c0_73], %152 {strides = array<i32>} : memref<16x100xf32, #tpu.memory_space<vmem>>, vector<16x100xf32>,
    %154 = arith.addf %63, %127 : vector<16x48xf32>
    %155 = arith.mulf %154, %154 : vector<16x48xf32>
    %156 = vector.extract_strided_slice %155 {offsets = [0, 0], sizes = [16, 16], strides = [1, 1]} : vector<16x48xf32> to vector<16x16xf32>
    %157 = vector.extract_strided_slice %155 {offsets = [0, 16], sizes = [16, 16], strides = [1, 1]} : vector<16x48xf32> to vector<16x16xf32>
    %158 = arith.addf %156, %157 : vector<16x16xf32>
    %159 = vector.extract_strided_slice %155 {offsets = [0, 32], sizes = [16, 16], strides = [1, 1]} : vector<16x48xf32> to vector<16x16xf32>
    %160 = arith.addf %158, %159 : vector<16x16xf32>
    %cst_74 = arith.constant 9.99999993E-9 : f32
    %161 = vector.broadcast %cst_74 : f32 to vector<16x16xf32>
    %162 = arith.maximumf %160, %161 : vector<16x16xf32>
    %cst_75 = arith.constant dense<0.000000e+00> : vector<16xf32>
    %163 = vector.multi_reduction <add>, %162, %cst_75 [1] : vector<16x16xf32> to vector<16xf32>
    %164 = vector.shape_cast %163 : vector<16xf32> to vector<16x1xf32>
    %cst_76 = arith.constant 1.600000e+01 : f32
    %165 = vector.broadcast %cst_76 : f32 to vector<16x1xf32>
    %166 = arith.divf %164, %165 : vector<16x1xf32>
    %167 = math.rsqrt %166 : vector<16x1xf32>
    %168 = vector.broadcast %167 : vector<16x1xf32> to vector<16x48xf32>
    %169 = arith.mulf %154, %168 : vector<16x48xf32>
    %c0_77 = arith.constant 0 : index
    %c0_78 = arith.constant 0 : index
    %170 = vector.load %arg25[%c0_77, %c0_78] : memref<16x48xf32, #tpu.memory_space<vmem>>, vector<16x48xf32>
    tpu.vector_store %arg25[%c0_77, %c0_78], %169 {strides = array<i32>} : memref<16x48xf32, #tpu.memory_space<vmem>>, vector<16x48xf32>,
    return
  }
  func.func @transform_0(%arg0: i32) -> (i32, i32) {
    %c0_i32 = arith.constant 0 : i32
    %c0_i32_0 = arith.constant 0 : i32
    return %arg0, %c0_i32 : i32, i32
  }
  func.func @transform_1(%arg0: i32) -> (i32, i32) {
    %c0_i32 = arith.constant 0 : i32
    %c0_i32_0 = arith.constant 0 : i32
    return %arg0, %c0_i32 : i32, i32
  }
  func.func @transform_2(%arg0: i32) -> (i32, i32) {
    %c0_i32 = arith.constant 0 : i32
    %c0_i32_0 = arith.constant 0 : i32
    return %arg0, %c0_i32 : i32, i32
  }
  func.func @transform_3(%arg0: i32) -> (i32, i32) {
    %c0_i32 = arith.constant 0 : i32
    %c0_i32_0 = arith.constant 0 : i32
    return %arg0, %c0_i32 : i32, i32
  }
  func.func @transform_4(%arg0: i32) -> (i32, i32) {
    %c0_i32 = arith.constant 0 : i32
    %c0_i32_0 = arith.constant 0 : i32
    return %arg0, %c0_i32 : i32, i32
  }
  func.func @transform_5(%arg0: i32) -> (i32, i32) {
    %c0_i32 = arith.constant 0 : i32
    %c0_i32_0 = arith.constant 0 : i32
    %c0_i32_1 = arith.constant 0 : i32
    return %c0_i32, %c0_i32_0 : i32, i32
  }
  func.func @transform_6(%arg0: i32) -> (i32, i32) {
    %c0_i32 = arith.constant 0 : i32
    %c0_i32_0 = arith.constant 0 : i32
    %c0_i32_1 = arith.constant 0 : i32
    return %c0_i32, %c0_i32_0 : i32, i32
  }
  func.func @transform_7(%arg0: i32) -> (i32, i32) {
    %c0_i32 = arith.constant 0 : i32
    %c0_i32_0 = arith.constant 0 : i32
    %c0_i32_1 = arith.constant 0 : i32
    return %c0_i32, %c0_i32_0 : i32, i32
  }
  func.func @transform_8(%arg0: i32) -> (i32, i32) {
    %c0_i32 = arith.constant 0 : i32
    %c0_i32_0 = arith.constant 0 : i32
    %c0_i32_1 = arith.constant 0 : i32
    return %c0_i32, %c0_i32_0 : i32, i32
  }
  func.func @transform_9(%arg0: i32) -> (i32, i32) {
    %c0_i32 = arith.constant 0 : i32
    %c0_i32_0 = arith.constant 0 : i32
    %c0_i32_1 = arith.constant 0 : i32
    return %c0_i32, %c0_i32_0 : i32, i32
  }
  func.func @transform_10(%arg0: i32) -> (i32, i32) {
    %c0_i32 = arith.constant 0 : i32
    %c0_i32_0 = arith.constant 0 : i32
    %c0_i32_1 = arith.constant 0 : i32
    return %c0_i32, %c0_i32_0 : i32, i32
  }
  func.func @transform_11(%arg0: i32) -> (i32, i32) {
    %c0_i32 = arith.constant 0 : i32
    %c0_i32_0 = arith.constant 0 : i32
    %c0_i32_1 = arith.constant 0 : i32
    return %c0_i32, %c0_i32_0 : i32, i32
  }
  func.func @transform_12(%arg0: i32) -> (i32, i32) {
    %c0_i32 = arith.constant 0 : i32
    %c0_i32_0 = arith.constant 0 : i32
    %c0_i32_1 = arith.constant 0 : i32
    return %c0_i32, %c0_i32_0 : i32, i32
  }
  func.func @transform_13(%arg0: i32) -> (i32, i32) {
    %c0_i32 = arith.constant 0 : i32
    %c0_i32_0 = arith.constant 0 : i32
    %c0_i32_1 = arith.constant 0 : i32
    return %c0_i32, %c0_i32_0 : i32, i32
  }
  func.func @transform_14(%arg0: i32) -> (i32, i32) {
    %c0_i32 = arith.constant 0 : i32
    %c0_i32_0 = arith.constant 0 : i32
    %c0_i32_1 = arith.constant 0 : i32
    return %c0_i32, %c0_i32_0 : i32, i32
  }
  func.func @transform_15(%arg0: i32) -> (i32, i32) {
    %c0_i32 = arith.constant 0 : i32
    %c0_i32_0 = arith.constant 0 : i32
    %c0_i32_1 = arith.constant 0 : i32
    return %c0_i32, %c0_i32_0 : i32, i32
  }
  func.func @transform_16(%arg0: i32) -> (i32, i32) {
    %c0_i32 = arith.constant 0 : i32
    %c0_i32_0 = arith.constant 0 : i32
    %c0_i32_1 = arith.constant 0 : i32
    return %c0_i32, %c0_i32_0 : i32, i32
  }
  func.func @transform_17(%arg0: i32) -> (i32, i32) {
    %c0_i32 = arith.constant 0 : i32
    %c0_i32_0 = arith.constant 0 : i32
    %c0_i32_1 = arith.constant 0 : i32
    return %c0_i32, %c0_i32_0 : i32, i32
  }
  func.func @transform_18(%arg0: i32) -> (i32, i32) {
    %c0_i32 = arith.constant 0 : i32
    %c0_i32_0 = arith.constant 0 : i32
    %c0_i32_1 = arith.constant 0 : i32
    return %c0_i32, %c0_i32_0 : i32, i32
  }
  func.func @transform_19(%arg0: i32) -> (i32, i32) {
    %c0_i32 = arith.constant 0 : i32
    %c0_i32_0 = arith.constant 0 : i32
    %c0_i32_1 = arith.constant 0 : i32
    return %c0_i32, %c0_i32_0 : i32, i32
  }
  func.func @transform_20(%arg0: i32) -> (i32, i32) {
    %c0_i32 = arith.constant 0 : i32
    %c0_i32_0 = arith.constant 0 : i32
    %c0_i32_1 = arith.constant 0 : i32
    return %c0_i32, %c0_i32_0 : i32, i32
  }
  func.func @transform_21(%arg0: i32) -> (i32, i32) {
    %c0_i32 = arith.constant 0 : i32
    %c0_i32_0 = arith.constant 0 : i32
    %c0_i32_1 = arith.constant 0 : i32
    return %c0_i32, %c0_i32_0 : i32, i32
  }
  func.func @transform_22(%arg0: i32) -> (i32, i32) {
    %c0_i32 = arith.constant 0 : i32
    %c0_i32_0 = arith.constant 0 : i32
    %c0_i32_1 = arith.constant 0 : i32
    return %c0_i32, %c0_i32_0 : i32, i32
  }
  func.func @transform_23(%arg0: i32) -> (i32, i32) {
    %c0_i32 = arith.constant 0 : i32
    %c0_i32_0 = arith.constant 0 : i32
    return %arg0, %c0_i32 : i32, i32
  }
  func.func @transform_24(%arg0: i32) -> (i32, i32) {
    %c0_i32 = arith.constant 0 : i32
    %c0_i32_0 = arith.constant 0 : i32
    return %arg0, %c0_i32 : i32, i32
  }
}

module attributes {stable_mosaic.version = 11 : i64} {
  func.func @_wout_kernel(%arg0: i32, %arg1: memref<16x100xf32, #tpu.memory_space<vmem>>, %arg2: memref<16x48xf32, #tpu.memory_space<vmem>>, %arg3: memref<1x100xf32, #tpu.memory_space<vmem>>, %arg4: memref<1x100xf32, #tpu.memory_space<vmem>>, %arg5: memref<48x48xbf16, #tpu.memory_space<vmem>>, %arg6: memref<100x100xbf16, #tpu.memory_space<vmem>>, %arg7: memref<16x100xbf16, #tpu.memory_space<vmem>>, %arg8: memref<1x100xf32, #tpu.memory_space<vmem>>, %arg9: memref<16x100xf32, #tpu.memory_space<vmem>>) attributes {dimension_semantics = [#tpu.dimension_semantics<parallel>], iteration_bounds = array<i64: 2>, scalar_prefetch = 0 : i64, scratch_operands = 0 : i64, tpu.core_type = #tpu.core_type<tc>, window_params = [{transform_indices = @transform_0, window_bounds = array<i64: 16, 100>}, {transform_indices = @transform_1, window_bounds = array<i64: 16, 48>}, {pipeline_mode = #tpu.pipeline_mode<synchronous>, transform_indices = @transform_2, window_bounds = array<i64: 1, 100>}, {pipeline_mode = #tpu.pipeline_mode<synchronous>, transform_indices = @transform_3, window_bounds = array<i64: 1, 100>}, {pipeline_mode = #tpu.pipeline_mode<synchronous>, transform_indices = @transform_4, window_bounds = array<i64: 48, 48>}, {pipeline_mode = #tpu.pipeline_mode<synchronous>, transform_indices = @transform_5, window_bounds = array<i64: 100, 100>}, {pipeline_mode = #tpu.pipeline_mode<synchronous>, transform_indices = @transform_6, window_bounds = array<i64: 16, 100>}, {pipeline_mode = #tpu.pipeline_mode<synchronous>, transform_indices = @transform_7, window_bounds = array<i64: 1, 100>}, {transform_indices = @transform_8, window_bounds = array<i64: 16, 100>}]} {
    %c0 = arith.constant 0 : index
    %c0_0 = arith.constant 0 : index
    %0 = vector.load %arg5[%c0, %c0_0] : memref<48x48xbf16, #tpu.memory_space<vmem>>, vector<48x48xbf16>
    %c0_1 = arith.constant 0 : index
    %c0_2 = arith.constant 0 : index
    %1 = vector.load %arg6[%c0_1, %c0_2] : memref<100x100xbf16, #tpu.memory_space<vmem>>, vector<100x100xbf16>
    %c0_3 = arith.constant 0 : index
    %c0_4 = arith.constant 0 : index
    %2 = vector.load %arg7[%c0_3, %c0_4] : memref<16x100xbf16, #tpu.memory_space<vmem>>, vector<16x100xbf16>
    %c0_5 = arith.constant 0 : index
    %c0_6 = arith.constant 0 : index
    %3 = vector.load %arg8[%c0_5, %c0_6] : memref<1x100xf32, #tpu.memory_space<vmem>>, vector<1x100xf32>
    %c0_7 = arith.constant 0 : index
    %c0_8 = arith.constant 0 : index
    %4 = vector.load %arg1[%c0_7, %c0_8] : memref<16x100xf32, #tpu.memory_space<vmem>>, vector<16x100xf32>
    %c0_9 = arith.constant 0 : index
    %c0_10 = arith.constant 0 : index
    %5 = vector.load %arg3[%c0_9, %c0_10] : memref<1x100xf32, #tpu.memory_space<vmem>>, vector<1x100xf32>
    %c0_11 = arith.constant 0 : index
    %c0_12 = arith.constant 0 : index
    %6 = vector.load %arg4[%c0_11, %c0_12] : memref<1x100xf32, #tpu.memory_space<vmem>>, vector<1x100xf32>
    %cst = arith.constant dense<0.000000e+00> : vector<16xf32>
    %7 = vector.multi_reduction <add>, %4, %cst [1] : vector<16x100xf32> to vector<16xf32>
    %8 = vector.shape_cast %7 : vector<16xf32> to vector<16x1xf32>
    %cst_13 = arith.constant 1.000000e+02 : f32
    %9 = vector.broadcast %cst_13 : f32 to vector<16x1xf32>
    %10 = arith.divf %8, %9 : vector<16x1xf32>
    %11 = vector.broadcast %10 : vector<16x1xf32> to vector<16x100xf32>
    %12 = arith.subf %4, %11 : vector<16x100xf32>
    %13 = arith.mulf %12, %12 : vector<16x100xf32>
    %cst_14 = arith.constant dense<0.000000e+00> : vector<16xf32>
    %14 = vector.multi_reduction <add>, %13, %cst_14 [1] : vector<16x100xf32> to vector<16xf32>
    %15 = vector.shape_cast %14 : vector<16xf32> to vector<16x1xf32>
    %cst_15 = arith.constant 1.000000e+02 : f32
    %16 = vector.broadcast %cst_15 : f32 to vector<16x1xf32>
    %17 = arith.divf %15, %16 : vector<16x1xf32>
    %18 = vector.broadcast %10 : vector<16x1xf32> to vector<16x100xf32>
    %19 = arith.subf %4, %18 : vector<16x100xf32>
    %cst_16 = arith.constant 9.99999974E-6 : f32
    %20 = vector.broadcast %cst_16 : f32 to vector<16x1xf32>
    %21 = arith.addf %17, %20 : vector<16x1xf32>
    %22 = math.rsqrt %21 : vector<16x1xf32>
    %23 = vector.broadcast %22 : vector<16x1xf32> to vector<16x100xf32>
    %24 = arith.mulf %19, %23 : vector<16x100xf32>
    %25 = vector.broadcast %5 : vector<1x100xf32> to vector<16x100xf32>
    %26 = arith.mulf %24, %25 : vector<16x100xf32>
    %27 = vector.broadcast %6 : vector<1x100xf32> to vector<16x100xf32>
    %28 = arith.addf %26, %27 : vector<16x100xf32>
    %c0_17 = arith.constant 0 : index
    %c0_18 = arith.constant 0 : index
    %29 = vector.load %arg2[%c0_17, %c0_18] : memref<16x48xf32, #tpu.memory_space<vmem>>, vector<16x48xf32>
    %30 = arith.mulf %29, %29 : vector<16x48xf32>
    %31 = vector.extract_strided_slice %30 {offsets = [0, 0], sizes = [16, 16], strides = [1, 1]} : vector<16x48xf32> to vector<16x16xf32>
    %32 = vector.extract_strided_slice %30 {offsets = [0, 16], sizes = [16, 16], strides = [1, 1]} : vector<16x48xf32> to vector<16x16xf32>
    %33 = arith.addf %31, %32 : vector<16x16xf32>
    %34 = vector.extract_strided_slice %30 {offsets = [0, 32], sizes = [16, 16], strides = [1, 1]} : vector<16x48xf32> to vector<16x16xf32>
    %35 = arith.addf %33, %34 : vector<16x16xf32>
    %cst_19 = arith.constant 9.99999993E-9 : f32
    %36 = vector.broadcast %cst_19 : f32 to vector<16x16xf32>
    %37 = arith.maximumf %35, %36 : vector<16x16xf32>
    %cst_20 = arith.constant dense<0.000000e+00> : vector<16xf32>
    %38 = vector.multi_reduction <add>, %37, %cst_20 [1] : vector<16x16xf32> to vector<16xf32>
    %39 = vector.shape_cast %38 : vector<16xf32> to vector<16x1xf32>
    %cst_21 = arith.constant 1.600000e+01 : f32
    %40 = vector.broadcast %cst_21 : f32 to vector<16x1xf32>
    %41 = arith.divf %39, %40 : vector<16x1xf32>
    %42 = math.rsqrt %41 : vector<16x1xf32>
    %43 = vector.broadcast %42 : vector<16x1xf32> to vector<16x48xf32>
    %44 = arith.mulf %29, %43 : vector<16x48xf32>
    %45 = arith.truncf %44 : vector<16x48xf32> to vector<16x48xbf16>
    %cst_22 = arith.constant dense<0.000000e+00> : vector<16x48xf32>
    %46 = tpu.matmul %45, %0, %cst_22 {dimension_numbers = #tpu.dot_dimension_numbers<[1], [0], [0], [1], [0, 0, 1, 1], [], []>} : vector<16x48xbf16>, vector<48x48xbf16>, vector<16x48xf32> -> vector<16x48xf32>
    %47 = arith.mulf %46, %46 : vector<16x48xf32>
    %48 = vector.extract_strided_slice %47 {offsets = [0, 0], sizes = [16, 16], strides = [1, 1]} : vector<16x48xf32> to vector<16x16xf32>
    %49 = vector.extract_strided_slice %47 {offsets = [0, 16], sizes = [16, 16], strides = [1, 1]} : vector<16x48xf32> to vector<16x16xf32>
    %50 = arith.addf %48, %49 : vector<16x16xf32>
    %51 = vector.extract_strided_slice %47 {offsets = [0, 32], sizes = [16, 16], strides = [1, 1]} : vector<16x48xf32> to vector<16x16xf32>
    %52 = arith.addf %50, %51 : vector<16x16xf32>
    %cst_23 = arith.constant 9.99999993E-9 : f32
    %53 = vector.broadcast %cst_23 : f32 to vector<16x16xf32>
    %54 = arith.maximumf %52, %53 : vector<16x16xf32>
    %55 = math.sqrt %54 : vector<16x16xf32>
    %56 = arith.truncf %28 : vector<16x100xf32> to vector<16x100xbf16>
    %cst_24 = arith.constant dense<0.000000e+00> : vector<16x100xf32>
    %57 = tpu.matmul %56, %1, %cst_24 {dimension_numbers = #tpu.dot_dimension_numbers<[1], [0], [0], [1], [0, 0, 1, 1], [], []>} : vector<16x100xbf16>, vector<100x100xbf16>, vector<16x100xf32> -> vector<16x100xf32>
    %58 = arith.truncf %55 : vector<16x16xf32> to vector<16x16xbf16>
    %cst_25 = arith.constant dense<0.000000e+00> : vector<16x100xf32>
    %59 = tpu.matmul %58, %2, %cst_25 {dimension_numbers = #tpu.dot_dimension_numbers<[1], [0], [0], [1], [0, 0, 1, 1], [], []>} : vector<16x16xbf16>, vector<16x100xbf16>, vector<16x100xf32> -> vector<16x100xf32>
    %60 = arith.addf %57, %59 : vector<16x100xf32>
    %61 = vector.broadcast %3 : vector<1x100xf32> to vector<16x100xf32>
    %62 = arith.addf %60, %61 : vector<16x100xf32>
    %cst_26 = arith.constant 0.000000e+00 : f32
    %63 = vector.broadcast %cst_26 : f32 to vector<16x100xf32>
    %64 = arith.maximumf %62, %63 : vector<16x100xf32>
    %c0_27 = arith.constant 0 : index
    %c0_28 = arith.constant 0 : index
    %65 = vector.load %arg9[%c0_27, %c0_28] : memref<16x100xf32, #tpu.memory_space<vmem>>, vector<16x100xf32>
    tpu.vector_store %arg9[%c0_27, %c0_28], %64 {strides = array<i32>} : memref<16x100xf32, #tpu.memory_space<vmem>>, vector<16x100xf32>,
    return
  }
  func.func @transform_0(%arg0: i32) -> (i32, i32) {
    %c0_i32 = arith.constant 0 : i32
    %c0_i32_0 = arith.constant 0 : i32
    return %arg0, %c0_i32 : i32, i32
  }
  func.func @transform_1(%arg0: i32) -> (i32, i32) {
    %c0_i32 = arith.constant 0 : i32
    %c0_i32_0 = arith.constant 0 : i32
    return %arg0, %c0_i32 : i32, i32
  }
  func.func @transform_2(%arg0: i32) -> (i32, i32) {
    %c0_i32 = arith.constant 0 : i32
    %c0_i32_0 = arith.constant 0 : i32
    %c0_i32_1 = arith.constant 0 : i32
    return %c0_i32, %c0_i32_0 : i32, i32
  }
  func.func @transform_3(%arg0: i32) -> (i32, i32) {
    %c0_i32 = arith.constant 0 : i32
    %c0_i32_0 = arith.constant 0 : i32
    %c0_i32_1 = arith.constant 0 : i32
    return %c0_i32, %c0_i32_0 : i32, i32
  }
  func.func @transform_4(%arg0: i32) -> (i32, i32) {
    %c0_i32 = arith.constant 0 : i32
    %c0_i32_0 = arith.constant 0 : i32
    %c0_i32_1 = arith.constant 0 : i32
    return %c0_i32, %c0_i32_0 : i32, i32
  }
  func.func @transform_5(%arg0: i32) -> (i32, i32) {
    %c0_i32 = arith.constant 0 : i32
    %c0_i32_0 = arith.constant 0 : i32
    %c0_i32_1 = arith.constant 0 : i32
    return %c0_i32, %c0_i32_0 : i32, i32
  }
  func.func @transform_6(%arg0: i32) -> (i32, i32) {
    %c0_i32 = arith.constant 0 : i32
    %c0_i32_0 = arith.constant 0 : i32
    %c0_i32_1 = arith.constant 0 : i32
    return %c0_i32, %c0_i32_0 : i32, i32
  }
  func.func @transform_7(%arg0: i32) -> (i32, i32) {
    %c0_i32 = arith.constant 0 : i32
    %c0_i32_0 = arith.constant 0 : i32
    %c0_i32_1 = arith.constant 0 : i32
    return %c0_i32, %c0_i32_0 : i32, i32
  }
  func.func @transform_8(%arg0: i32) -> (i32, i32) {
    %c0_i32 = arith.constant 0 : i32
    %c0_i32_0 = arith.constant 0 : i32
    return %arg0, %c0_i32 : i32, i32
  }
}

</mosaic_0001>

<llo_original>
// kernel: base_model_forward.13
$region0: #{base_model_forward.13}
  #allocation0 [shape = 'u32[]', space=smem, size = 0x4, offset = 0x4, fixed_abs, tag = 'smem constant byte address 0x4 - core index']
  #allocation1 [shape = 'u32[144,128]{1,0:T(1,128)}', space=vmem, size = 0x12000, scoped, tag = 'internal scratch']
  %s0 = inlined_call_operand.vmem [shape: f32[32,32], index: 0, kind: input, shape index: {}]
  %s1 = inlined_call_operand.vmem [shape: f32[1,32], index: 1, kind: input, shape index: {}]
  %s2 = inlined_call_operand.vmem [shape: f32[1,32], index: 2, kind: input, shape index: {}]
  %s3 = inlined_call_operand.vmem [shape: bf16[32,100], index: 3, kind: input, shape index: {}]
  %s4 = inlined_call_operand.vmem [shape: f32[1,100], index: 4, kind: input, shape index: {}]
  %s5 = inlined_call_operand.vmem [shape: f32[32,100], index: 5, kind: output, shape index: {}]
  %s6 = sld [smem:[#allocation0]]
  $region53: #{base_model_forward.13} parent=0
    _
  %s8 = ssub.s32 1, %s6
  %s9 = scalar_select 0, %s8, %s6
  loop: start=0, step=1, limit=4
  $region2: #{base_model_forward.13} parent=0 // loop_pre_header
    _
  $region3: #{base_model_forward.13} parent=0 // loop_header
    %s11 = sphi 0, %s15
    %p12 = scmp.ge.s32.totalorder %s11, 4
    %s21 = sphi 0, %s23
    %s24 = sphi 0, %s21
    %s25 = sphi 0, %s24
    %s41 = sphi 0, %s25
    %s45 = sphi 0, %s45
    %s47 = sphi 0, %s45
    %s48 = sphi 0, %s47
    %s62 = sphi 0, %s48
    %s66 = sphi 0, %s66
    %s68 = sphi 0, %s66
    %s69 = sphi 0, %s68
    %s83 = sphi 0, %s69
    %s87 = sphi 0, %s87
    %s89 = sphi 0, %s87
    %s90 = sphi 0, %s89
    %s104 = sphi 0, %s90
    %s108 = sphi 0, %s108
    %s110 = sphi 0, %s108
    %s111 = sphi 0, %s110
    %s125 = sphi 0, %s111
    %s131 = sphi 0, %s133
    %s134 = sphi 0, %s131
    %s135 = sphi 0, %s134
    %s151 = sphi 0, %s135
  $region4: #{base_model_forward.13} parent=0 // loop_header_branch
    %14 = sbr.rel (%p12) target = $region8
  $region5: #{base_model_forward.13} parent=0 // loop_body
    %s16 = ssub.s32 %s11, 1
    %s17 = ssub.s32 %s11, 2
    %s18 = sadd.s32 %s11, 1
    %s19 = ssub.s32 %s11, %s18
    %p20 = scmp.eq.s32.totalorder %s19, 0
    %s22 = sadd.s32 %s21, 1
    %s23 = scalar_select %p20, %s21, %s22
    %p26 = pneg %p20
    %p27 = scmp.eq.s32.totalorder %s11, 1
    %p28 = por %p26, %p27
    %p29 = scmp.ne.s32.totalorder %s21, %s24
    %p30 = scmp.eq.s32.totalorder %s11, 0
    %p31 = por %p29, %p30
    %p32 = scmp.ne.s32.totalorder %s21, %s24
    %p33 = scmp.eq.s32.totalorder %s16, 1
    %p34 = por %p32, %p33
    %p35 = scmp.ne.s32.totalorder %s24, %s25
    %p36 = scmp.eq.s32.totalorder %s16, 0
    %p37 = por %p35, %p36
    %p38 = scmp.ne.s32.totalorder %s24, %s25
    %p39 = scmp.eq.s32.totalorder %s17, 1
    %p40 = por %p38, %p39
    %p42 = scmp.ne.s32.totalorder %s25, %s41
    %p43 = scmp.eq.s32.totalorder %s17, 0
    %p44 = por %p42, %p43
    %s46 = sadd.s32 %s45, 1
    %p49 = scmp.eq.s32.totalorder %s11, 1
    %p50 = scmp.ne.s32.totalorder %s45, %s47
    %p51 = scmp.eq.s32.totalorder %s11, 0
    %p52 = por %p50, %p51
    %p53 = scmp.ne.s32.totalorder %s45, %s47
    %p54 = scmp.eq.s32.totalorder %s16, 1
    %p55 = por %p53, %p54
    %p56 = scmp.ne.s32.totalorder %s47, %s48
    %p57 = scmp.eq.s32.totalorder %s16, 0
    %p58 = por %p56, %p57
    %p59 = scmp.ne.s32.totalorder %s47, %s48
    %p60 = scmp.eq.s32.totalorder %s17, 1
    %p61 = por %p59, %p60
    %p63 = scmp.ne.s32.totalorder %s48, %s62
    %p64 = scmp.eq.s32.totalorder %s17, 0
    %p65 = por %p63, %p64
    %s67 = sadd.s32 %s66, 1
    %p70 = scmp.eq.s32.totalorder %s11, 1
    %p71 = scmp.ne.s32.totalorder %s66, %s68
    %p72 = scmp.eq.s32.totalorder %s11, 0
    %p73 = por %p71, %p72
    %p74 = scmp.ne.s32.totalorder %s66, %s68
    %p75 = scmp.eq.s32.totalorder %s16, 1
    %p76 = por %p74, %p75
    %p77 = scmp.ne.s32.totalorder %s68, %s69
    %p78 = scmp.eq.s32.totalorder %s16, 0
    %p79 = por %p77, %p78
    %p80 = scmp.ne.s32.totalorder %s68, %s69
    %p81 = scmp.eq.s32.totalorder %s17, 1
    %p82 = por %p80, %p81
    %p84 = scmp.ne.s32.totalorder %s69, %s83
    %p85 = scmp.eq.s32.totalorder %s17, 0
    %p86 = por %p84, %p85
    %s88 = sadd.s32 %s87, 1
    %p91 = scmp.eq.s32.totalorder %s11, 1
    %p92 = scmp.ne.s32.totalorder %s87, %s89
    %p93 = scmp.eq.s32.totalorder %s11, 0
    %p94 = por %p92, %p93
    %p95 = scmp.ne.s32.totalorder %s87, %s89
    %p96 = scmp.eq.s32.totalorder %s16, 1
    %p97 = por %p95, %p96
    %p98 = scmp.ne.s32.totalorder %s89, %s90
    %p99 = scmp.eq.s32.totalorder %s16, 0
    %p100 = por %p98, %p99
    %p101 = scmp.ne.s32.totalorder %s89, %s90
    %p102 = scmp.eq.s32.totalorder %s17, 1
    %p103 = por %p101, %p102
    %p105 = scmp.ne.s32.totalorder %s90, %s104
    %p106 = scmp.eq.s32.totalorder %s17, 0
    %p107 = por %p105, %p106
    %s109 = sadd.s32 %s108, 1
    %p112 = scmp.eq.s32.totalorder %s11, 1
    %p113 = scmp.ne.s32.totalorder %s108, %s110
    %p114 = scmp.eq.s32.totalorder %s11, 0
    %p115 = por %p113, %p114
    %p116 = scmp.ne.s32.totalorder %s108, %s110
    %p117 = scmp.eq.s32.totalorder %s16, 1
    %p118 = por %p116, %p117
    %p119 = scmp.ne.s32.totalorder %s110, %s111
    %p120 = scmp.eq.s32.totalorder %s16, 0
    %p121 = por %p119, %p120
    %p122 = scmp.ne.s32.totalorder %s110, %s111
    %p123 = scmp.eq.s32.totalorder %s17, 1
    %p124 = por %p122, %p123
    %p126 = scmp.ne.s32.totalorder %s111, %s125
    %p127 = scmp.eq.s32.totalorder %s17, 0
    %p128 = por %p126, %p127
    %s129 = ssub.s32 %s11, %s18
    %p130 = scmp.eq.s32.totalorder %s129, 0
    %s132 = sadd.s32 %s131, 1
    %s133 = scalar_select %p130, %s131, %s132
    %p136 = pneg %p130
    %p137 = scmp.eq.s32.totalorder %s11, 1
    %p138 = por %p136, %p137
    %p139 = scmp.ne.s32.totalorder %s131, %s134
    %p140 = scmp.eq.s32.totalorder %s11, 0
    %p141 = por %p139, %p140
    %p142 = scmp.ne.s32.totalorder %s131, %s134
    %p143 = scmp.eq.s32.totalorder %s16, 1
    %p144 = por %p142, %p143
    %p145 = scmp.ne.s32.totalorder %s134, %s135
    %p146 = scmp.eq.s32.totalorder %s16, 0
    %p147 = por %p145, %p146
    %p148 = scmp.ne.s32.totalorder %s134, %s135
    %p149 = scmp.eq.s32.totalorder %s17, 1
    %p150 = por %p148, %p149
    %p152 = scmp.ne.s32.totalorder %s135, %s151
    %p153 = scmp.eq.s32.totalorder %s17, 0
    %p154 = por %p152, %p153
    %p155 = scmp.le.s32.totalorder 1, %s11
    %p156 = scmp.lt.s32.totalorder %s11, 3
    %p157 = pnand %p155, %p156
    %p158 = pneg %p157
    // Predicated region
    $region9: #{base_model_forward.13} parent=5 // pred_check
      _
    $region10: #{base_model_forward.13} parent=5 // pred_check_branch
      %160 = sbr.rel (%p157) target = $region12
    $region11: #{base_model_forward.13} parent=5 // pred_region
      %s161 = ssub.s32 %s11, 1
      // Predicated region
      $region13: #{base_model_forward.13} parent=11 // pred_check
        %p162 = pneg %p58
      $region14: #{base_model_forward.13} parent=11 // pred_check_branch
        %164 = sbr.rel (%p162) target = $region16
      $region15: #{base_model_forward.13} parent=11 // pred_region
        _
      $region16: #{base_model_forward.13} parent=11 // pred_fallthru
        _
      // Predicated region
      $region17: #{base_model_forward.13} parent=11 // pred_check
        %p165 = pneg %p79
      $region18: #{base_model_forward.13} parent=11 // pred_check_branch
        %167 = sbr.rel (%p165) target = $region20
      $region19: #{base_model_forward.13} parent=11 // pred_region
        _
      $region20: #{base_model_forward.13} parent=11 // pred_fallthru
        _
      // Predicated region
      $region21: #{base_model_forward.13} parent=11 // pred_check
        %p168 = pneg %p100
      $region22: #{base_model_forward.13} parent=11 // pred_check_branch
        %170 = sbr.rel (%p168) target = $region24
      $region23: #{base_model_forward.13} parent=11 // pred_region
        _
      $region24: #{base_model_forward.13} parent=11 // pred_fallthru
        _
      // Predicated region
      $region25: #{base_model_forward.13} parent=11 // pred_check
        %p171 = pneg %p121
      $region26: #{base_model_forward.13} parent=11 // pred_check_branch
        %173 = sbr.rel (%p171) target = $region28
      $region27: #{base_model_forward.13} parent=11 // pred_region
        _
      $region28: #{base_model_forward.13} parent=11 // pred_fallthru
        _
    $region12: #{base_model_forward.13} parent=5 // pred_fallthru
      _
    %p174 = scmp.lt.s32.totalorder %s11, 2
    // Predicated region
    $region29: #{base_model_forward.13} parent=5 // pred_check
      %p175 = pneg %p174
    $region30: #{base_model_forward.13} parent=5 // pred_check_branch
      %177 = sbr.rel (%p175) target = $region32
    $region31: #{base_model_forward.13} parent=5 // pred_region
      // Predicated region
      $region33: #{base_model_forward.13} parent=31 // pred_check
        %p178 = pneg %p31
      $region34: #{base_model_forward.13} parent=31 // pred_check_branch
        %180 = sbr.rel (%p178) target = $region36
      $region35: #{base_model_forward.13} parent=31 // pred_region
        %s181 = smul.u32 2, %s11
        %p182 = scmp.lt.s32.totalorder %s181, 3
        %s183 = scalar_select %p182, %s181, 3
        %s184 = smul.addr %s183, 8
        %s185 = scalar_lea.vmem %s0, %s184
        %s186 = smul.u32 2, %s11
      $region36: #{base_model_forward.13} parent=31 // pred_fallthru
        _
    $region32: #{base_model_forward.13} parent=5 // pred_fallthru
      _
    %p187 = scmp.le.s32.totalorder 1, %s11
    %p188 = scmp.lt.s32.totalorder %s11, 3
    %p189 = pnand %p187, %p188
    %p190 = pneg %p189
    // Predicated region
    $region37: #{base_model_forward.13} parent=5 // pred_check
      _
    $region38: #{base_model_forward.13} parent=5 // pred_check_branch
      %192 = sbr.rel (%p189) target = $region40
    $region39: #{base_model_forward.13} parent=5 // pred_region
      %s193 = ssub.s32 %s11, 1
      %s194 = smul.u32 2, %s16
      %p195 = scmp.lt.s32.totalorder %s194, 3
      %s196 = scalar_select %p195, %s194, 3
      %s197 = smul.addr %s196, 8
      %s198 = scalar_lea.vmem %s0, %s197
      %p199 = pneg %p37
      %p200 = pneg %p34
      %p201 = pneg %p58
      %p202 = pneg %p55
      %p203 = pneg %p79
      %p204 = pneg %p76
      %p205 = pneg %p100
      %p206 = pneg %p97
      %p207 = pneg %p121
      %p208 = pneg %p118
      %p209 = pneg %p147
      %p210 = pneg %p144
      %s211 = smul.u32 2, %s16
      %p212 = scmp.lt.s32.totalorder %s211, 3
      %s213 = scalar_select %p212, %s211, 3
      %s214 = smul.addr %s213, 8
      %s215 = scalar_lea.vmem %s5, %s214
      %s216 = smul.u32 2, %s16
      %p217 = scmp.lt.s32.totalorder %s216, 3
      %s218 = scalar_select %p217, %s216, 3
      %s219 = smul.addr %s218, 8
      %s220 = scalar_lea.vmem %s0, %s219
      %s221 = smul.u32 2, %s16
      %s222 = smul.u32 2, %s16
      %p223 = scmp.lt.s32.totalorder %s222, 3
      %s224 = scalar_select %p223, %s222, 3
      %s225 = smul.addr %s224, 8
      %s226 = scalar_lea.vmem %s5, %s225
      %s227 = smul.u32 2, %s16
      %v229 = vld [vmem:[%s220] sm:$0xff]
      %v230 = vld [vmem:[%s220 + $0x8] sm:$0xff]
      %v231 = vld [vmem:[%s1] sm:$0x1]
      %v232 = vld [vmem:[%s2] sm:$0x1]
      %vm233 = vcmask 261120
      %v234 = vsel %vm233, %v229, 0.0
      %235 = vadd.xlane.f32.xlu0 %v234
      %v236 = vpop.xlane.xlu0 %235
      %v237 = vsel %vm233, %v230, 0.0
      %238 = vadd.xlane.f32.xlu0 %v237
      %v239 = vpop.xlane.xlu0 %238
      %v240 = vrcp.pop 32.0
      %v241 = vmul.f32 %v236, %v240
      %v242 = vmul.f32 %v239, %v240
      %v243 = vsub.f32 %v229, %v241
      %v244 = vsub.f32 %v230, %v242
      %v245 = vmul.f32 %v243, %v243
      %v246 = vmul.f32 %v244, %v244
      %v247 = vsel %vm233, %v245, 0.0
      %248 = vadd.xlane.f32.xlu0 %v247
      %v249 = vpop.xlane.xlu0 %248
      %v250 = vsel %vm233, %v246, 0.0
      %251 = vadd.xlane.f32.xlu0 %v250
      %v252 = vpop.xlane.xlu0 %251
      %v253 = vmul.f32 %v249, %v240
      %v254 = vmul.f32 %v252, %v240
      %v255 = vadd.f32 %v253, 1e-05
      %v256 = vadd.f32 %v254, 1e-05
      %v257 = vrsqrt.pop %v255
      %v258 = vrsqrt.pop %v256
      %v259 = vmul.f32 %v243, %v257
      %v260 = vmul.f32 %v244, %v258
      %v262 = vlaneseq
      %v263 = vshrl.u32 %v262, 7
      %v264 = vsub.s32 0, %v263
      %v265 = vrot.slane %v231, %v264
      %v267 = vmul.f32 %v259, %v265
      %v268 = vmul.f32 %v260, %v265
      %v270 = vlaneseq
      %v271 = vshrl.u32 %v270, 7
      %v272 = vsub.s32 0, %v271
      %v273 = vrot.slane %v232, %v272
      %v275 = vadd.f32 %v267, %v273
      %v276 = vadd.f32 %v268, %v273
      %v277 = vpack.c.bf16 %v276, %v275
      %v278 = vld [vmem:[%s3] sm:$0xf]
      %v279 = vld [vmem:[%s3 + $0x4] sm:$0xf]
      %v280 = vld [vmem:[%s3 + $0x8] sm:$0xf]
      %v281 = vld [vmem:[%s3 + $0xc] sm:$0xf]
      %v282 = vld [vmem:[%s4] sm:$0x1]
      %v284 = vlaneseq
      %v285 = vshrl.u32 %v284, 7
      %v286 = vsub.s32 0, %v285
      %v287 = vrot.slane %v282, %v286
      %v293 = vunpack.c.l.b16 %v278
      %v294 = vunpack.c.l.b16 %v279
      %v295 = vunpack.c.l.b16 %v280
      %v296 = vunpack.c.l.b16 %v281
      %v297 = vpack.c.b16 %v294, %v293
      %v298 = vpack.c.b16 %v296, %v295
      %v302 = vsel %vm233, %v277, 0
      %304 = vmatprep.subr.bf16.mxu0 0
      %305 = vmatpush1.bf16.msra.mxu0 %v297
      %306 = vmatprep.subr.bf16.mxu0 0
      %307 = vmatpush1.bf16.msra.mxu0 %v298
      %308 = vmatprep.subr.bf16.mxu0 0
      %309 = vmatpush1.bf16.msra.mxu0 0
      %310 = vmatprep.subr.bf16.mxu0 0
      %311 = vmatpush1.bf16.msra.mxu0 0
      %312 = vmatprep.subr.bf16.mxu0 0
      %313 = vmatpush1.bf16.msra.mxu0 0
      %314 = vmatprep.subr.bf16.mxu0 0
      %315 = vmatpush1.bf16.msra.mxu0 0
      %316 = vmatprep.subr.bf16.mxu0 0
      %317 = vmatpush1.bf16.msra.mxu0 0
      %318 = vmatprep.subr.bf16.mxu0 0
      %319 = vmatpush1.bf16.msra.mxu0 0
      %320 = vmatprep.subr.bf16.mxu0 0
      %321 = vmatpush1.bf16.msra.mxu0 0
      %322 = vmatprep.subr.bf16.mxu0 0
      %323 = vmatpush1.bf16.msra.mxu0 0
      %324 = vmatprep.subr.bf16.mxu0 0
      %325 = vmatpush1.bf16.msra.mxu0 0
      %326 = vmatprep.subr.bf16.mxu0 0
      %327 = vmatpush1.bf16.msra.mxu0 0
      %328 = vmatprep.subr.bf16.mxu0 0
      %329 = vmatpush1.bf16.msra.mxu0 0
      %330 = vmatprep.subr.bf16.mxu0 0
      %331 = vmatpush1.bf16.msra.mxu0 0
      %332 = vmatprep.subr.bf16.mxu0 0
      %333 = vmatpush1.bf16.msra.mxu0 0
      %334 = vmatprep.subr.bf16.mxu0 0
      %335 = vmatpush1.bf16.msra.mxu0 0
      %336 = vmatprep.mubr.bf16.mxu0 0
      %337 = vmatmul.mubr.bf16.gmra.mrb[0].mxu0 %v302
      %v338 = vpop.f32.mrb[0].mxu0
      %v339 = vadd.f32 %v287, %v338
      %v340 = vpop.f32.mrb[0].mxu0
      %v341 = vpop.f32.mrb[0].mxu0
      %v342 = vadd.f32 %v287, %v341
      %v343 = vpop.f32.mrb[0].mxu0
      %344 = vdwg.mxu0
      %vm345 = vcmask 818176
      %346 = vst.msk [vmem:[%s226] sm:$0xff] %vm345, %v339
      %347 = vst.msk [vmem:[%s226 + $0x8] sm:$0xff] %vm345, %v342
      %s348 = smul.u32 2, %s16
      %p349 = scmp.lt.s32.totalorder %s348, 3
      %s350 = scalar_select %p349, %s348, 3
      %s351 = smul.addr %s350, 8
      %s352 = scalar_lea.vmem %s5, %s351
      // Predicated region
      $region41: #{base_model_forward.13} parent=39 // pred_check
        %p353 = pneg %p144
      $region42: #{base_model_forward.13} parent=39 // pred_check_branch
        %355 = sbr.rel (%p353) target = $region44
      $region43: #{base_model_forward.13} parent=39 // pred_region
        %s356 = smul.u32 2, %s16
      $region44: #{base_model_forward.13} parent=39 // pred_fallthru
        _
    $region40: #{base_model_forward.13} parent=5 // pred_fallthru
      _
    %p357 = scmp.le.s32.totalorder 2, %s11
    // Predicated region
    $region45: #{base_model_forward.13} parent=5 // pred_check
      %p358 = pneg %p357
    $region46: #{base_model_forward.13} parent=5 // pred_check_branch
      %360 = sbr.rel (%p358) target = $region48
    $region47: #{base_model_forward.13} parent=5 // pred_region
      %s361 = ssub.s32 %s11, 2
      // Predicated region
      $region49: #{base_model_forward.13} parent=47 // pred_check
        %p362 = pneg %p150
      $region50: #{base_model_forward.13} parent=47 // pred_check_branch
        %364 = sbr.rel (%p362) target = $region52
      $region51: #{base_model_forward.13} parent=47 // pred_region
        %s365 = smul.u32 2, %s17
        %p366 = scmp.lt.s32.totalorder %s365, 3
        %s367 = scalar_select %p366, %s365, 3
        %s368 = smul.addr %s367, 8
        %s369 = scalar_lea.vmem %s5, %s368
      $region52: #{base_model_forward.13} parent=47 // pred_fallthru
        _
    $region48: #{base_model_forward.13} parent=5 // pred_fallthru
      _
  $region6: #{base_model_forward.13} parent=0 // loop_footer
    %s15 = sadd.s32 1, %s11
  $region7: #{base_model_forward.13} parent=0 // loop_footer_branch
    %10 = sbr.rel target = $region3
  $region8: #{base_model_forward.13} parent=0 // loop_exit
    _

// kernel: base_model_forward.14
$region0: #{base_model_forward.14}
  #allocation0 [shape = 'u32[]', space=smem, size = 0x4, offset = 0x4, fixed_abs, tag = 'smem constant byte address 0x4 - core index']
  #allocation1 [shape = 'u32[144,128]{1,0:T(1,128)}', space=vmem, size = 0x12000, scoped, tag = 'internal scratch']
  #allocation2 [shape = 'f32[1,1]{1,0:T(1,128)S(1)}', space=vmem, size = 0x200, scoped, tag = 'scoped memory for base_model_forward.14']
  %s0 = inlined_call_operand.vmem [shape: f32[64,16], index: 0, kind: input, shape index: {}]
  %s1 = inlined_call_operand.vmem [shape: f32[64,3], index: 1, kind: input, shape index: {}]
  %s2 = inlined_call_operand.vmem [shape: f32[1,16], index: 2, kind: input, shape index: {}]
  %s3 = inlined_call_operand.vmem [shape: f32[1,16], index: 3, kind: input, shape index: {}]
  %s4 = inlined_call_operand.vmem [shape: bf16[3,3], index: 4, kind: input, shape index: {}]
  %s5 = inlined_call_operand.vmem [shape: bf16[16,32], index: 5, kind: input, shape index: {}]
  %s6 = inlined_call_operand.vmem [shape: bf16[1,32], index: 6, kind: input, shape index: {}]
  %s7 = inlined_call_operand.vmem [shape: f32[1,32], index: 7, kind: input, shape index: {}]
  %s8 = inlined_call_operand.vmem [shape: bf16[3,3], index: 8, kind: input, shape index: {}]
  %s9 = inlined_call_operand.vmem [shape: bf16[32,1], index: 9, kind: input, shape index: {}]
  %s10 = inlined_call_operand.<no memory space> [shape: f32[1,1], index: 10, kind: input, shape index: {}]
  %s11 = inlined_call_operand.vmem [shape: f32[64,32], index: 11, kind: output, shape index: {0}]
  %s12 = inlined_call_operand.vmem [shape: f32[64,3], index: 12, kind: output, shape index: {1}]
  %13 = xla_tuple %s11, %s12
  %s14 = sld [smem:[#allocation0]]
  $region85: #{base_model_forward.14} parent=0
    _
  %s16 = ssub.s32 1, %s14
  %s17 = scalar_select 0, %s16, %s14
  %v18 = vstv %s10
  %19 = vst [vmem:[#allocation2] sm:$0x1] %v18
  loop: start=0, step=1, limit=4
  $region2: #{base_model_forward.14} parent=0 // loop_pre_header
    _
  $region3: #{base_model_forward.14} parent=0 // loop_header
    %s21 = sphi 0, %s25
    %p22 = scmp.ge.s32.totalorder %s21, 4
    %s31 = sphi 0, %s33
    %s34 = sphi 0, %s31
    %s35 = sphi 0, %s34
    %s51 = sphi 0, %s35
    %s57 = sphi 0, %s59
    %s60 = sphi 0, %s57
    %s61 = sphi 0, %s60
    %s77 = sphi 0, %s61
    %s81 = sphi 0, %s81
    %s83 = sphi 0, %s81
    %s84 = sphi 0, %s83
    %s98 = sphi 0, %s84
    %s102 = sphi 0, %s102
    %s104 = sphi 0, %s102
    %s105 = sphi 0, %s104
    %s119 = sphi 0, %s105
    %s123 = sphi 0, %s123
    %s125 = sphi 0, %s123
    %s126 = sphi 0, %s125
    %s140 = sphi 0, %s126
    %s144 = sphi 0, %s144
    %s146 = sphi 0, %s144
    %s147 = sphi 0, %s146
    %s161 = sphi 0, %s147
    %s165 = sphi 0, %s165
    %s167 = sphi 0, %s165
    %s168 = sphi 0, %s167
    %s182 = sphi 0, %s168
    %s186 = sphi 0, %s186
    %s188 = sphi 0, %s186
    %s189 = sphi 0, %s188
    %s203 = sphi 0, %s189
    %s207 = sphi 0, %s207
    %s209 = sphi 0, %s207
    %s210 = sphi 0, %s209
    %s224 = sphi 0, %s210
    %s228 = sphi 0, %s228
    %s230 = sphi 0, %s228
    %s231 = sphi 0, %s230
    %s245 = sphi 0, %s231
    %s249 = sphi 0, %s249
    %s251 = sphi 0, %s249
    %s252 = sphi 0, %s251
    %s266 = sphi 0, %s252
    %s272 = sphi 0, %s274
    %s275 = sphi 0, %s272
    %s276 = sphi 0, %s275
    %s292 = sphi 0, %s276
    %s298 = sphi 0, %s300
    %s301 = sphi 0, %s298
    %s302 = sphi 0, %s301
    %s318 = sphi 0, %s302
  $region4: #{base_model_forward.14} parent=0 // loop_header_branch
    %24 = sbr.rel (%p22) target = $region8
  $region5: #{base_model_forward.14} parent=0 // loop_body
    %s26 = ssub.s32 %s21, 1
    %s27 = ssub.s32 %s21, 2
    %s28 = sadd.s32 %s21, 1
    %s29 = ssub.s32 %s21, %s28
    %p30 = scmp.eq.s32.totalorder %s29, 0
    %s32 = sadd.s32 %s31, 1
    %s33 = scalar_select %p30, %s31, %s32
    %p36 = pneg %p30
    %p37 = scmp.eq.s32.totalorder %s21, 1
    %p38 = por %p36, %p37
    %p39 = scmp.ne.s32.totalorder %s31, %s34
    %p40 = scmp.eq.s32.totalorder %s21, 0
    %p41 = por %p39, %p40
    %p42 = scmp.ne.s32.totalorder %s31, %s34
    %p43 = scmp.eq.s32.totalorder %s26, 1
    %p44 = por %p42, %p43
    %p45 = scmp.ne.s32.totalorder %s34, %s35
    %p46 = scmp.eq.s32.totalorder %s26, 0
    %p47 = por %p45, %p46
    %p48 = scmp.ne.s32.totalorder %s34, %s35
    %p49 = scmp.eq.s32.totalorder %s27, 1
    %p50 = por %p48, %p49
    %p52 = scmp.ne.s32.totalorder %s35, %s51
    %p53 = scmp.eq.s32.totalorder %s27, 0
    %p54 = por %p52, %p53
    %s55 = ssub.s32 %s21, %s28
    %p56 = scmp.eq.s32.totalorder %s55, 0
    %s58 = sadd.s32 %s57, 1
    %s59 = scalar_select %p56, %s57, %s58
    %p62 = pneg %p56
    %p63 = scmp.eq.s32.totalorder %s21, 1
    %p64 = por %p62, %p63
    %p65 = scmp.ne.s32.totalorder %s57, %s60
    %p66 = scmp.eq.s32.totalorder %s21, 0
    %p67 = por %p65, %p66
    %p68 = scmp.ne.s32.totalorder %s57, %s60
    %p69 = scmp.eq.s32.totalorder %s26, 1
    %p70 = por %p68, %p69
    %p71 = scmp.ne.s32.totalorder %s60, %s61
    %p72 = scmp.eq.s32.totalorder %s26, 0
    %p73 = por %p71, %p72
    %p74 = scmp.ne.s32.totalorder %s60, %s61
    %p75 = scmp.eq.s32.totalorder %s27, 1
    %p76 = por %p74, %p75
    %p78 = scmp.ne.s32.totalorder %s61, %s77
    %p79 = scmp.eq.s32.totalorder %s27, 0
    %p80 = por %p78, %p79
    %s82 = sadd.s32 %s81, 1
    %p85 = scmp.eq.s32.totalorder %s21, 1
    %p86 = scmp.ne.s32.totalorder %s81, %s83
    %p87 = scmp.eq.s32.totalorder %s21, 0
    %p88 = por %p86, %p87
    %p89 = scmp.ne.s32.totalorder %s81, %s83
    %p90 = scmp.eq.s32.totalorder %s26, 1
    %p91 = por %p89, %p90
    %p92 = scmp.ne.s32.totalorder %s83, %s84
    %p93 = scmp.eq.s32.totalorder %s26, 0
    %p94 = por %p92, %p93
    %p95 = scmp.ne.s32.totalorder %s83, %s84
    %p96 = scmp.eq.s32.totalorder %s27, 1
    %p97 = por %p95, %p96
    %p99 = scmp.ne.s32.totalorder %s84, %s98
    %p100 = scmp.eq.s32.totalorder %s27, 0
    %p101 = por %p99, %p100
    %s103 = sadd.s32 %s102, 1
    %p106 = scmp.eq.s32.totalorder %s21, 1
    %p107 = scmp.ne.s32.totalorder %s102, %s104
    %p108 = scmp.eq.s32.totalorder %s21, 0
    %p109 = por %p107, %p108
    %p110 = scmp.ne.s32.totalorder %s102, %s104
    %p111 = scmp.eq.s32.totalorder %s26, 1
    %p112 = por %p110, %p111
    %p113 = scmp.ne.s32.totalorder %s104, %s105
    %p114 = scmp.eq.s32.totalorder %s26, 0
    %p115 = por %p113, %p114
    %p116 = scmp.ne.s32.totalorder %s104, %s105
    %p117 = scmp.eq.s32.totalorder %s27, 1
    %p118 = por %p116, %p117
    %p120 = scmp.ne.s32.totalorder %s105, %s119
    %p121 = scmp.eq.s32.totalorder %s27, 0
    %p122 = por %p120, %p121
    %s124 = sadd.s32 %s123, 1
    %p127 = scmp.eq.s32.totalorder %s21, 1
    %p128 = scmp.ne.s32.totalorder %s123, %s125
    %p129 = scmp.eq.s32.totalorder %s21, 0
    %p130 = por %p128, %p129
    %p131 = scmp.ne.s32.totalorder %s123, %s125
    %p132 = scmp.eq.s32.totalorder %s26, 1
    %p133 = por %p131, %p132
    %p134 = scmp.ne.s32.totalorder %s125, %s126
    %p135 = scmp.eq.s32.totalorder %s26, 0
    %p136 = por %p134, %p135
    %p137 = scmp.ne.s32.totalorder %s125, %s126
    %p138 = scmp.eq.s32.totalorder %s27, 1
    %p139 = por %p137, %p138
    %p141 = scmp.ne.s32.totalorder %s126, %s140
    %p142 = scmp.eq.s32.totalorder %s27, 0
    %p143 = por %p141, %p142
    %s145 = sadd.s32 %s144, 1
    %p148 = scmp.eq.s32.totalorder %s21, 1
    %p149 = scmp.ne.s32.totalorder %s144, %s146
    %p150 = scmp.eq.s32.totalorder %s21, 0
    %p151 = por %p149, %p150
    %p152 = scmp.ne.s32.totalorder %s144, %s146
    %p153 = scmp.eq.s32.totalorder %s26, 1
    %p154 = por %p152, %p153
    %p155 = scmp.ne.s32.totalorder %s146, %s147
    %p156 = scmp.eq.s32.totalorder %s26, 0
    %p157 = por %p155, %p156
    %p158 = scmp.ne.s32.totalorder %s146, %s147
    %p159 = scmp.eq.s32.totalorder %s27, 1
    %p160 = por %p158, %p159
    %p162 = scmp.ne.s32.totalorder %s147, %s161
    %p163 = scmp.eq.s32.totalorder %s27, 0
    %p164 = por %p162, %p163
    %s166 = sadd.s32 %s165, 1
    %p169 = scmp.eq.s32.totalorder %s21, 1
    %p170 = scmp.ne.s32.totalorder %s165, %s167
    %p171 = scmp.eq.s32.totalorder %s21, 0
    %p172 = por %p170, %p171
    %p173 = scmp.ne.s32.totalorder %s165, %s167
    %p174 = scmp.eq.s32.totalorder %s26, 1
    %p175 = por %p173, %p174
    %p176 = scmp.ne.s32.totalorder %s167, %s168
    %p177 = scmp.eq.s32.totalorder %s26, 0
    %p178 = por %p176, %p177
    %p179 = scmp.ne.s32.totalorder %s167, %s168
    %p180 = scmp.eq.s32.totalorder %s27, 1
    %p181 = por %p179, %p180
    %p183 = scmp.ne.s32.totalorder %s168, %s182
    %p184 = scmp.eq.s32.totalorder %s27, 0
    %p185 = por %p183, %p184
    %s187 = sadd.s32 %s186, 1
    %p190 = scmp.eq.s32.totalorder %s21, 1
    %p191 = scmp.ne.s32.totalorder %s186, %s188
    %p192 = scmp.eq.s32.totalorder %s21, 0
    %p193 = por %p191, %p192
    %p194 = scmp.ne.s32.totalorder %s186, %s188
    %p195 = scmp.eq.s32.totalorder %s26, 1
    %p196 = por %p194, %p195
    %p197 = scmp.ne.s32.totalorder %s188, %s189
    %p198 = scmp.eq.s32.totalorder %s26, 0
    %p199 = por %p197, %p198
    %p200 = scmp.ne.s32.totalorder %s188, %s189
    %p201 = scmp.eq.s32.totalorder %s27, 1
    %p202 = por %p200, %p201
    %p204 = scmp.ne.s32.totalorder %s189, %s203
    %p205 = scmp.eq.s32.totalorder %s27, 0
    %p206 = por %p204, %p205
    %s208 = sadd.s32 %s207, 1
    %p211 = scmp.eq.s32.totalorder %s21, 1
    %p212 = scmp.ne.s32.totalorder %s207, %s209
    %p213 = scmp.eq.s32.totalorder %s21, 0
    %p214 = por %p212, %p213
    %p215 = scmp.ne.s32.totalorder %s207, %s209
    %p216 = scmp.eq.s32.totalorder %s26, 1
    %p217 = por %p215, %p216
    %p218 = scmp.ne.s32.totalorder %s209, %s210
    %p219 = scmp.eq.s32.totalorder %s26, 0
    %p220 = por %p218, %p219
    %p221 = scmp.ne.s32.totalorder %s209, %s210
    %p222 = scmp.eq.s32.totalorder %s27, 1
    %p223 = por %p221, %p222
    %p225 = scmp.ne.s32.totalorder %s210, %s224
    %p226 = scmp.eq.s32.totalorder %s27, 0
    %p227 = por %p225, %p226
    %s229 = sadd.s32 %s228, 1
    %p232 = scmp.eq.s32.totalorder %s21, 1
    %p233 = scmp.ne.s32.totalorder %s228, %s230
    %p234 = scmp.eq.s32.totalorder %s21, 0
    %p235 = por %p233, %p234
    %p236 = scmp.ne.s32.totalorder %s228, %s230
    %p237 = scmp.eq.s32.totalorder %s26, 1
    %p238 = por %p236, %p237
    %p239 = scmp.ne.s32.totalorder %s230, %s231
    %p240 = scmp.eq.s32.totalorder %s26, 0
    %p241 = por %p239, %p240
    %p242 = scmp.ne.s32.totalorder %s230, %s231
    %p243 = scmp.eq.s32.totalorder %s27, 1
    %p244 = por %p242, %p243
    %p246 = scmp.ne.s32.totalorder %s231, %s245
    %p247 = scmp.eq.s32.totalorder %s27, 0
    %p248 = por %p246, %p247
    %s250 = sadd.s32 %s249, 1
    %p253 = scmp.eq.s32.totalorder %s21, 1
    %p254 = scmp.ne.s32.totalorder %s249, %s251
    %p255 = scmp.eq.s32.totalorder %s21, 0
    %p256 = por %p254, %p255
    %p257 = scmp.ne.s32.totalorder %s249, %s251
    %p258 = scmp.eq.s32.totalorder %s26, 1
    %p259 = por %p257, %p258
    %p260 = scmp.ne.s32.totalorder %s251, %s252
    %p261 = scmp.eq.s32.totalorder %s26, 0
    %p262 = por %p260, %p261
    %p263 = scmp.ne.s32.totalorder %s251, %s252
    %p264 = scmp.eq.s32.totalorder %s27, 1
    %p265 = por %p263, %p264
    %p267 = scmp.ne.s32.totalorder %s252, %s266
    %p268 = scmp.eq.s32.totalorder %s27, 0
    %p269 = por %p267, %p268
    %s270 = ssub.s32 %s21, %s28
    %p271 = scmp.eq.s32.totalorder %s270, 0
    %s273 = sadd.s32 %s272, 1
    %s274 = scalar_select %p271, %s272, %s273
    %p277 = pneg %p271
    %p278 = scmp.eq.s32.totalorder %s21, 1
    %p279 = por %p277, %p278
    %p280 = scmp.ne.s32.totalorder %s272, %s275
    %p281 = scmp.eq.s32.totalorder %s21, 0
    %p282 = por %p280, %p281
    %p283 = scmp.ne.s32.totalorder %s272, %s275
    %p284 = scmp.eq.s32.totalorder %s26, 1
    %p285 = por %p283, %p284
    %p286 = scmp.ne.s32.totalorder %s275, %s276
    %p287 = scmp.eq.s32.totalorder %s26, 0
    %p288 = por %p286, %p287
    %p289 = scmp.ne.s32.totalorder %s275, %s276
    %p290 = scmp.eq.s32.totalorder %s27, 1
    %p291 = por %p289, %p290
    %p293 = scmp.ne.s32.totalorder %s276, %s292
    %p294 = scmp.eq.s32.totalorder %s27, 0
    %p295 = por %p293, %p294
    %s296 = ssub.s32 %s21, %s28
    %p297 = scmp.eq.s32.totalorder %s296, 0
    %s299 = sadd.s32 %s298, 1
    %s300 = scalar_select %p297, %s298, %s299
    %p303 = pneg %p297
    %p304 = scmp.eq.s32.totalorder %s21, 1
    %p305 = por %p303, %p304
    %p306 = scmp.ne.s32.totalorder %s298, %s301
    %p307 = scmp.eq.s32.totalorder %s21, 0
    %p308 = por %p306, %p307
    %p309 = scmp.ne.s32.totalorder %s298, %s301
    %p310 = scmp.eq.s32.totalorder %s26, 1
    %p311 = por %p309, %p310
    %p312 = scmp.ne.s32.totalorder %s301, %s302
    %p313 = scmp.eq.s32.totalorder %s26, 0
    %p314 = por %p312, %p313
    %p315 = scmp.ne.s32.totalorder %s301, %s302
    %p316 = scmp.eq.s32.totalorder %s27, 1
    %p317 = por %p315, %p316
    %p319 = scmp.ne.s32.totalorder %s302, %s318
    %p320 = scmp.eq.s32.totalorder %s27, 0
    %p321 = por %p319, %p320
    %p322 = scmp.le.s32.totalorder 1, %s21
    %p323 = scmp.lt.s32.totalorder %s21, 3
    %p324 = pnand %p322, %p323
    %p325 = pneg %p324
    // Predicated region
    $region9: #{base_model_forward.14} parent=5 // pred_check
      _
    $region10: #{base_model_forward.14} parent=5 // pred_check_branch
      %327 = sbr.rel (%p324) target = $region12
    $region11: #{base_model_forward.14} parent=5 // pred_region
      %s328 = ssub.s32 %s21, 1
      // Predicated region
      $region13: #{base_model_forward.14} parent=11 // pred_check
        %p329 = pneg %p94
      $region14: #{base_model_forward.14} parent=11 // pred_check_branch
        %331 = sbr.rel (%p329) target = $region16
      $region15: #{base_model_forward.14} parent=11 // pred_region
        _
      $region16: #{base_model_forward.14} parent=11 // pred_fallthru
        _
      // Predicated region
      $region17: #{base_model_forward.14} parent=11 // pred_check
        %p332 = pneg %p115
      $region18: #{base_model_forward.14} parent=11 // pred_check_branch
        %334 = sbr.rel (%p332) target = $region20
      $region19: #{base_model_forward.14} parent=11 // pred_region
        _
      $region20: #{base_model_forward.14} parent=11 // pred_fallthru
        _
      // Predicated region
      $region21: #{base_model_forward.14} parent=11 // pred_check
        %p335 = pneg %p136
      $region22: #{base_model_forward.14} parent=11 // pred_check_branch
        %337 = sbr.rel (%p335) target = $region24
      $region23: #{base_model_forward.14} parent=11 // pred_region
        _
      $region24: #{base_model_forward.14} parent=11 // pred_fallthru
        _
      // Predicated region
      $region25: #{base_model_forward.14} parent=11 // pred_check
        %p338 = pneg %p157
      $region26: #{base_model_forward.14} parent=11 // pred_check_branch
        %340 = sbr.rel (%p338) target = $region28
      $region27: #{base_model_forward.14} parent=11 // pred_region
        _
      $region28: #{base_model_forward.14} parent=11 // pred_fallthru
        _
      // Predicated region
      $region29: #{base_model_forward.14} parent=11 // pred_check
        %p341 = pneg %p178
      $region30: #{base_model_forward.14} parent=11 // pred_check_branch
        %343 = sbr.rel (%p341) target = $region32
      $region31: #{base_model_forward.14} parent=11 // pred_region
        _
      $region32: #{base_model_forward.14} parent=11 // pred_fallthru
        _
      // Predicated region
      $region33: #{base_model_forward.14} parent=11 // pred_check
        %p344 = pneg %p199
      $region34: #{base_model_forward.14} parent=11 // pred_check_branch
        %346 = sbr.rel (%p344) target = $region36
      $region35: #{base_model_forward.14} parent=11 // pred_region
        _
      $region36: #{base_model_forward.14} parent=11 // pred_fallthru
        _
      // Predicated region
      $region37: #{base_model_forward.14} parent=11 // pred_check
        %p347 = pneg %p220
      $region38: #{base_model_forward.14} parent=11 // pred_check_branch
        %349 = sbr.rel (%p347) target = $region40
      $region39: #{base_model_forward.14} parent=11 // pred_region
        _
      $region40: #{base_model_forward.14} parent=11 // pred_fallthru
        _
      // Predicated region
      $region41: #{base_model_forward.14} parent=11 // pred_check
        %p350 = pneg %p241
      $region42: #{base_model_forward.14} parent=11 // pred_check_branch
        %352 = sbr.rel (%p350) target = $region44
      $region43: #{base_model_forward.14} parent=11 // pred_region
        _
      $region44: #{base_model_forward.14} parent=11 // pred_fallthru
        _
      // Predicated region
      $region45: #{base_model_forward.14} parent=11 // pred_check
        %p353 = pneg %p262
      $region46: #{base_model_forward.14} parent=11 // pred_check_branch
        %355 = sbr.rel (%p353) target = $region48
      $region47: #{base_model_forward.14} parent=11 // pred_region
        _
      $region48: #{base_model_forward.14} parent=11 // pred_fallthru
        _
    $region12: #{base_model_forward.14} parent=5 // pred_fallthru
      _
    %p356 = scmp.lt.s32.totalorder %s21, 2
    // Predicated region
    $region49: #{base_model_forward.14} parent=5 // pred_check
      %p357 = pneg %p356
    $region50: #{base_model_forward.14} parent=5 // pred_check_branch
      %359 = sbr.rel (%p357) target = $region52
    $region51: #{base_model_forward.14} parent=5 // pred_region
      // Predicated region
      $region53: #{base_model_forward.14} parent=51 // pred_check
        %p360 = pneg %p41
      $region54: #{base_model_forward.14} parent=51 // pred_check_branch
        %362 = sbr.rel (%p360) target = $region56
      $region55: #{base_model_forward.14} parent=51 // pred_region
        %s363 = smul.u32 4, %s21
        %p364 = scmp.lt.s32.totalorder %s363, 7
        %s365 = scalar_select %p364, %s363, 7
        %s366 = smul.addr %s365, 8
        %s367 = scalar_lea.vmem %s0, %s366
        %s368 = smul.u32 4, %s21
      $region56: #{base_model_forward.14} parent=51 // pred_fallthru
        _
      // Predicated region
      $region57: #{base_model_forward.14} parent=51 // pred_check
        %p369 = pneg %p67
      $region58: #{base_model_forward.14} parent=51 // pred_check_branch
        %371 = sbr.rel (%p369) target = $region60
      $region59: #{base_model_forward.14} parent=51 // pred_region
        %s372 = smul.u32 4, %s21
        %p373 = scmp.lt.s32.totalorder %s372, 7
        %s374 = scalar_select %p373, %s372, 7
        %s375 = smul.addr %s374, 8
        %s376 = scalar_lea.vmem %s1, %s375
        %s377 = smul.u32 4, %s21
      $region60: #{base_model_forward.14} parent=51 // pred_fallthru
        _
    $region52: #{base_model_forward.14} parent=5 // pred_fallthru
      _
    %p378 = scmp.le.s32.totalorder 1, %s21
    %p379 = scmp.lt.s32.totalorder %s21, 3
    %p380 = pnand %p378, %p379
    %p381 = pneg %p380
    // Predicated region
    $region61: #{base_model_forward.14} parent=5 // pred_check
      _
    $region62: #{base_model_forward.14} parent=5 // pred_check_branch
      %383 = sbr.rel (%p380) target = $region64
    $region63: #{base_model_forward.14} parent=5 // pred_region
      %s384 = ssub.s32 %s21, 1
      %s385 = smul.u32 4, %s26
      %p386 = scmp.lt.s32.totalorder %s385, 7
      %s387 = scalar_select %p386, %s385, 7
      %s388 = smul.addr %s387, 8
      %s389 = scalar_lea.vmem %s0, %s388
      %p390 = pneg %p47
      %p391 = pneg %p44
      %s392 = smul.u32 4, %s26
      %p393 = scmp.lt.s32.totalorder %s392, 7
      %s394 = scalar_select %p393, %s392, 7
      %s395 = smul.addr %s394, 8
      %s396 = scalar_lea.vmem %s1, %s395
      %p397 = pneg %p73
      %p398 = pneg %p70
      %p399 = pneg %p94
      %p400 = pneg %p91
      %p401 = pneg %p115
      %p402 = pneg %p112
      %p403 = pneg %p136
      %p404 = pneg %p133
      %p405 = pneg %p157
      %p406 = pneg %p154
      %p407 = pneg %p178
      %p408 = pneg %p175
      %p409 = pneg %p199
      %p410 = pneg %p196
      %p411 = pneg %p220
      %p412 = pneg %p217
      %p413 = pneg %p241
      %p414 = pneg %p238
      %p415 = pneg %p262
      %p416 = pneg %p259
      %p417 = pneg %p288
      %p418 = pneg %p285
      %s419 = smul.u32 4, %s26
      %p420 = scmp.lt.s32.totalorder %s419, 7
      %s421 = scalar_select %p420, %s419, 7
      %s422 = smul.addr %s421, 8
      %s423 = scalar_lea.vmem %s11, %s422
      %p424 = pneg %p314
      %p425 = pneg %p311
      %s426 = smul.u32 4, %s26
      %p427 = scmp.lt.s32.totalorder %s426, 7
      %s428 = scalar_select %p427, %s426, 7
      %s429 = smul.addr %s428, 8
      %s430 = scalar_lea.vmem %s12, %s429
      %s431 = smul.u32 4, %s26
      %p432 = scmp.lt.s32.totalorder %s431, 7
      %s433 = scalar_select %p432, %s431, 7
      %s434 = smul.addr %s433, 8
      %s435 = scalar_lea.vmem %s0, %s434
      %s436 = smul.u32 4, %s26
      %s437 = smul.u32 4, %s26
      %p438 = scmp.lt.s32.totalorder %s437, 7
      %s439 = scalar_select %p438, %s437, 7
      %s440 = smul.addr %s439, 8
      %s441 = scalar_lea.vmem %s1, %s440
      %s442 = smul.u32 4, %s26
      %s443 = smul.u32 4, %s26
      %p444 = scmp.lt.s32.totalorder %s443, 7
      %s445 = scalar_select %p444, %s443, 7
      %s446 = smul.addr %s445, 8
      %s447 = scalar_lea.vmem %s11, %s446
      %s448 = smul.u32 4, %s26
      %s449 = smul.u32 4, %s26
      %p450 = scmp.lt.s32.totalorder %s449, 7
      %s451 = scalar_select %p450, %s449, 7
      %s452 = smul.addr %s451, 8
      %s453 = scalar_lea.vmem %s12, %s452
      %s454 = smul.u32 4, %s26
      %v456 = vld [vmem:[%s4] sm:$0x3]
      %v457 = vld [vmem:[%s5] sm:$0xf]
      %v458 = vld [vmem:[%s5 + $0x4] sm:$0xf]
      %v459 = vld [vmem:[%s6] sm:$0x1]
      %v460 = vld [vmem:[%s7] sm:$0x1]
      %v461 = vld [vmem:[%s8] sm:$0x3]
      %v462 = vld [vmem:[%s9] sm:$0xf]
      %v463 = vld [vmem:[%s9 + $0x4] sm:$0xf]
      %v464 = vld [vmem:[%s9 + $0x8] sm:$0xf]
      %v465 = vld [vmem:[%s9 + $0xc] sm:$0xf]
      %v466 = vld [vmem:[#allocation2] sm:$0x1]
      %v467 = vld [vmem:[%s435] sm:$0xff]
      %v468 = vld [vmem:[%s435 + $0x8] sm:$0xff]
      %v469 = vld [vmem:[%s435 + $0x10] sm:$0xff]
      %v470 = vld [vmem:[%s435 + $0x18] sm:$0xff]
      %v471 = vld [vmem:[%s2] sm:$0x1]
      %v472 = vld [vmem:[%s3] sm:$0x1]
      %vm473 = vcmask 130048
      %v474 = vsel %vm473, %v467, 0.0
      %475 = vadd.xlane.f32.xlu0 %v474
      %v476 = vpop.xlane.xlu0 %475
      %v477 = vsel %vm473, %v468, 0.0
      %478 = vadd.xlane.f32.xlu0 %v477
      %v479 = vpop.xlane.xlu0 %478
      %v480 = vsel %vm473, %v469, 0.0
      %481 = vadd.xlane.f32.xlu0 %v480
      %v482 = vpop.xlane.xlu0 %481
      %v483 = vsel %vm473, %v470, 0.0
      %484 = vadd.xlane.f32.xlu0 %v483
      %v485 = vpop.xlane.xlu0 %484
      %v486 = vrcp.pop 16.0
      %v487 = vmul.f32 %v476, %v486
      %v488 = vmul.f32 %v479, %v486
      %v489 = vmul.f32 %v482, %v486
      %v490 = vmul.f32 %v485, %v486
      %v491 = vsub.f32 %v467, %v487
      %v492 = vsub.f32 %v468, %v488
      %v493 = vsub.f32 %v469, %v489
      %v494 = vsub.f32 %v470, %v490
      %v495 = vmul.f32 %v491, %v491
      %v496 = vmul.f32 %v492, %v492
      %v497 = vmul.f32 %v493, %v493
      %v498 = vmul.f32 %v494, %v494
      %v499 = vsel %vm473, %v495, 0.0
      %500 = vadd.xlane.f32.xlu0 %v499
      %v501 = vpop.xlane.xlu0 %500
      %v502 = vsel %vm473, %v496, 0.0
      %503 = vadd.xlane.f32.xlu0 %v502
      %v504 = vpop.xlane.xlu0 %503
      %v505 = vsel %vm473, %v497, 0.0
      %506 = vadd.xlane.f32.xlu0 %v505
      %v507 = vpop.xlane.xlu0 %506
      %v508 = vsel %vm473, %v498, 0.0
      %509 = vadd.xlane.f32.xlu0 %v508
      %v510 = vpop.xlane.xlu0 %509
      %v511 = vmul.f32 %v501, %v486
      %v512 = vmul.f32 %v504, %v486
      %v513 = vmul.f32 %v507, %v486
      %v514 = vmul.f32 %v510, %v486
      %v515 = vadd.f32 %v511, 1e-05
      %v516 = vadd.f32 %v512, 1e-05
      %v517 = vadd.f32 %v513, 1e-05
      %v518 = vadd.f32 %v514, 1e-05
      %v519 = vrsqrt.pop %v515
      %v520 = vrsqrt.pop %v516
      %v521 = vrsqrt.pop %v517
      %v522 = vrsqrt.pop %v518
      %v523 = vmul.f32 %v491, %v519
      %v524 = vmul.f32 %v492, %v520
      %v525 = vmul.f32 %v493, %v521
      %v526 = vmul.f32 %v494, %v522
      %v528 = vlaneseq
      %v529 = vshrl.u32 %v528, 7
      %v530 = vsub.s32 0, %v529
      %v531 = vrot.slane %v471, %v530
      %v533 = vmul.f32 %v523, %v531
      %v534 = vmul.f32 %v524, %v531
      %v535 = vmul.f32 %v525, %v531
      %v536 = vmul.f32 %v526, %v531
      %v538 = vlaneseq
      %v539 = vshrl.u32 %v538, 7
      %v540 = vsub.s32 0, %v539
      %v541 = vrot.slane %v472, %v540
      %v543 = vadd.f32 %v533, %v541
      %v544 = vadd.f32 %v534, %v541
      %v545 = vadd.f32 %v535, %v541
      %v546 = vadd.f32 %v536, %v541
      %v547 = vld [vmem:[%s441] sm:$0xff]
      %v548 = vld [vmem:[%s441 + $0x8] sm:$0xff]
      %v549 = vld [vmem:[%s441 + $0x10] sm:$0xff]
      %v550 = vld [vmem:[%s441 + $0x18] sm:$0xff]
      %v551 = vmul.f32 %v547, %v547
      %v552 = vmul.f32 %v548, %v548
      %v553 = vmul.f32 %v549, %v549
      %v554 = vmul.f32 %v550, %v550
      %559 = vrot.lane.b32.xlu0 %v551, 127
      %v560 = vpop.permute.xlu0 %559
      %561 = vrot.lane.b32.xlu0 %v552, 127
      %v562 = vpop.permute.xlu0 %561
      %563 = vrot.lane.b32.xlu0 %v553, 127
      %v564 = vpop.permute.xlu0 %563
      %565 = vrot.lane.b32.xlu0 %v554, 127
      %v566 = vpop.permute.xlu0 %565
      %v571 = vadd.f32 %v551, %v560
      %v572 = vadd.f32 %v552, %v562
      %v573 = vadd.f32 %v553, %v564
      %v574 = vadd.f32 %v554, %v566
      %575 = vrot.lane.b32.xlu0 %v551, 126
      %v576 = vpop.permute.xlu0 %575
      %577 = vrot.lane.b32.xlu0 %v552, 126
      %v578 = vpop.permute.xlu0 %577
      %579 = vrot.lane.b32.xlu0 %v553, 126
      %v580 = vpop.permute.xlu0 %579
      %581 = vrot.lane.b32.xlu0 %v554, 126
      %v582 = vpop.permute.xlu0 %581
      %v587 = vadd.f32 %v571, %v576
      %v588 = vadd.f32 %v572, %v578
      %v589 = vadd.f32 %v573, %v580
      %v590 = vadd.f32 %v574, %v582
      %v591 = vmax.f32 %v587, 1e-08
      %v592 = vmax.f32 %v588, 1e-08
      %v593 = vmax.f32 %v589, 1e-08
      %v594 = vmax.f32 %v590, 1e-08
      %v595 = vadd.f32 %v591, 0.0
      %v596 = vadd.f32 %v592, 0.0
      %v597 = vadd.f32 %v593, 0.0
      %v598 = vadd.f32 %v594, 0.0
      %v599 = vrsqrt.pop %v595
      %v600 = vrsqrt.pop %v596
      %v601 = vrsqrt.pop %v597
      %v602 = vrsqrt.pop %v598
      %604 = vset.pattern.permute.xlu0 0
      %605 = vperm.xlu0 %604, %v599
      %v606 = vpop.permute.xlu0 %605
      %609 = vset.pattern.permute.xlu0 0
      %610 = vperm.xlu0 %609, %v600
      %v611 = vpop.permute.xlu0 %610
      %614 = vset.pattern.permute.xlu0 0
      %615 = vperm.xlu0 %614, %v601
      %v616 = vpop.permute.xlu0 %615
      %619 = vset.pattern.permute.xlu0 0
      %620 = vperm.xlu0 %619, %v602
      %v621 = vpop.permute.xlu0 %620
      %v623 = vmul.f32 %v547, %v606
      %v624 = vmul.f32 %v548, %v611
      %v625 = vmul.f32 %v549, %v616
      %v626 = vmul.f32 %v550, %v621
      %v627 = vpack.c.bf16 %v624, %v623
      %v628 = vpack.c.bf16 %v626, %v625
      %vm629 = vcmask 23552
      %v631 = vsel %vm629, %v627, 0
      %v634 = vsel %vm629, %v628, 0
      %vm636 = vcmask 1040384
      %vm637 = vcmask 1041408
      %v638 = vsel %vm636, 4294967295, 65535
      %v639 = vsel %vm637, %v638, 0
      %v641 = vand.u32 %v456, %v639
      %643 = vmatprep.subr.bf16.mxu0 0
      %644 = vmatpush1.bf16.msra.mxu0 %v641
      %645 = vmatprep.subr.bf16.mxu0 0
      %646 = vmatpush1.bf16.msra.mxu0 0
      %647 = vmatprep.subr.bf16.mxu0 0
      %648 = vmatpush1.bf16.msra.mxu0 0
      %649 = vmatprep.subr.bf16.mxu0 0
      %650 = vmatpush1.bf16.msra.mxu0 0
      %651 = vmatprep.subr.bf16.mxu0 0
      %652 = vmatpush1.bf16.msra.mxu0 0
      %653 = vmatprep.subr.bf16.mxu0 0
      %654 = vmatpush1.bf16.msra.mxu0 0
      %655 = vmatprep.subr.bf16.mxu0 0
      %656 = vmatpush1.bf16.msra.mxu0 0
      %657 = vmatprep.subr.bf16.mxu0 0
      %658 = vmatpush1.bf16.msra.mxu0 0
      %659 = vmatprep.subr.bf16.mxu0 0
      %660 = vmatpush1.bf16.msra.mxu0 0
      %661 = vmatprep.subr.bf16.mxu0 0
      %662 = vmatpush1.bf16.msra.mxu0 0
      %663 = vmatprep.subr.bf16.mxu0 0
      %664 = vmatpush1.bf16.msra.mxu0 0
      %665 = vmatprep.subr.bf16.mxu0 0
      %666 = vmatpush1.bf16.msra.mxu0 0
      %667 = vmatprep.subr.bf16.mxu0 0
      %668 = vmatpush1.bf16.msra.mxu0 0
      %669 = vmatprep.subr.bf16.mxu0 0
      %670 = vmatpush1.bf16.msra.mxu0 0
      %671 = vmatprep.subr.bf16.mxu0 0
      %672 = vmatpush1.bf16.msra.mxu0 0
      %673 = vmatprep.subr.bf16.mxu0 0
      %674 = vmatpush1.bf16.msra.mxu0 0
      %675 = vmatprep.mubr.bf16.mxu0 0
      %676 = vmatmul.mubr.bf16.gmra.mrb[0].mxu0 %v631
      %v677 = vpop.f32.mrb[0].mxu0
      %v678 = vadd.f32 0.0, %v677
      %v679 = vpop.f32.mrb[0].mxu0
      %v680 = vpop.f32.mrb[0].mxu0
      %v681 = vadd.f32 0.0, %v680
      %v682 = vpop.f32.mrb[0].mxu0
      %683 = vmatprep.mubr.bf16.mxu0 0
      %684 = vmatmul.mubr.bf16.gmra.mrb[0].mxu0 %v634
      %v685 = vpop.f32.mrb[0].mxu0
      %v686 = vadd.f32 0.0, %v685
      %v687 = vpop.f32.mrb[0].mxu0
      %v688 = vpop.f32.mrb[0].mxu0
      %v689 = vadd.f32 0.0, %v688
      %v690 = vpop.f32.mrb[0].mxu0
      %691 = vdwg.mxu0
      %v692 = vmul.f32 %v678, %v678
      %v693 = vmul.f32 %v681, %v681
      %v694 = vmul.f32 %v686, %v686
      %v695 = vmul.f32 %v689, %v689
      %700 = vrot.lane.b32.xlu0 %v692, 127
      %v701 = vpop.permute.xlu0 %700
      %702 = vrot.lane.b32.xlu0 %v693, 127
      %v703 = vpop.permute.xlu0 %702
      %704 = vrot.lane.b32.xlu0 %v694, 127
      %v705 = vpop.permute.xlu0 %704
      %706 = vrot.lane.b32.xlu0 %v695, 127
      %v707 = vpop.permute.xlu0 %706
      %v712 = vadd.f32 %v692, %v701
      %v713 = vadd.f32 %v693, %v703
      %v714 = vadd.f32 %v694, %v705
      %v715 = vadd.f32 %v695, %v707
      %716 = vrot.lane.b32.xlu0 %v692, 126
      %v717 = vpop.permute.xlu0 %716
      %718 = vrot.lane.b32.xlu0 %v693, 126
      %v719 = vpop.permute.xlu0 %718
      %720 = vrot.lane.b32.xlu0 %v694, 126
      %v721 = vpop.permute.xlu0 %720
      %722 = vrot.lane.b32.xlu0 %v695, 126
      %v723 = vpop.permute.xlu0 %722
      %v728 = vadd.f32 %v712, %v717
      %v729 = vadd.f32 %v713, %v719
      %v730 = vadd.f32 %v714, %v721
      %v731 = vadd.f32 %v715, %v723
      %v732 = vmax.f32 %v728, 1e-08
      %v733 = vmax.f32 %v729, 1e-08
      %v734 = vmax.f32 %v730, 1e-08
      %v735 = vmax.f32 %v731, 1e-08
      %v736 = vrsqrt.pop %v732
      %v737 = vmul.f32 %v732, %v736
      %vm738 = vcmp.eq.f32.partialorder %v732, inf
      %v739 = vsel %vm738, %v732, %v737
      %vm740 = vcmp.eq.f32.partialorder %v732, 0.0
      %v741 = vand.u32 %v732, 2147483648
      %v742 = vsel %vm740, %v741, %v739
      %v743 = vrsqrt.pop %v733
      %v744 = vmul.f32 %v733, %v743
      %vm745 = vcmp.eq.f32.partialorder %v733, inf
      %v746 = vsel %vm745, %v733, %v744
      %vm747 = vcmp.eq.f32.partialorder %v733, 0.0
      %v748 = vand.u32 %v733, 2147483648
      %v749 = vsel %vm747, %v748, %v746
      %v750 = vrsqrt.pop %v734
      %v751 = vmul.f32 %v734, %v750
      %vm752 = vcmp.eq.f32.partialorder %v734, inf
      %v753 = vsel %vm752, %v734, %v751
      %vm754 = vcmp.eq.f32.partialorder %v734, 0.0
      %v755 = vand.u32 %v734, 2147483648
      %v756 = vsel %vm754, %v755, %v753
      %v757 = vrsqrt.pop %v735
      %v758 = vmul.f32 %v735, %v757
      %vm759 = vcmp.eq.f32.partialorder %v735, inf
      %v760 = vsel %vm759, %v735, %v758
      %vm761 = vcmp.eq.f32.partialorder %v735, 0.0
      %v762 = vand.u32 %v735, 2147483648
      %v763 = vsel %vm761, %v762, %v760
      %v764 = vpack.c.bf16 %v544, %v543
      %v765 = vpack.c.bf16 %v546, %v545
      %v766 = vpack.c.bf16 %v749, %v742
      %v767 = vpack.c.bf16 %v763, %v756
      %vm768 = vcmask 7168
      %v770 = vsel %vm768, %v766, 0
      %v773 = vsel %vm768, %v767, 0
      %v775 = vsel 0, 4294967295, 65535
      %v776 = vsel %vm636, %v775, 0
      %v778 = vand.u32 %v459, %v776
      %780 = vmatprep.subr.bf16.mxu0 0
      %781 = vmatpush1.bf16.msra.mxu0 %v778
      %782 = vmatprep.subr.bf16.mxu0 0
      %783 = vmatpush1.bf16.msra.mxu0 0
      %784 = vmatprep.subr.bf16.mxu0 0
      %785 = vmatpush1.bf16.msra.mxu0 0
      %786 = vmatprep.subr.bf16.mxu0 0
      %787 = vmatpush1.bf16.msra.mxu0 0
      %788 = vmatprep.subr.bf16.mxu0 0
      %789 = vmatpush1.bf16.msra.mxu0 0
      %790 = vmatprep.subr.bf16.mxu0 0
      %791 = vmatpush1.bf16.msra.mxu0 0
      %792 = vmatprep.subr.bf16.mxu0 0
      %793 = vmatpush1.bf16.msra.mxu0 0
      %794 = vmatprep.subr.bf16.mxu0 0
      %795 = vmatpush1.bf16.msra.mxu0 0
      %796 = vmatprep.subr.bf16.mxu0 0
      %797 = vmatpush1.bf16.msra.mxu0 0
      %798 = vmatprep.subr.bf16.mxu0 0
      %799 = vmatpush1.bf16.msra.mxu0 0
      %800 = vmatprep.subr.bf16.mxu0 0
      %801 = vmatpush1.bf16.msra.mxu0 0
      %802 = vmatprep.subr.bf16.mxu0 0
      %803 = vmatpush1.bf16.msra.mxu0 0
      %804 = vmatprep.subr.bf16.mxu0 0
      %805 = vmatpush1.bf16.msra.mxu0 0
      %806 = vmatprep.subr.bf16.mxu0 0
      %807 = vmatpush1.bf16.msra.mxu0 0
      %808 = vmatprep.subr.bf16.mxu0 0
      %809 = vmatpush1.bf16.msra.mxu0 0
      %810 = vmatprep.subr.bf16.mxu0 0
      %811 = vmatpush1.bf16.msra.mxu0 0
      %812 = vmatprep.mubr.bf16.mxu0 0
      %813 = vmatmul.mubr.bf16.gmra.mrb[0].mxu0 %v770
      %v814 = vpop.f32.mrb[0].mxu0
      %v815 = vadd.f32 0.0, %v814
      %v816 = vpop.f32.mrb[0].mxu0
      %v817 = vpop.f32.mrb[0].mxu0
      %v818 = vadd.f32 0.0, %v817
      %v819 = vpop.f32.mrb[0].mxu0
      %820 = vmatprep.mubr.bf16.mxu0 0
      %821 = vmatmul.mubr.bf16.gmra.mrb[0].mxu0 %v773
      %v822 = vpop.f32.mrb[0].mxu0
      %v823 = vadd.f32 0.0, %v822
      %v824 = vpop.f32.mrb[0].mxu0
      %v825 = vpop.f32.mrb[0].mxu0
      %v826 = vadd.f32 0.0, %v825
      %v827 = vpop.f32.mrb[0].mxu0
      %828 = vdwg.mxu0
      %v831 = vunpack.c.l.b16 %v457
      %v832 = vunpack.c.l.b16 %v458
      %v833 = vpack.c.b16 %v832, %v831
      %v836 = vsel %vm473, %v764, 0
      %v839 = vsel %vm473, %v765, 0
      %841 = vmatprep.subr.bf16.mxu0 0
      %842 = vmatpush1.bf16.msra.mxu0 %v833
      %843 = vmatprep.subr.bf16.mxu0 0
      %844 = vmatpush1.bf16.msra.mxu0 0
      %845 = vmatprep.subr.bf16.mxu0 0
      %846 = vmatpush1.bf16.msra.mxu0 0
      %847 = vmatprep.subr.bf16.mxu0 0
      %848 = vmatpush1.bf16.msra.mxu0 0
      %849 = vmatprep.subr.bf16.mxu0 0
      %850 = vmatpush1.bf16.msra.mxu0 0
      %851 = vmatprep.subr.bf16.mxu0 0
      %852 = vmatpush1.bf16.msra.mxu0 0
      %853 = vmatprep.subr.bf16.mxu0 0
      %854 = vmatpush1.bf16.msra.mxu0 0
      %855 = vmatprep.subr.bf16.mxu0 0
      %856 = vmatpush1.bf16.msra.mxu0 0
      %857 = vmatprep.subr.bf16.mxu0 0
      %858 = vmatpush1.bf16.msra.mxu0 0
      %859 = vmatprep.subr.bf16.mxu0 0
      %860 = vmatpush1.bf16.msra.mxu0 0
      %861 = vmatprep.subr.bf16.mxu0 0
      %862 = vmatpush1.bf16.msra.mxu0 0
      %863 = vmatprep.subr.bf16.mxu0 0
      %864 = vmatpush1.bf16.msra.mxu0 0
      %865 = vmatprep.subr.bf16.mxu0 0
      %866 = vmatpush1.bf16.msra.mxu0 0
      %867 = vmatprep.subr.bf16.mxu0 0
      %868 = vmatpush1.bf16.msra.mxu0 0
      %869 = vmatprep.subr.bf16.mxu0 0
      %870 = vmatpush1.bf16.msra.mxu0 0
      %871 = vmatprep.subr.bf16.mxu0 0
      %872 = vmatpush1.bf16.msra.mxu0 0
      %873 = vmatprep.mubr.bf16.mxu0 0
      %874 = vmatmul.mubr.bf16.gmra.mrb[0].mxu0 %v836
      %v875 = vpop.f32.mrb[0].mxu0
      %v876 = vadd.f32 %v815, %v875
      %v877 = vpop.f32.mrb[0].mxu0
      %v878 = vpop.f32.mrb[0].mxu0
      %v879 = vadd.f32 %v818, %v878
      %v880 = vpop.f32.mrb[0].mxu0
      %881 = vmatprep.mubr.bf16.mxu0 0
      %882 = vmatmul.mubr.bf16.gmra.mrb[0].mxu0 %v839
      %v883 = vpop.f32.mrb[0].mxu0
      %v884 = vadd.f32 %v823, %v883
      %v885 = vpop.f32.mrb[0].mxu0
      %v886 = vpop.f32.mrb[0].mxu0
      %v887 = vadd.f32 %v826, %v886
      %v888 = vpop.f32.mrb[0].mxu0
      %889 = vdwg.mxu0
      %v891 = vlaneseq
      %v892 = vshrl.u32 %v891, 7
      %v893 = vsub.s32 0, %v892
      %v894 = vrot.slane %v460, %v893
      %v896 = vadd.f32 %v876, %v894
      %v897 = vadd.f32 %v879, %v894
      %v898 = vadd.f32 %v884, %v894
      %v899 = vadd.f32 %v887, %v894
      %v900 = vpack.c.bf16 %v681, %v678
      %v901 = vpack.c.bf16 %v689, %v686
      %v903 = vsel %vm629, %v900, 0
      %v906 = vsel %vm629, %v901, 0
      %v909 = vand.u32 %v461, %v639
      %911 = vmatprep.subr.bf16.mxu0 0
      %912 = vmatpush1.bf16.msra.mxu0 %v909
      %913 = vmatprep.subr.bf16.mxu0 0
      %914 = vmatpush1.bf16.msra.mxu0 0
      %915 = vmatprep.subr.bf16.mxu0 0
      %916 = vmatpush1.bf16.msra.mxu0 0
      %917 = vmatprep.subr.bf16.mxu0 0
      %918 = vmatpush1.bf16.msra.mxu0 0
      %919 = vmatprep.subr.bf16.mxu0 0
      %920 = vmatpush1.bf16.msra.mxu0 0
      %921 = vmatprep.subr.bf16.mxu0 0
      %922 = vmatpush1.bf16.msra.mxu0 0
      %923 = vmatprep.subr.bf16.mxu0 0
      %924 = vmatpush1.bf16.msra.mxu0 0
      %925 = vmatprep.subr.bf16.mxu0 0
      %926 = vmatpush1.bf16.msra.mxu0 0
      %927 = vmatprep.subr.bf16.mxu0 0
      %928 = vmatpush1.bf16.msra.mxu0 0
      %929 = vmatprep.subr.bf16.mxu0 0
      %930 = vmatpush1.bf16.msra.mxu0 0
      %931 = vmatprep.subr.bf16.mxu0 0
      %932 = vmatpush1.bf16.msra.mxu0 0
      %933 = vmatprep.subr.bf16.mxu0 0
      %934 = vmatpush1.bf16.msra.mxu0 0
      %935 = vmatprep.subr.bf16.mxu0 0
      %936 = vmatpush1.bf16.msra.mxu0 0
      %937 = vmatprep.subr.bf16.mxu0 0
      %938 = vmatpush1.bf16.msra.mxu0 0
      %939 = vmatprep.subr.bf16.mxu0 0
      %940 = vmatpush1.bf16.msra.mxu0 0
      %941 = vmatprep.subr.bf16.mxu0 0
      %942 = vmatpush1.bf16.msra.mxu0 0
      %943 = vmatprep.mubr.bf16.mxu0 0
      %944 = vmatmul.mubr.bf16.gmra.mrb[0].mxu0 %v903
      %v945 = vpop.f32.mrb[0].mxu0
      %v946 = vadd.f32 0.0, %v945
      %v947 = vpop.f32.mrb[0].mxu0
      %v948 = vpop.f32.mrb[0].mxu0
      %v949 = vadd.f32 0.0, %v948
      %v950 = vpop.f32.mrb[0].mxu0
      %951 = vmatprep.mubr.bf16.mxu0 0
      %952 = vmatmul.mubr.bf16.gmra.mrb[0].mxu0 %v906
      %v953 = vpop.f32.mrb[0].mxu0
      %v954 = vadd.f32 0.0, %v953
      %v955 = vpop.f32.mrb[0].mxu0
      %v956 = vpop.f32.mrb[0].mxu0
      %v957 = vadd.f32 0.0, %v956
      %v958 = vpop.f32.mrb[0].mxu0
      %959 = vdwg.mxu0
      %v960 = vpack.c.bf16 %v897, %v896
      %v961 = vpack.c.bf16 %v899, %v898
      %v963 = vlaneseq
      %v964 = vshrl.u32 %v963, 7
      %v965 = vsub.s32 0, %v964
      %v966 = vrot.slane %v466, %v965
      %v972 = vunpack.c.l.b16 %v462
      %v973 = vunpack.c.l.b16 %v463
      %v974 = vunpack.c.l.b16 %v464
      %v975 = vunpack.c.l.b16 %v465
      %v976 = vpack.c.b16 %v973, %v972
      %v977 = vpack.c.b16 %v975, %v974
      %vm980 = vcmask 261120
      %v982 = vsel %vm980, %v960, 0
      %v985 = vsel %vm980, %v961, 0
      %987 = vmatprep.subr.bf16.mxu0 0
      %988 = vmatpush1.bf16.msra.mxu0 %v976
      %989 = vmatprep.subr.bf16.mxu0 0
      %990 = vmatpush1.bf16.msra.mxu0 %v977
      %991 = vmatprep.subr.bf16.mxu0 0
      %992 = vmatpush1.bf16.msra.mxu0 0
      %993 = vmatprep.subr.bf16.mxu0 0
      %994 = vmatpush1.bf16.msra.mxu0 0
      %995 = vmatprep.subr.bf16.mxu0 0
      %996 = vmatpush1.bf16.msra.mxu0 0
      %997 = vmatprep.subr.bf16.mxu0 0
      %998 = vmatpush1.bf16.msra.mxu0 0
      %999 = vmatprep.subr.bf16.mxu0 0
      %1000 = vmatpush1.bf16.msra.mxu0 0
      %1001 = vmatprep.subr.bf16.mxu0 0
      %1002 = vmatpush1.bf16.msra.mxu0 0
      %1003 = vmatprep.subr.bf16.mxu0 0
      %1004 = vmatpush1.bf16.msra.mxu0 0
      %1005 = vmatprep.subr.bf16.mxu0 0
      %1006 = vmatpush1.bf16.msra.mxu0 0
      %1007 = vmatprep.subr.bf16.mxu0 0
      %1008 = vmatpush1.bf16.msra.mxu0 0
      %1009 = vmatprep.subr.bf16.mxu0 0
      %1010 = vmatpush1.bf16.msra.mxu0 0
      %1011 = vmatprep.subr.bf16.mxu0 0
      %1012 = vmatpush1.bf16.msra.mxu0 0
      %1013 = vmatprep.subr.bf16.mxu0 0
      %1014 = vmatpush1.bf16.msra.mxu0 0
      %1015 = vmatprep.subr.bf16.mxu0 0
      %1016 = vmatpush1.bf16.msra.mxu0 0
      %1017 = vmatprep.subr.bf16.mxu0 0
      %1018 = vmatpush1.bf16.msra.mxu0 0
      %1019 = vmatprep.mubr.bf16.mxu0 0
      %1020 = vmatmul.mubr.bf16.gmra.mrb[0].mxu0 %v982
      %v1021 = vpop.f32.mrb[0].mxu0
      %v1022 = vadd.f32 %v966, %v1021
      %v1023 = vpop.f32.mrb[0].mxu0
      %v1024 = vpop.f32.mrb[0].mxu0
      %v1025 = vadd.f32 %v966, %v1024
      %v1026 = vpop.f32.mrb[0].mxu0
      %1027 = vmatprep.mubr.bf16.mxu0 0
      %1028 = vmatmul.mubr.bf16.gmra.mrb[0].mxu0 %v985
      %v1029 = vpop.f32.mrb[0].mxu0
      %v1030 = vadd.f32 %v966, %v1029
      %v1031 = vpop.f32.mrb[0].mxu0
      %v1032 = vpop.f32.mrb[0].mxu0
      %v1033 = vadd.f32 %v966, %v1032
      %v1034 = vpop.f32.mrb[0].mxu0
      %1035 = vdwg.mxu0
      %v1036 = vxor.u32 %v1022, 2147483648
      %v1037 = vxor.u32 %v1025, 2147483648
      %v1038 = vxor.u32 %v1030, 2147483648
      %v1039 = vxor.u32 %v1033, 2147483648
      %v1040 = vmul.f32 %v1036, 1.442695
      %v1041 = vpow.pop %v1040
      %v1042 = vmul.f32 %v1037, 1.442695
      %v1043 = vpow.pop %v1042
      %v1044 = vmul.f32 %v1038, 1.442695
      %v1045 = vpow.pop %v1044
      %v1046 = vmul.f32 %v1039, 1.442695
      %v1047 = vpow.pop %v1046
      %v1048 = vadd.f32 %v1041, 1.0
      %v1049 = vadd.f32 %v1043, 1.0
      %v1050 = vadd.f32 %v1045, 1.0
      %v1051 = vadd.f32 %v1047, 1.0
      %v1052 = vrcp.pop %v1048
      %v1053 = vmul.f32 1.0, %v1052
      %v1054 = vrcp.pop %v1049
      %v1055 = vmul.f32 1.0, %v1054
      %v1056 = vrcp.pop %v1050
      %v1057 = vmul.f32 1.0, %v1056
      %v1058 = vrcp.pop %v1051
      %v1059 = vmul.f32 1.0, %v1058
      %1064 = vrot.lane.b32.xlu0 %v1053, 1
      %v1065 = vpop.permute.xlu0 %1064
      %1066 = vrot.lane.b32.xlu0 %v1055, 1
      %v1067 = vpop.permute.xlu0 %1066
      %1068 = vrot.lane.b32.xlu0 %v1057, 1
      %v1069 = vpop.permute.xlu0 %1068
      %1070 = vrot.lane.b32.xlu0 %v1059, 1
      %v1071 = vpop.permute.xlu0 %1070
      %1076 = vrot.lane.b32.xlu0 %v1053, 2
      %v1077 = vpop.permute.xlu0 %1076
      %1078 = vrot.lane.b32.xlu0 %v1055, 2
      %v1079 = vpop.permute.xlu0 %1078
      %1080 = vrot.lane.b32.xlu0 %v1057, 2
      %v1081 = vpop.permute.xlu0 %1080
      %1082 = vrot.lane.b32.xlu0 %v1059, 2
      %v1083 = vpop.permute.xlu0 %1082
      %v1088 = vsel %vm768, %v1053, %v1065
      %v1089 = vsel %vm768, %v1055, %v1067
      %v1090 = vsel %vm768, %v1057, %v1069
      %v1091 = vsel %vm768, %v1059, %v1071
      %vm1092 = vcmask 15360
      %v1093 = vsel %vm1092, %v1088, %v1077
      %v1094 = vsel %vm1092, %v1089, %v1079
      %v1095 = vsel %vm1092, %v1090, %v1081
      %v1096 = vsel %vm1092, %v1091, %v1083
      %v1097 = vmul.f32 %v946, %v1093
      %v1098 = vmul.f32 %v949, %v1094
      %v1099 = vmul.f32 %v954, %v1095
      %v1100 = vmul.f32 %v957, %v1096
      %1101 = vst.msk [vmem:[%s447] sm:$0xff] %vm980, %v896
      %1102 = vst.msk [vmem:[%s447 + $0x8] sm:$0xff] %vm980, %v897
      %1103 = vst.msk [vmem:[%s447 + $0x10] sm:$0xff] %vm980, %v898
      %1104 = vst.msk [vmem:[%s447 + $0x18] sm:$0xff] %vm980, %v899
      %1105 = vst.msk [vmem:[%s453] sm:$0xff] %vm629, %v1097
      %1106 = vst.msk [vmem:[%s453 + $0x8] sm:$0xff] %vm629, %v1098
      %1107 = vst.msk [vmem:[%s453 + $0x10] sm:$0xff] %vm629, %v1099
      %1108 = vst.msk [vmem:[%s453 + $0x18] sm:$0xff] %vm629, %v1100
      %s1109 = smul.u32 4, %s26
      %p1110 = scmp.lt.s32.totalorder %s1109, 7
      %s1111 = scalar_select %p1110, %s1109, 7
      %s1112 = smul.addr %s1111, 8
      %s1113 = scalar_lea.vmem %s11, %s1112
      %s1114 = smul.u32 4, %s26
      %p1115 = scmp.lt.s32.totalorder %s1114, 7
      %s1116 = scalar_select %p1115, %s1114, 7
      %s1117 = smul.addr %s1116, 8
      %s1118 = scalar_lea.vmem %s12, %s1117
      // Predicated region
      $region65: #{base_model_forward.14} parent=63 // pred_check
        %p1119 = pneg %p285
      $region66: #{base_model_forward.14} parent=63 // pred_check_branch
        %1121 = sbr.rel (%p1119) target = $region68
      $region67: #{base_model_forward.14} parent=63 // pred_region
        %s1122 = smul.u32 4, %s26
      $region68: #{base_model_forward.14} parent=63 // pred_fallthru
        _
      // Predicated region
      $region69: #{base_model_forward.14} parent=63 // pred_check
        %p1123 = pneg %p311
      $region70: #{base_model_forward.14} parent=63 // pred_check_branch
        %1125 = sbr.rel (%p1123) target = $region72
      $region71: #{base_model_forward.14} parent=63 // pred_region
        %s1126 = smul.u32 4, %s26
      $region72: #{base_model_forward.14} parent=63 // pred_fallthru
        _
    $region64: #{base_model_forward.14} parent=5 // pred_fallthru
      _
    %p1127 = scmp.le.s32.totalorder 2, %s21
    // Predicated region
    $region73: #{base_model_forward.14} parent=5 // pred_check
      %p1128 = pneg %p1127
    $region74: #{base_model_forward.14} parent=5 // pred_check_branch
      %1130 = sbr.rel (%p1128) target = $region76
    $region75: #{base_model_forward.14} parent=5 // pred_region
      %s1131 = ssub.s32 %s21, 2
      // Predicated region
      $region77: #{base_model_forward.14} parent=75 // pred_check
        %p1132 = pneg %p291
      $region78: #{base_model_forward.14} parent=75 // pred_check_branch
        %1134 = sbr.rel (%p1132) target = $region80
      $region79: #{base_model_forward.14} parent=75 // pred_region
        %s1135 = smul.u32 4, %s27
        %p1136 = scmp.lt.s32.totalorder %s1135, 7
        %s1137 = scalar_select %p1136, %s1135, 7
        %s1138 = smul.addr %s1137, 8
        %s1139 = scalar_lea.vmem %s11, %s1138
      $region80: #{base_model_forward.14} parent=75 // pred_fallthru
        _
      // Predicated region
      $region81: #{base_model_forward.14} parent=75 // pred_check
        %p1140 = pneg %p317
      $region82: #{base_model_forward.14} parent=75 // pred_check_branch
        %1142 = sbr.rel (%p1140) target = $region84
      $region83: #{base_model_forward.14} parent=75 // pred_region
        %s1143 = smul.u32 4, %s27
        %p1144 = scmp.lt.s32.totalorder %s1143, 7
        %s1145 = scalar_select %p1144, %s1143, 7
        %s1146 = smul.addr %s1145, 8
        %s1147 = scalar_lea.vmem %s12, %s1146
      $region84: #{base_model_forward.14} parent=75 // pred_fallthru
        _
    $region76: #{base_model_forward.14} parent=5 // pred_fallthru
      _
  $region6: #{base_model_forward.14} parent=0 // loop_footer
    %s25 = sadd.s32 1, %s21
  $region7: #{base_model_forward.14} parent=0 // loop_footer_branch
    %20 = sbr.rel target = $region3
  $region8: #{base_model_forward.14} parent=0 // loop_exit
    _

// kernel: base_model_forward.15
$region0: #{base_model_forward.15}
  #allocation0 [shape = 'u32[]', space=smem, size = 0x4, offset = 0x4, fixed_abs, tag = 'smem constant byte address 0x4 - core index']
  #allocation1 [shape = 'u32[144,128]{1,0:T(1,128)}', space=vmem, size = 0x12000, scoped, tag = 'internal scratch']
  %s0 = inlined_call_operand.smem [shape: u32[30], index: -1, kind: input, shape index: {}]
  %s1 = sld [smem:[%s0]]
  %s2 = scalar_lea.smem %s0, 1
  %s3 = sld [smem:[%s2]]
  %s4 = scalar_lea.smem %s0, 2
  %s5 = sld [smem:[%s4]]
  %s6 = scalar_lea.smem %s0, 3
  %s7 = sld [smem:[%s6]]
  %s8 = scalar_lea.smem %s0, 4
  %s9 = sld [smem:[%s8]]
  %s10 = scalar_lea.smem %s0, 5
  %s11 = sld [smem:[%s10]]
  %s12 = scalar_lea.smem %s0, 6
  %s13 = sld [smem:[%s12]]
  %s14 = scalar_lea.smem %s0, 7
  %s15 = sld [smem:[%s14]]
  %s16 = scalar_lea.smem %s0, 8
  %s17 = sld [smem:[%s16]]
  %s18 = scalar_lea.smem %s0, 9
  %s19 = sld [smem:[%s18]]
  %s20 = scalar_lea.smem %s0, 10
  %s21 = sld [smem:[%s20]]
  %s22 = scalar_lea.smem %s0, 11
  %s23 = sld [smem:[%s22]]
  %s24 = scalar_lea.smem %s0, 12
  %s25 = sld [smem:[%s24]]
  %s26 = scalar_lea.smem %s0, 13
  %s27 = sld [smem:[%s26]]
  %s28 = scalar_lea.smem %s0, 14
  %s29 = sld [smem:[%s28]]
  %s30 = scalar_lea.smem %s0, 15
  %s31 = sld [smem:[%s30]]
  %s32 = scalar_lea.smem %s0, 16
  %s33 = sld [smem:[%s32]]
  %s34 = scalar_lea.smem %s0, 17
  %s35 = sld [smem:[%s34]]
  %s36 = scalar_lea.smem %s0, 18
  %s37 = sld [smem:[%s36]]
  %s38 = scalar_lea.smem %s0, 19
  %s39 = sld [smem:[%s38]]
  %s40 = scalar_lea.smem %s0, 20
  %s41 = sld [smem:[%s40]]
  %s42 = scalar_lea.smem %s0, 21
  %s43 = sld [smem:[%s42]]
  %s44 = scalar_lea.smem %s0, 22
  %s45 = sld [smem:[%s44]]
  %s46 = scalar_lea.smem %s0, 23
  %s47 = sld [smem:[%s46]]
  %s48 = scalar_lea.smem %s0, 24
  %s49 = sld [smem:[%s48]]
  %s50 = scalar_lea.smem %s0, 25
  %s51 = sld [smem:[%s50]]
  %s52 = scalar_lea.smem %s0, 26
  %s53 = sld [smem:[%s52]]
  %s54 = scalar_lea.smem %s0, 27
  %s55 = sld [smem:[%s54]]
  %s56 = scalar_lea.smem %s0, 28
  %s57 = sld [smem:[%s56]]
  %s58 = scalar_lea.smem %s0, 29
  %s59 = sld [smem:[%s58]]
  %60 = xla_tuple %s57, %s59
  %s61 = sld [smem:[#allocation0]]
  $region153: #{base_model_forward.15} parent=0
    _
  %s63 = ssub.s32 1, %s61
  %s64 = scalar_select 0, %s63, %s61
  loop: start=0, step=1, limit=4
  $region2: #{base_model_forward.15} parent=0 // loop_pre_header
    _
  $region3: #{base_model_forward.15} parent=0 // loop_header
    %s66 = sphi 0, %s70
    %p67 = scmp.ge.s32.totalorder %s66, 4
    %s76 = sphi 0, %s78
    %s79 = sphi 0, %s76
    %s80 = sphi 0, %s79
    %s96 = sphi 0, %s80
    %s102 = sphi 0, %s104
    %s105 = sphi 0, %s102
    %s106 = sphi 0, %s105
    %s122 = sphi 0, %s106
    %s128 = sphi 0, %s130
    %s131 = sphi 0, %s128
    %s132 = sphi 0, %s131
    %s148 = sphi 0, %s132
    %s154 = sphi 0, %s156
    %s157 = sphi 0, %s154
    %s158 = sphi 0, %s157
    %s174 = sphi 0, %s158
    %s180 = sphi 0, %s182
    %s183 = sphi 0, %s180
    %s184 = sphi 0, %s183
    %s200 = sphi 0, %s184
    %s206 = sphi 0, %s208
    %s209 = sphi 0, %s206
    %s210 = sphi 0, %s209
    %s226 = sphi 0, %s210
    %s232 = sphi 0, %s234
    %s235 = sphi 0, %s232
    %s236 = sphi 0, %s235
    %s252 = sphi 0, %s236
    %s256 = sphi 0, %s256
    %s258 = sphi 0, %s256
    %s259 = sphi 0, %s258
    %s273 = sphi 0, %s259
    %s277 = sphi 0, %s277
    %s279 = sphi 0, %s277
    %s280 = sphi 0, %s279
    %s294 = sphi 0, %s280
    %s298 = sphi 0, %s298
    %s300 = sphi 0, %s298
    %s301 = sphi 0, %s300
    %s315 = sphi 0, %s301
    %s319 = sphi 0, %s319
    %s321 = sphi 0, %s319
    %s322 = sphi 0, %s321
    %s336 = sphi 0, %s322
    %s340 = sphi 0, %s340
    %s342 = sphi 0, %s340
    %s343 = sphi 0, %s342
    %s357 = sphi 0, %s343
    %s361 = sphi 0, %s361
    %s363 = sphi 0, %s361
    %s364 = sphi 0, %s363
    %s378 = sphi 0, %s364
    %s382 = sphi 0, %s382
    %s384 = sphi 0, %s382
    %s385 = sphi 0, %s384
    %s399 = sphi 0, %s385
    %s403 = sphi 0, %s403
    %s405 = sphi 0, %s403
    %s406 = sphi 0, %s405
    %s420 = sphi 0, %s406
    %s424 = sphi 0, %s424
    %s426 = sphi 0, %s424
    %s427 = sphi 0, %s426
    %s441 = sphi 0, %s427
    %s445 = sphi 0, %s445
    %s447 = sphi 0, %s445
    %s448 = sphi 0, %s447
    %s462 = sphi 0, %s448
    %s466 = sphi 0, %s466
    %s468 = sphi 0, %s466
    %s469 = sphi 0, %s468
    %s483 = sphi 0, %s469
    %s487 = sphi 0, %s487
    %s489 = sphi 0, %s487
    %s490 = sphi 0, %s489
    %s504 = sphi 0, %s490
    %s508 = sphi 0, %s508
    %s510 = sphi 0, %s508
    %s511 = sphi 0, %s510
    %s525 = sphi 0, %s511
    %s529 = sphi 0, %s529
    %s531 = sphi 0, %s529
    %s532 = sphi 0, %s531
    %s546 = sphi 0, %s532
    %s550 = sphi 0, %s550
    %s552 = sphi 0, %s550
    %s553 = sphi 0, %s552
    %s567 = sphi 0, %s553
    %s571 = sphi 0, %s571
    %s573 = sphi 0, %s571
    %s574 = sphi 0, %s573
    %s588 = sphi 0, %s574
    %s592 = sphi 0, %s592
    %s594 = sphi 0, %s592
    %s595 = sphi 0, %s594
    %s609 = sphi 0, %s595
    %s613 = sphi 0, %s613
    %s615 = sphi 0, %s613
    %s616 = sphi 0, %s615
    %s630 = sphi 0, %s616
    %s634 = sphi 0, %s634
    %s636 = sphi 0, %s634
    %s637 = sphi 0, %s636
    %s651 = sphi 0, %s637
    %s655 = sphi 0, %s655
    %s657 = sphi 0, %s655
    %s658 = sphi 0, %s657
    %s672 = sphi 0, %s658
    %s676 = sphi 0, %s676
    %s678 = sphi 0, %s676
    %s679 = sphi 0, %s678
    %s693 = sphi 0, %s679
    %s699 = sphi 0, %s701
    %s702 = sphi 0, %s699
    %s703 = sphi 0, %s702
    %s719 = sphi 0, %s703
    %s725 = sphi 0, %s727
    %s728 = sphi 0, %s725
    %s729 = sphi 0, %s728
    %s745 = sphi 0, %s729
  $region4: #{base_model_forward.15} parent=0 // loop_header_branch
    %69 = sbr.rel (%p67) target = $region8
  $region5: #{base_model_forward.15} parent=0 // loop_body
    %s71 = ssub.s32 %s66, 1
    %s72 = ssub.s32 %s66, 2
    %s73 = sadd.s32 %s66, 1
    %s74 = ssub.s32 %s66, %s73
    %p75 = scmp.eq.s32.totalorder %s74, 0
    %s77 = sadd.s32 %s76, 1
    %s78 = scalar_select %p75, %s76, %s77
    %p81 = pneg %p75
    %p82 = scmp.eq.s32.totalorder %s66, 1
    %p83 = por %p81, %p82
    %p84 = scmp.ne.s32.totalorder %s76, %s79
    %p85 = scmp.eq.s32.totalorder %s66, 0
    %p86 = por %p84, %p85
    %p87 = scmp.ne.s32.totalorder %s76, %s79
    %p88 = scmp.eq.s32.totalorder %s71, 1
    %p89 = por %p87, %p88
    %p90 = scmp.ne.s32.totalorder %s79, %s80
    %p91 = scmp.eq.s32.totalorder %s71, 0
    %p92 = por %p90, %p91
    %p93 = scmp.ne.s32.totalorder %s79, %s80
    %p94 = scmp.eq.s32.totalorder %s72, 1
    %p95 = por %p93, %p94
    %p97 = scmp.ne.s32.totalorder %s80, %s96
    %p98 = scmp.eq.s32.totalorder %s72, 0
    %p99 = por %p97, %p98
    %s100 = ssub.s32 %s66, %s73
    %p101 = scmp.eq.s32.totalorder %s100, 0
    %s103 = sadd.s32 %s102, 1
    %s104 = scalar_select %p101, %s102, %s103
    %p107 = pneg %p101
    %p108 = scmp.eq.s32.totalorder %s66, 1
    %p109 = por %p107, %p108
    %p110 = scmp.ne.s32.totalorder %s102, %s105
    %p111 = scmp.eq.s32.totalorder %s66, 0
    %p112 = por %p110, %p111
    %p113 = scmp.ne.s32.totalorder %s102, %s105
    %p114 = scmp.eq.s32.totalorder %s71, 1
    %p115 = por %p113, %p114
    %p116 = scmp.ne.s32.totalorder %s105, %s106
    %p117 = scmp.eq.s32.totalorder %s71, 0
    %p118 = por %p116, %p117
    %p119 = scmp.ne.s32.totalorder %s105, %s106
    %p120 = scmp.eq.s32.totalorder %s72, 1
    %p121 = por %p119, %p120
    %p123 = scmp.ne.s32.totalorder %s106, %s122
    %p124 = scmp.eq.s32.totalorder %s72, 0
    %p125 = por %p123, %p124
    %s126 = ssub.s32 %s66, %s73
    %p127 = scmp.eq.s32.totalorder %s126, 0
    %s129 = sadd.s32 %s128, 1
    %s130 = scalar_select %p127, %s128, %s129
    %p133 = pneg %p127
    %p134 = scmp.eq.s32.totalorder %s66, 1
    %p135 = por %p133, %p134
    %p136 = scmp.ne.s32.totalorder %s128, %s131
    %p137 = scmp.eq.s32.totalorder %s66, 0
    %p138 = por %p136, %p137
    %p139 = scmp.ne.s32.totalorder %s128, %s131
    %p140 = scmp.eq.s32.totalorder %s71, 1
    %p141 = por %p139, %p140
    %p142 = scmp.ne.s32.totalorder %s131, %s132
    %p143 = scmp.eq.s32.totalorder %s71, 0
    %p144 = por %p142, %p143
    %p145 = scmp.ne.s32.totalorder %s131, %s132
    %p146 = scmp.eq.s32.totalorder %s72, 1
    %p147 = por %p145, %p146
    %p149 = scmp.ne.s32.totalorder %s132, %s148
    %p150 = scmp.eq.s32.totalorder %s72, 0
    %p151 = por %p149, %p150
    %s152 = ssub.s32 %s66, %s73
    %p153 = scmp.eq.s32.totalorder %s152, 0
    %s155 = sadd.s32 %s154, 1
    %s156 = scalar_select %p153, %s154, %s155
    %p159 = pneg %p153
    %p160 = scmp.eq.s32.totalorder %s66, 1
    %p161 = por %p159, %p160
    %p162 = scmp.ne.s32.totalorder %s154, %s157
    %p163 = scmp.eq.s32.totalorder %s66, 0
    %p164 = por %p162, %p163
    %p165 = scmp.ne.s32.totalorder %s154, %s157
    %p166 = scmp.eq.s32.totalorder %s71, 1
    %p167 = por %p165, %p166
    %p168 = scmp.ne.s32.totalorder %s157, %s158
    %p169 = scmp.eq.s32.totalorder %s71, 0
    %p170 = por %p168, %p169
    %p171 = scmp.ne.s32.totalorder %s157, %s158
    %p172 = scmp.eq.s32.totalorder %s72, 1
    %p173 = por %p171, %p172
    %p175 = scmp.ne.s32.totalorder %s158, %s174
    %p176 = scmp.eq.s32.totalorder %s72, 0
    %p177 = por %p175, %p176
    %s178 = ssub.s32 %s66, %s73
    %p179 = scmp.eq.s32.totalorder %s178, 0
    %s181 = sadd.s32 %s180, 1
    %s182 = scalar_select %p179, %s180, %s181
    %p185 = pneg %p179
    %p186 = scmp.eq.s32.totalorder %s66, 1
    %p187 = por %p185, %p186
    %p188 = scmp.ne.s32.totalorder %s180, %s183
    %p189 = scmp.eq.s32.totalorder %s66, 0
    %p190 = por %p188, %p189
    %p191 = scmp.ne.s32.totalorder %s180, %s183
    %p192 = scmp.eq.s32.totalorder %s71, 1
    %p193 = por %p191, %p192
    %p194 = scmp.ne.s32.totalorder %s183, %s184
    %p195 = scmp.eq.s32.totalorder %s71, 0
    %p196 = por %p194, %p195
    %p197 = scmp.ne.s32.totalorder %s183, %s184
    %p198 = scmp.eq.s32.totalorder %s72, 1
    %p199 = por %p197, %p198
    %p201 = scmp.ne.s32.totalorder %s184, %s200
    %p202 = scmp.eq.s32.totalorder %s72, 0
    %p203 = por %p201, %p202
    %s204 = ssub.s32 %s66, %s73
    %p205 = scmp.eq.s32.totalorder %s204, 0
    %s207 = sadd.s32 %s206, 1
    %s208 = scalar_select %p205, %s206, %s207
    %p211 = pneg %p205
    %p212 = scmp.eq.s32.totalorder %s66, 1
    %p213 = por %p211, %p212
    %p214 = scmp.ne.s32.totalorder %s206, %s209
    %p215 = scmp.eq.s32.totalorder %s66, 0
    %p216 = por %p214, %p215
    %p217 = scmp.ne.s32.totalorder %s206, %s209
    %p218 = scmp.eq.s32.totalorder %s71, 1
    %p219 = por %p217, %p218
    %p220 = scmp.ne.s32.totalorder %s209, %s210
    %p221 = scmp.eq.s32.totalorder %s71, 0
    %p222 = por %p220, %p221
    %p223 = scmp.ne.s32.totalorder %s209, %s210
    %p224 = scmp.eq.s32.totalorder %s72, 1
    %p225 = por %p223, %p224
    %p227 = scmp.ne.s32.totalorder %s210, %s226
    %p228 = scmp.eq.s32.totalorder %s72, 0
    %p229 = por %p227, %p228
    %s230 = ssub.s32 %s66, %s73
    %p231 = scmp.eq.s32.totalorder %s230, 0
    %s233 = sadd.s32 %s232, 1
    %s234 = scalar_select %p231, %s232, %s233
    %p237 = pneg %p231
    %p238 = scmp.eq.s32.totalorder %s66, 1
    %p239 = por %p237, %p238
    %p240 = scmp.ne.s32.totalorder %s232, %s235
    %p241 = scmp.eq.s32.totalorder %s66, 0
    %p242 = por %p240, %p241
    %p243 = scmp.ne.s32.totalorder %s232, %s235
    %p244 = scmp.eq.s32.totalorder %s71, 1
    %p245 = por %p243, %p244
    %p246 = scmp.ne.s32.totalorder %s235, %s236
    %p247 = scmp.eq.s32.totalorder %s71, 0
    %p248 = por %p246, %p247
    %p249 = scmp.ne.s32.totalorder %s235, %s236
    %p250 = scmp.eq.s32.totalorder %s72, 1
    %p251 = por %p249, %p250
    %p253 = scmp.ne.s32.totalorder %s236, %s252
    %p254 = scmp.eq.s32.totalorder %s72, 0
    %p255 = por %p253, %p254
    %s257 = sadd.s32 %s256, 1
    %p260 = scmp.eq.s32.totalorder %s66, 1
    %p261 = scmp.ne.s32.totalorder %s256, %s258
    %p262 = scmp.eq.s32.totalorder %s66, 0
    %p263 = por %p261, %p262
    %p264 = scmp.ne.s32.totalorder %s256, %s258
    %p265 = scmp.eq.s32.totalorder %s71, 1
    %p266 = por %p264, %p265
    %p267 = scmp.ne.s32.totalorder %s258, %s259
    %p268 = scmp.eq.s32.totalorder %s71, 0
    %p269 = por %p267, %p268
    %p270 = scmp.ne.s32.totalorder %s258, %s259
    %p271 = scmp.eq.s32.totalorder %s72, 1
    %p272 = por %p270, %p271
    %p274 = scmp.ne.s32.totalorder %s259, %s273
    %p275 = scmp.eq.s32.totalorder %s72, 0
    %p276 = por %p274, %p275
    %s278 = sadd.s32 %s277, 1
    %p281 = scmp.eq.s32.totalorder %s66, 1
    %p282 = scmp.ne.s32.totalorder %s277, %s279
    %p283 = scmp.eq.s32.totalorder %s66, 0
    %p284 = por %p282, %p283
    %p285 = scmp.ne.s32.totalorder %s277, %s279
    %p286 = scmp.eq.s32.totalorder %s71, 1
    %p287 = por %p285, %p286
    %p288 = scmp.ne.s32.totalorder %s279, %s280
    %p289 = scmp.eq.s32.totalorder %s71, 0
    %p290 = por %p288, %p289
    %p291 = scmp.ne.s32.totalorder %s279, %s280
    %p292 = scmp.eq.s32.totalorder %s72, 1
    %p293 = por %p291, %p292
    %p295 = scmp.ne.s32.totalorder %s280, %s294
    %p296 = scmp.eq.s32.totalorder %s72, 0
    %p297 = por %p295, %p296
    %s299 = sadd.s32 %s298, 1
    %p302 = scmp.eq.s32.totalorder %s66, 1
    %p303 = scmp.ne.s32.totalorder %s298, %s300
    %p304 = scmp.eq.s32.totalorder %s66, 0
    %p305 = por %p303, %p304
    %p306 = scmp.ne.s32.totalorder %s298, %s300
    %p307 = scmp.eq.s32.totalorder %s71, 1
    %p308 = por %p306, %p307
    %p309 = scmp.ne.s32.totalorder %s300, %s301
    %p310 = scmp.eq.s32.totalorder %s71, 0
    %p311 = por %p309, %p310
    %p312 = scmp.ne.s32.totalorder %s300, %s301
    %p313 = scmp.eq.s32.totalorder %s72, 1
    %p314 = por %p312, %p313
    %p316 = scmp.ne.s32.totalorder %s301, %s315
    %p317 = scmp.eq.s32.totalorder %s72, 0
    %p318 = por %p316, %p317
    %s320 = sadd.s32 %s319, 1
    %p323 = scmp.eq.s32.totalorder %s66, 1
    %p324 = scmp.ne.s32.totalorder %s319, %s321
    %p325 = scmp.eq.s32.totalorder %s66, 0
    %p326 = por %p324, %p325
    %p327 = scmp.ne.s32.totalorder %s319, %s321
    %p328 = scmp.eq.s32.totalorder %s71, 1
    %p329 = por %p327, %p328
    %p330 = scmp.ne.s32.totalorder %s321, %s322
    %p331 = scmp.eq.s32.totalorder %s71, 0
    %p332 = por %p330, %p331
    %p333 = scmp.ne.s32.totalorder %s321, %s322
    %p334 = scmp.eq.s32.totalorder %s72, 1
    %p335 = por %p333, %p334
    %p337 = scmp.ne.s32.totalorder %s322, %s336
    %p338 = scmp.eq.s32.totalorder %s72, 0
    %p339 = por %p337, %p338
    %s341 = sadd.s32 %s340, 1
    %p344 = scmp.eq.s32.totalorder %s66, 1
    %p345 = scmp.ne.s32.totalorder %s340, %s342
    %p346 = scmp.eq.s32.totalorder %s66, 0
    %p347 = por %p345, %p346
    %p348 = scmp.ne.s32.totalorder %s340, %s342
    %p349 = scmp.eq.s32.totalorder %s71, 1
    %p350 = por %p348, %p349
    %p351 = scmp.ne.s32.totalorder %s342, %s343
    %p352 = scmp.eq.s32.totalorder %s71, 0
    %p353 = por %p351, %p352
    %p354 = scmp.ne.s32.totalorder %s342, %s343
    %p355 = scmp.eq.s32.totalorder %s72, 1
    %p356 = por %p354, %p355
    %p358 = scmp.ne.s32.totalorder %s343, %s357
    %p359 = scmp.eq.s32.totalorder %s72, 0
    %p360 = por %p358, %p359
    %s362 = sadd.s32 %s361, 1
    %p365 = scmp.eq.s32.totalorder %s66, 1
    %p366 = scmp.ne.s32.totalorder %s361, %s363
    %p367 = scmp.eq.s32.totalorder %s66, 0
    %p368 = por %p366, %p367
    %p369 = scmp.ne.s32.totalorder %s361, %s363
    %p370 = scmp.eq.s32.totalorder %s71, 1
    %p371 = por %p369, %p370
    %p372 = scmp.ne.s32.totalorder %s363, %s364
    %p373 = scmp.eq.s32.totalorder %s71, 0
    %p374 = por %p372, %p373
    %p375 = scmp.ne.s32.totalorder %s363, %s364
    %p376 = scmp.eq.s32.totalorder %s72, 1
    %p377 = por %p375, %p376
    %p379 = scmp.ne.s32.totalorder %s364, %s378
    %p380 = scmp.eq.s32.totalorder %s72, 0
    %p381 = por %p379, %p380
    %s383 = sadd.s32 %s382, 1
    %p386 = scmp.eq.s32.totalorder %s66, 1
    %p387 = scmp.ne.s32.totalorder %s382, %s384
    %p388 = scmp.eq.s32.totalorder %s66, 0
    %p389 = por %p387, %p388
    %p390 = scmp.ne.s32.totalorder %s382, %s384
    %p391 = scmp.eq.s32.totalorder %s71, 1
    %p392 = por %p390, %p391
    %p393 = scmp.ne.s32.totalorder %s384, %s385
    %p394 = scmp.eq.s32.totalorder %s71, 0
    %p395 = por %p393, %p394
    %p396 = scmp.ne.s32.totalorder %s384, %s385
    %p397 = scmp.eq.s32.totalorder %s72, 1
    %p398 = por %p396, %p397
    %p400 = scmp.ne.s32.totalorder %s385, %s399
    %p401 = scmp.eq.s32.totalorder %s72, 0
    %p402 = por %p400, %p401
    %s404 = sadd.s32 %s403, 1
    %p407 = scmp.eq.s32.totalorder %s66, 1
    %p408 = scmp.ne.s32.totalorder %s403, %s405
    %p409 = scmp.eq.s32.totalorder %s66, 0
    %p410 = por %p408, %p409
    %p411 = scmp.ne.s32.totalorder %s403, %s405
    %p412 = scmp.eq.s32.totalorder %s71, 1
    %p413 = por %p411, %p412
    %p414 = scmp.ne.s32.totalorder %s405, %s406
    %p415 = scmp.eq.s32.totalorder %s71, 0
    %p416 = por %p414, %p415
    %p417 = scmp.ne.s32.totalorder %s405, %s406
    %p418 = scmp.eq.s32.totalorder %s72, 1
    %p419 = por %p417, %p418
    %p421 = scmp.ne.s32.totalorder %s406, %s420
    %p422 = scmp.eq.s32.totalorder %s72, 0
    %p423 = por %p421, %p422
    %s425 = sadd.s32 %s424, 1
    %p428 = scmp.eq.s32.totalorder %s66, 1
    %p429 = scmp.ne.s32.totalorder %s424, %s426
    %p430 = scmp.eq.s32.totalorder %s66, 0
    %p431 = por %p429, %p430
    %p432 = scmp.ne.s32.totalorder %s424, %s426
    %p433 = scmp.eq.s32.totalorder %s71, 1
    %p434 = por %p432, %p433
    %p435 = scmp.ne.s32.totalorder %s426, %s427
    %p436 = scmp.eq.s32.totalorder %s71, 0
    %p437 = por %p435, %p436
    %p438 = scmp.ne.s32.totalorder %s426, %s427
    %p439 = scmp.eq.s32.totalorder %s72, 1
    %p440 = por %p438, %p439
    %p442 = scmp.ne.s32.totalorder %s427, %s441
    %p443 = scmp.eq.s32.totalorder %s72, 0
    %p444 = por %p442, %p443
    %s446 = sadd.s32 %s445, 1
    %p449 = scmp.eq.s32.totalorder %s66, 1
    %p450 = scmp.ne.s32.totalorder %s445, %s447
    %p451 = scmp.eq.s32.totalorder %s66, 0
    %p452 = por %p450, %p451
    %p453 = scmp.ne.s32.totalorder %s445, %s447
    %p454 = scmp.eq.s32.totalorder %s71, 1
    %p455 = por %p453, %p454
    %p456 = scmp.ne.s32.totalorder %s447, %s448
    %p457 = scmp.eq.s32.totalorder %s71, 0
    %p458 = por %p456, %p457
    %p459 = scmp.ne.s32.totalorder %s447, %s448
    %p460 = scmp.eq.s32.totalorder %s72, 1
    %p461 = por %p459, %p460
    %p463 = scmp.ne.s32.totalorder %s448, %s462
    %p464 = scmp.eq.s32.totalorder %s72, 0
    %p465 = por %p463, %p464
    %s467 = sadd.s32 %s466, 1
    %p470 = scmp.eq.s32.totalorder %s66, 1
    %p471 = scmp.ne.s32.totalorder %s466, %s468
    %p472 = scmp.eq.s32.totalorder %s66, 0
    %p473 = por %p471, %p472
    %p474 = scmp.ne.s32.totalorder %s466, %s468
    %p475 = scmp.eq.s32.totalorder %s71, 1
    %p476 = por %p474, %p475
    %p477 = scmp.ne.s32.totalorder %s468, %s469
    %p478 = scmp.eq.s32.totalorder %s71, 0
    %p479 = por %p477, %p478
    %p480 = scmp.ne.s32.totalorder %s468, %s469
    %p481 = scmp.eq.s32.totalorder %s72, 1
    %p482 = por %p480, %p481
    %p484 = scmp.ne.s32.totalorder %s469, %s483
    %p485 = scmp.eq.s32.totalorder %s72, 0
    %p486 = por %p484, %p485
    %s488 = sadd.s32 %s487, 1
    %p491 = scmp.eq.s32.totalorder %s66, 1
    %p492 = scmp.ne.s32.totalorder %s487, %s489
    %p493 = scmp.eq.s32.totalorder %s66, 0
    %p494 = por %p492, %p493
    %p495 = scmp.ne.s32.totalorder %s487, %s489
    %p496 = scmp.eq.s32.totalorder %s71, 1
    %p497 = por %p495, %p496
    %p498 = scmp.ne.s32.totalorder %s489, %s490
    %p499 = scmp.eq.s32.totalorder %s71, 0
    %p500 = por %p498, %p499
    %p501 = scmp.ne.s32.totalorder %s489, %s490
    %p502 = scmp.eq.s32.totalorder %s72, 1
    %p503 = por %p501, %p502
    %p505 = scmp.ne.s32.totalorder %s490, %s504
    %p506 = scmp.eq.s32.totalorder %s72, 0
    %p507 = por %p505, %p506
    %s509 = sadd.s32 %s508, 1
    %p512 = scmp.eq.s32.totalorder %s66, 1
    %p513 = scmp.ne.s32.totalorder %s508, %s510
    %p514 = scmp.eq.s32.totalorder %s66, 0
    %p515 = por %p513, %p514
    %p516 = scmp.ne.s32.totalorder %s508, %s510
    %p517 = scmp.eq.s32.totalorder %s71, 1
    %p518 = por %p516, %p517
    %p519 = scmp.ne.s32.totalorder %s510, %s511
    %p520 = scmp.eq.s32.totalorder %s71, 0
    %p521 = por %p519, %p520
    %p522 = scmp.ne.s32.totalorder %s510, %s511
    %p523 = scmp.eq.s32.totalorder %s72, 1
    %p524 = por %p522, %p523
    %p526 = scmp.ne.s32.totalorder %s511, %s525
    %p527 = scmp.eq.s32.totalorder %s72, 0
    %p528 = por %p526, %p527
    %s530 = sadd.s32 %s529, 1
    %p533 = scmp.eq.s32.totalorder %s66, 1
    %p534 = scmp.ne.s32.totalorder %s529, %s531
    %p535 = scmp.eq.s32.totalorder %s66, 0
    %p536 = por %p534, %p535
    %p537 = scmp.ne.s32.totalorder %s529, %s531
    %p538 = scmp.eq.s32.totalorder %s71, 1
    %p539 = por %p537, %p538
    %p540 = scmp.ne.s32.totalorder %s531, %s532
    %p541 = scmp.eq.s32.totalorder %s71, 0
    %p542 = por %p540, %p541
    %p543 = scmp.ne.s32.totalorder %s531, %s532
    %p544 = scmp.eq.s32.totalorder %s72, 1
    %p545 = por %p543, %p544
    %p547 = scmp.ne.s32.totalorder %s532, %s546
    %p548 = scmp.eq.s32.totalorder %s72, 0
    %p549 = por %p547, %p548
    %s551 = sadd.s32 %s550, 1
    %p554 = scmp.eq.s32.totalorder %s66, 1
    %p555 = scmp.ne.s32.totalorder %s550, %s552
    %p556 = scmp.eq.s32.totalorder %s66, 0
    %p557 = por %p555, %p556
    %p558 = scmp.ne.s32.totalorder %s550, %s552
    %p559 = scmp.eq.s32.totalorder %s71, 1
    %p560 = por %p558, %p559
    %p561 = scmp.ne.s32.totalorder %s552, %s553
    %p562 = scmp.eq.s32.totalorder %s71, 0
    %p563 = por %p561, %p562
    %p564 = scmp.ne.s32.totalorder %s552, %s553
    %p565 = scmp.eq.s32.totalorder %s72, 1
    %p566 = por %p564, %p565
    %p568 = scmp.ne.s32.totalorder %s553, %s567
    %p569 = scmp.eq.s32.totalorder %s72, 0
    %p570 = por %p568, %p569
    %s572 = sadd.s32 %s571, 1
    %p575 = scmp.eq.s32.totalorder %s66, 1
    %p576 = scmp.ne.s32.totalorder %s571, %s573
    %p577 = scmp.eq.s32.totalorder %s66, 0
    %p578 = por %p576, %p577
    %p579 = scmp.ne.s32.totalorder %s571, %s573
    %p580 = scmp.eq.s32.totalorder %s71, 1
    %p581 = por %p579, %p580
    %p582 = scmp.ne.s32.totalorder %s573, %s574
    %p583 = scmp.eq.s32.totalorder %s71, 0
    %p584 = por %p582, %p583
    %p585 = scmp.ne.s32.totalorder %s573, %s574
    %p586 = scmp.eq.s32.totalorder %s72, 1
    %p587 = por %p585, %p586
    %p589 = scmp.ne.s32.totalorder %s574, %s588
    %p590 = scmp.eq.s32.totalorder %s72, 0
    %p591 = por %p589, %p590
    %s593 = sadd.s32 %s592, 1
    %p596 = scmp.eq.s32.totalorder %s66, 1
    %p597 = scmp.ne.s32.totalorder %s592, %s594
    %p598 = scmp.eq.s32.totalorder %s66, 0
    %p599 = por %p597, %p598
    %p600 = scmp.ne.s32.totalorder %s592, %s594
    %p601 = scmp.eq.s32.totalorder %s71, 1
    %p602 = por %p600, %p601
    %p603 = scmp.ne.s32.totalorder %s594, %s595
    %p604 = scmp.eq.s32.totalorder %s71, 0
    %p605 = por %p603, %p604
    %p606 = scmp.ne.s32.totalorder %s594, %s595
    %p607 = scmp.eq.s32.totalorder %s72, 1
    %p608 = por %p606, %p607
    %p610 = scmp.ne.s32.totalorder %s595, %s609
    %p611 = scmp.eq.s32.totalorder %s72, 0
    %p612 = por %p610, %p611
    %s614 = sadd.s32 %s613, 1
    %p617 = scmp.eq.s32.totalorder %s66, 1
    %p618 = scmp.ne.s32.totalorder %s613, %s615
    %p619 = scmp.eq.s32.totalorder %s66, 0
    %p620 = por %p618, %p619
    %p621 = scmp.ne.s32.totalorder %s613, %s615
    %p622 = scmp.eq.s32.totalorder %s71, 1
    %p623 = por %p621, %p622
    %p624 = scmp.ne.s32.totalorder %s615, %s616
    %p625 = scmp.eq.s32.totalorder %s71, 0
    %p626 = por %p624, %p625
    %p627 = scmp.ne.s32.totalorder %s615, %s616
    %p628 = scmp.eq.s32.totalorder %s72, 1
    %p629 = por %p627, %p628
    %p631 = scmp.ne.s32.totalorder %s616, %s630
    %p632 = scmp.eq.s32.totalorder %s72, 0
    %p633 = por %p631, %p632
    %s635 = sadd.s32 %s634, 1
    %p638 = scmp.eq.s32.totalorder %s66, 1
    %p639 = scmp.ne.s32.totalorder %s634, %s636
    %p640 = scmp.eq.s32.totalorder %s66, 0
    %p641 = por %p639, %p640
    %p642 = scmp.ne.s32.totalorder %s634, %s636
    %p643 = scmp.eq.s32.totalorder %s71, 1
    %p644 = por %p642, %p643
    %p645 = scmp.ne.s32.totalorder %s636, %s637
    %p646 = scmp.eq.s32.totalorder %s71, 0
    %p647 = por %p645, %p646
    %p648 = scmp.ne.s32.totalorder %s636, %s637
    %p649 = scmp.eq.s32.totalorder %s72, 1
    %p650 = por %p648, %p649
    %p652 = scmp.ne.s32.totalorder %s637, %s651
    %p653 = scmp.eq.s32.totalorder %s72, 0
    %p654 = por %p652, %p653
    %s656 = sadd.s32 %s655, 1
    %p659 = scmp.eq.s32.totalorder %s66, 1
    %p660 = scmp.ne.s32.totalorder %s655, %s657
    %p661 = scmp.eq.s32.totalorder %s66, 0
    %p662 = por %p660, %p661
    %p663 = scmp.ne.s32.totalorder %s655, %s657
    %p664 = scmp.eq.s32.totalorder %s71, 1
    %p665 = por %p663, %p664
    %p666 = scmp.ne.s32.totalorder %s657, %s658
    %p667 = scmp.eq.s32.totalorder %s71, 0
    %p668 = por %p666, %p667
    %p669 = scmp.ne.s32.totalorder %s657, %s658
    %p670 = scmp.eq.s32.totalorder %s72, 1
    %p671 = por %p669, %p670
    %p673 = scmp.ne.s32.totalorder %s658, %s672
    %p674 = scmp.eq.s32.totalorder %s72, 0
    %p675 = por %p673, %p674
    %s677 = sadd.s32 %s676, 1
    %p680 = scmp.eq.s32.totalorder %s66, 1
    %p681 = scmp.ne.s32.totalorder %s676, %s678
    %p682 = scmp.eq.s32.totalorder %s66, 0
    %p683 = por %p681, %p682
    %p684 = scmp.ne.s32.totalorder %s676, %s678
    %p685 = scmp.eq.s32.totalorder %s71, 1
    %p686 = por %p684, %p685
    %p687 = scmp.ne.s32.totalorder %s678, %s679
    %p688 = scmp.eq.s32.totalorder %s71, 0
    %p689 = por %p687, %p688
    %p690 = scmp.ne.s32.totalorder %s678, %s679
    %p691 = scmp.eq.s32.totalorder %s72, 1
    %p692 = por %p690, %p691
    %p694 = scmp.ne.s32.totalorder %s679, %s693
    %p695 = scmp.eq.s32.totalorder %s72, 0
    %p696 = por %p694, %p695
    %s697 = ssub.s32 %s66, %s73
    %p698 = scmp.eq.s32.totalorder %s697, 0
    %s700 = sadd.s32 %s699, 1
    %s701 = scalar_select %p698, %s699, %s700
    %p704 = pneg %p698
    %p705 = scmp.eq.s32.totalorder %s66, 1
    %p706 = por %p704, %p705
    %p707 = scmp.ne.s32.totalorder %s699, %s702
    %p708 = scmp.eq.s32.totalorder %s66, 0
    %p709 = por %p707, %p708
    %p710 = scmp.ne.s32.totalorder %s699, %s702
    %p711 = scmp.eq.s32.totalorder %s71, 1
    %p712 = por %p710, %p711
    %p713 = scmp.ne.s32.totalorder %s702, %s703
    %p714 = scmp.eq.s32.totalorder %s71, 0
    %p715 = por %p713, %p714
    %p716 = scmp.ne.s32.totalorder %s702, %s703
    %p717 = scmp.eq.s32.totalorder %s72, 1
    %p718 = por %p716, %p717
    %p720 = scmp.ne.s32.totalorder %s703, %s719
    %p721 = scmp.eq.s32.totalorder %s72, 0
    %p722 = por %p720, %p721
    %s723 = ssub.s32 %s66, %s73
    %p724 = scmp.eq.s32.totalorder %s723, 0
    %s726 = sadd.s32 %s725, 1
    %s727 = scalar_select %p724, %s725, %s726
    %p730 = pneg %p724
    %p731 = scmp.eq.s32.totalorder %s66, 1
    %p732 = por %p730, %p731
    %p733 = scmp.ne.s32.totalorder %s725, %s728
    %p734 = scmp.eq.s32.totalorder %s66, 0
    %p735 = por %p733, %p734
    %p736 = scmp.ne.s32.totalorder %s725, %s728
    %p737 = scmp.eq.s32.totalorder %s71, 1
    %p738 = por %p736, %p737
    %p739 = scmp.ne.s32.totalorder %s728, %s729
    %p740 = scmp.eq.s32.totalorder %s71, 0
    %p741 = por %p739, %p740
    %p742 = scmp.ne.s32.totalorder %s728, %s729
    %p743 = scmp.eq.s32.totalorder %s72, 1
    %p744 = por %p742, %p743
    %p746 = scmp.ne.s32.totalorder %s729, %s745
    %p747 = scmp.eq.s32.totalorder %s72, 0
    %p748 = por %p746, %p747
    %p749 = scmp.le.s32.totalorder 1, %s66
    %p750 = scmp.lt.s32.totalorder %s66, 3
    %p751 = pnand %p749, %p750
    %p752 = pneg %p751
    // Predicated region
    $region9: #{base_model_forward.15} parent=5 // pred_check
      _
    $region10: #{base_model_forward.15} parent=5 // pred_check_branch
      %754 = sbr.rel (%p751) target = $region12
    $region11: #{base_model_forward.15} parent=5 // pred_region
      %s755 = ssub.s32 %s66, 1
      // Predicated region
      $region13: #{base_model_forward.15} parent=11 // pred_check
        %p756 = pneg %p269
      $region14: #{base_model_forward.15} parent=11 // pred_check_branch
        %758 = sbr.rel (%p756) target = $region16
      $region15: #{base_model_forward.15} parent=11 // pred_region
        _
      $region16: #{base_model_forward.15} parent=11 // pred_fallthru
        _
      // Predicated region
      $region17: #{base_model_forward.15} parent=11 // pred_check
        %p759 = pneg %p290
      $region18: #{base_model_forward.15} parent=11 // pred_check_branch
        %761 = sbr.rel (%p759) target = $region20
      $region19: #{base_model_forward.15} parent=11 // pred_region
        _
      $region20: #{base_model_forward.15} parent=11 // pred_fallthru
        _
      // Predicated region
      $region21: #{base_model_forward.15} parent=11 // pred_check
        %p762 = pneg %p311
      $region22: #{base_model_forward.15} parent=11 // pred_check_branch
        %764 = sbr.rel (%p762) target = $region24
      $region23: #{base_model_forward.15} parent=11 // pred_region
        _
      $region24: #{base_model_forward.15} parent=11 // pred_fallthru
        _
      // Predicated region
      $region25: #{base_model_forward.15} parent=11 // pred_check
        %p765 = pneg %p332
      $region26: #{base_model_forward.15} parent=11 // pred_check_branch
        %767 = sbr.rel (%p765) target = $region28
      $region27: #{base_model_forward.15} parent=11 // pred_region
        _
      $region28: #{base_model_forward.15} parent=11 // pred_fallthru
        _
      // Predicated region
      $region29: #{base_model_forward.15} parent=11 // pred_check
        %p768 = pneg %p353
      $region30: #{base_model_forward.15} parent=11 // pred_check_branch
        %770 = sbr.rel (%p768) target = $region32
      $region31: #{base_model_forward.15} parent=11 // pred_region
        _
      $region32: #{base_model_forward.15} parent=11 // pred_fallthru
        _
      // Predicated region
      $region33: #{base_model_forward.15} parent=11 // pred_check
        %p771 = pneg %p374
      $region34: #{base_model_forward.15} parent=11 // pred_check_branch
        %773 = sbr.rel (%p771) target = $region36
      $region35: #{base_model_forward.15} parent=11 // pred_region
        _
      $region36: #{base_model_forward.15} parent=11 // pred_fallthru
        _
      // Predicated region
      $region37: #{base_model_forward.15} parent=11 // pred_check
        %p774 = pneg %p395
      $region38: #{base_model_forward.15} parent=11 // pred_check_branch
        %776 = sbr.rel (%p774) target = $region40
      $region39: #{base_model_forward.15} parent=11 // pred_region
        _
      $region40: #{base_model_forward.15} parent=11 // pred_fallthru
        _
      // Predicated region
      $region41: #{base_model_forward.15} parent=11 // pred_check
        %p777 = pneg %p416
      $region42: #{base_model_forward.15} parent=11 // pred_check_branch
        %779 = sbr.rel (%p777) target = $region44
      $region43: #{base_model_forward.15} parent=11 // pred_region
        _
      $region44: #{base_model_forward.15} parent=11 // pred_fallthru
        _
      // Predicated region
      $region45: #{base_model_forward.15} parent=11 // pred_check
        %p780 = pneg %p437
      $region46: #{base_model_forward.15} parent=11 // pred_check_branch
        %782 = sbr.rel (%p780) target = $region48
      $region47: #{base_model_forward.15} parent=11 // pred_region
        _
      $region48: #{base_model_forward.15} parent=11 // pred_fallthru
        _
      // Predicated region
      $region49: #{base_model_forward.15} parent=11 // pred_check
        %p783 = pneg %p458
      $region50: #{base_model_forward.15} parent=11 // pred_check_branch
        %785 = sbr.rel (%p783) target = $region52
      $region51: #{base_model_forward.15} parent=11 // pred_region
        _
      $region52: #{base_model_forward.15} parent=11 // pred_fallthru
        _
      // Predicated region
      $region53: #{base_model_forward.15} parent=11 // pred_check
        %p786 = pneg %p479
      $region54: #{base_model_forward.15} parent=11 // pred_check_branch
        %788 = sbr.rel (%p786) target = $region56
      $region55: #{base_model_forward.15} parent=11 // pred_region
        _
      $region56: #{base_model_forward.15} parent=11 // pred_fallthru
        _
      // Predicated region
      $region57: #{base_model_forward.15} parent=11 // pred_check
        %p789 = pneg %p500
      $region58: #{base_model_forward.15} parent=11 // pred_check_branch
        %791 = sbr.rel (%p789) target = $region60
      $region59: #{base_model_forward.15} parent=11 // pred_region
        _
      $region60: #{base_model_forward.15} parent=11 // pred_fallthru
        _
      // Predicated region
      $region61: #{base_model_forward.15} parent=11 // pred_check
        %p792 = pneg %p521
      $region62: #{base_model_forward.15} parent=11 // pred_check_branch
        %794 = sbr.rel (%p792) target = $region64
      $region63: #{base_model_forward.15} parent=11 // pred_region
        _
      $region64: #{base_model_forward.15} parent=11 // pred_fallthru
        _
      // Predicated region
      $region65: #{base_model_forward.15} parent=11 // pred_check
        %p795 = pneg %p542
      $region66: #{base_model_forward.15} parent=11 // pred_check_branch
        %797 = sbr.rel (%p795) target = $region68
      $region67: #{base_model_forward.15} parent=11 // pred_region
        _
      $region68: #{base_model_forward.15} parent=11 // pred_fallthru
        _
      // Predicated region
      $region69: #{base_model_forward.15} parent=11 // pred_check
        %p798 = pneg %p563
      $region70: #{base_model_forward.15} parent=11 // pred_check_branch
        %800 = sbr.rel (%p798) target = $region72
      $region71: #{base_model_forward.15} parent=11 // pred_region
        _
      $region72: #{base_model_forward.15} parent=11 // pred_fallthru
        _
      // Predicated region
      $region73: #{base_model_forward.15} parent=11 // pred_check
        %p801 = pneg %p584
      $region74: #{base_model_forward.15} parent=11 // pred_check_branch
        %803 = sbr.rel (%p801) target = $region76
      $region75: #{base_model_forward.15} parent=11 // pred_region
        _
      $region76: #{base_model_forward.15} parent=11 // pred_fallthru
        _
      // Predicated region
      $region77: #{base_model_forward.15} parent=11 // pred_check
        %p804 = pneg %p605
      $region78: #{base_model_forward.15} parent=11 // pred_check_branch
        %806 = sbr.rel (%p804) target = $region80
      $region79: #{base_model_forward.15} parent=11 // pred_region
        _
      $region80: #{base_model_forward.15} parent=11 // pred_fallthru
        _
      // Predicated region
      $region81: #{base_model_forward.15} parent=11 // pred_check
        %p807 = pneg %p626
      $region82: #{base_model_forward.15} parent=11 // pred_check_branch
        %809 = sbr.rel (%p807) target = $region84
      $region83: #{base_model_forward.15} parent=11 // pred_region
        _
      $region84: #{base_model_forward.15} parent=11 // pred_fallthru
        _
      // Predicated region
      $region85: #{base_model_forward.15} parent=11 // pred_check
        %p810 = pneg %p647
      $region86: #{base_model_forward.15} parent=11 // pred_check_branch
        %812 = sbr.rel (%p810) target = $region88
      $region87: #{base_model_forward.15} parent=11 // pred_region
        _
      $region88: #{base_model_forward.15} parent=11 // pred_fallthru
        _
      // Predicated region
      $region89: #{base_model_forward.15} parent=11 // pred_check
        %p813 = pneg %p668
      $region90: #{base_model_forward.15} parent=11 // pred_check_branch
        %815 = sbr.rel (%p813) target = $region92
      $region91: #{base_model_forward.15} parent=11 // pred_region
        _
      $region92: #{base_model_forward.15} parent=11 // pred_fallthru
        _
      // Predicated region
      $region93: #{base_model_forward.15} parent=11 // pred_check
        %p816 = pneg %p689
      $region94: #{base_model_forward.15} parent=11 // pred_check_branch
        %818 = sbr.rel (%p816) target = $region96
      $region95: #{base_model_forward.15} parent=11 // pred_region
        _
      $region96: #{base_model_forward.15} parent=11 // pred_fallthru
        _
    $region12: #{base_model_forward.15} parent=5 // pred_fallthru
      _
    %p819 = scmp.lt.s32.totalorder %s66, 2
    // Predicated region
    $region97: #{base_model_forward.15} parent=5 // pred_check
      %p820 = pneg %p819
    $region98: #{base_model_forward.15} parent=5 // pred_check_branch
      %822 = sbr.rel (%p820) target = $region100
    $region99: #{base_model_forward.15} parent=5 // pred_region
      // Predicated region
      $region101: #{base_model_forward.15} parent=99 // pred_check
        %p823 = pneg %p86
      $region102: #{base_model_forward.15} parent=99 // pred_check_branch
        %825 = sbr.rel (%p823) target = $region104
      $region103: #{base_model_forward.15} parent=99 // pred_region
        %s826 = smul.u32 4, %s66
        %p827 = scmp.lt.s32.totalorder %s826, 7
        %s828 = scalar_select %p827, %s826, 7
        %s829 = smul.addr %s828, 8
        %s830 = scalar_lea.vmem %s1, %s829
        %s831 = smul.u32 4, %s66
      $region104: #{base_model_forward.15} parent=99 // pred_fallthru
        _
      // Predicated region
      $region105: #{base_model_forward.15} parent=99 // pred_check
        %p832 = pneg %p112
      $region106: #{base_model_forward.15} parent=99 // pred_check_branch
        %834 = sbr.rel (%p832) target = $region108
      $region107: #{base_model_forward.15} parent=99 // pred_region
        %s835 = smul.u32 4, %s66
        %p836 = scmp.lt.s32.totalorder %s835, 7
        %s837 = scalar_select %p836, %s835, 7
        %s838 = smul.addr %s837, 8
        %s839 = scalar_lea.vmem %s3, %s838
        %s840 = smul.u32 4, %s66
      $region108: #{base_model_forward.15} parent=99 // pred_fallthru
        _
      // Predicated region
      $region109: #{base_model_forward.15} parent=99 // pred_check
        %p841 = pneg %p138
      $region110: #{base_model_forward.15} parent=99 // pred_check_branch
        %843 = sbr.rel (%p841) target = $region112
      $region111: #{base_model_forward.15} parent=99 // pred_region
        %s844 = smul.u32 4, %s66
        %p845 = scmp.lt.s32.totalorder %s844, 7
        %s846 = scalar_select %p845, %s844, 7
        %s847 = smul.addr %s846, 8
        %s848 = scalar_lea.vmem %s5, %s847
        %s849 = smul.u32 4, %s66
      $region112: #{base_model_forward.15} parent=99 // pred_fallthru
        _
      // Predicated region
      $region113: #{base_model_forward.15} parent=99 // pred_check
        %p850 = pneg %p164
      $region114: #{base_model_forward.15} parent=99 // pred_check_branch
        %852 = sbr.rel (%p850) target = $region116
      $region115: #{base_model_forward.15} parent=99 // pred_region
        %s853 = smul.u32 4, %s66
        %p854 = scmp.lt.s32.totalorder %s853, 7
        %s855 = scalar_select %p854, %s853, 7
        %s856 = smul.addr %s855, 8
        %s857 = scalar_lea.vmem %s7, %s856
        %s858 = smul.u32 4, %s66
      $region116: #{base_model_forward.15} parent=99 // pred_fallthru
        _
      // Predicated region
      $region117: #{base_model_forward.15} parent=99 // pred_check
        %p859 = pneg %p190
      $region118: #{base_model_forward.15} parent=99 // pred_check_branch
        %861 = sbr.rel (%p859) target = $region120
      $region119: #{base_model_forward.15} parent=99 // pred_region
        %s862 = smul.u32 4, %s66
        %p863 = scmp.lt.s32.totalorder %s862, 7
        %s864 = scalar_select %p863, %s862, 7
        %s865 = smul.addr %s864, 8
        %s866 = scalar_lea.vmem %s9, %s865
        %s867 = smul.u32 4, %s66
      $region120: #{base_model_forward.15} parent=99 // pred_fallthru
        _
      // Predicated region
      $region121: #{base_model_forward.15} parent=99 // pred_check
        %p868 = pneg %p216
      $region122: #{base_model_forward.15} parent=99 // pred_check_branch
        %870 = sbr.rel (%p868) target = $region124
      $region123: #{base_model_forward.15} parent=99 // pred_region
        %s871 = smul.u32 4, %s66
        %p872 = scmp.lt.s32.totalorder %s871, 7
        %s873 = scalar_select %p872, %s871, 7
        %s874 = smul.addr %s873, 8
        %s875 = scalar_lea.vmem %s11, %s874
        %s876 = smul.u32 4, %s66
      $region124: #{base_model_forward.15} parent=99 // pred_fallthru
        _
      // Predicated region
      $region125: #{base_model_forward.15} parent=99 // pred_check
        %p877 = pneg %p242
      $region126: #{base_model_forward.15} parent=99 // pred_check_branch
        %879 = sbr.rel (%p877) target = $region128
      $region127: #{base_model_forward.15} parent=99 // pred_region
        %s880 = smul.u32 4, %s66
        %p881 = scmp.lt.s32.totalorder %s880, 7
        %s882 = scalar_select %p881, %s880, 7
        %s883 = smul.addr %s882, 8
        %s884 = scalar_lea.vmem %s13, %s883
        %s885 = smul.u32 4, %s66
      $region128: #{base_model_forward.15} parent=99 // pred_fallthru
        _
    $region100: #{base_model_forward.15} parent=5 // pred_fallthru
      _
    %p886 = scmp.le.s32.totalorder 1, %s66
    %p887 = scmp.lt.s32.totalorder %s66, 3
    %p888 = pnand %p886, %p887
    %p889 = pneg %p888
    // Predicated region
    $region129: #{base_model_forward.15} parent=5 // pred_check
      _
    $region130: #{base_model_forward.15} parent=5 // pred_check_branch
      %891 = sbr.rel (%p888) target = $region132
    $region131: #{base_model_forward.15} parent=5 // pred_region
      %s892 = ssub.s32 %s66, 1
      %s893 = smul.u32 4, %s71
      %p894 = scmp.lt.s32.totalorder %s893, 7
      %s895 = scalar_select %p894, %s893, 7
      %s896 = smul.addr %s895, 8
      %s897 = scalar_lea.vmem %s1, %s896
      %p898 = pneg %p92
      %p899 = pneg %p89
      %s900 = smul.u32 4, %s71
      %p901 = scmp.lt.s32.totalorder %s900, 7
      %s902 = scalar_select %p901, %s900, 7
      %s903 = smul.addr %s902, 8
      %s904 = scalar_lea.vmem %s3, %s903
      %p905 = pneg %p118
      %p906 = pneg %p115
      %s907 = smul.u32 4, %s71
      %p908 = scmp.lt.s32.totalorder %s907, 7
      %s909 = scalar_select %p908, %s907, 7
      %s910 = smul.addr %s909, 8
      %s911 = scalar_lea.vmem %s5, %s910
      %p912 = pneg %p144
      %p913 = pneg %p141
      %s914 = smul.u32 4, %s71
      %p915 = scmp.lt.s32.totalorder %s914, 7
      %s916 = scalar_select %p915, %s914, 7
      %s917 = smul.addr %s916, 8
      %s918 = scalar_lea.vmem %s7, %s917
      %p919 = pneg %p170
      %p920 = pneg %p167
      %s921 = smul.u32 4, %s71
      %p922 = scmp.lt.s32.totalorder %s921, 7
      %s923 = scalar_select %p922, %s921, 7
      %s924 = smul.addr %s923, 8
      %s925 = scalar_lea.vmem %s9, %s924
      %p926 = pneg %p196
      %p927 = pneg %p193
      %s928 = smul.u32 4, %s71
      %p929 = scmp.lt.s32.totalorder %s928, 7
      %s930 = scalar_select %p929, %s928, 7
      %s931 = smul.addr %s930, 8
      %s932 = scalar_lea.vmem %s11, %s931
      %p933 = pneg %p222
      %p934 = pneg %p219
      %s935 = smul.u32 4, %s71
      %p936 = scmp.lt.s32.totalorder %s935, 7
      %s937 = scalar_select %p936, %s935, 7
      %s938 = smul.addr %s937, 8
      %s939 = scalar_lea.vmem %s13, %s938
      %p940 = pneg %p248
      %p941 = pneg %p245
      %p942 = pneg %p269
      %p943 = pneg %p266
      %p944 = pneg %p290
      %p945 = pneg %p287
      %p946 = pneg %p311
      %p947 = pneg %p308
      %p948 = pneg %p332
      %p949 = pneg %p329
      %p950 = pneg %p353
      %p951 = pneg %p350
      %p952 = pneg %p374
      %p953 = pneg %p371
      %p954 = pneg %p395
      %p955 = pneg %p392
      %p956 = pneg %p416
      %p957 = pneg %p413
      %p958 = pneg %p437
      %p959 = pneg %p434
      %p960 = pneg %p458
      %p961 = pneg %p455
      %p962 = pneg %p479
      %p963 = pneg %p476
      %p964 = pneg %p500
      %p965 = pneg %p497
      %p966 = pneg %p521
      %p967 = pneg %p518
      %p968 = pneg %p542
      %p969 = pneg %p539
      %p970 = pneg %p563
      %p971 = pneg %p560
      %p972 = pneg %p584
      %p973 = pneg %p581
      %p974 = pneg %p605
      %p975 = pneg %p602
      %p976 = pneg %p626
      %p977 = pneg %p623
      %p978 = pneg %p647
      %p979 = pneg %p644
      %p980 = pneg %p668
      %p981 = pneg %p665
      %p982 = pneg %p689
      %p983 = pneg %p686
      %p984 = pneg %p715
      %p985 = pneg %p712
      %s986 = smul.u32 4, %s71
      %p987 = scmp.lt.s32.totalorder %s986, 7
      %s988 = scalar_select %p987, %s986, 7
      %s989 = smul.addr %s988, 8
      %s990 = scalar_lea.vmem %s57, %s989
      %p991 = pneg %p741
      %p992 = pneg %p738
      %s993 = smul.u32 4, %s71
      %p994 = scmp.lt.s32.totalorder %s993, 7
      %s995 = scalar_select %p994, %s993, 7
      %s996 = smul.addr %s995, 8
      %s997 = scalar_lea.vmem %s59, %s996
      %s998 = smul.u32 4, %s71
      %p999 = scmp.lt.s32.totalorder %s998, 7
      %s1000 = scalar_select %p999, %s998, 7
      %s1001 = smul.addr %s1000, 8
      %s1002 = scalar_lea.vmem %s1, %s1001
      %s1003 = smul.u32 4, %s71
      %s1004 = smul.u32 4, %s71
      %p1005 = scmp.lt.s32.totalorder %s1004, 7
      %s1006 = scalar_select %p1005, %s1004, 7
      %s1007 = smul.addr %s1006, 8
      %s1008 = scalar_lea.vmem %s3, %s1007
      %s1009 = smul.u32 4, %s71
      %s1010 = smul.u32 4, %s71
      %p1011 = scmp.lt.s32.totalorder %s1010, 7
      %s1012 = scalar_select %p1011, %s1010, 7
      %s1013 = smul.addr %s1012, 8
      %s1014 = scalar_lea.vmem %s5, %s1013
      %s1015 = smul.u32 4, %s71
      %s1016 = smul.u32 4, %s71
      %p1017 = scmp.lt.s32.totalorder %s1016, 7
      %s1018 = scalar_select %p1017, %s1016, 7
      %s1019 = smul.addr %s1018, 8
      %s1020 = scalar_lea.vmem %s7, %s1019
      %s1021 = smul.u32 4, %s71
      %s1022 = smul.u32 4, %s71
      %p1023 = scmp.lt.s32.totalorder %s1022, 7
      %s1024 = scalar_select %p1023, %s1022, 7
      %s1025 = smul.addr %s1024, 8
      %s1026 = scalar_lea.vmem %s9, %s1025
      %s1027 = smul.u32 4, %s71
      %s1028 = smul.u32 4, %s71
      %p1029 = scmp.lt.s32.totalorder %s1028, 7
      %s1030 = scalar_select %p1029, %s1028, 7
      %s1031 = smul.addr %s1030, 8
      %s1032 = scalar_lea.vmem %s11, %s1031
      %s1033 = smul.u32 4, %s71
      %s1034 = smul.u32 4, %s71
      %p1035 = scmp.lt.s32.totalorder %s1034, 7
      %s1036 = scalar_select %p1035, %s1034, 7
      %s1037 = smul.addr %s1036, 8
      %s1038 = scalar_lea.vmem %s13, %s1037
      %s1039 = smul.u32 4, %s71
      %s1040 = smul.u32 4, %s71
      %p1041 = scmp.lt.s32.totalorder %s1040, 7
      %s1042 = scalar_select %p1041, %s1040, 7
      %s1043 = smul.addr %s1042, 8
      %s1044 = scalar_lea.vmem %s57, %s1043
      %s1045 = smul.u32 4, %s71
      %s1046 = smul.u32 4, %s71
      %p1047 = scmp.lt.s32.totalorder %s1046, 7
      %s1048 = scalar_select %p1047, %s1046, 7
      %s1049 = smul.addr %s1048, 8
      %s1050 = scalar_lea.vmem %s59, %s1049
      %s1051 = smul.u32 4, %s71
      %v1053 = vld [vmem:[%s15] sm:$0xf]
      %v1054 = vld [vmem:[%s15 + $0x4] sm:$0xf]
      %v1055 = vld [vmem:[%s15 + $0x8] sm:$0xf]
      %v1056 = vld [vmem:[%s15 + $0xc] sm:$0xf]
      %v1057 = vld [vmem:[%s15 + $0x10] sm:$0xf]
      %v1058 = vld [vmem:[%s15 + $0x14] sm:$0xf]
      %v1059 = vld [vmem:[%s15 + $0x18] sm:$0xf]
      %v1060 = vld [vmem:[%s15 + $0x1c] sm:$0xf]
      %v1061 = vld [vmem:[%s15 + $0x20] sm:$0xf]
      %v1062 = vld [vmem:[%s15 + $0x24] sm:$0xf]
      %v1063 = vld [vmem:[%s15 + $0x28] sm:$0xf]
      %v1064 = vld [vmem:[%s15 + $0x2c] sm:$0xf]
      %v1065 = vld [vmem:[%s15 + $0x30] sm:$0x3]
      %v1066 = vld [vmem:[%s17] sm:$0xf]
      %v1067 = vld [vmem:[%s17 + $0x4] sm:$0xf]
      %v1068 = vld [vmem:[%s17 + $0x8] sm:$0xf]
      %v1069 = vld [vmem:[%s17 + $0xc] sm:$0xf]
      %v1070 = vld [vmem:[%s17 + $0x10] sm:$0xf]
      %v1071 = vld [vmem:[%s17 + $0x14] sm:$0xf]
      %v1072 = vld [vmem:[%s17 + $0x18] sm:$0xf]
      %v1073 = vld [vmem:[%s17 + $0x1c] sm:$0xf]
      %v1074 = vld [vmem:[%s17 + $0x20] sm:$0xf]
      %v1075 = vld [vmem:[%s17 + $0x24] sm:$0xf]
      %v1076 = vld [vmem:[%s17 + $0x28] sm:$0xf]
      %v1077 = vld [vmem:[%s17 + $0x2c] sm:$0xf]
      %v1078 = vld [vmem:[%s17 + $0x30] sm:$0xf]
      %v1079 = vld [vmem:[%s17 + $0x34] sm:$0xf]
      %v1080 = vld [vmem:[%s17 + $0x38] sm:$0xf]
      %v1081 = vld [vmem:[%s17 + $0x3c] sm:$0xf]
      %v1082 = vld [vmem:[%s17 + $0x40] sm:$0xf]
      %v1083 = vld [vmem:[%s17 + $0x44] sm:$0xf]
      %v1084 = vld [vmem:[%s17 + $0x48] sm:$0xf]
      %v1085 = vld [vmem:[%s17 + $0x4c] sm:$0xf]
      %v1086 = vld [vmem:[%s17 + $0x50] sm:$0xf]
      %v1087 = vld [vmem:[%s17 + $0x54] sm:$0xf]
      %v1088 = vld [vmem:[%s17 + $0x58] sm:$0xf]
      %v1089 = vld [vmem:[%s17 + $0x5c] sm:$0xf]
      %v1090 = vld [vmem:[%s17 + $0x60] sm:$0xf]
      %v1091 = vld [vmem:[%s17 + $0x64] sm:$0xf]
      %v1092 = vld [vmem:[%s17 + $0x68] sm:$0xf]
      %v1093 = vld [vmem:[%s17 + $0x6c] sm:$0xf]
      %v1094 = vld [vmem:[%s17 + $0x70] sm:$0xf]
      %v1095 = vld [vmem:[%s19] sm:$0xf]
      %v1096 = vld [vmem:[%s19 + $0x4] sm:$0xf]
      %v1097 = vld [vmem:[%s19 + $0x8] sm:$0xf]
      %v1098 = vld [vmem:[%s19 + $0xc] sm:$0xf]
      %v1099 = vld [vmem:[%s19 + $0x10] sm:$0x1]
      %v1100 = vld [vmem:[%s21] sm:$0x1]
      %v1101 = vld [vmem:[%s23] sm:$0xf]
      %v1102 = vld [vmem:[%s23 + $0x4] sm:$0xf]
      %v1103 = vld [vmem:[%s23 + $0x8] sm:$0xf]
      %v1104 = vld [vmem:[%s23 + $0xc] sm:$0xf]
      %v1105 = vld [vmem:[%s23 + $0x10] sm:$0xf]
      %v1106 = vld [vmem:[%s23 + $0x14] sm:$0xf]
      %v1107 = vld [vmem:[%s23 + $0x18] sm:$0xf]
      %v1108 = vld [vmem:[%s23 + $0x1c] sm:$0xf]
      %v1109 = vld [vmem:[%s23 + $0x20] sm:$0xf]
      %v1110 = vld [vmem:[%s23 + $0x24] sm:$0xf]
      %v1111 = vld [vmem:[%s23 + $0x28] sm:$0xf]
      %v1112 = vld [vmem:[%s23 + $0x2c] sm:$0xf]
      %v1113 = vld [vmem:[%s23 + $0x30] sm:$0x3]
      %v1114 = vld [vmem:[%s25] sm:$0xf]
      %v1115 = vld [vmem:[%s25 + $0x4] sm:$0xf]
      %v1116 = vld [vmem:[%s25 + $0x8] sm:$0xf]
      %v1117 = vld [vmem:[%s25 + $0xc] sm:$0xf]
      %v1118 = vld [vmem:[%s25 + $0x10] sm:$0xf]
      %v1119 = vld [vmem:[%s25 + $0x14] sm:$0xf]
      %v1120 = vld [vmem:[%s25 + $0x18] sm:$0xf]
      %v1121 = vld [vmem:[%s25 + $0x1c] sm:$0xf]
      %v1122 = vld [vmem:[%s25 + $0x20] sm:$0xf]
      %v1123 = vld [vmem:[%s25 + $0x24] sm:$0xf]
      %v1124 = vld [vmem:[%s25 + $0x28] sm:$0xf]
      %v1125 = vld [vmem:[%s25 + $0x2c] sm:$0xf]
      %v1126 = vld [vmem:[%s25 + $0x30] sm:$0x3]
      %v1127 = vld [vmem:[%s27] sm:$0x1]
      %v1128 = vld [vmem:[%s29] sm:$0xf]
      %v1129 = vld [vmem:[%s29 + $0x4] sm:$0xf]
      %v1130 = vld [vmem:[%s29 + $0x8] sm:$0xf]
      %v1131 = vld [vmem:[%s29 + $0xc] sm:$0xf]
      %v1132 = vld [vmem:[%s29 + $0x10] sm:$0xf]
      %v1133 = vld [vmem:[%s29 + $0x14] sm:$0xf]
      %v1134 = vld [vmem:[%s31] sm:$0xf]
      %v1135 = vld [vmem:[%s31 + $0x4] sm:$0xf]
      %v1136 = vld [vmem:[%s31 + $0x8] sm:$0xf]
      %v1137 = vld [vmem:[%s31 + $0xc] sm:$0xf]
      %v1138 = vld [vmem:[%s31 + $0x10] sm:$0xf]
      %v1139 = vld [vmem:[%s31 + $0x14] sm:$0xf]
      %v1140 = vld [vmem:[%s31 + $0x18] sm:$0xf]
      %v1141 = vld [vmem:[%s31 + $0x1c] sm:$0xf]
      %v1142 = vld [vmem:[%s31 + $0x20] sm:$0xf]
      %v1143 = vld [vmem:[%s31 + $0x24] sm:$0xf]
      %v1144 = vld [vmem:[%s31 + $0x28] sm:$0xf]
      %v1145 = vld [vmem:[%s31 + $0x2c] sm:$0xf]
      %v1146 = vld [vmem:[%s31 + $0x30] sm:$0x3]
      %v1147 = vld [vmem:[%s33] sm:$0xf]
      %v1148 = vld [vmem:[%s33 + $0x4] sm:$0xf]
      %v1149 = vld [vmem:[%s35] sm:$0x1]
      %v1150 = vld [vmem:[%s37] sm:$0xf]
      %v1151 = vld [vmem:[%s37 + $0x4] sm:$0xf]
      %v1152 = vld [vmem:[%s37 + $0x8] sm:$0xf]
      %v1153 = vld [vmem:[%s37 + $0xc] sm:$0xf]
      %v1154 = vld [vmem:[%s37 + $0x10] sm:$0xf]
      %v1155 = vld [vmem:[%s37 + $0x14] sm:$0xf]
      %v1156 = vld [vmem:[%s39] sm:$0xf]
      %v1157 = vld [vmem:[%s39 + $0x4] sm:$0xf]
      %v1158 = vld [vmem:[%s39 + $0x8] sm:$0xf]
      %v1159 = vld [vmem:[%s39 + $0xc] sm:$0xf]
      %v1160 = vld [vmem:[%s39 + $0x10] sm:$0xf]
      %v1161 = vld [vmem:[%s39 + $0x14] sm:$0xf]
      %v1162 = vld [vmem:[%s39 + $0x18] sm:$0xf]
      %v1163 = vld [vmem:[%s39 + $0x1c] sm:$0xf]
      %v1164 = vld [vmem:[%s39 + $0x20] sm:$0xf]
      %v1165 = vld [vmem:[%s39 + $0x24] sm:$0xf]
      %v1166 = vld [vmem:[%s39 + $0x28] sm:$0xf]
      %v1167 = vld [vmem:[%s39 + $0x2c] sm:$0xf]
      %v1168 = vld [vmem:[%s39 + $0x30] sm:$0x3]
      %v1169 = vld [vmem:[%s41] sm:$0x1]
      %v1170 = vld [vmem:[%s43] sm:$0xf]
      %v1171 = vld [vmem:[%s43 + $0x4] sm:$0xf]
      %v1172 = vld [vmem:[%s43 + $0x8] sm:$0xf]
      %v1173 = vld [vmem:[%s43 + $0xc] sm:$0xf]
      %v1174 = vld [vmem:[%s43 + $0x10] sm:$0xf]
      %v1175 = vld [vmem:[%s43 + $0x14] sm:$0xf]
      %v1176 = vld [vmem:[%s45] sm:$0xf]
      %v1177 = vld [vmem:[%s45 + $0x4] sm:$0xf]
      %v1178 = vld [vmem:[%s45 + $0x8] sm:$0xf]
      %v1179 = vld [vmem:[%s45 + $0xc] sm:$0xf]
      %v1180 = vld [vmem:[%s45 + $0x10] sm:$0xf]
      %v1181 = vld [vmem:[%s45 + $0x14] sm:$0xf]
      %v1182 = vld [vmem:[%s45 + $0x18] sm:$0xf]
      %v1183 = vld [vmem:[%s45 + $0x1c] sm:$0xf]
      %v1184 = vld [vmem:[%s45 + $0x20] sm:$0xf]
      %v1185 = vld [vmem:[%s45 + $0x24] sm:$0xf]
      %v1186 = vld [vmem:[%s45 + $0x28] sm:$0xf]
      %v1187 = vld [vmem:[%s45 + $0x2c] sm:$0xf]
      %v1188 = vld [vmem:[%s45 + $0x30] sm:$0x3]
      %v1189 = vld [vmem:[%s47] sm:$0xf]
      %v1190 = vld [vmem:[%s47 + $0x4] sm:$0xf]
      %v1191 = vld [vmem:[%s49] sm:$0x1]
      %v1192 = vld [vmem:[%s51] sm:$0xf]
      %v1193 = vld [vmem:[%s51 + $0x4] sm:$0xf]
      %v1194 = vld [vmem:[%s51 + $0x8] sm:$0xf]
      %v1195 = vld [vmem:[%s51 + $0xc] sm:$0xf]
      %v1196 = vld [vmem:[%s51 + $0x10] sm:$0xf]
      %v1197 = vld [vmem:[%s51 + $0x14] sm:$0xf]
      %v1198 = vld [vmem:[%s53] sm:$0xf]
      %v1199 = vld [vmem:[%s53 + $0x4] sm:$0xf]
      %v1200 = vld [vmem:[%s53 + $0x8] sm:$0xf]
      %v1201 = vld [vmem:[%s53 + $0xc] sm:$0xf]
      %v1202 = vld [vmem:[%s53 + $0x10] sm:$0xf]
      %v1203 = vld [vmem:[%s53 + $0x14] sm:$0xf]
      %v1204 = vld [vmem:[%s53 + $0x18] sm:$0xf]
      %v1205 = vld [vmem:[%s53 + $0x1c] sm:$0xf]
      %v1206 = vld [vmem:[%s53 + $0x20] sm:$0xf]
      %v1207 = vld [vmem:[%s53 + $0x24] sm:$0xf]
      %v1208 = vld [vmem:[%s53 + $0x28] sm:$0xf]
      %v1209 = vld [vmem:[%s53 + $0x2c] sm:$0xf]
      %v1210 = vld [vmem:[%s53 + $0x30] sm:$0x3]
      %v1211 = vld [vmem:[%s55] sm:$0x1]
      %v1212 = vld [vmem:[%s1002] sm:$0xff]
      %v1213 = vld [vmem:[%s1002 + $0x8] sm:$0xff]
      %v1214 = vld [vmem:[%s1002 + $0x10] sm:$0xff]
      %v1215 = vld [vmem:[%s1002 + $0x18] sm:$0xff]
      %v1216 = vld [vmem:[%s1008] sm:$0xff]
      %v1217 = vld [vmem:[%s1008 + $0x8] sm:$0xff]
      %v1218 = vld [vmem:[%s1008 + $0x10] sm:$0xff]
      %v1219 = vld [vmem:[%s1008 + $0x18] sm:$0xff]
      %v1220 = vld [vmem:[%s1014] sm:$0xff]
      %v1221 = vld [vmem:[%s1014 + $0x8] sm:$0xff]
      %v1222 = vld [vmem:[%s1014 + $0x10] sm:$0xff]
      %v1223 = vld [vmem:[%s1014 + $0x18] sm:$0xff]
      %1228 = vrot.lane.b32.xlu0 %v1216, 100
      %v1229 = vpop.permute.xlu0 %1228
      %1230 = vrot.lane.b32.xlu0 %v1217, 100
      %v1231 = vpop.permute.xlu0 %1230
      %1232 = vrot.lane.b32.xlu0 %v1218, 100
      %v1233 = vpop.permute.xlu0 %1232
      %1234 = vrot.lane.b32.xlu0 %v1219, 100
      %v1235 = vpop.permute.xlu0 %1234
      %1244 = vrot.lane.b32.xlu0 %v1220, 4
      %v1245 = vpop.permute.xlu0 %1244
      %1246 = vrot.lane.b32.xlu0 %v1221, 4
      %v1247 = vpop.permute.xlu0 %1246
      %1248 = vrot.lane.b32.xlu0 %v1222, 4
      %v1249 = vpop.permute.xlu0 %1248
      %1250 = vrot.lane.b32.xlu0 %v1223, 4
      %v1251 = vpop.permute.xlu0 %1250
      %vm1256 = vcmask 818176
      %v1257 = vsel %vm1256, %v1212, %v1229
      %v1258 = vsel %vm1256, %v1213, %v1231
      %v1259 = vsel %vm1256, %v1214, %v1233
      %v1260 = vsel %vm1256, %v1215, %v1235
      %vm1261 = vcmask 31744
      %v1262 = vsel %vm1261, %v1229, %v1245
      %v1263 = vsel %vm1261, %v1231, %v1247
      %v1264 = vsel %vm1261, %v1233, %v1249
      %v1265 = vsel %vm1261, %v1235, %v1251
      %v1266 = vld [vmem:[%s1020] sm:$0xff]
      %v1267 = vld [vmem:[%s1020 + $0x8] sm:$0xff]
      %v1268 = vld [vmem:[%s1020 + $0x10] sm:$0xff]
      %v1269 = vld [vmem:[%s1020 + $0x18] sm:$0xff]
      %v1270 = vld [vmem:[%s1026] sm:$0xff]
      %v1271 = vld [vmem:[%s1026 + $0x8] sm:$0xff]
      %v1272 = vld [vmem:[%s1026 + $0x10] sm:$0xff]
      %v1273 = vld [vmem:[%s1026 + $0x18] sm:$0xff]
      %v1274 = vld [vmem:[%s1032] sm:$0xff]
      %v1275 = vld [vmem:[%s1032 + $0x8] sm:$0xff]
      %v1276 = vld [vmem:[%s1032 + $0x10] sm:$0xff]
      %v1277 = vld [vmem:[%s1032 + $0x18] sm:$0xff]
      %1282 = vrot.lane.b32.xlu0 %v1270, 48
      %v1283 = vpop.permute.xlu0 %1282
      %1284 = vrot.lane.b32.xlu0 %v1271, 48
      %v1285 = vpop.permute.xlu0 %1284
      %1286 = vrot.lane.b32.xlu0 %v1272, 48
      %v1287 = vpop.permute.xlu0 %1286
      %1288 = vrot.lane.b32.xlu0 %v1273, 48
      %v1289 = vpop.permute.xlu0 %1288
      %1298 = vrot.lane.b32.xlu0 %v1274, 51
      %v1299 = vpop.permute.xlu0 %1298
      %1300 = vrot.lane.b32.xlu0 %v1275, 51
      %v1301 = vpop.permute.xlu0 %1300
      %1302 = vrot.lane.b32.xlu0 %v1276, 51
      %v1303 = vpop.permute.xlu0 %1302
      %1304 = vrot.lane.b32.xlu0 %v1277, 51
      %v1305 = vpop.permute.xlu0 %1304
      %vm1310 = vcmask 392192
      %v1311 = vsel %vm1310, %v1266, %v1283
      %v1312 = vsel %vm1310, %v1267, %v1285
      %v1313 = vsel %vm1310, %v1268, %v1287
      %v1314 = vsel %vm1310, %v1269, %v1289
      %vm1315 = vcmask 416768
      %v1316 = vsel %vm1315, %v1311, %v1299
      %v1317 = vsel %vm1315, %v1312, %v1301
      %v1318 = vsel %vm1315, %v1313, %v1303
      %v1319 = vsel %vm1315, %v1314, %v1305
      %v1320 = vpack.c.bf16 %v1317, %v1316
      %v1321 = vpack.c.bf16 %v1319, %v1318
      %v1335 = vunpack.c.l.b16 %v1053
      %v1336 = vunpack.c.l.b16 %v1054
      %v1337 = vunpack.c.l.b16 %v1055
      %v1338 = vunpack.c.l.b16 %v1056
      %v1339 = vunpack.c.l.b16 %v1057
      %v1340 = vunpack.c.l.b16 %v1058
      %v1341 = vunpack.c.l.b16 %v1059
      %v1342 = vunpack.c.l.b16 %v1060
      %v1343 = vunpack.c.l.b16 %v1061
      %v1344 = vunpack.c.l.b16 %v1062
      %v1345 = vunpack.c.l.b16 %v1063
      %v1346 = vunpack.c.l.b16 %v1064
      %v1347 = vunpack.c.l.b16 %v1065
      %v1348 = vpack.c.b16 %v1336, %v1335
      %v1349 = vpack.c.b16 %v1338, %v1337
      %v1350 = vpack.c.b16 %v1340, %v1339
      %v1351 = vpack.c.b16 %v1342, %v1341
      %v1352 = vpack.c.b16 %v1344, %v1343
      %v1353 = vpack.c.b16 %v1346, %v1345
      %v1354 = vpack.c.b16 %v1347, %v1347
      %vm1361 = vcmask 809984
      %v1363 = vsel %vm1361, %v1320, 0
      %v1366 = vsel %vm1361, %v1321, 0
      %vm1368 = vcmask 1040384
      %vm1369 = vcmask 1041408
      %v1370 = vsel %vm1368, 4294967295, 65535
      %v1371 = vsel %vm1369, %v1370, 0
      %v1373 = vand.u32 %v1354, %v1371
      %1375 = vmatprep.subr.bf16.mxu0 0
      %1376 = vmatpush1.bf16.msra.mxu0 %v1348
      %1377 = vmatprep.subr.bf16.mxu0 0
      %1378 = vmatpush1.bf16.msra.mxu0 %v1349
      %1379 = vmatprep.subr.bf16.mxu0 0
      %1380 = vmatpush1.bf16.msra.mxu0 %v1350
      %1381 = vmatprep.subr.bf16.mxu0 0
      %1382 = vmatpush1.bf16.msra.mxu0 %v1351
      %1383 = vmatprep.subr.bf16.mxu0 0
      %1384 = vmatpush1.bf16.msra.mxu0 %v1352
      %1385 = vmatprep.subr.bf16.mxu0 0
      %1386 = vmatpush1.bf16.msra.mxu0 %v1353
      %1387 = vmatprep.subr.bf16.mxu0 0
      %1388 = vmatpush1.bf16.msra.mxu0 %v1373
      %1389 = vmatprep.subr.bf16.mxu0 0
      %1390 = vmatpush1.bf16.msra.mxu0 0
      %1391 = vmatprep.subr.bf16.mxu0 0
      %1392 = vmatpush1.bf16.msra.mxu0 0
      %1393 = vmatprep.subr.bf16.mxu0 0
      %1394 = vmatpush1.bf16.msra.mxu0 0
      %1395 = vmatprep.subr.bf16.mxu0 0
      %1396 = vmatpush1.bf16.msra.mxu0 0
      %1397 = vmatprep.subr.bf16.mxu0 0
      %1398 = vmatpush1.bf16.msra.mxu0 0
      %1399 = vmatprep.subr.bf16.mxu0 0
      %1400 = vmatpush1.bf16.msra.mxu0 0
      %1401 = vmatprep.subr.bf16.mxu0 0
      %1402 = vmatpush1.bf16.msra.mxu0 0
      %1403 = vmatprep.subr.bf16.mxu0 0
      %1404 = vmatpush1.bf16.msra.mxu0 0
      %1405 = vmatprep.subr.bf16.mxu0 0
      %1406 = vmatpush1.bf16.msra.mxu0 0
      %1407 = vmatprep.mubr.bf16.mxu0 0
      %1408 = vmatmul.mubr.bf16.gmra.mrb[0].mxu0 %v1363
      %v1409 = vpop.f32.mrb[0].mxu0
      %v1410 = vadd.f32 0.0, %v1409
      %v1411 = vpop.f32.mrb[0].mxu0
      %v1412 = vpop.f32.mrb[0].mxu0
      %v1413 = vadd.f32 0.0, %v1412
      %v1414 = vpop.f32.mrb[0].mxu0
      %1415 = vmatprep.mubr.bf16.mxu0 0
      %1416 = vmatmul.mubr.bf16.gmra.mrb[0].mxu0 %v1366
      %v1417 = vpop.f32.mrb[0].mxu0
      %v1418 = vadd.f32 0.0, %v1417
      %v1419 = vpop.f32.mrb[0].mxu0
      %v1420 = vpop.f32.mrb[0].mxu0
      %v1421 = vadd.f32 0.0, %v1420
      %v1422 = vpop.f32.mrb[0].mxu0
      %1423 = vdwg.mxu0
      %v1424 = vmul.f32 %v1410, %v1410
      %v1425 = vmul.f32 %v1413, %v1413
      %v1426 = vmul.f32 %v1418, %v1418
      %v1427 = vmul.f32 %v1421, %v1421
      %1432 = vrot.lane.b32.xlu0 %v1424, 95
      %v1433 = vpop.permute.xlu0 %1432
      %1434 = vrot.lane.b32.xlu0 %v1425, 95
      %v1435 = vpop.permute.xlu0 %1434
      %1436 = vrot.lane.b32.xlu0 %v1426, 95
      %v1437 = vpop.permute.xlu0 %1436
      %1438 = vrot.lane.b32.xlu0 %v1427, 95
      %v1439 = vpop.permute.xlu0 %1438
      %v1444 = vadd.f32 %v1424, %v1433
      %v1445 = vadd.f32 %v1425, %v1435
      %v1446 = vadd.f32 %v1426, %v1437
      %v1447 = vadd.f32 %v1427, %v1439
      %1448 = vrot.lane.b32.xlu0 %v1424, 62
      %v1449 = vpop.permute.xlu0 %1448
      %1450 = vrot.lane.b32.xlu0 %v1425, 62
      %v1451 = vpop.permute.xlu0 %1450
      %1452 = vrot.lane.b32.xlu0 %v1426, 62
      %v1453 = vpop.permute.xlu0 %1452
      %1454 = vrot.lane.b32.xlu0 %v1427, 62
      %v1455 = vpop.permute.xlu0 %1454
      %v1460 = vadd.f32 %v1444, %v1449
      %v1461 = vadd.f32 %v1445, %v1451
      %v1462 = vadd.f32 %v1446, %v1453
      %v1463 = vadd.f32 %v1447, %v1455
      %v1464 = vmax.f32 %v1460, 1e-08
      %v1465 = vmax.f32 %v1461, 1e-08
      %v1466 = vmax.f32 %v1462, 1e-08
      %v1467 = vmax.f32 %v1463, 1e-08
      %v1468 = vrsqrt.pop %v1464
      %v1469 = vmul.f32 %v1464, %v1468
      %vm1470 = vcmp.eq.f32.partialorder %v1464, inf
      %v1471 = vsel %vm1470, %v1464, %v1469
      %vm1472 = vcmp.eq.f32.partialorder %v1464, 0.0
      %v1473 = vand.u32 %v1464, 2147483648
      %v1474 = vsel %vm1472, %v1473, %v1471
      %v1475 = vrsqrt.pop %v1465
      %v1476 = vmul.f32 %v1465, %v1475
      %vm1477 = vcmp.eq.f32.partialorder %v1465, inf
      %v1478 = vsel %vm1477, %v1465, %v1476
      %vm1479 = vcmp.eq.f32.partialorder %v1465, 0.0
      %v1480 = vand.u32 %v1465, 2147483648
      %v1481 = vsel %vm1479, %v1480, %v1478
      %v1482 = vrsqrt.pop %v1466
      %v1483 = vmul.f32 %v1466, %v1482
      %vm1484 = vcmp.eq.f32.partialorder %v1466, inf
      %v1485 = vsel %vm1484, %v1466, %v1483
      %vm1486 = vcmp.eq.f32.partialorder %v1466, 0.0
      %v1487 = vand.u32 %v1466, 2147483648
      %v1488 = vsel %vm1486, %v1487, %v1485
      %v1489 = vrsqrt.pop %v1467
      %v1490 = vmul.f32 %v1467, %v1489
      %vm1491 = vcmp.eq.f32.partialorder %v1467, inf
      %v1492 = vsel %vm1491, %v1467, %v1490
      %vm1493 = vcmp.eq.f32.partialorder %v1467, 0.0
      %v1494 = vand.u32 %v1467, 2147483648
      %v1495 = vsel %vm1493, %v1494, %v1492
      %v1496 = vpack.c.bf16 %v1258, %v1257
      %v1497 = vpack.c.bf16 %v1263, %v1262
      %v1498 = vpack.c.bf16 %v1260, %v1259
      %v1499 = vpack.c.bf16 %v1265, %v1264
      %v1500 = vpack.c.bf16 %v1481, %v1474
      %v1501 = vpack.c.bf16 %v1495, %v1488
      %v1507 = vunpack.c.l.b16 %v1095
      %v1508 = vunpack.c.l.b16 %v1096
      %v1509 = vunpack.c.l.b16 %v1097
      %v1510 = vunpack.c.l.b16 %v1098
      %v1511 = vunpack.c.l.b16 %v1099
      %v1512 = vpack.c.b16 %v1508, %v1507
      %v1513 = vpack.c.b16 %v1510, %v1509
      %v1514 = vpack.c.b16 %v1511, %v1511
      %vm1517 = vcmask 269312
      %v1519 = vsel %vm1517, %v1500, 0
      %v1522 = vsel %vm1517, %v1501, 0
      %v1524 = vsel 0, 4294967295, 65535
      %v1525 = vsel %vm1368, %v1524, 0
      %v1527 = vand.u32 %v1514, %v1525
      %1529 = vmatprep.subr.bf16.mxu0 0
      %1530 = vmatpush1.bf16.msra.mxu0 %v1512
      %1531 = vmatprep.subr.bf16.mxu0 0
      %1532 = vmatpush1.bf16.msra.mxu0 %v1513
      %1533 = vmatprep.subr.bf16.mxu0 0
      %1534 = vmatpush1.bf16.msra.mxu0 %v1527
      %1535 = vmatprep.subr.bf16.mxu0 0
      %1536 = vmatpush1.bf16.msra.mxu0 0
      %1537 = vmatprep.subr.bf16.mxu0 0
      %1538 = vmatpush1.bf16.msra.mxu0 0
      %1539 = vmatprep.subr.bf16.mxu0 0
      %1540 = vmatpush1.bf16.msra.mxu0 0
      %1541 = vmatprep.subr.bf16.mxu0 0
      %1542 = vmatpush1.bf16.msra.mxu0 0
      %1543 = vmatprep.subr.bf16.mxu0 0
      %1544 = vmatpush1.bf16.msra.mxu0 0
      %1545 = vmatprep.subr.bf16.mxu0 0
      %1546 = vmatpush1.bf16.msra.mxu0 0
      %1547 = vmatprep.subr.bf16.mxu0 0
      %1548 = vmatpush1.bf16.msra.mxu0 0
      %1549 = vmatprep.subr.bf16.mxu0 0
      %1550 = vmatpush1.bf16.msra.mxu0 0
      %1551 = vmatprep.subr.bf16.mxu0 0
      %1552 = vmatpush1.bf16.msra.mxu0 0
      %1553 = vmatprep.subr.bf16.mxu0 0
      %1554 = vmatpush1.bf16.msra.mxu0 0
      %1555 = vmatprep.subr.bf16.mxu0 0
      %1556 = vmatpush1.bf16.msra.mxu0 0
      %1557 = vmatprep.subr.bf16.mxu0 0
      %1558 = vmatpush1.bf16.msra.mxu0 0
      %1559 = vmatprep.subr.bf16.mxu0 0
      %1560 = vmatpush1.bf16.msra.mxu0 0
      %1561 = vmatprep.mubr.bf16.mxu0 0
      %1562 = vmatmul.mubr.bf16.gmra.mrb[0].mxu0 %v1519
      %v1563 = vpop.f32.mrb[0].mxu0
      %v1564 = vadd.f32 0.0, %v1563
      %v1565 = vpop.f32.mrb[0].mxu0
      %v1566 = vpop.f32.mrb[0].mxu0
      %v1567 = vadd.f32 0.0, %v1566
      %v1568 = vpop.f32.mrb[0].mxu0
      %1569 = vmatprep.mubr.bf16.mxu0 0
      %1570 = vmatmul.mubr.bf16.gmra.mrb[0].mxu0 %v1522
      %v1571 = vpop.f32.mrb[0].mxu0
      %v1572 = vadd.f32 0.0, %v1571
      %v1573 = vpop.f32.mrb[0].mxu0
      %v1574 = vpop.f32.mrb[0].mxu0
      %v1575 = vadd.f32 0.0, %v1574
      %v1576 = vpop.f32.mrb[0].mxu0
      %1577 = vdwg.mxu0
      %v1607 = vunpack.c.l.b16 %v1066
      %v1608 = vunpack.c.l.b16 %v1067
      %v1609 = vunpack.c.l.b16 %v1068
      %v1610 = vunpack.c.l.b16 %v1069
      %v1611 = vunpack.c.l.b16 %v1070
      %v1612 = vunpack.c.l.b16 %v1071
      %v1613 = vunpack.c.l.b16 %v1072
      %v1614 = vunpack.c.l.b16 %v1073
      %v1615 = vunpack.c.l.b16 %v1074
      %v1616 = vunpack.c.l.b16 %v1075
      %v1617 = vunpack.c.l.b16 %v1076
      %v1618 = vunpack.c.l.b16 %v1077
      %v1619 = vunpack.c.l.b16 %v1078
      %v1620 = vunpack.c.l.b16 %v1079
      %v1621 = vunpack.c.l.b16 %v1080
      %v1622 = vunpack.c.l.b16 %v1081
      %v1623 = vunpack.c.l.b16 %v1082
      %v1624 = vunpack.c.l.b16 %v1083
      %v1625 = vunpack.c.l.b16 %v1084
      %v1626 = vunpack.c.l.b16 %v1085
      %v1627 = vunpack.c.l.b16 %v1086
      %v1628 = vunpack.c.l.b16 %v1087
      %v1629 = vunpack.c.l.b16 %v1088
      %v1630 = vunpack.c.l.b16 %v1089
      %v1631 = vunpack.c.l.b16 %v1090
      %v1632 = vunpack.c.l.b16 %v1091
      %v1633 = vunpack.c.l.b16 %v1092
      %v1634 = vunpack.c.l.b16 %v1093
      %v1635 = vunpack.c.l.b16 %v1094
      %v1636 = vpack.c.b16 %v1608, %v1607
      %v1637 = vpack.c.b16 %v1610, %v1609
      %v1638 = vpack.c.b16 %v1612, %v1611
      %v1639 = vpack.c.b16 %v1614, %v1613
      %v1640 = vpack.c.b16 %v1616, %v1615
      %v1641 = vpack.c.b16 %v1618, %v1617
      %v1642 = vpack.c.b16 %v1620, %v1619
      %v1643 = vpack.c.b16 %v1622, %v1621
      %v1644 = vpack.c.b16 %v1624, %v1623
      %v1645 = vpack.c.b16 %v1626, %v1625
      %v1646 = vpack.c.b16 %v1628, %v1627
      %v1647 = vpack.c.b16 %v1630, %v1629
      %v1648 = vpack.c.b16 %v1632, %v1631
      %v1649 = vpack.c.b16 %v1634, %v1633
      %v1650 = vpack.c.b16 %v1635, %v1635
      %vm1665 = vcmask 850944
      %v1667 = vsel %vm1665, %v1497, 0
      %v1670 = vsel %vm1665, %v1499, 0
      %vm1672 = vcmask 1043456
      %v1674 = vsel %vm1672, %v1650, 0
      %1676 = vmatprep.subr.bf16.mxu0 0
      %1677 = vmatpush1.bf16.msra.mxu0 %v1636
      %1678 = vmatprep.subr.bf16.mxu0 0
      %1679 = vmatpush1.bf16.msra.mxu0 %v1637
      %1680 = vmatprep.subr.bf16.mxu0 0
      %1681 = vmatpush1.bf16.msra.mxu0 %v1638
      %1682 = vmatprep.subr.bf16.mxu0 0
      %1683 = vmatpush1.bf16.msra.mxu0 %v1639
      %1684 = vmatprep.subr.bf16.mxu0 0
      %1685 = vmatpush1.bf16.msra.mxu0 %v1640
      %1686 = vmatprep.subr.bf16.mxu0 0
      %1687 = vmatpush1.bf16.msra.mxu0 %v1641
      %1688 = vmatprep.subr.bf16.mxu0 0
      %1689 = vmatpush1.bf16.msra.mxu0 %v1642
      %1690 = vmatprep.subr.bf16.mxu0 0
      %1691 = vmatpush1.bf16.msra.mxu0 %v1643
      %1692 = vmatprep.subr.bf16.mxu0 0
      %1693 = vmatpush1.bf16.msra.mxu0 %v1644
      %1694 = vmatprep.subr.bf16.mxu0 0
      %1695 = vmatpush1.bf16.msra.mxu0 %v1645
      %1696 = vmatprep.subr.bf16.mxu0 0
      %1697 = vmatpush1.bf16.msra.mxu0 %v1646
      %1698 = vmatprep.subr.bf16.mxu0 0
      %1699 = vmatpush1.bf16.msra.mxu0 %v1647
      %1700 = vmatprep.subr.bf16.mxu0 0
      %1701 = vmatpush1.bf16.msra.mxu0 %v1648
      %1702 = vmatprep.subr.bf16.mxu0 0
      %1703 = vmatpush1.bf16.msra.mxu0 %v1649
      %1704 = vmatprep.subr.bf16.mxu0 0
      %1705 = vmatpush1.bf16.msra.mxu0 %v1674
      %1706 = vmatprep.subr.bf16.mxu0 0
      %1707 = vmatpush1.bf16.msra.mxu0 0
      %1708 = vmatprep.mubr.bf16.mxu0 %v1667
      %1709 = vmatmul.mubr.bf16.gmra.mrb[0].mxu0 %v1496
      %v1710 = vpop.f32.mrb[0].mxu0
      %v1711 = vadd.f32 %v1564, %v1710
      %v1712 = vpop.f32.mrb[0].mxu0
      %v1713 = vpop.f32.mrb[0].mxu0
      %v1714 = vadd.f32 %v1567, %v1713
      %v1715 = vpop.f32.mrb[0].mxu0
      %1716 = vmatprep.mubr.bf16.mxu0 %v1670
      %1717 = vmatmul.mubr.bf16.gmra.mrb[0].mxu0 %v1498
      %v1718 = vpop.f32.mrb[0].mxu0
      %v1719 = vadd.f32 %v1572, %v1718
      %v1720 = vpop.f32.mrb[0].mxu0
      %v1721 = vpop.f32.mrb[0].mxu0
      %v1722 = vadd.f32 %v1575, %v1721
      %v1723 = vpop.f32.mrb[0].mxu0
      %1724 = vdwg.mxu0
      %v1726 = vlaneseq
      %v1727 = vshrl.u32 %v1726, 7
      %v1728 = vsub.s32 0, %v1727
      %v1729 = vrot.slane %v1100, %v1728
      %v1731 = vadd.f32 %v1711, %v1729
      %v1732 = vadd.f32 %v1714, %v1729
      %v1733 = vadd.f32 %v1719, %v1729
      %v1734 = vadd.f32 %v1722, %v1729
      %v1735 = vpack.c.bf16 %v1413, %v1410
      %v1736 = vpack.c.bf16 %v1421, %v1418
      %v1750 = vunpack.c.l.b16 %v1101
      %v1751 = vunpack.c.l.b16 %v1102
      %v1752 = vunpack.c.l.b16 %v1103
      %v1753 = vunpack.c.l.b16 %v1104
      %v1754 = vunpack.c.l.b16 %v1105
      %v1755 = vunpack.c.l.b16 %v1106
      %v1756 = vunpack.c.l.b16 %v1107
      %v1757 = vunpack.c.l.b16 %v1108
      %v1758 = vunpack.c.l.b16 %v1109
      %v1759 = vunpack.c.l.b16 %v1110
      %v1760 = vunpack.c.l.b16 %v1111
      %v1761 = vunpack.c.l.b16 %v1112
      %v1762 = vunpack.c.l.b16 %v1113
      %v1763 = vpack.c.b16 %v1751, %v1750
      %v1764 = vpack.c.b16 %v1753, %v1752
      %v1765 = vpack.c.b16 %v1755, %v1754
      %v1766 = vpack.c.b16 %v1757, %v1756
      %v1767 = vpack.c.b16 %v1759, %v1758
      %v1768 = vpack.c.b16 %v1761, %v1760
      %v1769 = vpack.c.b16 %v1762, %v1762
      %v1777 = vsel %vm1361, %v1735, 0
      %v1780 = vsel %vm1361, %v1736, 0
      %v1783 = vand.u32 %v1769, %v1371
      %1785 = vmatprep.subr.bf16.mxu0 0
      %1786 = vmatpush1.bf16.msra.mxu0 %v1763
      %1787 = vmatprep.subr.bf16.mxu0 0
      %1788 = vmatpush1.bf16.msra.mxu0 %v1764
      %1789 = vmatprep.subr.bf16.mxu0 0
      %1790 = vmatpush1.bf16.msra.mxu0 %v1765
      %1791 = vmatprep.subr.bf16.mxu0 0
      %1792 = vmatpush1.bf16.msra.mxu0 %v1766
      %1793 = vmatprep.subr.bf16.mxu0 0
      %1794 = vmatpush1.bf16.msra.mxu0 %v1767
      %1795 = vmatprep.subr.bf16.mxu0 0
      %1796 = vmatpush1.bf16.msra.mxu0 %v1768
      %1797 = vmatprep.subr.bf16.mxu0 0
      %1798 = vmatpush1.bf16.msra.mxu0 %v1783
      %1799 = vmatprep.subr.bf16.mxu0 0
      %1800 = vmatpush1.bf16.msra.mxu0 0
      %1801 = vmatprep.subr.bf16.mxu0 0
      %1802 = vmatpush1.bf16.msra.mxu0 0
      %1803 = vmatprep.subr.bf16.mxu0 0
      %1804 = vmatpush1.bf16.msra.mxu0 0
      %1805 = vmatprep.subr.bf16.mxu0 0
      %1806 = vmatpush1.bf16.msra.mxu0 0
      %1807 = vmatprep.subr.bf16.mxu0 0
      %1808 = vmatpush1.bf16.msra.mxu0 0
      %1809 = vmatprep.subr.bf16.mxu0 0
      %1810 = vmatpush1.bf16.msra.mxu0 0
      %1811 = vmatprep.subr.bf16.mxu0 0
      %1812 = vmatpush1.bf16.msra.mxu0 0
      %1813 = vmatprep.subr.bf16.mxu0 0
      %1814 = vmatpush1.bf16.msra.mxu0 0
      %1815 = vmatprep.subr.bf16.mxu0 0
      %1816 = vmatpush1.bf16.msra.mxu0 0
      %1817 = vmatprep.mubr.bf16.mxu0 0
      %1818 = vmatmul.mubr.bf16.gmra.mrb[0].mxu0 %v1777
      %v1819 = vpop.f32.mrb[0].mxu0
      %v1820 = vadd.f32 0.0, %v1819
      %v1821 = vpop.f32.mrb[0].mxu0
      %v1822 = vpop.f32.mrb[0].mxu0
      %v1823 = vadd.f32 0.0, %v1822
      %v1824 = vpop.f32.mrb[0].mxu0
      %1825 = vmatprep.mubr.bf16.mxu0 0
      %1826 = vmatmul.mubr.bf16.gmra.mrb[0].mxu0 %v1780
      %v1827 = vpop.f32.mrb[0].mxu0
      %v1828 = vadd.f32 0.0, %v1827
      %v1829 = vpop.f32.mrb[0].mxu0
      %v1830 = vpop.f32.mrb[0].mxu0
      %v1831 = vadd.f32 0.0, %v1830
      %v1832 = vpop.f32.mrb[0].mxu0
      %1833 = vdwg.mxu0
      %v1834 = vpack.c.bf16 %v1732, %v1731
      %v1835 = vpack.c.bf16 %v1734, %v1733
      %v1837 = vlaneseq
      %v1838 = vshrl.u32 %v1837, 7
      %v1839 = vsub.s32 0, %v1838
      %v1840 = vrot.slane %v1127, %v1839
      %v1855 = vunpack.c.l.b16 %v1114
      %v1856 = vunpack.c.l.b16 %v1115
      %v1857 = vunpack.c.l.b16 %v1116
      %v1858 = vunpack.c.l.b16 %v1117
      %v1859 = vunpack.c.l.b16 %v1118
      %v1860 = vunpack.c.l.b16 %v1119
      %v1861 = vunpack.c.l.b16 %v1120
      %v1862 = vunpack.c.l.b16 %v1121
      %v1863 = vunpack.c.l.b16 %v1122
      %v1864 = vunpack.c.l.b16 %v1123
      %v1865 = vunpack.c.l.b16 %v1124
      %v1866 = vunpack.c.l.b16 %v1125
      %v1867 = vunpack.c.l.b16 %v1126
      %v1868 = vpack.c.b16 %v1856, %v1855
      %v1869 = vpack.c.b16 %v1858, %v1857
      %v1870 = vpack.c.b16 %v1860, %v1859
      %v1871 = vpack.c.b16 %v1862, %v1861
      %v1872 = vpack.c.b16 %v1864, %v1863
      %v1873 = vpack.c.b16 %v1866, %v1865
      %v1874 = vpack.c.b16 %v1867, %v1867
      %v1882 = vsel %vm1256, %v1834, 0
      %v1885 = vsel %vm1256, %v1835, 0
      %v1888 = vsel %vm1369, %v1874, 0
      %1890 = vmatprep.subr.bf16.mxu0 0
      %1891 = vmatpush1.bf16.msra.mxu0 %v1868
      %1892 = vmatprep.subr.bf16.mxu0 0
      %1893 = vmatpush1.bf16.msra.mxu0 %v1869
      %1894 = vmatprep.subr.bf16.mxu0 0
      %1895 = vmatpush1.bf16.msra.mxu0 %v1870
      %1896 = vmatprep.subr.bf16.mxu0 0
      %1897 = vmatpush1.bf16.msra.mxu0 %v1871
      %1898 = vmatprep.subr.bf16.mxu0 0
      %1899 = vmatpush1.bf16.msra.mxu0 %v1872
      %1900 = vmatprep.subr.bf16.mxu0 0
      %1901 = vmatpush1.bf16.msra.mxu0 %v1873
      %1902 = vmatprep.subr.bf16.mxu0 0
      %1903 = vmatpush1.bf16.msra.mxu0 %v1888
      %1904 = vmatprep.subr.bf16.mxu0 0
      %1905 = vmatpush1.bf16.msra.mxu0 0
      %1906 = vmatprep.subr.bf16.mxu0 0
      %1907 = vmatpush1.bf16.msra.mxu0 0
      %1908 = vmatprep.subr.bf16.mxu0 0
      %1909 = vmatpush1.bf16.msra.mxu0 0
      %1910 = vmatprep.subr.bf16.mxu0 0
      %1911 = vmatpush1.bf16.msra.mxu0 0
      %1912 = vmatprep.subr.bf16.mxu0 0
      %1913 = vmatpush1.bf16.msra.mxu0 0
      %1914 = vmatprep.subr.bf16.mxu0 0
      %1915 = vmatpush1.bf16.msra.mxu0 0
      %1916 = vmatprep.subr.bf16.mxu0 0
      %1917 = vmatpush1.bf16.msra.mxu0 0
      %1918 = vmatprep.subr.bf16.mxu0 0
      %1919 = vmatpush1.bf16.msra.mxu0 0
      %1920 = vmatprep.subr.bf16.mxu0 0
      %1921 = vmatpush1.bf16.msra.mxu0 0
      %1922 = vmatprep.mubr.bf16.mxu0 0
      %1923 = vmatmul.mubr.bf16.gmra.mrb[0].mxu0 %v1882
      %v1924 = vpop.f32.mrb[0].mxu0
      %v1925 = vadd.f32 %v1840, %v1924
      %v1926 = vpop.f32.mrb[0].mxu0
      %v1927 = vpop.f32.mrb[0].mxu0
      %v1928 = vadd.f32 %v1840, %v1927
      %v1929 = vpop.f32.mrb[0].mxu0
      %1930 = vmatprep.mubr.bf16.mxu0 0
      %1931 = vmatmul.mubr.bf16.gmra.mrb[0].mxu0 %v1885
      %v1932 = vpop.f32.mrb[0].mxu0
      %v1933 = vadd.f32 %v1840, %v1932
      %v1934 = vpop.f32.mrb[0].mxu0
      %v1935 = vpop.f32.mrb[0].mxu0
      %v1936 = vadd.f32 %v1840, %v1935
      %v1937 = vpop.f32.mrb[0].mxu0
      %1938 = vdwg.mxu0
      %v1939 = vxor.u32 %v1925, 2147483648
      %v1940 = vxor.u32 %v1928, 2147483648
      %v1941 = vxor.u32 %v1933, 2147483648
      %v1942 = vxor.u32 %v1936, 2147483648
      %v1943 = vmul.f32 %v1939, 1.442695
      %v1944 = vpow.pop %v1943
      %v1945 = vmul.f32 %v1940, 1.442695
      %v1946 = vpow.pop %v1945
      %v1947 = vmul.f32 %v1941, 1.442695
      %v1948 = vpow.pop %v1947
      %v1949 = vmul.f32 %v1942, 1.442695
      %v1950 = vpow.pop %v1949
      %v1951 = vadd.f32 %v1944, 1.0
      %v1952 = vadd.f32 %v1946, 1.0
      %v1953 = vadd.f32 %v1948, 1.0
      %v1954 = vadd.f32 %v1950, 1.0
      %v1955 = vrcp.pop %v1951
      %v1956 = vmul.f32 1.0, %v1955
      %v1957 = vrcp.pop %v1952
      %v1958 = vmul.f32 1.0, %v1957
      %v1959 = vrcp.pop %v1953
      %v1960 = vmul.f32 1.0, %v1959
      %v1961 = vrcp.pop %v1954
      %v1962 = vmul.f32 1.0, %v1961
      %1967 = vrot.lane.b32.xlu0 %v1956, 16
      %v1968 = vpop.permute.xlu0 %1967
      %1969 = vrot.lane.b32.xlu0 %v1958, 16
      %v1970 = vpop.permute.xlu0 %1969
      %1971 = vrot.lane.b32.xlu0 %v1960, 16
      %v1972 = vpop.permute.xlu0 %1971
      %1973 = vrot.lane.b32.xlu0 %v1962, 16
      %v1974 = vpop.permute.xlu0 %1973
      %1979 = vrot.lane.b32.xlu0 %v1956, 32
      %v1980 = vpop.permute.xlu0 %1979
      %1981 = vrot.lane.b32.xlu0 %v1958, 32
      %v1982 = vpop.permute.xlu0 %1981
      %1983 = vrot.lane.b32.xlu0 %v1960, 32
      %v1984 = vpop.permute.xlu0 %1983
      %1985 = vrot.lane.b32.xlu0 %v1962, 32
      %v1986 = vpop.permute.xlu0 %1985
      %vm1991 = vcmask 130048
      %v1992 = vsel %vm1991, %v1956, %v1968
      %v1993 = vsel %vm1991, %v1958, %v1970
      %v1994 = vsel %vm1991, %v1960, %v1972
      %v1995 = vsel %vm1991, %v1962, %v1974
      %vm1996 = vcmask 261120
      %v1997 = vsel %vm1996, %v1992, %v1980
      %v1998 = vsel %vm1996, %v1993, %v1982
      %v1999 = vsel %vm1996, %v1994, %v1984
      %v2000 = vsel %vm1996, %v1995, %v1986
      %v2001 = vmul.f32 %v1820, %v1997
      %v2002 = vmul.f32 %v1823, %v1998
      %v2003 = vmul.f32 %v1828, %v1999
      %v2004 = vmul.f32 %v1831, %v2000
      %v2005 = vmax.f32 %v1731, 0.0
      %v2006 = vmax.f32 %v1732, 0.0
      %v2007 = vmax.f32 %v1733, 0.0
      %v2008 = vmax.f32 %v1734, 0.0
      %v2009 = vpack.c.bf16 %v2002, %v2001
      %v2010 = vpack.c.bf16 %v2004, %v2003
      %v2017 = vunpack.c.l.b16 %v1128
      %v2018 = vunpack.c.l.b16 %v1129
      %v2019 = vunpack.c.l.b16 %v1130
      %v2020 = vunpack.c.l.b16 %v1131
      %v2021 = vunpack.c.l.b16 %v1132
      %v2022 = vunpack.c.l.b16 %v1133
      %v2023 = vpack.c.b16 %v2018, %v2017
      %v2024 = vpack.c.b16 %v2020, %v2019
      %v2025 = vpack.c.b16 %v2022, %v2021
      %v2030 = vsel %vm1310, %v2009, 0
      %v2033 = vsel %vm1310, %v2010, 0
      %2035 = vmatprep.subr.bf16.mxu0 0
      %2036 = vmatpush1.bf16.msra.mxu0 %v2023
      %2037 = vmatprep.subr.bf16.mxu0 0
      %2038 = vmatpush1.bf16.msra.mxu0 %v2024
      %2039 = vmatprep.subr.bf16.mxu0 0
      %2040 = vmatpush1.bf16.msra.mxu0 %v2025
      %2041 = vmatprep.subr.bf16.mxu0 0
      %2042 = vmatpush1.bf16.msra.mxu0 0
      %2043 = vmatprep.subr.bf16.mxu0 0
      %2044 = vmatpush1.bf16.msra.mxu0 0
      %2045 = vmatprep.subr.bf16.mxu0 0
      %2046 = vmatpush1.bf16.msra.mxu0 0
      %2047 = vmatprep.subr.bf16.mxu0 0
      %2048 = vmatpush1.bf16.msra.mxu0 0
      %2049 = vmatprep.subr.bf16.mxu0 0
      %2050 = vmatpush1.bf16.msra.mxu0 0
      %2051 = vmatprep.subr.bf16.mxu0 0
      %2052 = vmatpush1.bf16.msra.mxu0 0
      %2053 = vmatprep.subr.bf16.mxu0 0
      %2054 = vmatpush1.bf16.msra.mxu0 0
      %2055 = vmatprep.subr.bf16.mxu0 0
      %2056 = vmatpush1.bf16.msra.mxu0 0
      %2057 = vmatprep.subr.bf16.mxu0 0
      %2058 = vmatpush1.bf16.msra.mxu0 0
      %2059 = vmatprep.subr.bf16.mxu0 0
      %2060 = vmatpush1.bf16.msra.mxu0 0
      %2061 = vmatprep.subr.bf16.mxu0 0
      %2062 = vmatpush1.bf16.msra.mxu0 0
      %2063 = vmatprep.subr.bf16.mxu0 0
      %2064 = vmatpush1.bf16.msra.mxu0 0
      %2065 = vmatprep.subr.bf16.mxu0 0
      %2066 = vmatpush1.bf16.msra.mxu0 0
      %2067 = vmatprep.mubr.bf16.mxu0 0
      %2068 = vmatmul.mubr.bf16.gmra.mrb[0].mxu0 %v2030
      %v2069 = vpop.f32.mrb[0].mxu0
      %v2070 = vadd.f32 0.0, %v2069
      %v2071 = vpop.f32.mrb[0].mxu0
      %v2072 = vpop.f32.mrb[0].mxu0
      %v2073 = vadd.f32 0.0, %v2072
      %v2074 = vpop.f32.mrb[0].mxu0
      %2075 = vmatprep.mubr.bf16.mxu0 0
      %2076 = vmatmul.mubr.bf16.gmra.mrb[0].mxu0 %v2033
      %v2077 = vpop.f32.mrb[0].mxu0
      %v2078 = vadd.f32 0.0, %v2077
      %v2079 = vpop.f32.mrb[0].mxu0
      %v2080 = vpop.f32.mrb[0].mxu0
      %v2081 = vadd.f32 0.0, %v2080
      %v2082 = vpop.f32.mrb[0].mxu0
      %2083 = vdwg.mxu0
      %v2084 = vmul.f32 %v2070, %v2070
      %v2085 = vmul.f32 %v2073, %v2073
      %v2086 = vmul.f32 %v2078, %v2078
      %v2087 = vmul.f32 %v2081, %v2081
      %2092 = vrot.lane.b32.xlu0 %v2084, 112
      %v2093 = vpop.permute.xlu0 %2092
      %2094 = vrot.lane.b32.xlu0 %v2085, 112
      %v2095 = vpop.permute.xlu0 %2094
      %2096 = vrot.lane.b32.xlu0 %v2086, 112
      %v2097 = vpop.permute.xlu0 %2096
      %2098 = vrot.lane.b32.xlu0 %v2087, 112
      %v2099 = vpop.permute.xlu0 %2098
      %v2104 = vadd.f32 %v2084, %v2093
      %v2105 = vadd.f32 %v2085, %v2095
      %v2106 = vadd.f32 %v2086, %v2097
      %v2107 = vadd.f32 %v2087, %v2099
      %2108 = vrot.lane.b32.xlu0 %v2084, 96
      %v2109 = vpop.permute.xlu0 %2108
      %2110 = vrot.lane.b32.xlu0 %v2085, 96
      %v2111 = vpop.permute.xlu0 %2110
      %2112 = vrot.lane.b32.xlu0 %v2086, 96
      %v2113 = vpop.permute.xlu0 %2112
      %2114 = vrot.lane.b32.xlu0 %v2087, 96
      %v2115 = vpop.permute.xlu0 %2114
      %v2120 = vadd.f32 %v2104, %v2109
      %v2121 = vadd.f32 %v2105, %v2111
      %v2122 = vadd.f32 %v2106, %v2113
      %v2123 = vadd.f32 %v2107, %v2115
      %v2124 = vmax.f32 %v2120, 1e-08
      %v2125 = vmax.f32 %v2121, 1e-08
      %v2126 = vmax.f32 %v2122, 1e-08
      %v2127 = vmax.f32 %v2123, 1e-08
      %v2128 = vrsqrt.pop %v2124
      %v2129 = vmul.f32 %v2124, %v2128
      %vm2130 = vcmp.eq.f32.partialorder %v2124, inf
      %v2131 = vsel %vm2130, %v2124, %v2129
      %vm2132 = vcmp.eq.f32.partialorder %v2124, 0.0
      %v2133 = vand.u32 %v2124, 2147483648
      %v2134 = vsel %vm2132, %v2133, %v2131
      %v2135 = vrsqrt.pop %v2125
      %v2136 = vmul.f32 %v2125, %v2135
      %vm2137 = vcmp.eq.f32.partialorder %v2125, inf
      %v2138 = vsel %vm2137, %v2125, %v2136
      %vm2139 = vcmp.eq.f32.partialorder %v2125, 0.0
      %v2140 = vand.u32 %v2125, 2147483648
      %v2141 = vsel %vm2139, %v2140, %v2138
      %v2142 = vrsqrt.pop %v2126
      %v2143 = vmul.f32 %v2126, %v2142
      %vm2144 = vcmp.eq.f32.partialorder %v2126, inf
      %v2145 = vsel %vm2144, %v2126, %v2143
      %vm2146 = vcmp.eq.f32.partialorder %v2126, 0.0
      %v2147 = vand.u32 %v2126, 2147483648
      %v2148 = vsel %vm2146, %v2147, %v2145
      %v2149 = vrsqrt.pop %v2127
      %v2150 = vmul.f32 %v2127, %v2149
      %vm2151 = vcmp.eq.f32.partialorder %v2127, inf
      %v2152 = vsel %vm2151, %v2127, %v2150
      %vm2153 = vcmp.eq.f32.partialorder %v2127, 0.0
      %v2154 = vand.u32 %v2127, 2147483648
      %v2155 = vsel %vm2153, %v2154, %v2152
      %v2156 = vpack.c.bf16 %v2006, %v2005
      %v2157 = vpack.c.bf16 %v2008, %v2007
      %v2158 = vpack.c.bf16 %v2141, %v2134
      %v2159 = vpack.c.bf16 %v2155, %v2148
      %v2162 = vunpack.c.l.b16 %v1147
      %v2163 = vunpack.c.l.b16 %v1148
      %v2164 = vpack.c.b16 %v2163, %v2162
      %v2167 = vsel %vm1991, %v2158, 0
      %v2170 = vsel %vm1991, %v2159, 0
      %2172 = vmatprep.subr.bf16.mxu0 0
      %2173 = vmatpush1.bf16.msra.mxu0 %v2164
      %2174 = vmatprep.subr.bf16.mxu0 0
      %2175 = vmatpush1.bf16.msra.mxu0 0
      %2176 = vmatprep.subr.bf16.mxu0 0
      %2177 = vmatpush1.bf16.msra.mxu0 0
      %2178 = vmatprep.subr.bf16.mxu0 0
      %2179 = vmatpush1.bf16.msra.mxu0 0
      %2180 = vmatprep.subr.bf16.mxu0 0
      %2181 = vmatpush1.bf16.msra.mxu0 0
      %2182 = vmatprep.subr.bf16.mxu0 0
      %2183 = vmatpush1.bf16.msra.mxu0 0
      %2184 = vmatprep.subr.bf16.mxu0 0
      %2185 = vmatpush1.bf16.msra.mxu0 0
      %2186 = vmatprep.subr.bf16.mxu0 0
      %2187 = vmatpush1.bf16.msra.mxu0 0
      %2188 = vmatprep.subr.bf16.mxu0 0
      %2189 = vmatpush1.bf16.msra.mxu0 0
      %2190 = vmatprep.subr.bf16.mxu0 0
      %2191 = vmatpush1.bf16.msra.mxu0 0
      %2192 = vmatprep.subr.bf16.mxu0 0
      %2193 = vmatpush1.bf16.msra.mxu0 0
      %2194 = vmatprep.subr.bf16.mxu0 0
      %2195 = vmatpush1.bf16.msra.mxu0 0
      %2196 = vmatprep.subr.bf16.mxu0 0
      %2197 = vmatpush1.bf16.msra.mxu0 0
      %2198 = vmatprep.subr.bf16.mxu0 0
      %2199 = vmatpush1.bf16.msra.mxu0 0
      %2200 = vmatprep.subr.bf16.mxu0 0
      %2201 = vmatpush1.bf16.msra.mxu0 0
      %2202 = vmatprep.subr.bf16.mxu0 0
      %2203 = vmatpush1.bf16.msra.mxu0 0
      %2204 = vmatprep.mubr.bf16.mxu0 0
      %2205 = vmatmul.mubr.bf16.gmra.mrb[0].mxu0 %v2167
      %v2206 = vpop.f32.mrb[0].mxu0
      %v2207 = vadd.f32 0.0, %v2206
      %v2208 = vpop.f32.mrb[0].mxu0
      %v2209 = vpop.f32.mrb[0].mxu0
      %v2210 = vadd.f32 0.0, %v2209
      %v2211 = vpop.f32.mrb[0].mxu0
      %2212 = vmatprep.mubr.bf16.mxu0 0
      %2213 = vmatmul.mubr.bf16.gmra.mrb[0].mxu0 %v2170
      %v2214 = vpop.f32.mrb[0].mxu0
      %v2215 = vadd.f32 0.0, %v2214
      %v2216 = vpop.f32.mrb[0].mxu0
      %v2217 = vpop.f32.mrb[0].mxu0
      %v2218 = vadd.f32 0.0, %v2217
      %v2219 = vpop.f32.mrb[0].mxu0
      %2220 = vdwg.mxu0
      %v2234 = vunpack.c.l.b16 %v1134
      %v2235 = vunpack.c.l.b16 %v1135
      %v2236 = vunpack.c.l.b16 %v1136
      %v2237 = vunpack.c.l.b16 %v1137
      %v2238 = vunpack.c.l.b16 %v1138
      %v2239 = vunpack.c.l.b16 %v1139
      %v2240 = vunpack.c.l.b16 %v1140
      %v2241 = vunpack.c.l.b16 %v1141
      %v2242 = vunpack.c.l.b16 %v1142
      %v2243 = vunpack.c.l.b16 %v1143
      %v2244 = vunpack.c.l.b16 %v1144
      %v2245 = vunpack.c.l.b16 %v1145
      %v2246 = vunpack.c.l.b16 %v1146
      %v2247 = vpack.c.b16 %v2235, %v2234
      %v2248 = vpack.c.b16 %v2237, %v2236
      %v2249 = vpack.c.b16 %v2239, %v2238
      %v2250 = vpack.c.b16 %v2241, %v2240
      %v2251 = vpack.c.b16 %v2243, %v2242
      %v2252 = vpack.c.b16 %v2245, %v2244
      %v2253 = vpack.c.b16 %v2246, %v2246
      %v2261 = vsel %vm1256, %v2156, 0
      %v2264 = vsel %vm1256, %v2157, 0
      %v2267 = vsel %vm1369, %v2253, 0
      %2269 = vmatprep.subr.bf16.mxu0 0
      %2270 = vmatpush1.bf16.msra.mxu0 %v2247
      %2271 = vmatprep.subr.bf16.mxu0 0
      %2272 = vmatpush1.bf16.msra.mxu0 %v2248
      %2273 = vmatprep.subr.bf16.mxu0 0
      %2274 = vmatpush1.bf16.msra.mxu0 %v2249
      %2275 = vmatprep.subr.bf16.mxu0 0
      %2276 = vmatpush1.bf16.msra.mxu0 %v2250
      %2277 = vmatprep.subr.bf16.mxu0 0
      %2278 = vmatpush1.bf16.msra.mxu0 %v2251
      %2279 = vmatprep.subr.bf16.mxu0 0
      %2280 = vmatpush1.bf16.msra.mxu0 %v2252
      %2281 = vmatprep.subr.bf16.mxu0 0
      %2282 = vmatpush1.bf16.msra.mxu0 %v2267
      %2283 = vmatprep.subr.bf16.mxu0 0
      %2284 = vmatpush1.bf16.msra.mxu0 0
      %2285 = vmatprep.subr.bf16.mxu0 0
      %2286 = vmatpush1.bf16.msra.mxu0 0
      %2287 = vmatprep.subr.bf16.mxu0 0
      %2288 = vmatpush1.bf16.msra.mxu0 0
      %2289 = vmatprep.subr.bf16.mxu0 0
      %2290 = vmatpush1.bf16.msra.mxu0 0
      %2291 = vmatprep.subr.bf16.mxu0 0
      %2292 = vmatpush1.bf16.msra.mxu0 0
      %2293 = vmatprep.subr.bf16.mxu0 0
      %2294 = vmatpush1.bf16.msra.mxu0 0
      %2295 = vmatprep.subr.bf16.mxu0 0
      %2296 = vmatpush1.bf16.msra.mxu0 0
      %2297 = vmatprep.subr.bf16.mxu0 0
      %2298 = vmatpush1.bf16.msra.mxu0 0
      %2299 = vmatprep.subr.bf16.mxu0 0
      %2300 = vmatpush1.bf16.msra.mxu0 0
      %2301 = vmatprep.mubr.bf16.mxu0 0
      %2302 = vmatmul.mubr.bf16.gmra.mrb[0].mxu0 %v2261
      %v2303 = vpop.f32.mrb[0].mxu0
      %v2304 = vadd.f32 %v2207, %v2303
      %v2305 = vpop.f32.mrb[0].mxu0
      %v2306 = vpop.f32.mrb[0].mxu0
      %v2307 = vadd.f32 %v2210, %v2306
      %v2308 = vpop.f32.mrb[0].mxu0
      %2309 = vmatprep.mubr.bf16.mxu0 0
      %2310 = vmatmul.mubr.bf16.gmra.mrb[0].mxu0 %v2264
      %v2311 = vpop.f32.mrb[0].mxu0
      %v2312 = vadd.f32 %v2215, %v2311
      %v2313 = vpop.f32.mrb[0].mxu0
      %v2314 = vpop.f32.mrb[0].mxu0
      %v2315 = vadd.f32 %v2218, %v2314
      %v2316 = vpop.f32.mrb[0].mxu0
      %2317 = vdwg.mxu0
      %v2319 = vlaneseq
      %v2320 = vshrl.u32 %v2319, 7
      %v2321 = vsub.s32 0, %v2320
      %v2322 = vrot.slane %v1149, %v2321
      %v2324 = vadd.f32 %v2304, %v2322
      %v2325 = vadd.f32 %v2307, %v2322
      %v2326 = vadd.f32 %v2312, %v2322
      %v2327 = vadd.f32 %v2315, %v2322
      %v2328 = vpack.c.bf16 %v2073, %v2070
      %v2329 = vpack.c.bf16 %v2081, %v2078
      %v2336 = vunpack.c.l.b16 %v1150
      %v2337 = vunpack.c.l.b16 %v1151
      %v2338 = vunpack.c.l.b16 %v1152
      %v2339 = vunpack.c.l.b16 %v1153
      %v2340 = vunpack.c.l.b16 %v1154
      %v2341 = vunpack.c.l.b16 %v1155
      %v2342 = vpack.c.b16 %v2337, %v2336
      %v2343 = vpack.c.b16 %v2339, %v2338
      %v2344 = vpack.c.b16 %v2341, %v2340
      %v2349 = vsel %vm1310, %v2328, 0
      %v2352 = vsel %vm1310, %v2329, 0
      %2354 = vmatprep.subr.bf16.mxu0 0
      %2355 = vmatpush1.bf16.msra.mxu0 %v2342
      %2356 = vmatprep.subr.bf16.mxu0 0
      %2357 = vmatpush1.bf16.msra.mxu0 %v2343
      %2358 = vmatprep.subr.bf16.mxu0 0
      %2359 = vmatpush1.bf16.msra.mxu0 %v2344
      %2360 = vmatprep.subr.bf16.mxu0 0
      %2361 = vmatpush1.bf16.msra.mxu0 0
      %2362 = vmatprep.subr.bf16.mxu0 0
      %2363 = vmatpush1.bf16.msra.mxu0 0
      %2364 = vmatprep.subr.bf16.mxu0 0
      %2365 = vmatpush1.bf16.msra.mxu0 0
      %2366 = vmatprep.subr.bf16.mxu0 0
      %2367 = vmatpush1.bf16.msra.mxu0 0
      %2368 = vmatprep.subr.bf16.mxu0 0
      %2369 = vmatpush1.bf16.msra.mxu0 0
      %2370 = vmatprep.subr.bf16.mxu0 0
      %2371 = vmatpush1.bf16.msra.mxu0 0
      %2372 = vmatprep.subr.bf16.mxu0 0
      %2373 = vmatpush1.bf16.msra.mxu0 0
      %2374 = vmatprep.subr.bf16.mxu0 0
      %2375 = vmatpush1.bf16.msra.mxu0 0
      %2376 = vmatprep.subr.bf16.mxu0 0
      %2377 = vmatpush1.bf16.msra.mxu0 0
      %2378 = vmatprep.subr.bf16.mxu0 0
      %2379 = vmatpush1.bf16.msra.mxu0 0
      %2380 = vmatprep.subr.bf16.mxu0 0
      %2381 = vmatpush1.bf16.msra.mxu0 0
      %2382 = vmatprep.subr.bf16.mxu0 0
      %2383 = vmatpush1.bf16.msra.mxu0 0
      %2384 = vmatprep.subr.bf16.mxu0 0
      %2385 = vmatpush1.bf16.msra.mxu0 0
      %2386 = vmatprep.mubr.bf16.mxu0 0
      %2387 = vmatmul.mubr.bf16.gmra.mrb[0].mxu0 %v2349
      %v2388 = vpop.f32.mrb[0].mxu0
      %v2389 = vadd.f32 0.0, %v2388
      %v2390 = vpop.f32.mrb[0].mxu0
      %v2391 = vpop.f32.mrb[0].mxu0
      %v2392 = vadd.f32 0.0, %v2391
      %v2393 = vpop.f32.mrb[0].mxu0
      %2394 = vmatprep.mubr.bf16.mxu0 0
      %2395 = vmatmul.mubr.bf16.gmra.mrb[0].mxu0 %v2352
      %v2396 = vpop.f32.mrb[0].mxu0
      %v2397 = vadd.f32 0.0, %v2396
      %v2398 = vpop.f32.mrb[0].mxu0
      %v2399 = vpop.f32.mrb[0].mxu0
      %v2400 = vadd.f32 0.0, %v2399
      %v2401 = vpop.f32.mrb[0].mxu0
      %2402 = vdwg.mxu0
      %v2403 = vpack.c.bf16 %v2325, %v2324
      %v2404 = vpack.c.bf16 %v2327, %v2326
      %v2406 = vlaneseq
      %v2407 = vshrl.u32 %v2406, 7
      %v2408 = vsub.s32 0, %v2407
      %v2409 = vrot.slane %v1169, %v2408
      %v2424 = vunpack.c.l.b16 %v1156
      %v2425 = vunpack.c.l.b16 %v1157
      %v2426 = vunpack.c.l.b16 %v1158
      %v2427 = vunpack.c.l.b16 %v1159
      %v2428 = vunpack.c.l.b16 %v1160
      %v2429 = vunpack.c.l.b16 %v1161
      %v2430 = vunpack.c.l.b16 %v1162
      %v2431 = vunpack.c.l.b16 %v1163
      %v2432 = vunpack.c.l.b16 %v1164
      %v2433 = vunpack.c.l.b16 %v1165
      %v2434 = vunpack.c.l.b16 %v1166
      %v2435 = vunpack.c.l.b16 %v1167
      %v2436 = vunpack.c.l.b16 %v1168
      %v2437 = vpack.c.b16 %v2425, %v2424
      %v2438 = vpack.c.b16 %v2427, %v2426
      %v2439 = vpack.c.b16 %v2429, %v2428
      %v2440 = vpack.c.b16 %v2431, %v2430
      %v2441 = vpack.c.b16 %v2433, %v2432
      %v2442 = vpack.c.b16 %v2435, %v2434
      %v2443 = vpack.c.b16 %v2436, %v2436
      %v2451 = vsel %vm1256, %v2403, 0
      %v2454 = vsel %vm1256, %v2404, 0
      %v2457 = vsel %vm1369, %v2443, 0
      %2459 = vmatprep.subr.bf16.mxu0 0
      %2460 = vmatpush1.bf16.msra.mxu0 %v2437
      %2461 = vmatprep.subr.bf16.mxu0 0
      %2462 = vmatpush1.bf16.msra.mxu0 %v2438
      %2463 = vmatprep.subr.bf16.mxu0 0
      %2464 = vmatpush1.bf16.msra.mxu0 %v2439
      %2465 = vmatprep.subr.bf16.mxu0 0
      %2466 = vmatpush1.bf16.msra.mxu0 %v2440
      %2467 = vmatprep.subr.bf16.mxu0 0
      %2468 = vmatpush1.bf16.msra.mxu0 %v2441
      %2469 = vmatprep.subr.bf16.mxu0 0
      %2470 = vmatpush1.bf16.msra.mxu0 %v2442
      %2471 = vmatprep.subr.bf16.mxu0 0
      %2472 = vmatpush1.bf16.msra.mxu0 %v2457
      %2473 = vmatprep.subr.bf16.mxu0 0
      %2474 = vmatpush1.bf16.msra.mxu0 0
      %2475 = vmatprep.subr.bf16.mxu0 0
      %2476 = vmatpush1.bf16.msra.mxu0 0
      %2477 = vmatprep.subr.bf16.mxu0 0
      %2478 = vmatpush1.bf16.msra.mxu0 0
      %2479 = vmatprep.subr.bf16.mxu0 0
      %2480 = vmatpush1.bf16.msra.mxu0 0
      %2481 = vmatprep.subr.bf16.mxu0 0
      %2482 = vmatpush1.bf16.msra.mxu0 0
      %2483 = vmatprep.subr.bf16.mxu0 0
      %2484 = vmatpush1.bf16.msra.mxu0 0
      %2485 = vmatprep.subr.bf16.mxu0 0
      %2486 = vmatpush1.bf16.msra.mxu0 0
      %2487 = vmatprep.subr.bf16.mxu0 0
      %2488 = vmatpush1.bf16.msra.mxu0 0
      %2489 = vmatprep.subr.bf16.mxu0 0
      %2490 = vmatpush1.bf16.msra.mxu0 0
      %2491 = vmatprep.mubr.bf16.mxu0 0
      %2492 = vmatmul.mubr.bf16.gmra.mrb[0].mxu0 %v2451
      %v2493 = vpop.f32.mrb[0].mxu0
      %v2494 = vadd.f32 %v2409, %v2493
      %v2495 = vpop.f32.mrb[0].mxu0
      %v2496 = vpop.f32.mrb[0].mxu0
      %v2497 = vadd.f32 %v2409, %v2496
      %v2498 = vpop.f32.mrb[0].mxu0
      %2499 = vmatprep.mubr.bf16.mxu0 0
      %2500 = vmatmul.mubr.bf16.gmra.mrb[0].mxu0 %v2454
      %v2501 = vpop.f32.mrb[0].mxu0
      %v2502 = vadd.f32 %v2409, %v2501
      %v2503 = vpop.f32.mrb[0].mxu0
      %v2504 = vpop.f32.mrb[0].mxu0
      %v2505 = vadd.f32 %v2409, %v2504
      %v2506 = vpop.f32.mrb[0].mxu0
      %2507 = vdwg.mxu0
      %v2508 = vxor.u32 %v2494, 2147483648
      %v2509 = vxor.u32 %v2497, 2147483648
      %v2510 = vxor.u32 %v2502, 2147483648
      %v2511 = vxor.u32 %v2505, 2147483648
      %v2512 = vmul.f32 %v2508, 1.442695
      %v2513 = vpow.pop %v2512
      %v2514 = vmul.f32 %v2509, 1.442695
      %v2515 = vpow.pop %v2514
      %v2516 = vmul.f32 %v2510, 1.442695
      %v2517 = vpow.pop %v2516
      %v2518 = vmul.f32 %v2511, 1.442695
      %v2519 = vpow.pop %v2518
      %v2520 = vadd.f32 %v2513, 1.0
      %v2521 = vadd.f32 %v2515, 1.0
      %v2522 = vadd.f32 %v2517, 1.0
      %v2523 = vadd.f32 %v2519, 1.0
      %v2524 = vrcp.pop %v2520
      %v2525 = vmul.f32 1.0, %v2524
      %v2526 = vrcp.pop %v2521
      %v2527 = vmul.f32 1.0, %v2526
      %v2528 = vrcp.pop %v2522
      %v2529 = vmul.f32 1.0, %v2528
      %v2530 = vrcp.pop %v2523
      %v2531 = vmul.f32 1.0, %v2530
      %2536 = vrot.lane.b32.xlu0 %v2525, 16
      %v2537 = vpop.permute.xlu0 %2536
      %2538 = vrot.lane.b32.xlu0 %v2527, 16
      %v2539 = vpop.permute.xlu0 %2538
      %2540 = vrot.lane.b32.xlu0 %v2529, 16
      %v2541 = vpop.permute.xlu0 %2540
      %2542 = vrot.lane.b32.xlu0 %v2531, 16
      %v2543 = vpop.permute.xlu0 %2542
      %2548 = vrot.lane.b32.xlu0 %v2525, 32
      %v2549 = vpop.permute.xlu0 %2548
      %2550 = vrot.lane.b32.xlu0 %v2527, 32
      %v2551 = vpop.permute.xlu0 %2550
      %2552 = vrot.lane.b32.xlu0 %v2529, 32
      %v2553 = vpop.permute.xlu0 %2552
      %2554 = vrot.lane.b32.xlu0 %v2531, 32
      %v2555 = vpop.permute.xlu0 %2554
      %v2560 = vsel %vm1991, %v2525, %v2537
      %v2561 = vsel %vm1991, %v2527, %v2539
      %v2562 = vsel %vm1991, %v2529, %v2541
      %v2563 = vsel %vm1991, %v2531, %v2543
      %v2564 = vsel %vm1996, %v2560, %v2549
      %v2565 = vsel %vm1996, %v2561, %v2551
      %v2566 = vsel %vm1996, %v2562, %v2553
      %v2567 = vsel %vm1996, %v2563, %v2555
      %v2568 = vmul.f32 %v2389, %v2564
      %v2569 = vmul.f32 %v2392, %v2565
      %v2570 = vmul.f32 %v2397, %v2566
      %v2571 = vmul.f32 %v2400, %v2567
      %v2572 = vmax.f32 %v2324, 0.0
      %v2573 = vmax.f32 %v2325, 0.0
      %v2574 = vmax.f32 %v2326, 0.0
      %v2575 = vmax.f32 %v2327, 0.0
      %v2576 = vpack.c.bf16 %v2569, %v2568
      %v2577 = vpack.c.bf16 %v2571, %v2570
      %v2584 = vunpack.c.l.b16 %v1170
      %v2585 = vunpack.c.l.b16 %v1171
      %v2586 = vunpack.c.l.b16 %v1172
      %v2587 = vunpack.c.l.b16 %v1173
      %v2588 = vunpack.c.l.b16 %v1174
      %v2589 = vunpack.c.l.b16 %v1175
      %v2590 = vpack.c.b16 %v2585, %v2584
      %v2591 = vpack.c.b16 %v2587, %v2586
      %v2592 = vpack.c.b16 %v2589, %v2588
      %v2597 = vsel %vm1310, %v2576, 0
      %v2600 = vsel %vm1310, %v2577, 0
      %2602 = vmatprep.subr.bf16.mxu0 0
      %2603 = vmatpush1.bf16.msra.mxu0 %v2590
      %2604 = vmatprep.subr.bf16.mxu0 0
      %2605 = vmatpush1.bf16.msra.mxu0 %v2591
      %2606 = vmatprep.subr.bf16.mxu0 0
      %2607 = vmatpush1.bf16.msra.mxu0 %v2592
      %2608 = vmatprep.subr.bf16.mxu0 0
      %2609 = vmatpush1.bf16.msra.mxu0 0
      %2610 = vmatprep.subr.bf16.mxu0 0
      %2611 = vmatpush1.bf16.msra.mxu0 0
      %2612 = vmatprep.subr.bf16.mxu0 0
      %2613 = vmatpush1.bf16.msra.mxu0 0
      %2614 = vmatprep.subr.bf16.mxu0 0
      %2615 = vmatpush1.bf16.msra.mxu0 0
      %2616 = vmatprep.subr.bf16.mxu0 0
      %2617 = vmatpush1.bf16.msra.mxu0 0
      %2618 = vmatprep.subr.bf16.mxu0 0
      %2619 = vmatpush1.bf16.msra.mxu0 0
      %2620 = vmatprep.subr.bf16.mxu0 0
      %2621 = vmatpush1.bf16.msra.mxu0 0
      %2622 = vmatprep.subr.bf16.mxu0 0
      %2623 = vmatpush1.bf16.msra.mxu0 0
      %2624 = vmatprep.subr.bf16.mxu0 0
      %2625 = vmatpush1.bf16.msra.mxu0 0
      %2626 = vmatprep.subr.bf16.mxu0 0
      %2627 = vmatpush1.bf16.msra.mxu0 0
      %2628 = vmatprep.subr.bf16.mxu0 0
      %2629 = vmatpush1.bf16.msra.mxu0 0
      %2630 = vmatprep.subr.bf16.mxu0 0
      %2631 = vmatpush1.bf16.msra.mxu0 0
      %2632 = vmatprep.subr.bf16.mxu0 0
      %2633 = vmatpush1.bf16.msra.mxu0 0
      %2634 = vmatprep.mubr.bf16.mxu0 0
      %2635 = vmatmul.mubr.bf16.gmra.mrb[0].mxu0 %v2597
      %v2636 = vpop.f32.mrb[0].mxu0
      %v2637 = vadd.f32 0.0, %v2636
      %v2638 = vpop.f32.mrb[0].mxu0
      %v2639 = vpop.f32.mrb[0].mxu0
      %v2640 = vadd.f32 0.0, %v2639
      %v2641 = vpop.f32.mrb[0].mxu0
      %2642 = vmatprep.mubr.bf16.mxu0 0
      %2643 = vmatmul.mubr.bf16.gmra.mrb[0].mxu0 %v2600
      %v2644 = vpop.f32.mrb[0].mxu0
      %v2645 = vadd.f32 0.0, %v2644
      %v2646 = vpop.f32.mrb[0].mxu0
      %v2647 = vpop.f32.mrb[0].mxu0
      %v2648 = vadd.f32 0.0, %v2647
      %v2649 = vpop.f32.mrb[0].mxu0
      %2650 = vdwg.mxu0
      %v2651 = vmul.f32 %v2637, %v2637
      %v2652 = vmul.f32 %v2640, %v2640
      %v2653 = vmul.f32 %v2645, %v2645
      %v2654 = vmul.f32 %v2648, %v2648
      %2659 = vrot.lane.b32.xlu0 %v2651, 112
      %v2660 = vpop.permute.xlu0 %2659
      %2661 = vrot.lane.b32.xlu0 %v2652, 112
      %v2662 = vpop.permute.xlu0 %2661
      %2663 = vrot.lane.b32.xlu0 %v2653, 112
      %v2664 = vpop.permute.xlu0 %2663
      %2665 = vrot.lane.b32.xlu0 %v2654, 112
      %v2666 = vpop.permute.xlu0 %2665
      %v2671 = vadd.f32 %v2651, %v2660
      %v2672 = vadd.f32 %v2652, %v2662
      %v2673 = vadd.f32 %v2653, %v2664
      %v2674 = vadd.f32 %v2654, %v2666
      %2675 = vrot.lane.b32.xlu0 %v2651, 96
      %v2676 = vpop.permute.xlu0 %2675
      %2677 = vrot.lane.b32.xlu0 %v2652, 96
      %v2678 = vpop.permute.xlu0 %2677
      %2679 = vrot.lane.b32.xlu0 %v2653, 96
      %v2680 = vpop.permute.xlu0 %2679
      %2681 = vrot.lane.b32.xlu0 %v2654, 96
      %v2682 = vpop.permute.xlu0 %2681
      %v2687 = vadd.f32 %v2671, %v2676
      %v2688 = vadd.f32 %v2672, %v2678
      %v2689 = vadd.f32 %v2673, %v2680
      %v2690 = vadd.f32 %v2674, %v2682
      %v2691 = vmax.f32 %v2687, 1e-08
      %v2692 = vmax.f32 %v2688, 1e-08
      %v2693 = vmax.f32 %v2689, 1e-08
      %v2694 = vmax.f32 %v2690, 1e-08
      %v2695 = vrsqrt.pop %v2691
      %v2696 = vmul.f32 %v2691, %v2695
      %vm2697 = vcmp.eq.f32.partialorder %v2691, inf
      %v2698 = vsel %vm2697, %v2691, %v2696
      %vm2699 = vcmp.eq.f32.partialorder %v2691, 0.0
      %v2700 = vand.u32 %v2691, 2147483648
      %v2701 = vsel %vm2699, %v2700, %v2698
      %v2702 = vrsqrt.pop %v2692
      %v2703 = vmul.f32 %v2692, %v2702
      %vm2704 = vcmp.eq.f32.partialorder %v2692, inf
      %v2705 = vsel %vm2704, %v2692, %v2703
      %vm2706 = vcmp.eq.f32.partialorder %v2692, 0.0
      %v2707 = vand.u32 %v2692, 2147483648
      %v2708 = vsel %vm2706, %v2707, %v2705
      %v2709 = vrsqrt.pop %v2693
      %v2710 = vmul.f32 %v2693, %v2709
      %vm2711 = vcmp.eq.f32.partialorder %v2693, inf
      %v2712 = vsel %vm2711, %v2693, %v2710
      %vm2713 = vcmp.eq.f32.partialorder %v2693, 0.0
      %v2714 = vand.u32 %v2693, 2147483648
      %v2715 = vsel %vm2713, %v2714, %v2712
      %v2716 = vrsqrt.pop %v2694
      %v2717 = vmul.f32 %v2694, %v2716
      %vm2718 = vcmp.eq.f32.partialorder %v2694, inf
      %v2719 = vsel %vm2718, %v2694, %v2717
      %vm2720 = vcmp.eq.f32.partialorder %v2694, 0.0
      %v2721 = vand.u32 %v2694, 2147483648
      %v2722 = vsel %vm2720, %v2721, %v2719
      %v2723 = vpack.c.bf16 %v2573, %v2572
      %v2724 = vpack.c.bf16 %v2575, %v2574
      %v2725 = vpack.c.bf16 %v2708, %v2701
      %v2726 = vpack.c.bf16 %v2722, %v2715
      %v2729 = vunpack.c.l.b16 %v1189
      %v2730 = vunpack.c.l.b16 %v1190
      %v2731 = vpack.c.b16 %v2730, %v2729
      %v2734 = vsel %vm1991, %v2725, 0
      %v2737 = vsel %vm1991, %v2726, 0
      %2739 = vmatprep.subr.bf16.mxu0 0
      %2740 = vmatpush1.bf16.msra.mxu0 %v2731
      %2741 = vmatprep.subr.bf16.mxu0 0
      %2742 = vmatpush1.bf16.msra.mxu0 0
      %2743 = vmatprep.subr.bf16.mxu0 0
      %2744 = vmatpush1.bf16.msra.mxu0 0
      %2745 = vmatprep.subr.bf16.mxu0 0
      %2746 = vmatpush1.bf16.msra.mxu0 0
      %2747 = vmatprep.subr.bf16.mxu0 0
      %2748 = vmatpush1.bf16.msra.mxu0 0
      %2749 = vmatprep.subr.bf16.mxu0 0
      %2750 = vmatpush1.bf16.msra.mxu0 0
      %2751 = vmatprep.subr.bf16.mxu0 0
      %2752 = vmatpush1.bf16.msra.mxu0 0
      %2753 = vmatprep.subr.bf16.mxu0 0
      %2754 = vmatpush1.bf16.msra.mxu0 0
      %2755 = vmatprep.subr.bf16.mxu0 0
      %2756 = vmatpush1.bf16.msra.mxu0 0
      %2757 = vmatprep.subr.bf16.mxu0 0
      %2758 = vmatpush1.bf16.msra.mxu0 0
      %2759 = vmatprep.subr.bf16.mxu0 0
      %2760 = vmatpush1.bf16.msra.mxu0 0
      %2761 = vmatprep.subr.bf16.mxu0 0
      %2762 = vmatpush1.bf16.msra.mxu0 0
      %2763 = vmatprep.subr.bf16.mxu0 0
      %2764 = vmatpush1.bf16.msra.mxu0 0
      %2765 = vmatprep.subr.bf16.mxu0 0
      %2766 = vmatpush1.bf16.msra.mxu0 0
      %2767 = vmatprep.subr.bf16.mxu0 0
      %2768 = vmatpush1.bf16.msra.mxu0 0
      %2769 = vmatprep.subr.bf16.mxu0 0
      %2770 = vmatpush1.bf16.msra.mxu0 0
      %2771 = vmatprep.mubr.bf16.mxu0 0
      %2772 = vmatmul.mubr.bf16.gmra.mrb[0].mxu0 %v2734
      %v2773 = vpop.f32.mrb[0].mxu0
      %v2774 = vadd.f32 0.0, %v2773
      %v2775 = vpop.f32.mrb[0].mxu0
      %v2776 = vpop.f32.mrb[0].mxu0
      %v2777 = vadd.f32 0.0, %v2776
      %v2778 = vpop.f32.mrb[0].mxu0
      %2779 = vmatprep.mubr.bf16.mxu0 0
      %2780 = vmatmul.mubr.bf16.gmra.mrb[0].mxu0 %v2737
      %v2781 = vpop.f32.mrb[0].mxu0
      %v2782 = vadd.f32 0.0, %v2781
      %v2783 = vpop.f32.mrb[0].mxu0
      %v2784 = vpop.f32.mrb[0].mxu0
      %v2785 = vadd.f32 0.0, %v2784
      %v2786 = vpop.f32.mrb[0].mxu0
      %2787 = vdwg.mxu0
      %v2801 = vunpack.c.l.b16 %v1176
      %v2802 = vunpack.c.l.b16 %v1177
      %v2803 = vunpack.c.l.b16 %v1178
      %v2804 = vunpack.c.l.b16 %v1179
      %v2805 = vunpack.c.l.b16 %v1180
      %v2806 = vunpack.c.l.b16 %v1181
      %v2807 = vunpack.c.l.b16 %v1182
      %v2808 = vunpack.c.l.b16 %v1183
      %v2809 = vunpack.c.l.b16 %v1184
      %v2810 = vunpack.c.l.b16 %v1185
      %v2811 = vunpack.c.l.b16 %v1186
      %v2812 = vunpack.c.l.b16 %v1187
      %v2813 = vunpack.c.l.b16 %v1188
      %v2814 = vpack.c.b16 %v2802, %v2801
      %v2815 = vpack.c.b16 %v2804, %v2803
      %v2816 = vpack.c.b16 %v2806, %v2805
      %v2817 = vpack.c.b16 %v2808, %v2807
      %v2818 = vpack.c.b16 %v2810, %v2809
      %v2819 = vpack.c.b16 %v2812, %v2811
      %v2820 = vpack.c.b16 %v2813, %v2813
      %v2828 = vsel %vm1256, %v2723, 0
      %v2831 = vsel %vm1256, %v2724, 0
      %v2834 = vsel %vm1369, %v2820, 0
      %2836 = vmatprep.subr.bf16.mxu0 0
      %2837 = vmatpush1.bf16.msra.mxu0 %v2814
      %2838 = vmatprep.subr.bf16.mxu0 0
      %2839 = vmatpush1.bf16.msra.mxu0 %v2815
      %2840 = vmatprep.subr.bf16.mxu0 0
      %2841 = vmatpush1.bf16.msra.mxu0 %v2816
      %2842 = vmatprep.subr.bf16.mxu0 0
      %2843 = vmatpush1.bf16.msra.mxu0 %v2817
      %2844 = vmatprep.subr.bf16.mxu0 0
      %2845 = vmatpush1.bf16.msra.mxu0 %v2818
      %2846 = vmatprep.subr.bf16.mxu0 0
      %2847 = vmatpush1.bf16.msra.mxu0 %v2819
      %2848 = vmatprep.subr.bf16.mxu0 0
      %2849 = vmatpush1.bf16.msra.mxu0 %v2834
      %2850 = vmatprep.subr.bf16.mxu0 0
      %2851 = vmatpush1.bf16.msra.mxu0 0
      %2852 = vmatprep.subr.bf16.mxu0 0
      %2853 = vmatpush1.bf16.msra.mxu0 0
      %2854 = vmatprep.subr.bf16.mxu0 0
      %2855 = vmatpush1.bf16.msra.mxu0 0
      %2856 = vmatprep.subr.bf16.mxu0 0
      %2857 = vmatpush1.bf16.msra.mxu0 0
      %2858 = vmatprep.subr.bf16.mxu0 0
      %2859 = vmatpush1.bf16.msra.mxu0 0
      %2860 = vmatprep.subr.bf16.mxu0 0
      %2861 = vmatpush1.bf16.msra.mxu0 0
      %2862 = vmatprep.subr.bf16.mxu0 0
      %2863 = vmatpush1.bf16.msra.mxu0 0
      %2864 = vmatprep.subr.bf16.mxu0 0
      %2865 = vmatpush1.bf16.msra.mxu0 0
      %2866 = vmatprep.subr.bf16.mxu0 0
      %2867 = vmatpush1.bf16.msra.mxu0 0
      %2868 = vmatprep.mubr.bf16.mxu0 0
      %2869 = vmatmul.mubr.bf16.gmra.mrb[0].mxu0 %v2828
      %v2870 = vpop.f32.mrb[0].mxu0
      %v2871 = vadd.f32 %v2774, %v2870
      %v2872 = vpop.f32.mrb[0].mxu0
      %v2873 = vpop.f32.mrb[0].mxu0
      %v2874 = vadd.f32 %v2777, %v2873
      %v2875 = vpop.f32.mrb[0].mxu0
      %2876 = vmatprep.mubr.bf16.mxu0 0
      %2877 = vmatmul.mubr.bf16.gmra.mrb[0].mxu0 %v2831
      %v2878 = vpop.f32.mrb[0].mxu0
      %v2879 = vadd.f32 %v2782, %v2878
      %v2880 = vpop.f32.mrb[0].mxu0
      %v2881 = vpop.f32.mrb[0].mxu0
      %v2882 = vadd.f32 %v2785, %v2881
      %v2883 = vpop.f32.mrb[0].mxu0
      %2884 = vdwg.mxu0
      %v2886 = vlaneseq
      %v2887 = vshrl.u32 %v2886, 7
      %v2888 = vsub.s32 0, %v2887
      %v2889 = vrot.slane %v1191, %v2888
      %v2891 = vadd.f32 %v2871, %v2889
      %v2892 = vadd.f32 %v2874, %v2889
      %v2893 = vadd.f32 %v2879, %v2889
      %v2894 = vadd.f32 %v2882, %v2889
      %v2895 = vpack.c.bf16 %v2640, %v2637
      %v2896 = vpack.c.bf16 %v2648, %v2645
      %v2903 = vunpack.c.l.b16 %v1192
      %v2904 = vunpack.c.l.b16 %v1193
      %v2905 = vunpack.c.l.b16 %v1194
      %v2906 = vunpack.c.l.b16 %v1195
      %v2907 = vunpack.c.l.b16 %v1196
      %v2908 = vunpack.c.l.b16 %v1197
      %v2909 = vpack.c.b16 %v2904, %v2903
      %v2910 = vpack.c.b16 %v2906, %v2905
      %v2911 = vpack.c.b16 %v2908, %v2907
      %v2916 = vsel %vm1310, %v2895, 0
      %v2919 = vsel %vm1310, %v2896, 0
      %2921 = vmatprep.subr.bf16.mxu0 0
      %2922 = vmatpush1.bf16.msra.mxu0 %v2909
      %2923 = vmatprep.subr.bf16.mxu0 0
      %2924 = vmatpush1.bf16.msra.mxu0 %v2910
      %2925 = vmatprep.subr.bf16.mxu0 0
      %2926 = vmatpush1.bf16.msra.mxu0 %v2911
      %2927 = vmatprep.subr.bf16.mxu0 0
      %2928 = vmatpush1.bf16.msra.mxu0 0
      %2929 = vmatprep.subr.bf16.mxu0 0
      %2930 = vmatpush1.bf16.msra.mxu0 0
      %2931 = vmatprep.subr.bf16.mxu0 0
      %2932 = vmatpush1.bf16.msra.mxu0 0
      %2933 = vmatprep.subr.bf16.mxu0 0
      %2934 = vmatpush1.bf16.msra.mxu0 0
      %2935 = vmatprep.subr.bf16.mxu0 0
      %2936 = vmatpush1.bf16.msra.mxu0 0
      %2937 = vmatprep.subr.bf16.mxu0 0
      %2938 = vmatpush1.bf16.msra.mxu0 0
      %2939 = vmatprep.subr.bf16.mxu0 0
      %2940 = vmatpush1.bf16.msra.mxu0 0
      %2941 = vmatprep.subr.bf16.mxu0 0
      %2942 = vmatpush1.bf16.msra.mxu0 0
      %2943 = vmatprep.subr.bf16.mxu0 0
      %2944 = vmatpush1.bf16.msra.mxu0 0
      %2945 = vmatprep.subr.bf16.mxu0 0
      %2946 = vmatpush1.bf16.msra.mxu0 0
      %2947 = vmatprep.subr.bf16.mxu0 0
      %2948 = vmatpush1.bf16.msra.mxu0 0
      %2949 = vmatprep.subr.bf16.mxu0 0
      %2950 = vmatpush1.bf16.msra.mxu0 0
      %2951 = vmatprep.subr.bf16.mxu0 0
      %2952 = vmatpush1.bf16.msra.mxu0 0
      %2953 = vmatprep.mubr.bf16.mxu0 0
      %2954 = vmatmul.mubr.bf16.gmra.mrb[0].mxu0 %v2916
      %v2955 = vpop.f32.mrb[0].mxu0
      %v2956 = vadd.f32 0.0, %v2955
      %v2957 = vpop.f32.mrb[0].mxu0
      %v2958 = vpop.f32.mrb[0].mxu0
      %v2959 = vadd.f32 0.0, %v2958
      %v2960 = vpop.f32.mrb[0].mxu0
      %2961 = vmatprep.mubr.bf16.mxu0 0
      %2962 = vmatmul.mubr.bf16.gmra.mrb[0].mxu0 %v2919
      %v2963 = vpop.f32.mrb[0].mxu0
      %v2964 = vadd.f32 0.0, %v2963
      %v2965 = vpop.f32.mrb[0].mxu0
      %v2966 = vpop.f32.mrb[0].mxu0
      %v2967 = vadd.f32 0.0, %v2966
      %v2968 = vpop.f32.mrb[0].mxu0
      %2969 = vdwg.mxu0
      %v2970 = vpack.c.bf16 %v2892, %v2891
      %v2971 = vpack.c.bf16 %v2894, %v2893
      %v2973 = vlaneseq
      %v2974 = vshrl.u32 %v2973, 7
      %v2975 = vsub.s32 0, %v2974
      %v2976 = vrot.slane %v1211, %v2975
      %v2991 = vunpack.c.l.b16 %v1198
      %v2992 = vunpack.c.l.b16 %v1199
      %v2993 = vunpack.c.l.b16 %v1200
      %v2994 = vunpack.c.l.b16 %v1201
      %v2995 = vunpack.c.l.b16 %v1202
      %v2996 = vunpack.c.l.b16 %v1203
      %v2997 = vunpack.c.l.b16 %v1204
      %v2998 = vunpack.c.l.b16 %v1205
      %v2999 = vunpack.c.l.b16 %v1206
      %v3000 = vunpack.c.l.b16 %v1207
      %v3001 = vunpack.c.l.b16 %v1208
      %v3002 = vunpack.c.l.b16 %v1209
      %v3003 = vunpack.c.l.b16 %v1210
      %v3004 = vpack.c.b16 %v2992, %v2991
      %v3005 = vpack.c.b16 %v2994, %v2993
      %v3006 = vpack.c.b16 %v2996, %v2995
      %v3007 = vpack.c.b16 %v2998, %v2997
      %v3008 = vpack.c.b16 %v3000, %v2999
      %v3009 = vpack.c.b16 %v3002, %v3001
      %v3010 = vpack.c.b16 %v3003, %v3003
      %v3018 = vsel %vm1256, %v2970, 0
      %v3021 = vsel %vm1256, %v2971, 0
      %v3024 = vsel %vm1369, %v3010, 0
      %3026 = vmatprep.subr.bf16.mxu0 0
      %3027 = vmatpush1.bf16.msra.mxu0 %v3004
      %3028 = vmatprep.subr.bf16.mxu0 0
      %3029 = vmatpush1.bf16.msra.mxu0 %v3005
      %3030 = vmatprep.subr.bf16.mxu0 0
      %3031 = vmatpush1.bf16.msra.mxu0 %v3006
      %3032 = vmatprep.subr.bf16.mxu0 0
      %3033 = vmatpush1.bf16.msra.mxu0 %v3007
      %3034 = vmatprep.subr.bf16.mxu0 0
      %3035 = vmatpush1.bf16.msra.mxu0 %v3008
      %3036 = vmatprep.subr.bf16.mxu0 0
      %3037 = vmatpush1.bf16.msra.mxu0 %v3009
      %3038 = vmatprep.subr.bf16.mxu0 0
      %3039 = vmatpush1.bf16.msra.mxu0 %v3024
      %3040 = vmatprep.subr.bf16.mxu0 0
      %3041 = vmatpush1.bf16.msra.mxu0 0
      %3042 = vmatprep.subr.bf16.mxu0 0
      %3043 = vmatpush1.bf16.msra.mxu0 0
      %3044 = vmatprep.subr.bf16.mxu0 0
      %3045 = vmatpush1.bf16.msra.mxu0 0
      %3046 = vmatprep.subr.bf16.mxu0 0
      %3047 = vmatpush1.bf16.msra.mxu0 0
      %3048 = vmatprep.subr.bf16.mxu0 0
      %3049 = vmatpush1.bf16.msra.mxu0 0
      %3050 = vmatprep.subr.bf16.mxu0 0
      %3051 = vmatpush1.bf16.msra.mxu0 0
      %3052 = vmatprep.subr.bf16.mxu0 0
      %3053 = vmatpush1.bf16.msra.mxu0 0
      %3054 = vmatprep.subr.bf16.mxu0 0
      %3055 = vmatpush1.bf16.msra.mxu0 0
      %3056 = vmatprep.subr.bf16.mxu0 0
      %3057 = vmatpush1.bf16.msra.mxu0 0
      %3058 = vmatprep.mubr.bf16.mxu0 0
      %3059 = vmatmul.mubr.bf16.gmra.mrb[0].mxu0 %v3018
      %v3060 = vpop.f32.mrb[0].mxu0
      %v3061 = vadd.f32 %v2976, %v3060
      %v3062 = vpop.f32.mrb[0].mxu0
      %v3063 = vpop.f32.mrb[0].mxu0
      %v3064 = vadd.f32 %v2976, %v3063
      %v3065 = vpop.f32.mrb[0].mxu0
      %3066 = vmatprep.mubr.bf16.mxu0 0
      %3067 = vmatmul.mubr.bf16.gmra.mrb[0].mxu0 %v3021
      %v3068 = vpop.f32.mrb[0].mxu0
      %v3069 = vadd.f32 %v2976, %v3068
      %v3070 = vpop.f32.mrb[0].mxu0
      %v3071 = vpop.f32.mrb[0].mxu0
      %v3072 = vadd.f32 %v2976, %v3071
      %v3073 = vpop.f32.mrb[0].mxu0
      %3074 = vdwg.mxu0
      %v3075 = vxor.u32 %v3061, 2147483648
      %v3076 = vxor.u32 %v3064, 2147483648
      %v3077 = vxor.u32 %v3069, 2147483648
      %v3078 = vxor.u32 %v3072, 2147483648
      %v3079 = vmul.f32 %v3075, 1.442695
      %v3080 = vpow.pop %v3079
      %v3081 = vmul.f32 %v3076, 1.442695
      %v3082 = vpow.pop %v3081
      %v3083 = vmul.f32 %v3077, 1.442695
      %v3084 = vpow.pop %v3083
      %v3085 = vmul.f32 %v3078, 1.442695
      %v3086 = vpow.pop %v3085
      %v3087 = vadd.f32 %v3080, 1.0
      %v3088 = vadd.f32 %v3082, 1.0
      %v3089 = vadd.f32 %v3084, 1.0
      %v3090 = vadd.f32 %v3086, 1.0
      %v3091 = vrcp.pop %v3087
      %v3092 = vmul.f32 1.0, %v3091
      %v3093 = vrcp.pop %v3088
      %v3094 = vmul.f32 1.0, %v3093
      %v3095 = vrcp.pop %v3089
      %v3096 = vmul.f32 1.0, %v3095
      %v3097 = vrcp.pop %v3090
      %v3098 = vmul.f32 1.0, %v3097
      %3103 = vrot.lane.b32.xlu0 %v3092, 16
      %v3104 = vpop.permute.xlu0 %3103
      %3105 = vrot.lane.b32.xlu0 %v3094, 16
      %v3106 = vpop.permute.xlu0 %3105
      %3107 = vrot.lane.b32.xlu0 %v3096, 16
      %v3108 = vpop.permute.xlu0 %3107
      %3109 = vrot.lane.b32.xlu0 %v3098, 16
      %v3110 = vpop.permute.xlu0 %3109
      %3115 = vrot.lane.b32.xlu0 %v3092, 32
      %v3116 = vpop.permute.xlu0 %3115
      %3117 = vrot.lane.b32.xlu0 %v3094, 32
      %v3118 = vpop.permute.xlu0 %3117
      %3119 = vrot.lane.b32.xlu0 %v3096, 32
      %v3120 = vpop.permute.xlu0 %3119
      %3121 = vrot.lane.b32.xlu0 %v3098, 32
      %v3122 = vpop.permute.xlu0 %3121
      %v3127 = vsel %vm1991, %v3092, %v3104
      %v3128 = vsel %vm1991, %v3094, %v3106
      %v3129 = vsel %vm1991, %v3096, %v3108
      %v3130 = vsel %vm1991, %v3098, %v3110
      %v3131 = vsel %vm1996, %v3127, %v3116
      %v3132 = vsel %vm1996, %v3128, %v3118
      %v3133 = vsel %vm1996, %v3129, %v3120
      %v3134 = vsel %vm1996, %v3130, %v3122
      %v3135 = vmul.f32 %v2956, %v3131
      %v3136 = vmul.f32 %v2959, %v3132
      %v3137 = vmul.f32 %v2964, %v3133
      %v3138 = vmul.f32 %v2967, %v3134
      %v3139 = vld [vmem:[%s1038] sm:$0xff]
      %v3140 = vld [vmem:[%s1038 + $0x8] sm:$0xff]
      %v3141 = vld [vmem:[%s1038 + $0x10] sm:$0xff]
      %v3142 = vld [vmem:[%s1038 + $0x18] sm:$0xff]
      %3144 = vset.pattern.permute.xlu0 0
      %3145 = vperm.xlu0 %3144, %v3139
      %v3146 = vpop.permute.xlu0 %3145
      %3149 = vset.pattern.permute.xlu0 0
      %3150 = vperm.xlu0 %3149, %v3140
      %v3151 = vpop.permute.xlu0 %3150
      %3154 = vset.pattern.permute.xlu0 0
      %3155 = vperm.xlu0 %3154, %v3141
      %v3156 = vpop.permute.xlu0 %3155
      %3159 = vset.pattern.permute.xlu0 0
      %3160 = vperm.xlu0 %3159, %v3142
      %v3161 = vpop.permute.xlu0 %3160
      %v3163 = vmul.f32 %v2891, %v3146
      %v3164 = vmul.f32 %v2892, %v3151
      %v3165 = vmul.f32 %v2893, %v3156
      %v3166 = vmul.f32 %v2894, %v3161
      %3167 = vst.msk [vmem:[%s1044] sm:$0xff] %vm1256, %v3163
      %3168 = vst.msk [vmem:[%s1044 + $0x8] sm:$0xff] %vm1256, %v3164
      %3169 = vst.msk [vmem:[%s1044 + $0x10] sm:$0xff] %vm1256, %v3165
      %3170 = vst.msk [vmem:[%s1044 + $0x18] sm:$0xff] %vm1256, %v3166
      %v3171 = vmul.f32 %v3135, %v3146
      %v3172 = vmul.f32 %v3136, %v3151
      %v3173 = vmul.f32 %v3137, %v3156
      %v3174 = vmul.f32 %v3138, %v3161
      %3175 = vst.msk [vmem:[%s1050] sm:$0xff] %vm1310, %v3171
      %3176 = vst.msk [vmem:[%s1050 + $0x8] sm:$0xff] %vm1310, %v3172
      %3177 = vst.msk [vmem:[%s1050 + $0x10] sm:$0xff] %vm1310, %v3173
      %3178 = vst.msk [vmem:[%s1050 + $0x18] sm:$0xff] %vm1310, %v3174
      %s3179 = smul.u32 4, %s71
      %p3180 = scmp.lt.s32.totalorder %s3179, 7
      %s3181 = scalar_select %p3180, %s3179, 7
      %s3182 = smul.addr %s3181, 8
      %s3183 = scalar_lea.vmem %s57, %s3182
      %s3184 = smul.u32 4, %s71
      %p3185 = scmp.lt.s32.totalorder %s3184, 7
      %s3186 = scalar_select %p3185, %s3184, 7
      %s3187 = smul.addr %s3186, 8
      %s3188 = scalar_lea.vmem %s59, %s3187
      // Predicated region
      $region133: #{base_model_forward.15} parent=131 // pred_check
        %p3189 = pneg %p712
      $region134: #{base_model_forward.15} parent=131 // pred_check_branch
        %3191 = sbr.rel (%p3189) target = $region136
      $region135: #{base_model_forward.15} parent=131 // pred_region
        %s3192 = smul.u32 4, %s71
      $region136: #{base_model_forward.15} parent=131 // pred_fallthru
        _
      // Predicated region
      $region137: #{base_model_forward.15} parent=131 // pred_check
        %p3193 = pneg %p738
      $region138: #{base_model_forward.15} parent=131 // pred_check_branch
        %3195 = sbr.rel (%p3193) target = $region140
      $region139: #{base_model_forward.15} parent=131 // pred_region
        %s3196 = smul.u32 4, %s71
      $region140: #{base_model_forward.15} parent=131 // pred_fallthru
        _
    $region132: #{base_model_forward.15} parent=5 // pred_fallthru
      _
    %p3197 = scmp.le.s32.totalorder 2, %s66
    // Predicated region
    $region141: #{base_model_forward.15} parent=5 // pred_check
      %p3198 = pneg %p3197
    $region142: #{base_model_forward.15} parent=5 // pred_check_branch
      %3200 = sbr.rel (%p3198) target = $region144
    $region143: #{base_model_forward.15} parent=5 // pred_region
      %s3201 = ssub.s32 %s66, 2
      // Predicated region
      $region145: #{base_model_forward.15} parent=143 // pred_check
        %p3202 = pneg %p718
      $region146: #{base_model_forward.15} parent=143 // pred_check_branch
        %3204 = sbr.rel (%p3202) target = $region148
      $region147: #{base_model_forward.15} parent=143 // pred_region
        %s3205 = smul.u32 4, %s72
        %p3206 = scmp.lt.s32.totalorder %s3205, 7
        %s3207 = scalar_select %p3206, %s3205, 7
        %s3208 = smul.addr %s3207, 8
        %s3209 = scalar_lea.vmem %s57, %s3208
      $region148: #{base_model_forward.15} parent=143 // pred_fallthru
        _
      // Predicated region
      $region149: #{base_model_forward.15} parent=143 // pred_check
        %p3210 = pneg %p744
      $region150: #{base_model_forward.15} parent=143 // pred_check_branch
        %3212 = sbr.rel (%p3210) target = $region152
      $region151: #{base_model_forward.15} parent=143 // pred_region
        %s3213 = smul.u32 4, %s72
        %p3214 = scmp.lt.s32.totalorder %s3213, 7
        %s3215 = scalar_select %p3214, %s3213, 7
        %s3216 = smul.addr %s3215, 8
        %s3217 = scalar_lea.vmem %s59, %s3216
      $region152: #{base_model_forward.15} parent=143 // pred_fallthru
        _
    $region144: #{base_model_forward.15} parent=5 // pred_fallthru
      _
  $region6: #{base_model_forward.15} parent=0 // loop_footer
    %s70 = sadd.s32 1, %s66
  $region7: #{base_model_forward.15} parent=0 // loop_footer_branch
    %65 = sbr.rel target = $region3
  $region8: #{base_model_forward.15} parent=0 // loop_exit
    _

// kernel: base_model_forward.25
$region0: #{base_model_forward.25}
  #allocation0 [shape = 'u32[]', space=smem, size = 0x4, offset = 0x4, fixed_abs, tag = 'smem constant byte address 0x4 - core index']
  #allocation1 [shape = 'u32[144,128]{1,0:T(1,128)}', space=vmem, size = 0x12000, scoped, tag = 'internal scratch']
  %s0 = inlined_call_operand.vmem [shape: f32[32,100], index: 0, kind: input, shape index: {}]
  %s1 = inlined_call_operand.vmem [shape: f32[32,48], index: 1, kind: input, shape index: {}]
  %s2 = inlined_call_operand.vmem [shape: f32[1,100], index: 2, kind: input, shape index: {}]
  %s3 = inlined_call_operand.vmem [shape: f32[1,100], index: 3, kind: input, shape index: {}]
  %s4 = inlined_call_operand.vmem [shape: bf16[48,48], index: 4, kind: input, shape index: {}]
  %s5 = inlined_call_operand.vmem [shape: bf16[100,100], index: 5, kind: input, shape index: {}]
  %s6 = inlined_call_operand.vmem [shape: bf16[16,100], index: 6, kind: input, shape index: {}]
  %s7 = inlined_call_operand.vmem [shape: f32[1,100], index: 7, kind: input, shape index: {}]
  %s8 = inlined_call_operand.vmem [shape: f32[32,100], index: 8, kind: output, shape index: {}]
  %s9 = sld [smem:[#allocation0]]
  $region65: #{base_model_forward.25} parent=0
    _
  %s11 = ssub.s32 1, %s9
  %s12 = scalar_select 0, %s11, %s9
  loop: start=0, step=1, limit=4
  $region2: #{base_model_forward.25} parent=0 // loop_pre_header
    _
  $region3: #{base_model_forward.25} parent=0 // loop_header
    %s14 = sphi 0, %s18
    %p15 = scmp.ge.s32.totalorder %s14, 4
    %s24 = sphi 0, %s26
    %s27 = sphi 0, %s24
    %s28 = sphi 0, %s27
    %s44 = sphi 0, %s28
    %s50 = sphi 0, %s52
    %s53 = sphi 0, %s50
    %s54 = sphi 0, %s53
    %s70 = sphi 0, %s54
    %s74 = sphi 0, %s74
    %s76 = sphi 0, %s74
    %s77 = sphi 0, %s76
    %s91 = sphi 0, %s77
    %s95 = sphi 0, %s95
    %s97 = sphi 0, %s95
    %s98 = sphi 0, %s97
    %s112 = sphi 0, %s98
    %s116 = sphi 0, %s116
    %s118 = sphi 0, %s116
    %s119 = sphi 0, %s118
    %s133 = sphi 0, %s119
    %s137 = sphi 0, %s137
    %s139 = sphi 0, %s137
    %s140 = sphi 0, %s139
    %s154 = sphi 0, %s140
    %s158 = sphi 0, %s158
    %s160 = sphi 0, %s158
    %s161 = sphi 0, %s160
    %s175 = sphi 0, %s161
    %s179 = sphi 0, %s179
    %s181 = sphi 0, %s179
    %s182 = sphi 0, %s181
    %s196 = sphi 0, %s182
    %s202 = sphi 0, %s204
    %s205 = sphi 0, %s202
    %s206 = sphi 0, %s205
    %s222 = sphi 0, %s206
  $region4: #{base_model_forward.25} parent=0 // loop_header_branch
    %17 = sbr.rel (%p15) target = $region8
  $region5: #{base_model_forward.25} parent=0 // loop_body
    %s19 = ssub.s32 %s14, 1
    %s20 = ssub.s32 %s14, 2
    %s21 = sadd.s32 %s14, 1
    %s22 = ssub.s32 %s14, %s21
    %p23 = scmp.eq.s32.totalorder %s22, 0
    %s25 = sadd.s32 %s24, 1
    %s26 = scalar_select %p23, %s24, %s25
    %p29 = pneg %p23
    %p30 = scmp.eq.s32.totalorder %s14, 1
    %p31 = por %p29, %p30
    %p32 = scmp.ne.s32.totalorder %s24, %s27
    %p33 = scmp.eq.s32.totalorder %s14, 0
    %p34 = por %p32, %p33
    %p35 = scmp.ne.s32.totalorder %s24, %s27
    %p36 = scmp.eq.s32.totalorder %s19, 1
    %p37 = por %p35, %p36
    %p38 = scmp.ne.s32.totalorder %s27, %s28
    %p39 = scmp.eq.s32.totalorder %s19, 0
    %p40 = por %p38, %p39
    %p41 = scmp.ne.s32.totalorder %s27, %s28
    %p42 = scmp.eq.s32.totalorder %s20, 1
    %p43 = por %p41, %p42
    %p45 = scmp.ne.s32.totalorder %s28, %s44
    %p46 = scmp.eq.s32.totalorder %s20, 0
    %p47 = por %p45, %p46
    %s48 = ssub.s32 %s14, %s21
    %p49 = scmp.eq.s32.totalorder %s48, 0
    %s51 = sadd.s32 %s50, 1
    %s52 = scalar_select %p49, %s50, %s51
    %p55 = pneg %p49
    %p56 = scmp.eq.s32.totalorder %s14, 1
    %p57 = por %p55, %p56
    %p58 = scmp.ne.s32.totalorder %s50, %s53
    %p59 = scmp.eq.s32.totalorder %s14, 0
    %p60 = por %p58, %p59
    %p61 = scmp.ne.s32.totalorder %s50, %s53
    %p62 = scmp.eq.s32.totalorder %s19, 1
    %p63 = por %p61, %p62
    %p64 = scmp.ne.s32.totalorder %s53, %s54
    %p65 = scmp.eq.s32.totalorder %s19, 0
    %p66 = por %p64, %p65
    %p67 = scmp.ne.s32.totalorder %s53, %s54
    %p68 = scmp.eq.s32.totalorder %s20, 1
    %p69 = por %p67, %p68
    %p71 = scmp.ne.s32.totalorder %s54, %s70
    %p72 = scmp.eq.s32.totalorder %s20, 0
    %p73 = por %p71, %p72
    %s75 = sadd.s32 %s74, 1
    %p78 = scmp.eq.s32.totalorder %s14, 1
    %p79 = scmp.ne.s32.totalorder %s74, %s76
    %p80 = scmp.eq.s32.totalorder %s14, 0
    %p81 = por %p79, %p80
    %p82 = scmp.ne.s32.totalorder %s74, %s76
    %p83 = scmp.eq.s32.totalorder %s19, 1
    %p84 = por %p82, %p83
    %p85 = scmp.ne.s32.totalorder %s76, %s77
    %p86 = scmp.eq.s32.totalorder %s19, 0
    %p87 = por %p85, %p86
    %p88 = scmp.ne.s32.totalorder %s76, %s77
    %p89 = scmp.eq.s32.totalorder %s20, 1
    %p90 = por %p88, %p89
    %p92 = scmp.ne.s32.totalorder %s77, %s91
    %p93 = scmp.eq.s32.totalorder %s20, 0
    %p94 = por %p92, %p93
    %s96 = sadd.s32 %s95, 1
    %p99 = scmp.eq.s32.totalorder %s14, 1
    %p100 = scmp.ne.s32.totalorder %s95, %s97
    %p101 = scmp.eq.s32.totalorder %s14, 0
    %p102 = por %p100, %p101
    %p103 = scmp.ne.s32.totalorder %s95, %s97
    %p104 = scmp.eq.s32.totalorder %s19, 1
    %p105 = por %p103, %p104
    %p106 = scmp.ne.s32.totalorder %s97, %s98
    %p107 = scmp.eq.s32.totalorder %s19, 0
    %p108 = por %p106, %p107
    %p109 = scmp.ne.s32.totalorder %s97, %s98
    %p110 = scmp.eq.s32.totalorder %s20, 1
    %p111 = por %p109, %p110
    %p113 = scmp.ne.s32.totalorder %s98, %s112
    %p114 = scmp.eq.s32.totalorder %s20, 0
    %p115 = por %p113, %p114
    %s117 = sadd.s32 %s116, 1
    %p120 = scmp.eq.s32.totalorder %s14, 1
    %p121 = scmp.ne.s32.totalorder %s116, %s118
    %p122 = scmp.eq.s32.totalorder %s14, 0
    %p123 = por %p121, %p122
    %p124 = scmp.ne.s32.totalorder %s116, %s118
    %p125 = scmp.eq.s32.totalorder %s19, 1
    %p126 = por %p124, %p125
    %p127 = scmp.ne.s32.totalorder %s118, %s119
    %p128 = scmp.eq.s32.totalorder %s19, 0
    %p129 = por %p127, %p128
    %p130 = scmp.ne.s32.totalorder %s118, %s119
    %p131 = scmp.eq.s32.totalorder %s20, 1
    %p132 = por %p130, %p131
    %p134 = scmp.ne.s32.totalorder %s119, %s133
    %p135 = scmp.eq.s32.totalorder %s20, 0
    %p136 = por %p134, %p135
    %s138 = sadd.s32 %s137, 1
    %p141 = scmp.eq.s32.totalorder %s14, 1
    %p142 = scmp.ne.s32.totalorder %s137, %s139
    %p143 = scmp.eq.s32.totalorder %s14, 0
    %p144 = por %p142, %p143
    %p145 = scmp.ne.s32.totalorder %s137, %s139
    %p146 = scmp.eq.s32.totalorder %s19, 1
    %p147 = por %p145, %p146
    %p148 = scmp.ne.s32.totalorder %s139, %s140
    %p149 = scmp.eq.s32.totalorder %s19, 0
    %p150 = por %p148, %p149
    %p151 = scmp.ne.s32.totalorder %s139, %s140
    %p152 = scmp.eq.s32.totalorder %s20, 1
    %p153 = por %p151, %p152
    %p155 = scmp.ne.s32.totalorder %s140, %s154
    %p156 = scmp.eq.s32.totalorder %s20, 0
    %p157 = por %p155, %p156
    %s159 = sadd.s32 %s158, 1
    %p162 = scmp.eq.s32.totalorder %s14, 1
    %p163 = scmp.ne.s32.totalorder %s158, %s160
    %p164 = scmp.eq.s32.totalorder %s14, 0
    %p165 = por %p163, %p164
    %p166 = scmp.ne.s32.totalorder %s158, %s160
    %p167 = scmp.eq.s32.totalorder %s19, 1
    %p168 = por %p166, %p167
    %p169 = scmp.ne.s32.totalorder %s160, %s161
    %p170 = scmp.eq.s32.totalorder %s19, 0
    %p171 = por %p169, %p170
    %p172 = scmp.ne.s32.totalorder %s160, %s161
    %p173 = scmp.eq.s32.totalorder %s20, 1
    %p174 = por %p172, %p173
    %p176 = scmp.ne.s32.totalorder %s161, %s175
    %p177 = scmp.eq.s32.totalorder %s20, 0
    %p178 = por %p176, %p177
    %s180 = sadd.s32 %s179, 1
    %p183 = scmp.eq.s32.totalorder %s14, 1
    %p184 = scmp.ne.s32.totalorder %s179, %s181
    %p185 = scmp.eq.s32.totalorder %s14, 0
    %p186 = por %p184, %p185
    %p187 = scmp.ne.s32.totalorder %s179, %s181
    %p188 = scmp.eq.s32.totalorder %s19, 1
    %p189 = por %p187, %p188
    %p190 = scmp.ne.s32.totalorder %s181, %s182
    %p191 = scmp.eq.s32.totalorder %s19, 0
    %p192 = por %p190, %p191
    %p193 = scmp.ne.s32.totalorder %s181, %s182
    %p194 = scmp.eq.s32.totalorder %s20, 1
    %p195 = por %p193, %p194
    %p197 = scmp.ne.s32.totalorder %s182, %s196
    %p198 = scmp.eq.s32.totalorder %s20, 0
    %p199 = por %p197, %p198
    %s200 = ssub.s32 %s14, %s21
    %p201 = scmp.eq.s32.totalorder %s200, 0
    %s203 = sadd.s32 %s202, 1
    %s204 = scalar_select %p201, %s202, %s203
    %p207 = pneg %p201
    %p208 = scmp.eq.s32.totalorder %s14, 1
    %p209 = por %p207, %p208
    %p210 = scmp.ne.s32.totalorder %s202, %s205
    %p211 = scmp.eq.s32.totalorder %s14, 0
    %p212 = por %p210, %p211
    %p213 = scmp.ne.s32.totalorder %s202, %s205
    %p214 = scmp.eq.s32.totalorder %s19, 1
    %p215 = por %p213, %p214
    %p216 = scmp.ne.s32.totalorder %s205, %s206
    %p217 = scmp.eq.s32.totalorder %s19, 0
    %p218 = por %p216, %p217
    %p219 = scmp.ne.s32.totalorder %s205, %s206
    %p220 = scmp.eq.s32.totalorder %s20, 1
    %p221 = por %p219, %p220
    %p223 = scmp.ne.s32.totalorder %s206, %s222
    %p224 = scmp.eq.s32.totalorder %s20, 0
    %p225 = por %p223, %p224
    %p226 = scmp.le.s32.totalorder 1, %s14
    %p227 = scmp.lt.s32.totalorder %s14, 3
    %p228 = pnand %p226, %p227
    %p229 = pneg %p228
    // Predicated region
    $region9: #{base_model_forward.25} parent=5 // pred_check
      _
    $region10: #{base_model_forward.25} parent=5 // pred_check_branch
      %231 = sbr.rel (%p228) target = $region12
    $region11: #{base_model_forward.25} parent=5 // pred_region
      %s232 = ssub.s32 %s14, 1
      // Predicated region
      $region13: #{base_model_forward.25} parent=11 // pred_check
        %p233 = pneg %p87
      $region14: #{base_model_forward.25} parent=11 // pred_check_branch
        %235 = sbr.rel (%p233) target = $region16
      $region15: #{base_model_forward.25} parent=11 // pred_region
        _
      $region16: #{base_model_forward.25} parent=11 // pred_fallthru
        _
      // Predicated region
      $region17: #{base_model_forward.25} parent=11 // pred_check
        %p236 = pneg %p108
      $region18: #{base_model_forward.25} parent=11 // pred_check_branch
        %238 = sbr.rel (%p236) target = $region20
      $region19: #{base_model_forward.25} parent=11 // pred_region
        _
      $region20: #{base_model_forward.25} parent=11 // pred_fallthru
        _
      // Predicated region
      $region21: #{base_model_forward.25} parent=11 // pred_check
        %p239 = pneg %p129
      $region22: #{base_model_forward.25} parent=11 // pred_check_branch
        %241 = sbr.rel (%p239) target = $region24
      $region23: #{base_model_forward.25} parent=11 // pred_region
        _
      $region24: #{base_model_forward.25} parent=11 // pred_fallthru
        _
      // Predicated region
      $region25: #{base_model_forward.25} parent=11 // pred_check
        %p242 = pneg %p150
      $region26: #{base_model_forward.25} parent=11 // pred_check_branch
        %244 = sbr.rel (%p242) target = $region28
      $region27: #{base_model_forward.25} parent=11 // pred_region
        _
      $region28: #{base_model_forward.25} parent=11 // pred_fallthru
        _
      // Predicated region
      $region29: #{base_model_forward.25} parent=11 // pred_check
        %p245 = pneg %p171
      $region30: #{base_model_forward.25} parent=11 // pred_check_branch
        %247 = sbr.rel (%p245) target = $region32
      $region31: #{base_model_forward.25} parent=11 // pred_region
        _
      $region32: #{base_model_forward.25} parent=11 // pred_fallthru
        _
      // Predicated region
      $region33: #{base_model_forward.25} parent=11 // pred_check
        %p248 = pneg %p192
      $region34: #{base_model_forward.25} parent=11 // pred_check_branch
        %250 = sbr.rel (%p248) target = $region36
      $region35: #{base_model_forward.25} parent=11 // pred_region
        _
      $region36: #{base_model_forward.25} parent=11 // pred_fallthru
        _
    $region12: #{base_model_forward.25} parent=5 // pred_fallthru
      _
    %p251 = scmp.lt.s32.totalorder %s14, 2
    // Predicated region
    $region37: #{base_model_forward.25} parent=5 // pred_check
      %p252 = pneg %p251
    $region38: #{base_model_forward.25} parent=5 // pred_check_branch
      %254 = sbr.rel (%p252) target = $region40
    $region39: #{base_model_forward.25} parent=5 // pred_region
      // Predicated region
      $region41: #{base_model_forward.25} parent=39 // pred_check
        %p255 = pneg %p34
      $region42: #{base_model_forward.25} parent=39 // pred_check_branch
        %257 = sbr.rel (%p255) target = $region44
      $region43: #{base_model_forward.25} parent=39 // pred_region
        %s258 = smul.u32 2, %s14
        %p259 = scmp.lt.s32.totalorder %s258, 3
        %s260 = scalar_select %p259, %s258, 3
        %s261 = smul.addr %s260, 8
        %s262 = scalar_lea.vmem %s0, %s261
        %s263 = smul.u32 2, %s14
      $region44: #{base_model_forward.25} parent=39 // pred_fallthru
        _
      // Predicated region
      $region45: #{base_model_forward.25} parent=39 // pred_check
        %p264 = pneg %p60
      $region46: #{base_model_forward.25} parent=39 // pred_check_branch
        %266 = sbr.rel (%p264) target = $region48
      $region47: #{base_model_forward.25} parent=39 // pred_region
        %s267 = smul.u32 2, %s14
        %p268 = scmp.lt.s32.totalorder %s267, 3
        %s269 = scalar_select %p268, %s267, 3
        %s270 = smul.addr %s269, 8
        %s271 = scalar_lea.vmem %s1, %s270
        %s272 = smul.u32 2, %s14
      $region48: #{base_model_forward.25} parent=39 // pred_fallthru
        _
    $region40: #{base_model_forward.25} parent=5 // pred_fallthru
      _
    %p273 = scmp.le.s32.totalorder 1, %s14
    %p274 = scmp.lt.s32.totalorder %s14, 3
    %p275 = pnand %p273, %p274
    %p276 = pneg %p275
    // Predicated region
    $region49: #{base_model_forward.25} parent=5 // pred_check
      _
    $region50: #{base_model_forward.25} parent=5 // pred_check_branch
      %278 = sbr.rel (%p275) target = $region52
    $region51: #{base_model_forward.25} parent=5 // pred_region
      %s279 = ssub.s32 %s14, 1
      %s280 = smul.u32 2, %s19
      %p281 = scmp.lt.s32.totalorder %s280, 3
      %s282 = scalar_select %p281, %s280, 3
      %s283 = smul.addr %s282, 8
      %s284 = scalar_lea.vmem %s0, %s283
      %p285 = pneg %p40
      %p286 = pneg %p37
      %s287 = smul.u32 2, %s19
      %p288 = scmp.lt.s32.totalorder %s287, 3
      %s289 = scalar_select %p288, %s287, 3
      %s290 = smul.addr %s289, 8
      %s291 = scalar_lea.vmem %s1, %s290
      %p292 = pneg %p66
      %p293 = pneg %p63
      %p294 = pneg %p87
      %p295 = pneg %p84
      %p296 = pneg %p108
      %p297 = pneg %p105
      %p298 = pneg %p129
      %p299 = pneg %p126
      %p300 = pneg %p150
      %p301 = pneg %p147
      %p302 = pneg %p171
      %p303 = pneg %p168
      %p304 = pneg %p192
      %p305 = pneg %p189
      %p306 = pneg %p218
      %p307 = pneg %p215
      %s308 = smul.u32 2, %s19
      %p309 = scmp.lt.s32.totalorder %s308, 3
      %s310 = scalar_select %p309, %s308, 3
      %s311 = smul.addr %s310, 8
      %s312 = scalar_lea.vmem %s8, %s311
      %s313 = smul.u32 2, %s19
      %p314 = scmp.lt.s32.totalorder %s313, 3
      %s315 = scalar_select %p314, %s313, 3
      %s316 = smul.addr %s315, 8
      %s317 = scalar_lea.vmem %s0, %s316
      %s318 = smul.u32 2, %s19
      %s319 = smul.u32 2, %s19
      %p320 = scmp.lt.s32.totalorder %s319, 3
      %s321 = scalar_select %p320, %s319, 3
      %s322 = smul.addr %s321, 8
      %s323 = scalar_lea.vmem %s1, %s322
      %s324 = smul.u32 2, %s19
      %s325 = smul.u32 2, %s19
      %p326 = scmp.lt.s32.totalorder %s325, 3
      %s327 = scalar_select %p326, %s325, 3
      %s328 = smul.addr %s327, 8
      %s329 = scalar_lea.vmem %s8, %s328
      %s330 = smul.u32 2, %s19
      %v332 = vld [vmem:[%s4] sm:$0xf]
      %v333 = vld [vmem:[%s4 + $0x4] sm:$0xf]
      %v334 = vld [vmem:[%s4 + $0x8] sm:$0xf]
      %v335 = vld [vmem:[%s4 + $0xc] sm:$0xf]
      %v336 = vld [vmem:[%s4 + $0x10] sm:$0xf]
      %v337 = vld [vmem:[%s4 + $0x14] sm:$0xf]
      %v338 = vld [vmem:[%s5] sm:$0xf]
      %v339 = vld [vmem:[%s5 + $0x4] sm:$0xf]
      %v340 = vld [vmem:[%s5 + $0x8] sm:$0xf]
      %v341 = vld [vmem:[%s5 + $0xc] sm:$0xf]
      %v342 = vld [vmem:[%s5 + $0x10] sm:$0xf]
      %v343 = vld [vmem:[%s5 + $0x14] sm:$0xf]
      %v344 = vld [vmem:[%s5 + $0x18] sm:$0xf]
      %v345 = vld [vmem:[%s5 + $0x1c] sm:$0xf]
      %v346 = vld [vmem:[%s5 + $0x20] sm:$0xf]
      %v347 = vld [vmem:[%s5 + $0x24] sm:$0xf]
      %v348 = vld [vmem:[%s5 + $0x28] sm:$0xf]
      %v349 = vld [vmem:[%s5 + $0x2c] sm:$0xf]
      %v350 = vld [vmem:[%s5 + $0x30] sm:$0x3]
      %v351 = vld [vmem:[%s6] sm:$0xf]
      %v352 = vld [vmem:[%s6 + $0x4] sm:$0xf]
      %v353 = vld [vmem:[%s7] sm:$0x1]
      %v354 = vld [vmem:[%s317] sm:$0xff]
      %v355 = vld [vmem:[%s317 + $0x8] sm:$0xff]
      %v356 = vld [vmem:[%s2] sm:$0x1]
      %v357 = vld [vmem:[%s3] sm:$0x1]
      %vm358 = vcmask 818176
      %v359 = vsel %vm358, %v354, 0.0
      %360 = vadd.xlane.f32.xlu0 %v359
      %v361 = vpop.xlane.xlu0 %360
      %v362 = vsel %vm358, %v355, 0.0
      %363 = vadd.xlane.f32.xlu0 %v362
      %v364 = vpop.xlane.xlu0 %363
      %v365 = vrcp.pop 100.0
      %v366 = vmul.f32 %v361, %v365
      %v367 = vmul.f32 %v364, %v365
      %v368 = vsub.f32 %v354, %v366
      %v369 = vsub.f32 %v355, %v367
      %v370 = vmul.f32 %v368, %v368
      %v371 = vmul.f32 %v369, %v369
      %v372 = vsel %vm358, %v370, 0.0
      %373 = vadd.xlane.f32.xlu0 %v372
      %v374 = vpop.xlane.xlu0 %373
      %v375 = vsel %vm358, %v371, 0.0
      %376 = vadd.xlane.f32.xlu0 %v375
      %v377 = vpop.xlane.xlu0 %376
      %v378 = vmul.f32 %v374, %v365
      %v379 = vmul.f32 %v377, %v365
      %v380 = vadd.f32 %v378, 1e-05
      %v381 = vadd.f32 %v379, 1e-05
      %v382 = vrsqrt.pop %v380
      %v383 = vrsqrt.pop %v381
      %v384 = vmul.f32 %v368, %v382
      %v385 = vmul.f32 %v369, %v383
      %v387 = vlaneseq
      %v388 = vshrl.u32 %v387, 7
      %v389 = vsub.s32 0, %v388
      %v390 = vrot.slane %v356, %v389
      %v392 = vmul.f32 %v384, %v390
      %v393 = vmul.f32 %v385, %v390
      %v395 = vlaneseq
      %v396 = vshrl.u32 %v395, 7
      %v397 = vsub.s32 0, %v396
      %v398 = vrot.slane %v357, %v397
      %v400 = vadd.f32 %v392, %v398
      %v401 = vadd.f32 %v393, %v398
      %v402 = vld [vmem:[%s323] sm:$0xff]
      %v403 = vld [vmem:[%s323 + $0x8] sm:$0xff]
      %v404 = vmul.f32 %v402, %v402
      %v405 = vmul.f32 %v403, %v403
      %408 = vrot.lane.b32.xlu0 %v404, 112
      %v409 = vpop.permute.xlu0 %408
      %410 = vrot.lane.b32.xlu0 %v405, 112
      %v411 = vpop.permute.xlu0 %410
      %v414 = vadd.f32 %v404, %v409
      %v415 = vadd.f32 %v405, %v411
      %416 = vrot.lane.b32.xlu0 %v404, 96
      %v417 = vpop.permute.xlu0 %416
      %418 = vrot.lane.b32.xlu0 %v405, 96
      %v419 = vpop.permute.xlu0 %418
      %v422 = vadd.f32 %v414, %v417
      %v423 = vadd.f32 %v415, %v419
      %v424 = vmax.f32 %v422, 1e-08
      %v425 = vmax.f32 %v423, 1e-08
      %vm426 = vcmask 130048
      %v427 = vsel %vm426, %v424, 0.0
      %428 = vadd.xlane.f32.xlu0 %v427
      %v429 = vpop.xlane.xlu0 %428
      %v430 = vsel %vm426, %v425, 0.0
      %431 = vadd.xlane.f32.xlu0 %v430
      %v432 = vpop.xlane.xlu0 %431
      %v433 = vrcp.pop 16.0
      %v434 = vmul.f32 %v429, %v433
      %v435 = vmul.f32 %v432, %v433
      %v436 = vrsqrt.pop %v434
      %v437 = vrsqrt.pop %v435
      %v438 = vmul.f32 %v402, %v436
      %v439 = vmul.f32 %v403, %v437
      %v440 = vpack.c.bf16 %v439, %v438
      %v447 = vunpack.c.l.b16 %v332
      %v448 = vunpack.c.l.b16 %v333
      %v449 = vunpack.c.l.b16 %v334
      %v450 = vunpack.c.l.b16 %v335
      %v451 = vunpack.c.l.b16 %v336
      %v452 = vunpack.c.l.b16 %v337
      %v453 = vpack.c.b16 %v448, %v447
      %v454 = vpack.c.b16 %v450, %v449
      %v455 = vpack.c.b16 %v452, %v451
      %vm459 = vcmask 392192
      %v461 = vsel %vm459, %v440, 0
      %463 = vmatprep.subr.bf16.mxu0 0
      %464 = vmatpush1.bf16.msra.mxu0 %v453
      %465 = vmatprep.subr.bf16.mxu0 0
      %466 = vmatpush1.bf16.msra.mxu0 %v454
      %467 = vmatprep.subr.bf16.mxu0 0
      %468 = vmatpush1.bf16.msra.mxu0 %v455
      %469 = vmatprep.subr.bf16.mxu0 0
      %470 = vmatpush1.bf16.msra.mxu0 0
      %471 = vmatprep.subr.bf16.mxu0 0
      %472 = vmatpush1.bf16.msra.mxu0 0
      %473 = vmatprep.subr.bf16.mxu0 0
      %474 = vmatpush1.bf16.msra.mxu0 0
      %475 = vmatprep.subr.bf16.mxu0 0
      %476 = vmatpush1.bf16.msra.mxu0 0
      %477 = vmatprep.subr.bf16.mxu0 0
      %478 = vmatpush1.bf16.msra.mxu0 0
      %479 = vmatprep.subr.bf16.mxu0 0
      %480 = vmatpush1.bf16.msra.mxu0 0
      %481 = vmatprep.subr.bf16.mxu0 0
      %482 = vmatpush1.bf16.msra.mxu0 0
      %483 = vmatprep.subr.bf16.mxu0 0
      %484 = vmatpush1.bf16.msra.mxu0 0
      %485 = vmatprep.subr.bf16.mxu0 0
      %486 = vmatpush1.bf16.msra.mxu0 0
      %487 = vmatprep.subr.bf16.mxu0 0
      %488 = vmatpush1.bf16.msra.mxu0 0
      %489 = vmatprep.subr.bf16.mxu0 0
      %490 = vmatpush1.bf16.msra.mxu0 0
      %491 = vmatprep.subr.bf16.mxu0 0
      %492 = vmatpush1.bf16.msra.mxu0 0
      %493 = vmatprep.subr.bf16.mxu0 0
      %494 = vmatpush1.bf16.msra.mxu0 0
      %495 = vmatprep.mubr.bf16.mxu0 0
      %496 = vmatmul.mubr.bf16.gmra.mrb[0].mxu0 %v461
      %v497 = vpop.f32.mrb[0].mxu0
      %v498 = vadd.f32 0.0, %v497
      %v499 = vpop.f32.mrb[0].mxu0
      %v500 = vpop.f32.mrb[0].mxu0
      %v501 = vadd.f32 0.0, %v500
      %v502 = vpop.f32.mrb[0].mxu0
      %503 = vdwg.mxu0
      %v504 = vmul.f32 %v498, %v498
      %v505 = vmul.f32 %v501, %v501
      %508 = vrot.lane.b32.xlu0 %v504, 112
      %v509 = vpop.permute.xlu0 %508
      %510 = vrot.lane.b32.xlu0 %v505, 112
      %v511 = vpop.permute.xlu0 %510
      %v514 = vadd.f32 %v504, %v509
      %v515 = vadd.f32 %v505, %v511
      %516 = vrot.lane.b32.xlu0 %v504, 96
      %v517 = vpop.permute.xlu0 %516
      %518 = vrot.lane.b32.xlu0 %v505, 96
      %v519 = vpop.permute.xlu0 %518
      %v522 = vadd.f32 %v514, %v517
      %v523 = vadd.f32 %v515, %v519
      %v524 = vmax.f32 %v522, 1e-08
      %v525 = vmax.f32 %v523, 1e-08
      %v526 = vrsqrt.pop %v524
      %v527 = vmul.f32 %v524, %v526
      %vm528 = vcmp.eq.f32.partialorder %v524, inf
      %v529 = vsel %vm528, %v524, %v527
      %vm530 = vcmp.eq.f32.partialorder %v524, 0.0
      %v531 = vand.u32 %v524, 2147483648
      %v532 = vsel %vm530, %v531, %v529
      %v533 = vrsqrt.pop %v525
      %v534 = vmul.f32 %v525, %v533
      %vm535 = vcmp.eq.f32.partialorder %v525, inf
      %v536 = vsel %vm535, %v525, %v534
      %vm537 = vcmp.eq.f32.partialorder %v525, 0.0
      %v538 = vand.u32 %v525, 2147483648
      %v539 = vsel %vm537, %v538, %v536
      %v540 = vpack.c.bf16 %v401, %v400
      %v541 = vpack.c.bf16 %v539, %v532
      %v544 = vunpack.c.l.b16 %v351
      %v545 = vunpack.c.l.b16 %v352
      %v546 = vpack.c.b16 %v545, %v544
      %v549 = vsel %vm426, %v541, 0
      %551 = vmatprep.subr.bf16.mxu0 0
      %552 = vmatpush1.bf16.msra.mxu0 %v546
      %553 = vmatprep.subr.bf16.mxu0 0
      %554 = vmatpush1.bf16.msra.mxu0 0
      %555 = vmatprep.subr.bf16.mxu0 0
      %556 = vmatpush1.bf16.msra.mxu0 0
      %557 = vmatprep.subr.bf16.mxu0 0
      %558 = vmatpush1.bf16.msra.mxu0 0
      %559 = vmatprep.subr.bf16.mxu0 0
      %560 = vmatpush1.bf16.msra.mxu0 0
      %561 = vmatprep.subr.bf16.mxu0 0
      %562 = vmatpush1.bf16.msra.mxu0 0
      %563 = vmatprep.subr.bf16.mxu0 0
      %564 = vmatpush1.bf16.msra.mxu0 0
      %565 = vmatprep.subr.bf16.mxu0 0
      %566 = vmatpush1.bf16.msra.mxu0 0
      %567 = vmatprep.subr.bf16.mxu0 0
      %568 = vmatpush1.bf16.msra.mxu0 0
      %569 = vmatprep.subr.bf16.mxu0 0
      %570 = vmatpush1.bf16.msra.mxu0 0
      %571 = vmatprep.subr.bf16.mxu0 0
      %572 = vmatpush1.bf16.msra.mxu0 0
      %573 = vmatprep.subr.bf16.mxu0 0
      %574 = vmatpush1.bf16.msra.mxu0 0
      %575 = vmatprep.subr.bf16.mxu0 0
      %576 = vmatpush1.bf16.msra.mxu0 0
      %577 = vmatprep.subr.bf16.mxu0 0
      %578 = vmatpush1.bf16.msra.mxu0 0
      %579 = vmatprep.subr.bf16.mxu0 0
      %580 = vmatpush1.bf16.msra.mxu0 0
      %581 = vmatprep.subr.bf16.mxu0 0
      %582 = vmatpush1.bf16.msra.mxu0 0
      %583 = vmatprep.mubr.bf16.mxu0 0
      %584 = vmatmul.mubr.bf16.gmra.mrb[0].mxu0 %v549
      %v585 = vpop.f32.mrb[0].mxu0
      %v586 = vadd.f32 0.0, %v585
      %v587 = vpop.f32.mrb[0].mxu0
      %v588 = vpop.f32.mrb[0].mxu0
      %v589 = vadd.f32 0.0, %v588
      %v590 = vpop.f32.mrb[0].mxu0
      %591 = vdwg.mxu0
      %v605 = vunpack.c.l.b16 %v338
      %v606 = vunpack.c.l.b16 %v339
      %v607 = vunpack.c.l.b16 %v340
      %v608 = vunpack.c.l.b16 %v341
      %v609 = vunpack.c.l.b16 %v342
      %v610 = vunpack.c.l.b16 %v343
      %v611 = vunpack.c.l.b16 %v344
      %v612 = vunpack.c.l.b16 %v345
      %v613 = vunpack.c.l.b16 %v346
      %v614 = vunpack.c.l.b16 %v347
      %v615 = vunpack.c.l.b16 %v348
      %v616 = vunpack.c.l.b16 %v349
      %v617 = vunpack.c.l.b16 %v350
      %v618 = vpack.c.b16 %v606, %v605
      %v619 = vpack.c.b16 %v608, %v607
      %v620 = vpack.c.b16 %v610, %v609
      %v621 = vpack.c.b16 %v612, %v611
      %v622 = vpack.c.b16 %v614, %v613
      %v623 = vpack.c.b16 %v616, %v615
      %v624 = vpack.c.b16 %v617, %v617
      %v632 = vsel %vm358, %v540, 0
      %vm634 = vcmask 1041408
      %v636 = vsel %vm634, %v624, 0
      %638 = vmatprep.subr.bf16.mxu0 0
      %639 = vmatpush1.bf16.msra.mxu0 %v618
      %640 = vmatprep.subr.bf16.mxu0 0
      %641 = vmatpush1.bf16.msra.mxu0 %v619
      %642 = vmatprep.subr.bf16.mxu0 0
      %643 = vmatpush1.bf16.msra.mxu0 %v620
      %644 = vmatprep.subr.bf16.mxu0 0
      %645 = vmatpush1.bf16.msra.mxu0 %v621
      %646 = vmatprep.subr.bf16.mxu0 0
      %647 = vmatpush1.bf16.msra.mxu0 %v622
      %648 = vmatprep.subr.bf16.mxu0 0
      %649 = vmatpush1.bf16.msra.mxu0 %v623
      %650 = vmatprep.subr.bf16.mxu0 0
      %651 = vmatpush1.bf16.msra.mxu0 %v636
      %652 = vmatprep.subr.bf16.mxu0 0
      %653 = vmatpush1.bf16.msra.mxu0 0
      %654 = vmatprep.subr.bf16.mxu0 0
      %655 = vmatpush1.bf16.msra.mxu0 0
      %656 = vmatprep.subr.bf16.mxu0 0
      %657 = vmatpush1.bf16.msra.mxu0 0
      %658 = vmatprep.subr.bf16.mxu0 0
      %659 = vmatpush1.bf16.msra.mxu0 0
      %660 = vmatprep.subr.bf16.mxu0 0
      %661 = vmatpush1.bf16.msra.mxu0 0
      %662 = vmatprep.subr.bf16.mxu0 0
      %663 = vmatpush1.bf16.msra.mxu0 0
      %664 = vmatprep.subr.bf16.mxu0 0
      %665 = vmatpush1.bf16.msra.mxu0 0
      %666 = vmatprep.subr.bf16.mxu0 0
      %667 = vmatpush1.bf16.msra.mxu0 0
      %668 = vmatprep.subr.bf16.mxu0 0
      %669 = vmatpush1.bf16.msra.mxu0 0
      %670 = vmatprep.mubr.bf16.mxu0 0
      %671 = vmatmul.mubr.bf16.gmra.mrb[0].mxu0 %v632
      %v672 = vpop.f32.mrb[0].mxu0
      %v673 = vadd.f32 %v586, %v672
      %v674 = vpop.f32.mrb[0].mxu0
      %v675 = vpop.f32.mrb[0].mxu0
      %v676 = vadd.f32 %v589, %v675
      %v677 = vpop.f32.mrb[0].mxu0
      %678 = vdwg.mxu0
      %v680 = vlaneseq
      %v681 = vshrl.u32 %v680, 7
      %v682 = vsub.s32 0, %v681
      %v683 = vrot.slane %v353, %v682
      %v685 = vadd.f32 %v673, %v683
      %v686 = vadd.f32 %v676, %v683
      %v687 = vmax.f32 %v685, 0.0
      %v688 = vmax.f32 %v686, 0.0
      %689 = vst.msk [vmem:[%s329] sm:$0xff] %vm358, %v687
      %690 = vst.msk [vmem:[%s329 + $0x8] sm:$0xff] %vm358, %v688
      %s691 = smul.u32 2, %s19
      %p692 = scmp.lt.s32.totalorder %s691, 3
      %s693 = scalar_select %p692, %s691, 3
      %s694 = smul.addr %s693, 8
      %s695 = scalar_lea.vmem %s8, %s694
      // Predicated region
      $region53: #{base_model_forward.25} parent=51 // pred_check
        %p696 = pneg %p215
      $region54: #{base_model_forward.25} parent=51 // pred_check_branch
        %698 = sbr.rel (%p696) target = $region56
      $region55: #{base_model_forward.25} parent=51 // pred_region
        %s699 = smul.u32 2, %s19
      $region56: #{base_model_forward.25} parent=51 // pred_fallthru
        _
    $region52: #{base_model_forward.25} parent=5 // pred_fallthru
      _
    %p700 = scmp.le.s32.totalorder 2, %s14
    // Predicated region
    $region57: #{base_model_forward.25} parent=5 // pred_check
      %p701 = pneg %p700
    $region58: #{base_model_forward.25} parent=5 // pred_check_branch
      %703 = sbr.rel (%p701) target = $region60
    $region59: #{base_model_forward.25} parent=5 // pred_region
      %s704 = ssub.s32 %s14, 2
      // Predicated region
      $region61: #{base_model_forward.25} parent=59 // pred_check
        %p705 = pneg %p221
      $region62: #{base_model_forward.25} parent=59 // pred_check_branch
        %707 = sbr.rel (%p705) target = $region64
      $region63: #{base_model_forward.25} parent=59 // pred_region
        %s708 = smul.u32 2, %s20
        %p709 = scmp.lt.s32.totalorder %s708, 3
        %s710 = scalar_select %p709, %s708, 3
        %s711 = smul.addr %s710, 8
        %s712 = scalar_lea.vmem %s8, %s711
      $region64: #{base_model_forward.25} parent=59 // pred_fallthru
        _
    $region60: #{base_model_forward.25} parent=5 // pred_fallthru
      _
  $region6: #{base_model_forward.25} parent=0 // loop_footer
    %s18 = sadd.s32 1, %s14
  $region7: #{base_model_forward.25} parent=0 // loop_footer_branch
    %13 = sbr.rel target = $region3
  $region8: #{base_model_forward.25} parent=0 // loop_exit
    _

// kernel: base_model_forward.16
$region0: #{base_model_forward.16}
  #allocation0 [shape = 'u32[]', space=smem, size = 0x4, offset = 0x4, fixed_abs, tag = 'smem constant byte address 0x4 - core index']
  #allocation1 [shape = 'u32[144,128]{1,0:T(1,128)}', space=vmem, size = 0x12000, scoped, tag = 'internal scratch']
  %s0 = inlined_call_operand.vmem [shape: f32[32,100], index: 0, kind: input, shape index: {}]
  %s1 = inlined_call_operand.vmem [shape: f32[32,48], index: 1, kind: input, shape index: {}]
  %s2 = inlined_call_operand.vmem [shape: f32[32,100], index: 2, kind: input, shape index: {}]
  %s3 = inlined_call_operand.vmem [shape: f32[32,48], index: 3, kind: input, shape index: {}]
  %s4 = inlined_call_operand.vmem [shape: f32[32,1], index: 4, kind: input, shape index: {}]
  %s5 = inlined_call_operand.vmem [shape: f32[1,100], index: 5, kind: input, shape index: {}]
  %s6 = inlined_call_operand.vmem [shape: f32[1,100], index: 6, kind: input, shape index: {}]
  %s7 = inlined_call_operand.vmem [shape: bf16[48,96], index: 7, kind: input, shape index: {}]
  %s8 = inlined_call_operand.vmem [shape: bf16[100,400], index: 8, kind: input, shape index: {}]
  %s9 = inlined_call_operand.vmem [shape: bf16[32,400], index: 9, kind: input, shape index: {}]
  %s10 = inlined_call_operand.vmem [shape: f32[1,400], index: 10, kind: input, shape index: {}]
  %s11 = inlined_call_operand.vmem [shape: bf16[96,96], index: 11, kind: input, shape index: {}]
  %s12 = inlined_call_operand.vmem [shape: bf16[400,32], index: 12, kind: input, shape index: {}]
  %s13 = inlined_call_operand.vmem [shape: f32[1,32], index: 13, kind: input, shape index: {}]
  %s14 = inlined_call_operand.vmem [shape: bf16[96,96], index: 14, kind: input, shape index: {}]
  %s15 = inlined_call_operand.vmem [shape: bf16[400,100], index: 15, kind: input, shape index: {}]
  %s16 = inlined_call_operand.vmem [shape: bf16[32,100], index: 16, kind: input, shape index: {}]
  %s17 = inlined_call_operand.vmem [shape: f32[1,100], index: 17, kind: input, shape index: {}]
  %s18 = inlined_call_operand.vmem [shape: bf16[96,48], index: 18, kind: input, shape index: {}]
  %s19 = inlined_call_operand.vmem [shape: bf16[100,16], index: 19, kind: input, shape index: {}]
  %s20 = inlined_call_operand.vmem [shape: f32[1,16], index: 20, kind: input, shape index: {}]
  %s21 = inlined_call_operand.vmem [shape: f32[1,100], index: 21, kind: input, shape index: {}]
  %s22 = inlined_call_operand.vmem [shape: f32[1,100], index: 22, kind: input, shape index: {}]
  %s23 = inlined_call_operand.vmem [shape: f32[32,100], index: 23, kind: output, shape index: {0}]
  %s24 = inlined_call_operand.vmem [shape: f32[32,48], index: 24, kind: output, shape index: {1}]
  %25 = xla_tuple %s23, %s24
  %s26 = sld [smem:[#allocation0]]
  $region133: #{base_model_forward.16} parent=0
    _
  %s28 = ssub.s32 1, %s26
  %s29 = scalar_select 0, %s28, %s26
  loop: start=0, step=1, limit=4
  $region2: #{base_model_forward.16} parent=0 // loop_pre_header
    _
  $region3: #{base_model_forward.16} parent=0 // loop_header
    %s31 = sphi 0, %s35
    %p32 = scmp.ge.s32.totalorder %s31, 4
    %s41 = sphi 0, %s43
    %s44 = sphi 0, %s41
    %s45 = sphi 0, %s44
    %s61 = sphi 0, %s45
    %s67 = sphi 0, %s69
    %s70 = sphi 0, %s67
    %s71 = sphi 0, %s70
    %s87 = sphi 0, %s71
    %s93 = sphi 0, %s95
    %s96 = sphi 0, %s93
    %s97 = sphi 0, %s96
    %s113 = sphi 0, %s97
    %s119 = sphi 0, %s121
    %s122 = sphi 0, %s119
    %s123 = sphi 0, %s122
    %s139 = sphi 0, %s123
    %s145 = sphi 0, %s147
    %s148 = sphi 0, %s145
    %s149 = sphi 0, %s148
    %s165 = sphi 0, %s149
    %s169 = sphi 0, %s169
    %s171 = sphi 0, %s169
    %s172 = sphi 0, %s171
    %s186 = sphi 0, %s172
    %s190 = sphi 0, %s190
    %s192 = sphi 0, %s190
    %s193 = sphi 0, %s192
    %s207 = sphi 0, %s193
    %s211 = sphi 0, %s211
    %s213 = sphi 0, %s211
    %s214 = sphi 0, %s213
    %s228 = sphi 0, %s214
    %s232 = sphi 0, %s232
    %s234 = sphi 0, %s232
    %s235 = sphi 0, %s234
    %s249 = sphi 0, %s235
    %s253 = sphi 0, %s253
    %s255 = sphi 0, %s253
    %s256 = sphi 0, %s255
    %s270 = sphi 0, %s256
    %s274 = sphi 0, %s274
    %s276 = sphi 0, %s274
    %s277 = sphi 0, %s276
    %s291 = sphi 0, %s277
    %s295 = sphi 0, %s295
    %s297 = sphi 0, %s295
    %s298 = sphi 0, %s297
    %s312 = sphi 0, %s298
    %s316 = sphi 0, %s316
    %s318 = sphi 0, %s316
    %s319 = sphi 0, %s318
    %s333 = sphi 0, %s319
    %s337 = sphi 0, %s337
    %s339 = sphi 0, %s337
    %s340 = sphi 0, %s339
    %s354 = sphi 0, %s340
    %s358 = sphi 0, %s358
    %s360 = sphi 0, %s358
    %s361 = sphi 0, %s360
    %s375 = sphi 0, %s361
    %s379 = sphi 0, %s379
    %s381 = sphi 0, %s379
    %s382 = sphi 0, %s381
    %s396 = sphi 0, %s382
    %s400 = sphi 0, %s400
    %s402 = sphi 0, %s400
    %s403 = sphi 0, %s402
    %s417 = sphi 0, %s403
    %s421 = sphi 0, %s421
    %s423 = sphi 0, %s421
    %s424 = sphi 0, %s423
    %s438 = sphi 0, %s424
    %s442 = sphi 0, %s442
    %s444 = sphi 0, %s442
    %s445 = sphi 0, %s444
    %s459 = sphi 0, %s445
    %s463 = sphi 0, %s463
    %s465 = sphi 0, %s463
    %s466 = sphi 0, %s465
    %s480 = sphi 0, %s466
    %s484 = sphi 0, %s484
    %s486 = sphi 0, %s484
    %s487 = sphi 0, %s486
    %s501 = sphi 0, %s487
    %s505 = sphi 0, %s505
    %s507 = sphi 0, %s505
    %s508 = sphi 0, %s507
    %s522 = sphi 0, %s508
    %s526 = sphi 0, %s526
    %s528 = sphi 0, %s526
    %s529 = sphi 0, %s528
    %s543 = sphi 0, %s529
    %s549 = sphi 0, %s551
    %s552 = sphi 0, %s549
    %s553 = sphi 0, %s552
    %s569 = sphi 0, %s553
    %s575 = sphi 0, %s577
    %s578 = sphi 0, %s575
    %s579 = sphi 0, %s578
    %s595 = sphi 0, %s579
  $region4: #{base_model_forward.16} parent=0 // loop_header_branch
    %34 = sbr.rel (%p32) target = $region8
  $region5: #{base_model_forward.16} parent=0 // loop_body
    %s36 = ssub.s32 %s31, 1
    %s37 = ssub.s32 %s31, 2
    %s38 = sadd.s32 %s31, 1
    %s39 = ssub.s32 %s31, %s38
    %p40 = scmp.eq.s32.totalorder %s39, 0
    %s42 = sadd.s32 %s41, 1
    %s43 = scalar_select %p40, %s41, %s42
    %p46 = pneg %p40
    %p47 = scmp.eq.s32.totalorder %s31, 1
    %p48 = por %p46, %p47
    %p49 = scmp.ne.s32.totalorder %s41, %s44
    %p50 = scmp.eq.s32.totalorder %s31, 0
    %p51 = por %p49, %p50
    %p52 = scmp.ne.s32.totalorder %s41, %s44
    %p53 = scmp.eq.s32.totalorder %s36, 1
    %p54 = por %p52, %p53
    %p55 = scmp.ne.s32.totalorder %s44, %s45
    %p56 = scmp.eq.s32.totalorder %s36, 0
    %p57 = por %p55, %p56
    %p58 = scmp.ne.s32.totalorder %s44, %s45
    %p59 = scmp.eq.s32.totalorder %s37, 1
    %p60 = por %p58, %p59
    %p62 = scmp.ne.s32.totalorder %s45, %s61
    %p63 = scmp.eq.s32.totalorder %s37, 0
    %p64 = por %p62, %p63
    %s65 = ssub.s32 %s31, %s38
    %p66 = scmp.eq.s32.totalorder %s65, 0
    %s68 = sadd.s32 %s67, 1
    %s69 = scalar_select %p66, %s67, %s68
    %p72 = pneg %p66
    %p73 = scmp.eq.s32.totalorder %s31, 1
    %p74 = por %p72, %p73
    %p75 = scmp.ne.s32.totalorder %s67, %s70
    %p76 = scmp.eq.s32.totalorder %s31, 0
    %p77 = por %p75, %p76
    %p78 = scmp.ne.s32.totalorder %s67, %s70
    %p79 = scmp.eq.s32.totalorder %s36, 1
    %p80 = por %p78, %p79
    %p81 = scmp.ne.s32.totalorder %s70, %s71
    %p82 = scmp.eq.s32.totalorder %s36, 0
    %p83 = por %p81, %p82
    %p84 = scmp.ne.s32.totalorder %s70, %s71
    %p85 = scmp.eq.s32.totalorder %s37, 1
    %p86 = por %p84, %p85
    %p88 = scmp.ne.s32.totalorder %s71, %s87
    %p89 = scmp.eq.s32.totalorder %s37, 0
    %p90 = por %p88, %p89
    %s91 = ssub.s32 %s31, %s38
    %p92 = scmp.eq.s32.totalorder %s91, 0
    %s94 = sadd.s32 %s93, 1
    %s95 = scalar_select %p92, %s93, %s94
    %p98 = pneg %p92
    %p99 = scmp.eq.s32.totalorder %s31, 1
    %p100 = por %p98, %p99
    %p101 = scmp.ne.s32.totalorder %s93, %s96
    %p102 = scmp.eq.s32.totalorder %s31, 0
    %p103 = por %p101, %p102
    %p104 = scmp.ne.s32.totalorder %s93, %s96
    %p105 = scmp.eq.s32.totalorder %s36, 1
    %p106 = por %p104, %p105
    %p107 = scmp.ne.s32.totalorder %s96, %s97
    %p108 = scmp.eq.s32.totalorder %s36, 0
    %p109 = por %p107, %p108
    %p110 = scmp.ne.s32.totalorder %s96, %s97
    %p111 = scmp.eq.s32.totalorder %s37, 1
    %p112 = por %p110, %p111
    %p114 = scmp.ne.s32.totalorder %s97, %s113
    %p115 = scmp.eq.s32.totalorder %s37, 0
    %p116 = por %p114, %p115
    %s117 = ssub.s32 %s31, %s38
    %p118 = scmp.eq.s32.totalorder %s117, 0
    %s120 = sadd.s32 %s119, 1
    %s121 = scalar_select %p118, %s119, %s120
    %p124 = pneg %p118
    %p125 = scmp.eq.s32.totalorder %s31, 1
    %p126 = por %p124, %p125
    %p127 = scmp.ne.s32.totalorder %s119, %s122
    %p128 = scmp.eq.s32.totalorder %s31, 0
    %p129 = por %p127, %p128
    %p130 = scmp.ne.s32.totalorder %s119, %s122
    %p131 = scmp.eq.s32.totalorder %s36, 1
    %p132 = por %p130, %p131
    %p133 = scmp.ne.s32.totalorder %s122, %s123
    %p134 = scmp.eq.s32.totalorder %s36, 0
    %p135 = por %p133, %p134
    %p136 = scmp.ne.s32.totalorder %s122, %s123
    %p137 = scmp.eq.s32.totalorder %s37, 1
    %p138 = por %p136, %p137
    %p140 = scmp.ne.s32.totalorder %s123, %s139
    %p141 = scmp.eq.s32.totalorder %s37, 0
    %p142 = por %p140, %p141
    %s143 = ssub.s32 %s31, %s38
    %p144 = scmp.eq.s32.totalorder %s143, 0
    %s146 = sadd.s32 %s145, 1
    %s147 = scalar_select %p144, %s145, %s146
    %p150 = pneg %p144
    %p151 = scmp.eq.s32.totalorder %s31, 1
    %p152 = por %p150, %p151
    %p153 = scmp.ne.s32.totalorder %s145, %s148
    %p154 = scmp.eq.s32.totalorder %s31, 0
    %p155 = por %p153, %p154
    %p156 = scmp.ne.s32.totalorder %s145, %s148
    %p157 = scmp.eq.s32.totalorder %s36, 1
    %p158 = por %p156, %p157
    %p159 = scmp.ne.s32.totalorder %s148, %s149
    %p160 = scmp.eq.s32.totalorder %s36, 0
    %p161 = por %p159, %p160
    %p162 = scmp.ne.s32.totalorder %s148, %s149
    %p163 = scmp.eq.s32.totalorder %s37, 1
    %p164 = por %p162, %p163
    %p166 = scmp.ne.s32.totalorder %s149, %s165
    %p167 = scmp.eq.s32.totalorder %s37, 0
    %p168 = por %p166, %p167
    %s170 = sadd.s32 %s169, 1
    %p173 = scmp.eq.s32.totalorder %s31, 1
    %p174 = scmp.ne.s32.totalorder %s169, %s171
    %p175 = scmp.eq.s32.totalorder %s31, 0
    %p176 = por %p174, %p175
    %p177 = scmp.ne.s32.totalorder %s169, %s171
    %p178 = scmp.eq.s32.totalorder %s36, 1
    %p179 = por %p177, %p178
    %p180 = scmp.ne.s32.totalorder %s171, %s172
    %p181 = scmp.eq.s32.totalorder %s36, 0
    %p182 = por %p180, %p181
    %p183 = scmp.ne.s32.totalorder %s171, %s172
    %p184 = scmp.eq.s32.totalorder %s37, 1
    %p185 = por %p183, %p184
    %p187 = scmp.ne.s32.totalorder %s172, %s186
    %p188 = scmp.eq.s32.totalorder %s37, 0
    %p189 = por %p187, %p188
    %s191 = sadd.s32 %s190, 1
    %p194 = scmp.eq.s32.totalorder %s31, 1
    %p195 = scmp.ne.s32.totalorder %s190, %s192
    %p196 = scmp.eq.s32.totalorder %s31, 0
    %p197 = por %p195, %p196
    %p198 = scmp.ne.s32.totalorder %s190, %s192
    %p199 = scmp.eq.s32.totalorder %s36, 1
    %p200 = por %p198, %p199
    %p201 = scmp.ne.s32.totalorder %s192, %s193
    %p202 = scmp.eq.s32.totalorder %s36, 0
    %p203 = por %p201, %p202
    %p204 = scmp.ne.s32.totalorder %s192, %s193
    %p205 = scmp.eq.s32.totalorder %s37, 1
    %p206 = por %p204, %p205
    %p208 = scmp.ne.s32.totalorder %s193, %s207
    %p209 = scmp.eq.s32.totalorder %s37, 0
    %p210 = por %p208, %p209
    %s212 = sadd.s32 %s211, 1
    %p215 = scmp.eq.s32.totalorder %s31, 1
    %p216 = scmp.ne.s32.totalorder %s211, %s213
    %p217 = scmp.eq.s32.totalorder %s31, 0
    %p218 = por %p216, %p217
    %p219 = scmp.ne.s32.totalorder %s211, %s213
    %p220 = scmp.eq.s32.totalorder %s36, 1
    %p221 = por %p219, %p220
    %p222 = scmp.ne.s32.totalorder %s213, %s214
    %p223 = scmp.eq.s32.totalorder %s36, 0
    %p224 = por %p222, %p223
    %p225 = scmp.ne.s32.totalorder %s213, %s214
    %p226 = scmp.eq.s32.totalorder %s37, 1
    %p227 = por %p225, %p226
    %p229 = scmp.ne.s32.totalorder %s214, %s228
    %p230 = scmp.eq.s32.totalorder %s37, 0
    %p231 = por %p229, %p230
    %s233 = sadd.s32 %s232, 1
    %p236 = scmp.eq.s32.totalorder %s31, 1
    %p237 = scmp.ne.s32.totalorder %s232, %s234
    %p238 = scmp.eq.s32.totalorder %s31, 0
    %p239 = por %p237, %p238
    %p240 = scmp.ne.s32.totalorder %s232, %s234
    %p241 = scmp.eq.s32.totalorder %s36, 1
    %p242 = por %p240, %p241
    %p243 = scmp.ne.s32.totalorder %s234, %s235
    %p244 = scmp.eq.s32.totalorder %s36, 0
    %p245 = por %p243, %p244
    %p246 = scmp.ne.s32.totalorder %s234, %s235
    %p247 = scmp.eq.s32.totalorder %s37, 1
    %p248 = por %p246, %p247
    %p250 = scmp.ne.s32.totalorder %s235, %s249
    %p251 = scmp.eq.s32.totalorder %s37, 0
    %p252 = por %p250, %p251
    %s254 = sadd.s32 %s253, 1
    %p257 = scmp.eq.s32.totalorder %s31, 1
    %p258 = scmp.ne.s32.totalorder %s253, %s255
    %p259 = scmp.eq.s32.totalorder %s31, 0
    %p260 = por %p258, %p259
    %p261 = scmp.ne.s32.totalorder %s253, %s255
    %p262 = scmp.eq.s32.totalorder %s36, 1
    %p263 = por %p261, %p262
    %p264 = scmp.ne.s32.totalorder %s255, %s256
    %p265 = scmp.eq.s32.totalorder %s36, 0
    %p266 = por %p264, %p265
    %p267 = scmp.ne.s32.totalorder %s255, %s256
    %p268 = scmp.eq.s32.totalorder %s37, 1
    %p269 = por %p267, %p268
    %p271 = scmp.ne.s32.totalorder %s256, %s270
    %p272 = scmp.eq.s32.totalorder %s37, 0
    %p273 = por %p271, %p272
    %s275 = sadd.s32 %s274, 1
    %p278 = scmp.eq.s32.totalorder %s31, 1
    %p279 = scmp.ne.s32.totalorder %s274, %s276
    %p280 = scmp.eq.s32.totalorder %s31, 0
    %p281 = por %p279, %p280
    %p282 = scmp.ne.s32.totalorder %s274, %s276
    %p283 = scmp.eq.s32.totalorder %s36, 1
    %p284 = por %p282, %p283
    %p285 = scmp.ne.s32.totalorder %s276, %s277
    %p286 = scmp.eq.s32.totalorder %s36, 0
    %p287 = por %p285, %p286
    %p288 = scmp.ne.s32.totalorder %s276, %s277
    %p289 = scmp.eq.s32.totalorder %s37, 1
    %p290 = por %p288, %p289
    %p292 = scmp.ne.s32.totalorder %s277, %s291
    %p293 = scmp.eq.s32.totalorder %s37, 0
    %p294 = por %p292, %p293
    %s296 = sadd.s32 %s295, 1
    %p299 = scmp.eq.s32.totalorder %s31, 1
    %p300 = scmp.ne.s32.totalorder %s295, %s297
    %p301 = scmp.eq.s32.totalorder %s31, 0
    %p302 = por %p300, %p301
    %p303 = scmp.ne.s32.totalorder %s295, %s297
    %p304 = scmp.eq.s32.totalorder %s36, 1
    %p305 = por %p303, %p304
    %p306 = scmp.ne.s32.totalorder %s297, %s298
    %p307 = scmp.eq.s32.totalorder %s36, 0
    %p308 = por %p306, %p307
    %p309 = scmp.ne.s32.totalorder %s297, %s298
    %p310 = scmp.eq.s32.totalorder %s37, 1
    %p311 = por %p309, %p310
    %p313 = scmp.ne.s32.totalorder %s298, %s312
    %p314 = scmp.eq.s32.totalorder %s37, 0
    %p315 = por %p313, %p314
    %s317 = sadd.s32 %s316, 1
    %p320 = scmp.eq.s32.totalorder %s31, 1
    %p321 = scmp.ne.s32.totalorder %s316, %s318
    %p322 = scmp.eq.s32.totalorder %s31, 0
    %p323 = por %p321, %p322
    %p324 = scmp.ne.s32.totalorder %s316, %s318
    %p325 = scmp.eq.s32.totalorder %s36, 1
    %p326 = por %p324, %p325
    %p327 = scmp.ne.s32.totalorder %s318, %s319
    %p328 = scmp.eq.s32.totalorder %s36, 0
    %p329 = por %p327, %p328
    %p330 = scmp.ne.s32.totalorder %s318, %s319
    %p331 = scmp.eq.s32.totalorder %s37, 1
    %p332 = por %p330, %p331
    %p334 = scmp.ne.s32.totalorder %s319, %s333
    %p335 = scmp.eq.s32.totalorder %s37, 0
    %p336 = por %p334, %p335
    %s338 = sadd.s32 %s337, 1
    %p341 = scmp.eq.s32.totalorder %s31, 1
    %p342 = scmp.ne.s32.totalorder %s337, %s339
    %p343 = scmp.eq.s32.totalorder %s31, 0
    %p344 = por %p342, %p343
    %p345 = scmp.ne.s32.totalorder %s337, %s339
    %p346 = scmp.eq.s32.totalorder %s36, 1
    %p347 = por %p345, %p346
    %p348 = scmp.ne.s32.totalorder %s339, %s340
    %p349 = scmp.eq.s32.totalorder %s36, 0
    %p350 = por %p348, %p349
    %p351 = scmp.ne.s32.totalorder %s339, %s340
    %p352 = scmp.eq.s32.totalorder %s37, 1
    %p353 = por %p351, %p352
    %p355 = scmp.ne.s32.totalorder %s340, %s354
    %p356 = scmp.eq.s32.totalorder %s37, 0
    %p357 = por %p355, %p356
    %s359 = sadd.s32 %s358, 1
    %p362 = scmp.eq.s32.totalorder %s31, 1
    %p363 = scmp.ne.s32.totalorder %s358, %s360
    %p364 = scmp.eq.s32.totalorder %s31, 0
    %p365 = por %p363, %p364
    %p366 = scmp.ne.s32.totalorder %s358, %s360
    %p367 = scmp.eq.s32.totalorder %s36, 1
    %p368 = por %p366, %p367
    %p369 = scmp.ne.s32.totalorder %s360, %s361
    %p370 = scmp.eq.s32.totalorder %s36, 0
    %p371 = por %p369, %p370
    %p372 = scmp.ne.s32.totalorder %s360, %s361
    %p373 = scmp.eq.s32.totalorder %s37, 1
    %p374 = por %p372, %p373
    %p376 = scmp.ne.s32.totalorder %s361, %s375
    %p377 = scmp.eq.s32.totalorder %s37, 0
    %p378 = por %p376, %p377
    %s380 = sadd.s32 %s379, 1
    %p383 = scmp.eq.s32.totalorder %s31, 1
    %p384 = scmp.ne.s32.totalorder %s379, %s381
    %p385 = scmp.eq.s32.totalorder %s31, 0
    %p386 = por %p384, %p385
    %p387 = scmp.ne.s32.totalorder %s379, %s381
    %p388 = scmp.eq.s32.totalorder %s36, 1
    %p389 = por %p387, %p388
    %p390 = scmp.ne.s32.totalorder %s381, %s382
    %p391 = scmp.eq.s32.totalorder %s36, 0
    %p392 = por %p390, %p391
    %p393 = scmp.ne.s32.totalorder %s381, %s382
    %p394 = scmp.eq.s32.totalorder %s37, 1
    %p395 = por %p393, %p394
    %p397 = scmp.ne.s32.totalorder %s382, %s396
    %p398 = scmp.eq.s32.totalorder %s37, 0
    %p399 = por %p397, %p398
    %s401 = sadd.s32 %s400, 1
    %p404 = scmp.eq.s32.totalorder %s31, 1
    %p405 = scmp.ne.s32.totalorder %s400, %s402
    %p406 = scmp.eq.s32.totalorder %s31, 0
    %p407 = por %p405, %p406
    %p408 = scmp.ne.s32.totalorder %s400, %s402
    %p409 = scmp.eq.s32.totalorder %s36, 1
    %p410 = por %p408, %p409
    %p411 = scmp.ne.s32.totalorder %s402, %s403
    %p412 = scmp.eq.s32.totalorder %s36, 0
    %p413 = por %p411, %p412
    %p414 = scmp.ne.s32.totalorder %s402, %s403
    %p415 = scmp.eq.s32.totalorder %s37, 1
    %p416 = por %p414, %p415
    %p418 = scmp.ne.s32.totalorder %s403, %s417
    %p419 = scmp.eq.s32.totalorder %s37, 0
    %p420 = por %p418, %p419
    %s422 = sadd.s32 %s421, 1
    %p425 = scmp.eq.s32.totalorder %s31, 1
    %p426 = scmp.ne.s32.totalorder %s421, %s423
    %p427 = scmp.eq.s32.totalorder %s31, 0
    %p428 = por %p426, %p427
    %p429 = scmp.ne.s32.totalorder %s421, %s423
    %p430 = scmp.eq.s32.totalorder %s36, 1
    %p431 = por %p429, %p430
    %p432 = scmp.ne.s32.totalorder %s423, %s424
    %p433 = scmp.eq.s32.totalorder %s36, 0
    %p434 = por %p432, %p433
    %p435 = scmp.ne.s32.totalorder %s423, %s424
    %p436 = scmp.eq.s32.totalorder %s37, 1
    %p437 = por %p435, %p436
    %p439 = scmp.ne.s32.totalorder %s424, %s438
    %p440 = scmp.eq.s32.totalorder %s37, 0
    %p441 = por %p439, %p440
    %s443 = sadd.s32 %s442, 1
    %p446 = scmp.eq.s32.totalorder %s31, 1
    %p447 = scmp.ne.s32.totalorder %s442, %s444
    %p448 = scmp.eq.s32.totalorder %s31, 0
    %p449 = por %p447, %p448
    %p450 = scmp.ne.s32.totalorder %s442, %s444
    %p451 = scmp.eq.s32.totalorder %s36, 1
    %p452 = por %p450, %p451
    %p453 = scmp.ne.s32.totalorder %s444, %s445
    %p454 = scmp.eq.s32.totalorder %s36, 0
    %p455 = por %p453, %p454
    %p456 = scmp.ne.s32.totalorder %s444, %s445
    %p457 = scmp.eq.s32.totalorder %s37, 1
    %p458 = por %p456, %p457
    %p460 = scmp.ne.s32.totalorder %s445, %s459
    %p461 = scmp.eq.s32.totalorder %s37, 0
    %p462 = por %p460, %p461
    %s464 = sadd.s32 %s463, 1
    %p467 = scmp.eq.s32.totalorder %s31, 1
    %p468 = scmp.ne.s32.totalorder %s463, %s465
    %p469 = scmp.eq.s32.totalorder %s31, 0
    %p470 = por %p468, %p469
    %p471 = scmp.ne.s32.totalorder %s463, %s465
    %p472 = scmp.eq.s32.totalorder %s36, 1
    %p473 = por %p471, %p472
    %p474 = scmp.ne.s32.totalorder %s465, %s466
    %p475 = scmp.eq.s32.totalorder %s36, 0
    %p476 = por %p474, %p475
    %p477 = scmp.ne.s32.totalorder %s465, %s466
    %p478 = scmp.eq.s32.totalorder %s37, 1
    %p479 = por %p477, %p478
    %p481 = scmp.ne.s32.totalorder %s466, %s480
    %p482 = scmp.eq.s32.totalorder %s37, 0
    %p483 = por %p481, %p482
    %s485 = sadd.s32 %s484, 1
    %p488 = scmp.eq.s32.totalorder %s31, 1
    %p489 = scmp.ne.s32.totalorder %s484, %s486
    %p490 = scmp.eq.s32.totalorder %s31, 0
    %p491 = por %p489, %p490
    %p492 = scmp.ne.s32.totalorder %s484, %s486
    %p493 = scmp.eq.s32.totalorder %s36, 1
    %p494 = por %p492, %p493
    %p495 = scmp.ne.s32.totalorder %s486, %s487
    %p496 = scmp.eq.s32.totalorder %s36, 0
    %p497 = por %p495, %p496
    %p498 = scmp.ne.s32.totalorder %s486, %s487
    %p499 = scmp.eq.s32.totalorder %s37, 1
    %p500 = por %p498, %p499
    %p502 = scmp.ne.s32.totalorder %s487, %s501
    %p503 = scmp.eq.s32.totalorder %s37, 0
    %p504 = por %p502, %p503
    %s506 = sadd.s32 %s505, 1
    %p509 = scmp.eq.s32.totalorder %s31, 1
    %p510 = scmp.ne.s32.totalorder %s505, %s507
    %p511 = scmp.eq.s32.totalorder %s31, 0
    %p512 = por %p510, %p511
    %p513 = scmp.ne.s32.totalorder %s505, %s507
    %p514 = scmp.eq.s32.totalorder %s36, 1
    %p515 = por %p513, %p514
    %p516 = scmp.ne.s32.totalorder %s507, %s508
    %p517 = scmp.eq.s32.totalorder %s36, 0
    %p518 = por %p516, %p517
    %p519 = scmp.ne.s32.totalorder %s507, %s508
    %p520 = scmp.eq.s32.totalorder %s37, 1
    %p521 = por %p519, %p520
    %p523 = scmp.ne.s32.totalorder %s508, %s522
    %p524 = scmp.eq.s32.totalorder %s37, 0
    %p525 = por %p523, %p524
    %s527 = sadd.s32 %s526, 1
    %p530 = scmp.eq.s32.totalorder %s31, 1
    %p531 = scmp.ne.s32.totalorder %s526, %s528
    %p532 = scmp.eq.s32.totalorder %s31, 0
    %p533 = por %p531, %p532
    %p534 = scmp.ne.s32.totalorder %s526, %s528
    %p535 = scmp.eq.s32.totalorder %s36, 1
    %p536 = por %p534, %p535
    %p537 = scmp.ne.s32.totalorder %s528, %s529
    %p538 = scmp.eq.s32.totalorder %s36, 0
    %p539 = por %p537, %p538
    %p540 = scmp.ne.s32.totalorder %s528, %s529
    %p541 = scmp.eq.s32.totalorder %s37, 1
    %p542 = por %p540, %p541
    %p544 = scmp.ne.s32.totalorder %s529, %s543
    %p545 = scmp.eq.s32.totalorder %s37, 0
    %p546 = por %p544, %p545
    %s547 = ssub.s32 %s31, %s38
    %p548 = scmp.eq.s32.totalorder %s547, 0
    %s550 = sadd.s32 %s549, 1
    %s551 = scalar_select %p548, %s549, %s550
    %p554 = pneg %p548
    %p555 = scmp.eq.s32.totalorder %s31, 1
    %p556 = por %p554, %p555
    %p557 = scmp.ne.s32.totalorder %s549, %s552
    %p558 = scmp.eq.s32.totalorder %s31, 0
    %p559 = por %p557, %p558
    %p560 = scmp.ne.s32.totalorder %s549, %s552
    %p561 = scmp.eq.s32.totalorder %s36, 1
    %p562 = por %p560, %p561
    %p563 = scmp.ne.s32.totalorder %s552, %s553
    %p564 = scmp.eq.s32.totalorder %s36, 0
    %p565 = por %p563, %p564
    %p566 = scmp.ne.s32.totalorder %s552, %s553
    %p567 = scmp.eq.s32.totalorder %s37, 1
    %p568 = por %p566, %p567
    %p570 = scmp.ne.s32.totalorder %s553, %s569
    %p571 = scmp.eq.s32.totalorder %s37, 0
    %p572 = por %p570, %p571
    %s573 = ssub.s32 %s31, %s38
    %p574 = scmp.eq.s32.totalorder %s573, 0
    %s576 = sadd.s32 %s575, 1
    %s577 = scalar_select %p574, %s575, %s576
    %p580 = pneg %p574
    %p581 = scmp.eq.s32.totalorder %s31, 1
    %p582 = por %p580, %p581
    %p583 = scmp.ne.s32.totalorder %s575, %s578
    %p584 = scmp.eq.s32.totalorder %s31, 0
    %p585 = por %p583, %p584
    %p586 = scmp.ne.s32.totalorder %s575, %s578
    %p587 = scmp.eq.s32.totalorder %s36, 1
    %p588 = por %p586, %p587
    %p589 = scmp.ne.s32.totalorder %s578, %s579
    %p590 = scmp.eq.s32.totalorder %s36, 0
    %p591 = por %p589, %p590
    %p592 = scmp.ne.s32.totalorder %s578, %s579
    %p593 = scmp.eq.s32.totalorder %s37, 1
    %p594 = por %p592, %p593
    %p596 = scmp.ne.s32.totalorder %s579, %s595
    %p597 = scmp.eq.s32.totalorder %s37, 0
    %p598 = por %p596, %p597
    %p599 = scmp.le.s32.totalorder 1, %s31
    %p600 = scmp.lt.s32.totalorder %s31, 3
    %p601 = pnand %p599, %p600
    %p602 = pneg %p601
    // Predicated region
    $region9: #{base_model_forward.16} parent=5 // pred_check
      _
    $region10: #{base_model_forward.16} parent=5 // pred_check_branch
      %604 = sbr.rel (%p601) target = $region12
    $region11: #{base_model_forward.16} parent=5 // pred_region
      %s605 = ssub.s32 %s31, 1
      // Predicated region
      $region13: #{base_model_forward.16} parent=11 // pred_check
        %p606 = pneg %p182
      $region14: #{base_model_forward.16} parent=11 // pred_check_branch
        %608 = sbr.rel (%p606) target = $region16
      $region15: #{base_model_forward.16} parent=11 // pred_region
        _
      $region16: #{base_model_forward.16} parent=11 // pred_fallthru
        _
      // Predicated region
      $region17: #{base_model_forward.16} parent=11 // pred_check
        %p609 = pneg %p203
      $region18: #{base_model_forward.16} parent=11 // pred_check_branch
        %611 = sbr.rel (%p609) target = $region20
      $region19: #{base_model_forward.16} parent=11 // pred_region
        _
      $region20: #{base_model_forward.16} parent=11 // pred_fallthru
        _
      // Predicated region
      $region21: #{base_model_forward.16} parent=11 // pred_check
        %p612 = pneg %p224
      $region22: #{base_model_forward.16} parent=11 // pred_check_branch
        %614 = sbr.rel (%p612) target = $region24
      $region23: #{base_model_forward.16} parent=11 // pred_region
        _
      $region24: #{base_model_forward.16} parent=11 // pred_fallthru
        _
      // Predicated region
      $region25: #{base_model_forward.16} parent=11 // pred_check
        %p615 = pneg %p245
      $region26: #{base_model_forward.16} parent=11 // pred_check_branch
        %617 = sbr.rel (%p615) target = $region28
      $region27: #{base_model_forward.16} parent=11 // pred_region
        _
      $region28: #{base_model_forward.16} parent=11 // pred_fallthru
        _
      // Predicated region
      $region29: #{base_model_forward.16} parent=11 // pred_check
        %p618 = pneg %p266
      $region30: #{base_model_forward.16} parent=11 // pred_check_branch
        %620 = sbr.rel (%p618) target = $region32
      $region31: #{base_model_forward.16} parent=11 // pred_region
        _
      $region32: #{base_model_forward.16} parent=11 // pred_fallthru
        _
      // Predicated region
      $region33: #{base_model_forward.16} parent=11 // pred_check
        %p621 = pneg %p287
      $region34: #{base_model_forward.16} parent=11 // pred_check_branch
        %623 = sbr.rel (%p621) target = $region36
      $region35: #{base_model_forward.16} parent=11 // pred_region
        _
      $region36: #{base_model_forward.16} parent=11 // pred_fallthru
        _
      // Predicated region
      $region37: #{base_model_forward.16} parent=11 // pred_check
        %p624 = pneg %p308
      $region38: #{base_model_forward.16} parent=11 // pred_check_branch
        %626 = sbr.rel (%p624) target = $region40
      $region39: #{base_model_forward.16} parent=11 // pred_region
        _
      $region40: #{base_model_forward.16} parent=11 // pred_fallthru
        _
      // Predicated region
      $region41: #{base_model_forward.16} parent=11 // pred_check
        %p627 = pneg %p329
      $region42: #{base_model_forward.16} parent=11 // pred_check_branch
        %629 = sbr.rel (%p627) target = $region44
      $region43: #{base_model_forward.16} parent=11 // pred_region
        _
      $region44: #{base_model_forward.16} parent=11 // pred_fallthru
        _
      // Predicated region
      $region45: #{base_model_forward.16} parent=11 // pred_check
        %p630 = pneg %p350
      $region46: #{base_model_forward.16} parent=11 // pred_check_branch
        %632 = sbr.rel (%p630) target = $region48
      $region47: #{base_model_forward.16} parent=11 // pred_region
        _
      $region48: #{base_model_forward.16} parent=11 // pred_fallthru
        _
      // Predicated region
      $region49: #{base_model_forward.16} parent=11 // pred_check
        %p633 = pneg %p371
      $region50: #{base_model_forward.16} parent=11 // pred_check_branch
        %635 = sbr.rel (%p633) target = $region52
      $region51: #{base_model_forward.16} parent=11 // pred_region
        _
      $region52: #{base_model_forward.16} parent=11 // pred_fallthru
        _
      // Predicated region
      $region53: #{base_model_forward.16} parent=11 // pred_check
        %p636 = pneg %p392
      $region54: #{base_model_forward.16} parent=11 // pred_check_branch
        %638 = sbr.rel (%p636) target = $region56
      $region55: #{base_model_forward.16} parent=11 // pred_region
        _
      $region56: #{base_model_forward.16} parent=11 // pred_fallthru
        _
      // Predicated region
      $region57: #{base_model_forward.16} parent=11 // pred_check
        %p639 = pneg %p413
      $region58: #{base_model_forward.16} parent=11 // pred_check_branch
        %641 = sbr.rel (%p639) target = $region60
      $region59: #{base_model_forward.16} parent=11 // pred_region
        _
      $region60: #{base_model_forward.16} parent=11 // pred_fallthru
        _
      // Predicated region
      $region61: #{base_model_forward.16} parent=11 // pred_check
        %p642 = pneg %p434
      $region62: #{base_model_forward.16} parent=11 // pred_check_branch
        %644 = sbr.rel (%p642) target = $region64
      $region63: #{base_model_forward.16} parent=11 // pred_region
        _
      $region64: #{base_model_forward.16} parent=11 // pred_fallthru
        _
      // Predicated region
      $region65: #{base_model_forward.16} parent=11 // pred_check
        %p645 = pneg %p455
      $region66: #{base_model_forward.16} parent=11 // pred_check_branch
        %647 = sbr.rel (%p645) target = $region68
      $region67: #{base_model_forward.16} parent=11 // pred_region
        _
      $region68: #{base_model_forward.16} parent=11 // pred_fallthru
        _
      // Predicated region
      $region69: #{base_model_forward.16} parent=11 // pred_check
        %p648 = pneg %p476
      $region70: #{base_model_forward.16} parent=11 // pred_check_branch
        %650 = sbr.rel (%p648) target = $region72
      $region71: #{base_model_forward.16} parent=11 // pred_region
        _
      $region72: #{base_model_forward.16} parent=11 // pred_fallthru
        _
      // Predicated region
      $region73: #{base_model_forward.16} parent=11 // pred_check
        %p651 = pneg %p497
      $region74: #{base_model_forward.16} parent=11 // pred_check_branch
        %653 = sbr.rel (%p651) target = $region76
      $region75: #{base_model_forward.16} parent=11 // pred_region
        _
      $region76: #{base_model_forward.16} parent=11 // pred_fallthru
        _
      // Predicated region
      $region77: #{base_model_forward.16} parent=11 // pred_check
        %p654 = pneg %p518
      $region78: #{base_model_forward.16} parent=11 // pred_check_branch
        %656 = sbr.rel (%p654) target = $region80
      $region79: #{base_model_forward.16} parent=11 // pred_region
        _
      $region80: #{base_model_forward.16} parent=11 // pred_fallthru
        _
      // Predicated region
      $region81: #{base_model_forward.16} parent=11 // pred_check
        %p657 = pneg %p539
      $region82: #{base_model_forward.16} parent=11 // pred_check_branch
        %659 = sbr.rel (%p657) target = $region84
      $region83: #{base_model_forward.16} parent=11 // pred_region
        _
      $region84: #{base_model_forward.16} parent=11 // pred_fallthru
        _
    $region12: #{base_model_forward.16} parent=5 // pred_fallthru
      _
    %p660 = scmp.lt.s32.totalorder %s31, 2
    // Predicated region
    $region85: #{base_model_forward.16} parent=5 // pred_check
      %p661 = pneg %p660
    $region86: #{base_model_forward.16} parent=5 // pred_check_branch
      %663 = sbr.rel (%p661) target = $region88
    $region87: #{base_model_forward.16} parent=5 // pred_region
      // Predicated region
      $region89: #{base_model_forward.16} parent=87 // pred_check
        %p664 = pneg %p51
      $region90: #{base_model_forward.16} parent=87 // pred_check_branch
        %666 = sbr.rel (%p664) target = $region92
      $region91: #{base_model_forward.16} parent=87 // pred_region
        %s667 = smul.u32 2, %s31
        %p668 = scmp.lt.s32.totalorder %s667, 3
        %s669 = scalar_select %p668, %s667, 3
        %s670 = smul.addr %s669, 8
        %s671 = scalar_lea.vmem %s0, %s670
        %s672 = smul.u32 2, %s31
      $region92: #{base_model_forward.16} parent=87 // pred_fallthru
        _
      // Predicated region
      $region93: #{base_model_forward.16} parent=87 // pred_check
        %p673 = pneg %p77
      $region94: #{base_model_forward.16} parent=87 // pred_check_branch
        %675 = sbr.rel (%p673) target = $region96
      $region95: #{base_model_forward.16} parent=87 // pred_region
        %s676 = smul.u32 2, %s31
        %p677 = scmp.lt.s32.totalorder %s676, 3
        %s678 = scalar_select %p677, %s676, 3
        %s679 = smul.addr %s678, 8
        %s680 = scalar_lea.vmem %s1, %s679
        %s681 = smul.u32 2, %s31
      $region96: #{base_model_forward.16} parent=87 // pred_fallthru
        _
      // Predicated region
      $region97: #{base_model_forward.16} parent=87 // pred_check
        %p682 = pneg %p103
      $region98: #{base_model_forward.16} parent=87 // pred_check_branch
        %684 = sbr.rel (%p682) target = $region100
      $region99: #{base_model_forward.16} parent=87 // pred_region
        %s685 = smul.u32 2, %s31
        %p686 = scmp.lt.s32.totalorder %s685, 3
        %s687 = scalar_select %p686, %s685, 3
        %s688 = smul.addr %s687, 8
        %s689 = scalar_lea.vmem %s2, %s688
        %s690 = smul.u32 2, %s31
      $region100: #{base_model_forward.16} parent=87 // pred_fallthru
        _
      // Predicated region
      $region101: #{base_model_forward.16} parent=87 // pred_check
        %p691 = pneg %p129
      $region102: #{base_model_forward.16} parent=87 // pred_check_branch
        %693 = sbr.rel (%p691) target = $region104
      $region103: #{base_model_forward.16} parent=87 // pred_region
        %s694 = smul.u32 2, %s31
        %p695 = scmp.lt.s32.totalorder %s694, 3
        %s696 = scalar_select %p695, %s694, 3
        %s697 = smul.addr %s696, 8
        %s698 = scalar_lea.vmem %s3, %s697
        %s699 = smul.u32 2, %s31
      $region104: #{base_model_forward.16} parent=87 // pred_fallthru
        _
      // Predicated region
      $region105: #{base_model_forward.16} parent=87 // pred_check
        %p700 = pneg %p155
      $region106: #{base_model_forward.16} parent=87 // pred_check_branch
        %702 = sbr.rel (%p700) target = $region108
      $region107: #{base_model_forward.16} parent=87 // pred_region
        %s703 = smul.u32 2, %s31
        %p704 = scmp.lt.s32.totalorder %s703, 3
        %s705 = scalar_select %p704, %s703, 3
        %s706 = smul.addr %s705, 8
        %s707 = scalar_lea.vmem %s4, %s706
        %s708 = smul.u32 2, %s31
      $region108: #{base_model_forward.16} parent=87 // pred_fallthru
        _
    $region88: #{base_model_forward.16} parent=5 // pred_fallthru
      _
    %p709 = scmp.le.s32.totalorder 1, %s31
    %p710 = scmp.lt.s32.totalorder %s31, 3
    %p711 = pnand %p709, %p710
    %p712 = pneg %p711
    // Predicated region
    $region109: #{base_model_forward.16} parent=5 // pred_check
      _
    $region110: #{base_model_forward.16} parent=5 // pred_check_branch
      %714 = sbr.rel (%p711) target = $region112
    $region111: #{base_model_forward.16} parent=5 // pred_region
      %s715 = ssub.s32 %s31, 1
      %s716 = smul.u32 2, %s36
      %p717 = scmp.lt.s32.totalorder %s716, 3
      %s718 = scalar_select %p717, %s716, 3
      %s719 = smul.addr %s718, 8
      %s720 = scalar_lea.vmem %s0, %s719
      %p721 = pneg %p57
      %p722 = pneg %p54
      %s723 = smul.u32 2, %s36
      %p724 = scmp.lt.s32.totalorder %s723, 3
      %s725 = scalar_select %p724, %s723, 3
      %s726 = smul.addr %s725, 8
      %s727 = scalar_lea.vmem %s1, %s726
      %p728 = pneg %p83
      %p729 = pneg %p80
      %s730 = smul.u32 2, %s36
      %p731 = scmp.lt.s32.totalorder %s730, 3
      %s732 = scalar_select %p731, %s730, 3
      %s733 = smul.addr %s732, 8
      %s734 = scalar_lea.vmem %s2, %s733
      %p735 = pneg %p109
      %p736 = pneg %p106
      %s737 = smul.u32 2, %s36
      %p738 = scmp.lt.s32.totalorder %s737, 3
      %s739 = scalar_select %p738, %s737, 3
      %s740 = smul.addr %s739, 8
      %s741 = scalar_lea.vmem %s3, %s740
      %p742 = pneg %p135
      %p743 = pneg %p132
      %s744 = smul.u32 2, %s36
      %p745 = scmp.lt.s32.totalorder %s744, 3
      %s746 = scalar_select %p745, %s744, 3
      %s747 = smul.addr %s746, 8
      %s748 = scalar_lea.vmem %s4, %s747
      %p749 = pneg %p161
      %p750 = pneg %p158
      %p751 = pneg %p182
      %p752 = pneg %p179
      %p753 = pneg %p203
      %p754 = pneg %p200
      %p755 = pneg %p224
      %p756 = pneg %p221
      %p757 = pneg %p245
      %p758 = pneg %p242
      %p759 = pneg %p266
      %p760 = pneg %p263
      %p761 = pneg %p287
      %p762 = pneg %p284
      %p763 = pneg %p308
      %p764 = pneg %p305
      %p765 = pneg %p329
      %p766 = pneg %p326
      %p767 = pneg %p350
      %p768 = pneg %p347
      %p769 = pneg %p371
      %p770 = pneg %p368
      %p771 = pneg %p392
      %p772 = pneg %p389
      %p773 = pneg %p413
      %p774 = pneg %p410
      %p775 = pneg %p434
      %p776 = pneg %p431
      %p777 = pneg %p455
      %p778 = pneg %p452
      %p779 = pneg %p476
      %p780 = pneg %p473
      %p781 = pneg %p497
      %p782 = pneg %p494
      %p783 = pneg %p518
      %p784 = pneg %p515
      %p785 = pneg %p539
      %p786 = pneg %p536
      %p787 = pneg %p565
      %p788 = pneg %p562
      %s789 = smul.u32 2, %s36
      %p790 = scmp.lt.s32.totalorder %s789, 3
      %s791 = scalar_select %p790, %s789, 3
      %s792 = smul.addr %s791, 8
      %s793 = scalar_lea.vmem %s23, %s792
      %p794 = pneg %p591
      %p795 = pneg %p588
      %s796 = smul.u32 2, %s36
      %p797 = scmp.lt.s32.totalorder %s796, 3
      %s798 = scalar_select %p797, %s796, 3
      %s799 = smul.addr %s798, 8
      %s800 = scalar_lea.vmem %s24, %s799
      %s801 = smul.u32 2, %s36
      %p802 = scmp.lt.s32.totalorder %s801, 3
      %s803 = scalar_select %p802, %s801, 3
      %s804 = smul.addr %s803, 8
      %s805 = scalar_lea.vmem %s0, %s804
      %s806 = smul.u32 2, %s36
      %s807 = smul.u32 2, %s36
      %p808 = scmp.lt.s32.totalorder %s807, 3
      %s809 = scalar_select %p808, %s807, 3
      %s810 = smul.addr %s809, 8
      %s811 = scalar_lea.vmem %s1, %s810
      %s812 = smul.u32 2, %s36
      %s813 = smul.u32 2, %s36
      %p814 = scmp.lt.s32.totalorder %s813, 3
      %s815 = scalar_select %p814, %s813, 3
      %s816 = smul.addr %s815, 8
      %s817 = scalar_lea.vmem %s2, %s816
      %s818 = smul.u32 2, %s36
      %s819 = smul.u32 2, %s36
      %p820 = scmp.lt.s32.totalorder %s819, 3
      %s821 = scalar_select %p820, %s819, 3
      %s822 = smul.addr %s821, 8
      %s823 = scalar_lea.vmem %s3, %s822
      %s824 = smul.u32 2, %s36
      %s825 = smul.u32 2, %s36
      %p826 = scmp.lt.s32.totalorder %s825, 3
      %s827 = scalar_select %p826, %s825, 3
      %s828 = smul.addr %s827, 8
      %s829 = scalar_lea.vmem %s4, %s828
      %s830 = smul.u32 2, %s36
      %s831 = smul.u32 2, %s36
      %p832 = scmp.lt.s32.totalorder %s831, 3
      %s833 = scalar_select %p832, %s831, 3
      %s834 = smul.addr %s833, 8
      %s835 = scalar_lea.vmem %s23, %s834
      %s836 = smul.u32 2, %s36
      %s837 = smul.u32 2, %s36
      %p838 = scmp.lt.s32.totalorder %s837, 3
      %s839 = scalar_select %p838, %s837, 3
      %s840 = smul.addr %s839, 8
      %s841 = scalar_lea.vmem %s24, %s840
      %s842 = smul.u32 2, %s36
      %v844 = vld [vmem:[%s7] sm:$0xf]
      %v845 = vld [vmem:[%s7 + $0x4] sm:$0xf]
      %v846 = vld [vmem:[%s7 + $0x8] sm:$0xf]
      %v847 = vld [vmem:[%s7 + $0xc] sm:$0xf]
      %v848 = vld [vmem:[%s7 + $0x10] sm:$0xf]
      %v849 = vld [vmem:[%s7 + $0x14] sm:$0xf]
      %v850 = vld [vmem:[%s8] sm:$0xff]
      %v851 = vld [vmem:[%s8 + $0x8] sm:$0xff]
      %v852 = vld [vmem:[%s8 + $0x10] sm:$0xff]
      %v853 = vld [vmem:[%s8 + $0x18] sm:$0xff]
      %v854 = vld [vmem:[%s8 + $0x20] sm:$0xff]
      %v855 = vld [vmem:[%s8 + $0x28] sm:$0xff]
      %v856 = vld [vmem:[%s8 + $0x30] sm:$0xff]
      %v857 = vld [vmem:[%s8 + $0x38] sm:$0xff]
      %v858 = vld [vmem:[%s8 + $0x40] sm:$0xff]
      %v859 = vld [vmem:[%s8 + $0x48] sm:$0xff]
      %v860 = vld [vmem:[%s8 + $0x50] sm:$0xff]
      %v861 = vld [vmem:[%s8 + $0x58] sm:$0xff]
      %v862 = vld [vmem:[%s8 + $0x60] sm:$0xff]
      %v863 = vld [vmem:[%s8 + $0x68] sm:$0xff]
      %v864 = vld [vmem:[%s8 + $0x70] sm:$0xff]
      %v865 = vld [vmem:[%s8 + $0x78] sm:$0xff]
      %v866 = vld [vmem:[%s8 + $0x80] sm:$0xff]
      %v867 = vld [vmem:[%s8 + $0x88] sm:$0xff]
      %v868 = vld [vmem:[%s8 + $0x90] sm:$0xff]
      %v869 = vld [vmem:[%s8 + $0x98] sm:$0xff]
      %v870 = vld [vmem:[%s8 + $0xa0] sm:$0xff]
      %v871 = vld [vmem:[%s8 + $0xa8] sm:$0xff]
      %v872 = vld [vmem:[%s8 + $0xb0] sm:$0xff]
      %v873 = vld [vmem:[%s8 + $0xb8] sm:$0xff]
      %v874 = vld [vmem:[%s8 + $0xc0] sm:$0x33]
      %v875 = vld [vmem:[%s8 + $0xc8] sm:$0x33]
      %v876 = vld [vmem:[%s9] sm:$0xff]
      %v877 = vld [vmem:[%s9 + $0x8] sm:$0xff]
      %v878 = vld [vmem:[%s9 + $0x10] sm:$0xff]
      %v879 = vld [vmem:[%s9 + $0x18] sm:$0xff]
      %v880 = vld [vmem:[%s9 + $0x20] sm:$0xff]
      %v881 = vld [vmem:[%s9 + $0x28] sm:$0xff]
      %v882 = vld [vmem:[%s9 + $0x30] sm:$0xff]
      %v883 = vld [vmem:[%s9 + $0x38] sm:$0xff]
      %v884 = vld [vmem:[%s10] sm:$0xf]
      %v885 = vld [vmem:[%s11] sm:$0xf]
      %v886 = vld [vmem:[%s11 + $0x4] sm:$0xf]
      %v887 = vld [vmem:[%s11 + $0x8] sm:$0xf]
      %v888 = vld [vmem:[%s11 + $0xc] sm:$0xf]
      %v889 = vld [vmem:[%s11 + $0x10] sm:$0xf]
      %v890 = vld [vmem:[%s11 + $0x14] sm:$0xf]
      %v891 = vld [vmem:[%s11 + $0x18] sm:$0xf]
      %v892 = vld [vmem:[%s11 + $0x1c] sm:$0xf]
      %v893 = vld [vmem:[%s11 + $0x20] sm:$0xf]
      %v894 = vld [vmem:[%s11 + $0x24] sm:$0xf]
      %v895 = vld [vmem:[%s11 + $0x28] sm:$0xf]
      %v896 = vld [vmem:[%s11 + $0x2c] sm:$0xf]
      %v897 = vld [vmem:[%s12] sm:$0xf]
      %v898 = vld [vmem:[%s12 + $0x4] sm:$0xf]
      %v899 = vld [vmem:[%s12 + $0x8] sm:$0xf]
      %v900 = vld [vmem:[%s12 + $0xc] sm:$0xf]
      %v901 = vld [vmem:[%s12 + $0x10] sm:$0xf]
      %v902 = vld [vmem:[%s12 + $0x14] sm:$0xf]
      %v903 = vld [vmem:[%s12 + $0x18] sm:$0xf]
      %v904 = vld [vmem:[%s12 + $0x1c] sm:$0xf]
      %v905 = vld [vmem:[%s12 + $0x20] sm:$0xf]
      %v906 = vld [vmem:[%s12 + $0x24] sm:$0xf]
      %v907 = vld [vmem:[%s12 + $0x28] sm:$0xf]
      %v908 = vld [vmem:[%s12 + $0x2c] sm:$0xf]
      %v909 = vld [vmem:[%s12 + $0x30] sm:$0xf]
      %v910 = vld [vmem:[%s12 + $0x34] sm:$0xf]
      %v911 = vld [vmem:[%s12 + $0x38] sm:$0xf]
      %v912 = vld [vmem:[%s12 + $0x3c] sm:$0xf]
      %v913 = vld [vmem:[%s12 + $0x40] sm:$0xf]
      %v914 = vld [vmem:[%s12 + $0x44] sm:$0xf]
      %v915 = vld [vmem:[%s12 + $0x48] sm:$0xf]
      %v916 = vld [vmem:[%s12 + $0x4c] sm:$0xf]
      %v917 = vld [vmem:[%s12 + $0x50] sm:$0xf]
      %v918 = vld [vmem:[%s12 + $0x54] sm:$0xf]
      %v919 = vld [vmem:[%s12 + $0x58] sm:$0xf]
      %v920 = vld [vmem:[%s12 + $0x5c] sm:$0xf]
      %v921 = vld [vmem:[%s12 + $0x60] sm:$0xf]
      %v922 = vld [vmem:[%s12 + $0x64] sm:$0xf]
      %v923 = vld [vmem:[%s12 + $0x68] sm:$0xf]
      %v924 = vld [vmem:[%s12 + $0x6c] sm:$0xf]
      %v925 = vld [vmem:[%s12 + $0x70] sm:$0xf]
      %v926 = vld [vmem:[%s12 + $0x74] sm:$0xf]
      %v927 = vld [vmem:[%s12 + $0x78] sm:$0xf]
      %v928 = vld [vmem:[%s12 + $0x7c] sm:$0xf]
      %v929 = vld [vmem:[%s12 + $0x80] sm:$0xf]
      %v930 = vld [vmem:[%s12 + $0x84] sm:$0xf]
      %v931 = vld [vmem:[%s12 + $0x88] sm:$0xf]
      %v932 = vld [vmem:[%s12 + $0x8c] sm:$0xf]
      %v933 = vld [vmem:[%s12 + $0x90] sm:$0xf]
      %v934 = vld [vmem:[%s12 + $0x94] sm:$0xf]
      %v935 = vld [vmem:[%s12 + $0x98] sm:$0xf]
      %v936 = vld [vmem:[%s12 + $0x9c] sm:$0xf]
      %v937 = vld [vmem:[%s12 + $0xa0] sm:$0xf]
      %v938 = vld [vmem:[%s12 + $0xa4] sm:$0xf]
      %v939 = vld [vmem:[%s12 + $0xa8] sm:$0xf]
      %v940 = vld [vmem:[%s12 + $0xac] sm:$0xf]
      %v941 = vld [vmem:[%s12 + $0xb0] sm:$0xf]
      %v942 = vld [vmem:[%s12 + $0xb4] sm:$0xf]
      %v943 = vld [vmem:[%s12 + $0xb8] sm:$0xf]
      %v944 = vld [vmem:[%s12 + $0xbc] sm:$0xf]
      %v945 = vld [vmem:[%s12 + $0xc0] sm:$0xf]
      %v946 = vld [vmem:[%s12 + $0xc4] sm:$0xf]
      %v947 = vld [vmem:[%s13] sm:$0x1]
      %v948 = vld [vmem:[%s14] sm:$0xf]
      %v949 = vld [vmem:[%s14 + $0x4] sm:$0xf]
      %v950 = vld [vmem:[%s14 + $0x8] sm:$0xf]
      %v951 = vld [vmem:[%s14 + $0xc] sm:$0xf]
      %v952 = vld [vmem:[%s14 + $0x10] sm:$0xf]
      %v953 = vld [vmem:[%s14 + $0x14] sm:$0xf]
      %v954 = vld [vmem:[%s14 + $0x18] sm:$0xf]
      %v955 = vld [vmem:[%s14 + $0x1c] sm:$0xf]
      %v956 = vld [vmem:[%s14 + $0x20] sm:$0xf]
      %v957 = vld [vmem:[%s14 + $0x24] sm:$0xf]
      %v958 = vld [vmem:[%s14 + $0x28] sm:$0xf]
      %v959 = vld [vmem:[%s14 + $0x2c] sm:$0xf]
      %v960 = vld [vmem:[%s15] sm:$0xf]
      %v961 = vld [vmem:[%s15 + $0x4] sm:$0xf]
      %v962 = vld [vmem:[%s15 + $0x8] sm:$0xf]
      %v963 = vld [vmem:[%s15 + $0xc] sm:$0xf]
      %v964 = vld [vmem:[%s15 + $0x10] sm:$0xf]
      %v965 = vld [vmem:[%s15 + $0x14] sm:$0xf]
      %v966 = vld [vmem:[%s15 + $0x18] sm:$0xf]
      %v967 = vld [vmem:[%s15 + $0x1c] sm:$0xf]
      %v968 = vld [vmem:[%s15 + $0x20] sm:$0xf]
      %v969 = vld [vmem:[%s15 + $0x24] sm:$0xf]
      %v970 = vld [vmem:[%s15 + $0x28] sm:$0xf]
      %v971 = vld [vmem:[%s15 + $0x2c] sm:$0xf]
      %v972 = vld [vmem:[%s15 + $0x30] sm:$0xf]
      %v973 = vld [vmem:[%s15 + $0x34] sm:$0xf]
      %v974 = vld [vmem:[%s15 + $0x38] sm:$0xf]
      %v975 = vld [vmem:[%s15 + $0x3c] sm:$0xf]
      %v976 = vld [vmem:[%s15 + $0x40] sm:$0xf]
      %v977 = vld [vmem:[%s15 + $0x44] sm:$0xf]
      %v978 = vld [vmem:[%s15 + $0x48] sm:$0xf]
      %v979 = vld [vmem:[%s15 + $0x4c] sm:$0xf]
      %v980 = vld [vmem:[%s15 + $0x50] sm:$0xf]
      %v981 = vld [vmem:[%s15 + $0x54] sm:$0xf]
      %v982 = vld [vmem:[%s15 + $0x58] sm:$0xf]
      %v983 = vld [vmem:[%s15 + $0x5c] sm:$0xf]
      %v984 = vld [vmem:[%s15 + $0x60] sm:$0xf]
      %v985 = vld [vmem:[%s15 + $0x64] sm:$0xf]
      %v986 = vld [vmem:[%s15 + $0x68] sm:$0xf]
      %v987 = vld [vmem:[%s15 + $0x6c] sm:$0xf]
      %v988 = vld [vmem:[%s15 + $0x70] sm:$0xf]
      %v989 = vld [vmem:[%s15 + $0x74] sm:$0xf]
      %v990 = vld [vmem:[%s15 + $0x78] sm:$0xf]
      %v991 = vld [vmem:[%s15 + $0x7c] sm:$0xf]
      %v992 = vld [vmem:[%s15 + $0x80] sm:$0xf]
      %v993 = vld [vmem:[%s15 + $0x84] sm:$0xf]
      %v994 = vld [vmem:[%s15 + $0x88] sm:$0xf]
      %v995 = vld [vmem:[%s15 + $0x8c] sm:$0xf]
      %v996 = vld [vmem:[%s15 + $0x90] sm:$0xf]
      %v997 = vld [vmem:[%s15 + $0x94] sm:$0xf]
      %v998 = vld [vmem:[%s15 + $0x98] sm:$0xf]
      %v999 = vld [vmem:[%s15 + $0x9c] sm:$0xf]
      %v1000 = vld [vmem:[%s15 + $0xa0] sm:$0xf]
      %v1001 = vld [vmem:[%s15 + $0xa4] sm:$0xf]
      %v1002 = vld [vmem:[%s15 + $0xa8] sm:$0xf]
      %v1003 = vld [vmem:[%s15 + $0xac] sm:$0xf]
      %v1004 = vld [vmem:[%s15 + $0xb0] sm:$0xf]
      %v1005 = vld [vmem:[%s15 + $0xb4] sm:$0xf]
      %v1006 = vld [vmem:[%s15 + $0xb8] sm:$0xf]
      %v1007 = vld [vmem:[%s15 + $0xbc] sm:$0xf]
      %v1008 = vld [vmem:[%s15 + $0xc0] sm:$0xf]
      %v1009 = vld [vmem:[%s15 + $0xc4] sm:$0xf]
      %v1010 = vld [vmem:[%s16] sm:$0xf]
      %v1011 = vld [vmem:[%s16 + $0x4] sm:$0xf]
      %v1012 = vld [vmem:[%s16 + $0x8] sm:$0xf]
      %v1013 = vld [vmem:[%s16 + $0xc] sm:$0xf]
      %v1014 = vld [vmem:[%s17] sm:$0x1]
      %v1015 = vld [vmem:[%s18] sm:$0xf]
      %v1016 = vld [vmem:[%s18 + $0x4] sm:$0xf]
      %v1017 = vld [vmem:[%s18 + $0x8] sm:$0xf]
      %v1018 = vld [vmem:[%s18 + $0xc] sm:$0xf]
      %v1019 = vld [vmem:[%s18 + $0x10] sm:$0xf]
      %v1020 = vld [vmem:[%s18 + $0x14] sm:$0xf]
      %v1021 = vld [vmem:[%s18 + $0x18] sm:$0xf]
      %v1022 = vld [vmem:[%s18 + $0x1c] sm:$0xf]
      %v1023 = vld [vmem:[%s18 + $0x20] sm:$0xf]
      %v1024 = vld [vmem:[%s18 + $0x24] sm:$0xf]
      %v1025 = vld [vmem:[%s18 + $0x28] sm:$0xf]
      %v1026 = vld [vmem:[%s18 + $0x2c] sm:$0xf]
      %v1027 = vld [vmem:[%s19] sm:$0xf]
      %v1028 = vld [vmem:[%s19 + $0x4] sm:$0xf]
      %v1029 = vld [vmem:[%s19 + $0x8] sm:$0xf]
      %v1030 = vld [vmem:[%s19 + $0xc] sm:$0xf]
      %v1031 = vld [vmem:[%s19 + $0x10] sm:$0xf]
      %v1032 = vld [vmem:[%s19 + $0x14] sm:$0xf]
      %v1033 = vld [vmem:[%s19 + $0x18] sm:$0xf]
      %v1034 = vld [vmem:[%s19 + $0x1c] sm:$0xf]
      %v1035 = vld [vmem:[%s19 + $0x20] sm:$0xf]
      %v1036 = vld [vmem:[%s19 + $0x24] sm:$0xf]
      %v1037 = vld [vmem:[%s19 + $0x28] sm:$0xf]
      %v1038 = vld [vmem:[%s19 + $0x2c] sm:$0xf]
      %v1039 = vld [vmem:[%s19 + $0x30] sm:$0x3]
      %v1040 = vld [vmem:[%s20] sm:$0x1]
      %v1041 = vld [vmem:[%s829] sm:$0xff]
      %v1042 = vld [vmem:[%s829 + $0x8] sm:$0xff]
      %v1043 = vld [vmem:[%s805] sm:$0xff]
      %v1044 = vld [vmem:[%s805 + $0x8] sm:$0xff]
      %v1045 = vld [vmem:[%s817] sm:$0xff]
      %v1046 = vld [vmem:[%s817 + $0x8] sm:$0xff]
      %1048 = vset.pattern.permute.xlu0 0
      %1049 = vperm.xlu0 %1048, %v1041
      %v1050 = vpop.permute.xlu0 %1049
      %1053 = vset.pattern.permute.xlu0 0
      %1054 = vperm.xlu0 %1053, %v1042
      %v1055 = vpop.permute.xlu0 %1054
      %v1057 = vmul.f32 %v1045, %v1050
      %v1058 = vmul.f32 %v1046, %v1055
      %v1059 = vadd.f32 %v1043, %v1057
      %v1060 = vadd.f32 %v1044, %v1058
      %v1061 = vld [vmem:[%s811] sm:$0xff]
      %v1062 = vld [vmem:[%s811 + $0x8] sm:$0xff]
      %v1063 = vld [vmem:[%s823] sm:$0xff]
      %v1064 = vld [vmem:[%s823 + $0x8] sm:$0xff]
      %v1065 = vmul.f32 %v1063, %v1050
      %v1066 = vmul.f32 %v1064, %v1055
      %v1067 = vadd.f32 %v1061, %v1065
      %v1068 = vadd.f32 %v1062, %v1066
      %v1069 = vld [vmem:[%s5] sm:$0x1]
      %v1070 = vld [vmem:[%s6] sm:$0x1]
      %vm1071 = vcmask 818176
      %v1072 = vsel %vm1071, %v1059, 0.0
      %1073 = vadd.xlane.f32.xlu0 %v1072
      %v1074 = vpop.xlane.xlu0 %1073
      %v1075 = vsel %vm1071, %v1060, 0.0
      %1076 = vadd.xlane.f32.xlu0 %v1075
      %v1077 = vpop.xlane.xlu0 %1076
      %v1078 = vrcp.pop 100.0
      %v1079 = vmul.f32 %v1074, %v1078
      %v1080 = vmul.f32 %v1077, %v1078
      %v1081 = vsub.f32 %v1059, %v1079
      %v1082 = vsub.f32 %v1060, %v1080
      %v1083 = vmul.f32 %v1081, %v1081
      %v1084 = vmul.f32 %v1082, %v1082
      %v1085 = vsel %vm1071, %v1083, 0.0
      %1086 = vadd.xlane.f32.xlu0 %v1085
      %v1087 = vpop.xlane.xlu0 %1086
      %v1088 = vsel %vm1071, %v1084, 0.0
      %1089 = vadd.xlane.f32.xlu0 %v1088
      %v1090 = vpop.xlane.xlu0 %1089
      %v1091 = vmul.f32 %v1087, %v1078
      %v1092 = vmul.f32 %v1090, %v1078
      %v1093 = vadd.f32 %v1091, 1e-05
      %v1094 = vadd.f32 %v1092, 1e-05
      %v1095 = vrsqrt.pop %v1093
      %v1096 = vrsqrt.pop %v1094
      %v1097 = vmul.f32 %v1081, %v1095
      %v1098 = vmul.f32 %v1082, %v1096
      %v1100 = vlaneseq
      %v1101 = vshrl.u32 %v1100, 7
      %v1102 = vsub.s32 0, %v1101
      %v1103 = vrot.slane %v1069, %v1102
      %v1105 = vmul.f32 %v1097, %v1103
      %v1106 = vmul.f32 %v1098, %v1103
      %v1108 = vlaneseq
      %v1109 = vshrl.u32 %v1108, 7
      %v1110 = vsub.s32 0, %v1109
      %v1111 = vrot.slane %v1070, %v1110
      %v1113 = vadd.f32 %v1105, %v1111
      %v1114 = vadd.f32 %v1106, %v1111
      %v1115 = vmul.f32 %v1067, %v1067
      %v1116 = vmul.f32 %v1068, %v1068
      %1119 = vrot.lane.b32.xlu0 %v1115, 112
      %v1120 = vpop.permute.xlu0 %1119
      %1121 = vrot.lane.b32.xlu0 %v1116, 112
      %v1122 = vpop.permute.xlu0 %1121
      %v1125 = vadd.f32 %v1115, %v1120
      %v1126 = vadd.f32 %v1116, %v1122
      %1127 = vrot.lane.b32.xlu0 %v1115, 96
      %v1128 = vpop.permute.xlu0 %1127
      %1129 = vrot.lane.b32.xlu0 %v1116, 96
      %v1130 = vpop.permute.xlu0 %1129
      %v1133 = vadd.f32 %v1125, %v1128
      %v1134 = vadd.f32 %v1126, %v1130
      %v1135 = vmax.f32 %v1133, 1e-08
      %v1136 = vmax.f32 %v1134, 1e-08
      %vm1137 = vcmask 130048
      %v1138 = vsel %vm1137, %v1135, 0.0
      %1139 = vadd.xlane.f32.xlu0 %v1138
      %v1140 = vpop.xlane.xlu0 %1139
      %v1141 = vsel %vm1137, %v1136, 0.0
      %1142 = vadd.xlane.f32.xlu0 %v1141
      %v1143 = vpop.xlane.xlu0 %1142
      %v1144 = vrcp.pop 16.0
      %v1145 = vmul.f32 %v1140, %v1144
      %v1146 = vmul.f32 %v1143, %v1144
      %v1147 = vrsqrt.pop %v1145
      %v1148 = vrsqrt.pop %v1146
      %v1149 = vmul.f32 %v1067, %v1147
      %v1150 = vmul.f32 %v1068, %v1148
      %v1151 = vpack.c.bf16 %v1150, %v1149
      %v1158 = vunpack.c.l.b16 %v844
      %v1159 = vunpack.c.l.b16 %v845
      %v1160 = vunpack.c.l.b16 %v846
      %v1161 = vunpack.c.l.b16 %v847
      %v1162 = vunpack.c.l.b16 %v848
      %v1163 = vunpack.c.l.b16 %v849
      %v1164 = vpack.c.b16 %v1159, %v1158
      %v1165 = vpack.c.b16 %v1161, %v1160
      %v1166 = vpack.c.b16 %v1163, %v1162
      %vm1170 = vcmask 392192
      %v1172 = vsel %vm1170, %v1151, 0
      %1174 = vmatprep.subr.bf16.mxu0 0
      %1175 = vmatpush1.bf16.msra.mxu0 %v1164
      %1176 = vmatprep.subr.bf16.mxu0 0
      %1177 = vmatpush1.bf16.msra.mxu0 %v1165
      %1178 = vmatprep.subr.bf16.mxu0 0
      %1179 = vmatpush1.bf16.msra.mxu0 %v1166
      %1180 = vmatprep.subr.bf16.mxu0 0
      %1181 = vmatpush1.bf16.msra.mxu0 0
      %1182 = vmatprep.subr.bf16.mxu0 0
      %1183 = vmatpush1.bf16.msra.mxu0 0
      %1184 = vmatprep.subr.bf16.mxu0 0
      %1185 = vmatpush1.bf16.msra.mxu0 0
      %1186 = vmatprep.subr.bf16.mxu0 0
      %1187 = vmatpush1.bf16.msra.mxu0 0
      %1188 = vmatprep.subr.bf16.mxu0 0
      %1189 = vmatpush1.bf16.msra.mxu0 0
      %1190 = vmatprep.subr.bf16.mxu0 0
      %1191 = vmatpush1.bf16.msra.mxu0 0
      %1192 = vmatprep.subr.bf16.mxu0 0
      %1193 = vmatpush1.bf16.msra.mxu0 0
      %1194 = vmatprep.subr.bf16.mxu0 0
      %1195 = vmatpush1.bf16.msra.mxu0 0
      %1196 = vmatprep.subr.bf16.mxu0 0
      %1197 = vmatpush1.bf16.msra.mxu0 0
      %1198 = vmatprep.subr.bf16.mxu0 0
      %1199 = vmatpush1.bf16.msra.mxu0 0
      %1200 = vmatprep.subr.bf16.mxu0 0
      %1201 = vmatpush1.bf16.msra.mxu0 0
      %1202 = vmatprep.subr.bf16.mxu0 0
      %1203 = vmatpush1.bf16.msra.mxu0 0
      %1204 = vmatprep.subr.bf16.mxu0 0
      %1205 = vmatpush1.bf16.msra.mxu0 0
      %1206 = vmatprep.mubr.bf16.mxu0 0
      %1207 = vmatmul.mubr.bf16.gmra.mrb[0].mxu0 %v1172
      %v1208 = vpop.f32.mrb[0].mxu0
      %v1209 = vadd.f32 0.0, %v1208
      %v1210 = vpop.f32.mrb[0].mxu0
      %v1211 = vpop.f32.mrb[0].mxu0
      %v1212 = vadd.f32 0.0, %v1211
      %v1213 = vpop.f32.mrb[0].mxu0
      %1214 = vdwg.mxu0
      %v1215 = vmul.f32 %v1209, %v1209
      %v1216 = vmul.f32 %v1212, %v1212
      %1219 = vrot.lane.b32.xlu0 %v1215, 96
      %v1220 = vpop.permute.xlu0 %1219
      %1221 = vrot.lane.b32.xlu0 %v1216, 96
      %v1222 = vpop.permute.xlu0 %1221
      %v1225 = vadd.f32 %v1215, %v1220
      %v1226 = vadd.f32 %v1216, %v1222
      %1227 = vrot.lane.b32.xlu0 %v1215, 64
      %v1228 = vpop.permute.xlu0 %1227
      %1229 = vrot.lane.b32.xlu0 %v1216, 64
      %v1230 = vpop.permute.xlu0 %1229
      %v1233 = vadd.f32 %v1225, %v1228
      %v1234 = vadd.f32 %v1226, %v1230
      %v1235 = vmax.f32 %v1233, 1e-08
      %v1236 = vmax.f32 %v1234, 1e-08
      %v1237 = vrsqrt.pop %v1235
      %v1238 = vmul.f32 %v1235, %v1237
      %vm1239 = vcmp.eq.f32.partialorder %v1235, inf
      %v1240 = vsel %vm1239, %v1235, %v1238
      %vm1241 = vcmp.eq.f32.partialorder %v1235, 0.0
      %v1242 = vand.u32 %v1235, 2147483648
      %v1243 = vsel %vm1241, %v1242, %v1240
      %v1244 = vrsqrt.pop %v1236
      %v1245 = vmul.f32 %v1236, %v1244
      %vm1246 = vcmp.eq.f32.partialorder %v1236, inf
      %v1247 = vsel %vm1246, %v1236, %v1245
      %vm1248 = vcmp.eq.f32.partialorder %v1236, 0.0
      %v1249 = vand.u32 %v1236, 2147483648
      %v1250 = vsel %vm1248, %v1249, %v1247
      %v1251 = vpack.c.bf16 %v1114, %v1113
      %v1252 = vpack.c.bf16 %v1250, %v1243
      %v1261 = vunpack.c.l.b16 %v876
      %v1262 = vunpack.c.h.b16 %v876
      %v1263 = vunpack.c.l.b16 %v877
      %v1264 = vunpack.c.h.b16 %v877
      %v1265 = vunpack.c.l.b16 %v878
      %v1266 = vunpack.c.h.b16 %v878
      %v1267 = vunpack.c.l.b16 %v879
      %v1268 = vunpack.c.h.b16 %v879
      %v1269 = vunpack.c.l.b16 %v880
      %v1270 = vunpack.c.h.b16 %v880
      %v1271 = vunpack.c.l.b16 %v881
      %v1272 = vunpack.c.h.b16 %v881
      %v1273 = vunpack.c.l.b16 %v882
      %v1274 = vunpack.c.h.b16 %v882
      %v1275 = vunpack.c.l.b16 %v883
      %v1276 = vunpack.c.h.b16 %v883
      %v1277 = vpack.c.b16 %v1265, %v1261
      %v1278 = vpack.c.b16 %v1266, %v1262
      %v1279 = vpack.c.b16 %v1267, %v1263
      %v1280 = vpack.c.b16 %v1268, %v1264
      %v1281 = vpack.c.b16 %v1273, %v1269
      %v1282 = vpack.c.b16 %v1274, %v1270
      %v1283 = vpack.c.b16 %v1275, %v1271
      %v1284 = vpack.c.b16 %v1276, %v1272
      %vm1293 = vcmask 261120
      %v1295 = vsel %vm1293, %v1252, 0
      %1297 = vmatprep.subr.bf16.mxu0 %v1278
      %1298 = vmatpush1.bf16.msra.mxu0 %v1277
      %1299 = vmatprep.subr.bf16.mxu0 %v1282
      %1300 = vmatpush1.bf16.msra.mxu0 %v1281
      %1301 = vmatprep.subr.bf16.mxu0 0
      %1302 = vmatpush1.bf16.msra.mxu0 0
      %1303 = vmatprep.subr.bf16.mxu0 0
      %1304 = vmatpush1.bf16.msra.mxu0 0
      %1305 = vmatprep.subr.bf16.mxu0 0
      %1306 = vmatpush1.bf16.msra.mxu0 0
      %1307 = vmatprep.subr.bf16.mxu0 0
      %1308 = vmatpush1.bf16.msra.mxu0 0
      %1309 = vmatprep.subr.bf16.mxu0 0
      %1310 = vmatpush1.bf16.msra.mxu0 0
      %1311 = vmatprep.subr.bf16.mxu0 0
      %1312 = vmatpush1.bf16.msra.mxu0 0
      %1313 = vmatprep.subr.bf16.mxu0 0
      %1314 = vmatpush1.bf16.msra.mxu0 0
      %1315 = vmatprep.subr.bf16.mxu0 0
      %1316 = vmatpush1.bf16.msra.mxu0 0
      %1317 = vmatprep.subr.bf16.mxu0 0
      %1318 = vmatpush1.bf16.msra.mxu0 0
      %1319 = vmatprep.subr.bf16.mxu0 0
      %1320 = vmatpush1.bf16.msra.mxu0 0
      %1321 = vmatprep.subr.bf16.mxu0 0
      %1322 = vmatpush1.bf16.msra.mxu0 0
      %1323 = vmatprep.subr.bf16.mxu0 0
      %1324 = vmatpush1.bf16.msra.mxu0 0
      %1325 = vmatprep.subr.bf16.mxu0 0
      %1326 = vmatpush1.bf16.msra.mxu0 0
      %1327 = vmatprep.subr.bf16.mxu0 0
      %1328 = vmatpush1.bf16.msra.mxu0 0
      %1329 = vmatprep.mubr.bf16.mxu0 0
      %1330 = vmatmul.mubr.bf16.gmra.mrb[0].mxu0 %v1295
      %v1331 = vpop.f32.mrb[0].mxu0
      %v1332 = vadd.f32 0.0, %v1331
      %v1333 = vpop.f32.mrb[0].mxu0
      %v1334 = vadd.f32 0.0, %v1333
      %v1335 = vpop.f32.mrb[0].mxu0
      %v1336 = vadd.f32 0.0, %v1335
      %v1337 = vpop.f32.mrb[0].mxu0
      %v1338 = vadd.f32 0.0, %v1337
      %1339 = vdwg.mxu0
      %1340 = vmatprep.subr.bf16.mxu0 %v1280
      %1341 = vmatpush1.bf16.msra.mxu0 %v1279
      %1342 = vmatprep.subr.bf16.mxu0 %v1284
      %1343 = vmatpush1.bf16.msra.mxu0 %v1283
      %1344 = vmatprep.subr.bf16.mxu0 0
      %1345 = vmatpush1.bf16.msra.mxu0 0
      %1346 = vmatprep.subr.bf16.mxu0 0
      %1347 = vmatpush1.bf16.msra.mxu0 0
      %1348 = vmatprep.subr.bf16.mxu0 0
      %1349 = vmatpush1.bf16.msra.mxu0 0
      %1350 = vmatprep.subr.bf16.mxu0 0
      %1351 = vmatpush1.bf16.msra.mxu0 0
      %1352 = vmatprep.subr.bf16.mxu0 0
      %1353 = vmatpush1.bf16.msra.mxu0 0
      %1354 = vmatprep.subr.bf16.mxu0 0
      %1355 = vmatpush1.bf16.msra.mxu0 0
      %1356 = vmatprep.subr.bf16.mxu0 0
      %1357 = vmatpush1.bf16.msra.mxu0 0
      %1358 = vmatprep.subr.bf16.mxu0 0
      %1359 = vmatpush1.bf16.msra.mxu0 0
      %1360 = vmatprep.subr.bf16.mxu0 0
      %1361 = vmatpush1.bf16.msra.mxu0 0
      %1362 = vmatprep.subr.bf16.mxu0 0
      %1363 = vmatpush1.bf16.msra.mxu0 0
      %1364 = vmatprep.subr.bf16.mxu0 0
      %1365 = vmatpush1.bf16.msra.mxu0 0
      %1366 = vmatprep.subr.bf16.mxu0 0
      %1367 = vmatpush1.bf16.msra.mxu0 0
      %1368 = vmatprep.subr.bf16.mxu0 0
      %1369 = vmatpush1.bf16.msra.mxu0 0
      %1370 = vmatprep.subr.bf16.mxu0 0
      %1371 = vmatpush1.bf16.msra.mxu0 0
      %1372 = vmatprep.mubr.bf16.mxu0 0
      %1373 = vmatmul.mubr.bf16.gmra.mrb[0].mxu0 %v1295
      %v1374 = vpop.f32.mrb[0].mxu0
      %v1375 = vadd.f32 0.0, %v1374
      %v1376 = vpop.f32.mrb[0].mxu0
      %v1377 = vadd.f32 0.0, %v1376
      %v1378 = vpop.f32.mrb[0].mxu0
      %v1379 = vadd.f32 0.0, %v1378
      %v1380 = vpop.f32.mrb[0].mxu0
      %v1381 = vadd.f32 0.0, %v1380
      %1382 = vdwg.mxu0
      %v1409 = vunpack.c.l.b16 %v850
      %v1410 = vunpack.c.h.b16 %v850
      %v1411 = vunpack.c.l.b16 %v851
      %v1412 = vunpack.c.h.b16 %v851
      %v1413 = vunpack.c.l.b16 %v852
      %v1414 = vunpack.c.h.b16 %v852
      %v1415 = vunpack.c.l.b16 %v853
      %v1416 = vunpack.c.h.b16 %v853
      %v1417 = vunpack.c.l.b16 %v854
      %v1418 = vunpack.c.h.b16 %v854
      %v1419 = vunpack.c.l.b16 %v855
      %v1420 = vunpack.c.h.b16 %v855
      %v1421 = vunpack.c.l.b16 %v856
      %v1422 = vunpack.c.h.b16 %v856
      %v1423 = vunpack.c.l.b16 %v857
      %v1424 = vunpack.c.h.b16 %v857
      %v1425 = vunpack.c.l.b16 %v858
      %v1426 = vunpack.c.h.b16 %v858
      %v1427 = vunpack.c.l.b16 %v859
      %v1428 = vunpack.c.h.b16 %v859
      %v1429 = vunpack.c.l.b16 %v860
      %v1430 = vunpack.c.h.b16 %v860
      %v1431 = vunpack.c.l.b16 %v861
      %v1432 = vunpack.c.h.b16 %v861
      %v1433 = vunpack.c.l.b16 %v862
      %v1434 = vunpack.c.h.b16 %v862
      %v1435 = vunpack.c.l.b16 %v863
      %v1436 = vunpack.c.h.b16 %v863
      %v1437 = vunpack.c.l.b16 %v864
      %v1438 = vunpack.c.h.b16 %v864
      %v1439 = vunpack.c.l.b16 %v865
      %v1440 = vunpack.c.h.b16 %v865
      %v1441 = vunpack.c.l.b16 %v866
      %v1442 = vunpack.c.h.b16 %v866
      %v1443 = vunpack.c.l.b16 %v867
      %v1444 = vunpack.c.h.b16 %v867
      %v1445 = vunpack.c.l.b16 %v868
      %v1446 = vunpack.c.h.b16 %v868
      %v1447 = vunpack.c.l.b16 %v869
      %v1448 = vunpack.c.h.b16 %v869
      %v1449 = vunpack.c.l.b16 %v870
      %v1450 = vunpack.c.h.b16 %v870
      %v1451 = vunpack.c.l.b16 %v871
      %v1452 = vunpack.c.h.b16 %v871
      %v1453 = vunpack.c.l.b16 %v872
      %v1454 = vunpack.c.h.b16 %v872
      %v1455 = vunpack.c.l.b16 %v873
      %v1456 = vunpack.c.h.b16 %v873
      %v1457 = vunpack.c.l.b16 %v874
      %v1458 = vunpack.c.h.b16 %v874
      %v1459 = vunpack.c.l.b16 %v875
      %v1460 = vunpack.c.h.b16 %v875
      %v1461 = vpack.c.b16 %v1413, %v1409
      %v1462 = vpack.c.b16 %v1414, %v1410
      %v1463 = vpack.c.b16 %v1415, %v1411
      %v1464 = vpack.c.b16 %v1416, %v1412
      %v1465 = vpack.c.b16 %v1421, %v1417
      %v1466 = vpack.c.b16 %v1422, %v1418
      %v1467 = vpack.c.b16 %v1423, %v1419
      %v1468 = vpack.c.b16 %v1424, %v1420
      %v1469 = vpack.c.b16 %v1429, %v1425
      %v1470 = vpack.c.b16 %v1430, %v1426
      %v1471 = vpack.c.b16 %v1431, %v1427
      %v1472 = vpack.c.b16 %v1432, %v1428
      %v1473 = vpack.c.b16 %v1437, %v1433
      %v1474 = vpack.c.b16 %v1438, %v1434
      %v1475 = vpack.c.b16 %v1439, %v1435
      %v1476 = vpack.c.b16 %v1440, %v1436
      %v1477 = vpack.c.b16 %v1445, %v1441
      %v1478 = vpack.c.b16 %v1446, %v1442
      %v1479 = vpack.c.b16 %v1447, %v1443
      %v1480 = vpack.c.b16 %v1448, %v1444
      %v1481 = vpack.c.b16 %v1453, %v1449
      %v1482 = vpack.c.b16 %v1454, %v1450
      %v1483 = vpack.c.b16 %v1455, %v1451
      %v1484 = vpack.c.b16 %v1456, %v1452
      %v1485 = vpack.c.b16 %v1457, %v1457
      %v1486 = vpack.c.b16 %v1458, %v1458
      %v1487 = vpack.c.b16 %v1459, %v1459
      %v1488 = vpack.c.b16 %v1460, %v1460
      %v1514 = vsel %vm1071, %v1251, 0
      %vm1516 = vcmask 1041408
      %v1518 = vsel %vm1516, %v1485, 0
      %v1521 = vsel %vm1516, %v1486, 0
      %v1524 = vsel %vm1516, %v1487, 0
      %v1527 = vsel %vm1516, %v1488, 0
      %1529 = vmatprep.subr.bf16.mxu0 %v1462
      %1530 = vmatpush1.bf16.msra.mxu0 %v1461
      %1531 = vmatprep.subr.bf16.mxu0 %v1466
      %1532 = vmatpush1.bf16.msra.mxu0 %v1465
      %1533 = vmatprep.subr.bf16.mxu0 %v1470
      %1534 = vmatpush1.bf16.msra.mxu0 %v1469
      %1535 = vmatprep.subr.bf16.mxu0 %v1474
      %1536 = vmatpush1.bf16.msra.mxu0 %v1473
      %1537 = vmatprep.subr.bf16.mxu0 %v1478
      %1538 = vmatpush1.bf16.msra.mxu0 %v1477
      %1539 = vmatprep.subr.bf16.mxu0 %v1482
      %1540 = vmatpush1.bf16.msra.mxu0 %v1481
      %1541 = vmatprep.subr.bf16.mxu0 %v1521
      %1542 = vmatpush1.bf16.msra.mxu0 %v1518
      %1543 = vmatprep.subr.bf16.mxu0 0
      %1544 = vmatpush1.bf16.msra.mxu0 0
      %1545 = vmatprep.subr.bf16.mxu0 0
      %1546 = vmatpush1.bf16.msra.mxu0 0
      %1547 = vmatprep.subr.bf16.mxu0 0
      %1548 = vmatpush1.bf16.msra.mxu0 0
      %1549 = vmatprep.subr.bf16.mxu0 0
      %1550 = vmatpush1.bf16.msra.mxu0 0
      %1551 = vmatprep.subr.bf16.mxu0 0
      %1552 = vmatpush1.bf16.msra.mxu0 0
      %1553 = vmatprep.subr.bf16.mxu0 0
      %1554 = vmatpush1.bf16.msra.mxu0 0
      %1555 = vmatprep.subr.bf16.mxu0 0
      %1556 = vmatpush1.bf16.msra.mxu0 0
      %1557 = vmatprep.subr.bf16.mxu0 0
      %1558 = vmatpush1.bf16.msra.mxu0 0
      %1559 = vmatprep.subr.bf16.mxu0 0
      %1560 = vmatpush1.bf16.msra.mxu0 0
      %1561 = vmatprep.mubr.bf16.mxu0 0
      %1562 = vmatmul.mubr.bf16.gmra.mrb[0].mxu0 %v1514
      %v1563 = vpop.f32.mrb[0].mxu0
      %v1564 = vadd.f32 %v1332, %v1563
      %v1565 = vpop.f32.mrb[0].mxu0
      %v1566 = vadd.f32 %v1334, %v1565
      %v1567 = vpop.f32.mrb[0].mxu0
      %v1568 = vadd.f32 %v1336, %v1567
      %v1569 = vpop.f32.mrb[0].mxu0
      %v1570 = vadd.f32 %v1338, %v1569
      %1571 = vdwg.mxu0
      %1572 = vmatprep.subr.bf16.mxu0 %v1464
      %1573 = vmatpush1.bf16.msra.mxu0 %v1463
      %1574 = vmatprep.subr.bf16.mxu0 %v1468
      %1575 = vmatpush1.bf16.msra.mxu0 %v1467
      %1576 = vmatprep.subr.bf16.mxu0 %v1472
      %1577 = vmatpush1.bf16.msra.mxu0 %v1471
      %1578 = vmatprep.subr.bf16.mxu0 %v1476
      %1579 = vmatpush1.bf16.msra.mxu0 %v1475
      %1580 = vmatprep.subr.bf16.mxu0 %v1480
      %1581 = vmatpush1.bf16.msra.mxu0 %v1479
      %1582 = vmatprep.subr.bf16.mxu0 %v1484
      %1583 = vmatpush1.bf16.msra.mxu0 %v1483
      %1584 = vmatprep.subr.bf16.mxu0 %v1527
      %1585 = vmatpush1.bf16.msra.mxu0 %v1524
      %1586 = vmatprep.subr.bf16.mxu0 0
      %1587 = vmatpush1.bf16.msra.mxu0 0
      %1588 = vmatprep.subr.bf16.mxu0 0
      %1589 = vmatpush1.bf16.msra.mxu0 0
      %1590 = vmatprep.subr.bf16.mxu0 0
      %1591 = vmatpush1.bf16.msra.mxu0 0
      %1592 = vmatprep.subr.bf16.mxu0 0
      %1593 = vmatpush1.bf16.msra.mxu0 0
      %1594 = vmatprep.subr.bf16.mxu0 0
      %1595 = vmatpush1.bf16.msra.mxu0 0
      %1596 = vmatprep.subr.bf16.mxu0 0
      %1597 = vmatpush1.bf16.msra.mxu0 0
      %1598 = vmatprep.subr.bf16.mxu0 0
      %1599 = vmatpush1.bf16.msra.mxu0 0
      %1600 = vmatprep.subr.bf16.mxu0 0
      %1601 = vmatpush1.bf16.msra.mxu0 0
      %1602 = vmatprep.subr.bf16.mxu0 0
      %1603 = vmatpush1.bf16.msra.mxu0 0
      %1604 = vmatprep.mubr.bf16.mxu0 0
      %1605 = vmatmul.mubr.bf16.gmra.mrb[0].mxu0 %v1514
      %v1606 = vpop.f32.mrb[0].mxu0
      %v1607 = vadd.f32 %v1375, %v1606
      %v1608 = vpop.f32.mrb[0].mxu0
      %v1609 = vadd.f32 %v1377, %v1608
      %v1610 = vpop.f32.mrb[0].mxu0
      %v1611 = vadd.f32 %v1379, %v1610
      %v1612 = vpop.f32.mrb[0].mxu0
      %v1613 = vadd.f32 %v1381, %v1612
      %1614 = vdwg.mxu0
      %v1616 = vlaneseq
      %v1617 = vshrl.u32 %v1616, 7
      %v1618 = vsub.s32 0, %v1617
      %v1619 = vrot.slane %v884, %v1618
      %v1620 = vlaneseq
      %v1621 = vshrl.u32 %v1620, 7
      %v1622 = vsub.s32 1, %v1621
      %v1623 = vrot.slane %v884, %v1622
      %v1624 = vlaneseq
      %v1625 = vshrl.u32 %v1624, 7
      %v1626 = vsub.s32 2, %v1625
      %v1627 = vrot.slane %v884, %v1626
      %v1628 = vlaneseq
      %v1629 = vshrl.u32 %v1628, 7
      %v1630 = vsub.s32 3, %v1629
      %v1631 = vrot.slane %v884, %v1630
      %v1636 = vadd.f32 %v1564, %v1619
      %v1637 = vadd.f32 %v1566, %v1623
      %v1638 = vadd.f32 %v1607, %v1627
      %v1639 = vadd.f32 %v1609, %v1631
      %v1640 = vadd.f32 %v1568, %v1619
      %v1641 = vadd.f32 %v1570, %v1623
      %v1642 = vadd.f32 %v1611, %v1627
      %v1643 = vadd.f32 %v1613, %v1631
      %v1644 = vpack.c.bf16 %v1212, %v1209
      %v1657 = vunpack.c.l.b16 %v885
      %v1658 = vunpack.c.l.b16 %v886
      %v1659 = vunpack.c.l.b16 %v887
      %v1660 = vunpack.c.l.b16 %v888
      %v1661 = vunpack.c.l.b16 %v889
      %v1662 = vunpack.c.l.b16 %v890
      %v1663 = vunpack.c.l.b16 %v891
      %v1664 = vunpack.c.l.b16 %v892
      %v1665 = vunpack.c.l.b16 %v893
      %v1666 = vunpack.c.l.b16 %v894
      %v1667 = vunpack.c.l.b16 %v895
      %v1668 = vunpack.c.l.b16 %v896
      %v1669 = vpack.c.b16 %v1658, %v1657
      %v1670 = vpack.c.b16 %v1660, %v1659
      %v1671 = vpack.c.b16 %v1662, %v1661
      %v1672 = vpack.c.b16 %v1664, %v1663
      %v1673 = vpack.c.b16 %v1666, %v1665
      %v1674 = vpack.c.b16 %v1668, %v1667
      %vm1681 = vcmask 785408
      %v1683 = vsel %vm1681, %v1644, 0
      %1685 = vmatprep.subr.bf16.mxu0 0
      %1686 = vmatpush1.bf16.msra.mxu0 %v1669
      %1687 = vmatprep.subr.bf16.mxu0 0
      %1688 = vmatpush1.bf16.msra.mxu0 %v1670
      %1689 = vmatprep.subr.bf16.mxu0 0
      %1690 = vmatpush1.bf16.msra.mxu0 %v1671
      %1691 = vmatprep.subr.bf16.mxu0 0
      %1692 = vmatpush1.bf16.msra.mxu0 %v1672
      %1693 = vmatprep.subr.bf16.mxu0 0
      %1694 = vmatpush1.bf16.msra.mxu0 %v1673
      %1695 = vmatprep.subr.bf16.mxu0 0
      %1696 = vmatpush1.bf16.msra.mxu0 %v1674
      %1697 = vmatprep.subr.bf16.mxu0 0
      %1698 = vmatpush1.bf16.msra.mxu0 0
      %1699 = vmatprep.subr.bf16.mxu0 0
      %1700 = vmatpush1.bf16.msra.mxu0 0
      %1701 = vmatprep.subr.bf16.mxu0 0
      %1702 = vmatpush1.bf16.msra.mxu0 0
      %1703 = vmatprep.subr.bf16.mxu0 0
      %1704 = vmatpush1.bf16.msra.mxu0 0
      %1705 = vmatprep.subr.bf16.mxu0 0
      %1706 = vmatpush1.bf16.msra.mxu0 0
      %1707 = vmatprep.subr.bf16.mxu0 0
      %1708 = vmatpush1.bf16.msra.mxu0 0
      %1709 = vmatprep.subr.bf16.mxu0 0
      %1710 = vmatpush1.bf16.msra.mxu0 0
      %1711 = vmatprep.subr.bf16.mxu0 0
      %1712 = vmatpush1.bf16.msra.mxu0 0
      %1713 = vmatprep.subr.bf16.mxu0 0
      %1714 = vmatpush1.bf16.msra.mxu0 0
      %1715 = vmatprep.subr.bf16.mxu0 0
      %1716 = vmatpush1.bf16.msra.mxu0 0
      %1717 = vmatprep.mubr.bf16.mxu0 0
      %1718 = vmatmul.mubr.bf16.gmra.mrb[0].mxu0 %v1683
      %v1719 = vpop.f32.mrb[0].mxu0
      %v1720 = vadd.f32 0.0, %v1719
      %v1721 = vpop.f32.mrb[0].mxu0
      %v1722 = vpop.f32.mrb[0].mxu0
      %v1723 = vadd.f32 0.0, %v1722
      %v1724 = vpop.f32.mrb[0].mxu0
      %1725 = vdwg.mxu0
      %v1726 = vpack.c.bf16 %v1640, %v1636
      %v1727 = vpack.c.bf16 %v1641, %v1637
      %v1728 = vpack.c.bf16 %v1642, %v1638
      %v1729 = vpack.c.bf16 %v1643, %v1639
      %v1731 = vlaneseq
      %v1732 = vshrl.u32 %v1731, 7
      %v1733 = vsub.s32 0, %v1732
      %v1734 = vrot.slane %v947, %v1733
      %v1786 = vunpack.c.l.b16 %v897
      %v1787 = vunpack.c.l.b16 %v898
      %v1788 = vunpack.c.l.b16 %v899
      %v1789 = vunpack.c.l.b16 %v900
      %v1790 = vunpack.c.l.b16 %v901
      %v1791 = vunpack.c.l.b16 %v902
      %v1792 = vunpack.c.l.b16 %v903
      %v1793 = vunpack.c.l.b16 %v904
      %v1794 = vunpack.c.l.b16 %v905
      %v1795 = vunpack.c.l.b16 %v906
      %v1796 = vunpack.c.l.b16 %v907
      %v1797 = vunpack.c.l.b16 %v908
      %v1798 = vunpack.c.l.b16 %v909
      %v1799 = vunpack.c.l.b16 %v910
      %v1800 = vunpack.c.l.b16 %v911
      %v1801 = vunpack.c.l.b16 %v912
      %v1802 = vunpack.c.l.b16 %v913
      %v1803 = vunpack.c.l.b16 %v914
      %v1804 = vunpack.c.l.b16 %v915
      %v1805 = vunpack.c.l.b16 %v916
      %v1806 = vunpack.c.l.b16 %v917
      %v1807 = vunpack.c.l.b16 %v918
      %v1808 = vunpack.c.l.b16 %v919
      %v1809 = vunpack.c.l.b16 %v920
      %v1810 = vunpack.c.l.b16 %v921
      %v1811 = vunpack.c.l.b16 %v922
      %v1812 = vunpack.c.l.b16 %v923
      %v1813 = vunpack.c.l.b16 %v924
      %v1814 = vunpack.c.l.b16 %v925
      %v1815 = vunpack.c.l.b16 %v926
      %v1816 = vunpack.c.l.b16 %v927
      %v1817 = vunpack.c.l.b16 %v928
      %v1818 = vunpack.c.l.b16 %v929
      %v1819 = vunpack.c.l.b16 %v930
      %v1820 = vunpack.c.l.b16 %v931
      %v1821 = vunpack.c.l.b16 %v932
      %v1822 = vunpack.c.l.b16 %v933
      %v1823 = vunpack.c.l.b16 %v934
      %v1824 = vunpack.c.l.b16 %v935
      %v1825 = vunpack.c.l.b16 %v936
      %v1826 = vunpack.c.l.b16 %v937
      %v1827 = vunpack.c.l.b16 %v938
      %v1828 = vunpack.c.l.b16 %v939
      %v1829 = vunpack.c.l.b16 %v940
      %v1830 = vunpack.c.l.b16 %v941
      %v1831 = vunpack.c.l.b16 %v942
      %v1832 = vunpack.c.l.b16 %v943
      %v1833 = vunpack.c.l.b16 %v944
      %v1834 = vunpack.c.l.b16 %v945
      %v1835 = vunpack.c.l.b16 %v946
      %v1836 = vpack.c.b16 %v1787, %v1786
      %v1837 = vpack.c.b16 %v1789, %v1788
      %v1838 = vpack.c.b16 %v1791, %v1790
      %v1839 = vpack.c.b16 %v1793, %v1792
      %v1840 = vpack.c.b16 %v1795, %v1794
      %v1841 = vpack.c.b16 %v1797, %v1796
      %v1842 = vpack.c.b16 %v1799, %v1798
      %v1843 = vpack.c.b16 %v1801, %v1800
      %v1844 = vpack.c.b16 %v1803, %v1802
      %v1845 = vpack.c.b16 %v1805, %v1804
      %v1846 = vpack.c.b16 %v1807, %v1806
      %v1847 = vpack.c.b16 %v1809, %v1808
      %v1848 = vpack.c.b16 %v1811, %v1810
      %v1849 = vpack.c.b16 %v1813, %v1812
      %v1850 = vpack.c.b16 %v1815, %v1814
      %v1851 = vpack.c.b16 %v1817, %v1816
      %v1852 = vpack.c.b16 %v1819, %v1818
      %v1853 = vpack.c.b16 %v1821, %v1820
      %v1854 = vpack.c.b16 %v1823, %v1822
      %v1855 = vpack.c.b16 %v1825, %v1824
      %v1856 = vpack.c.b16 %v1827, %v1826
      %v1857 = vpack.c.b16 %v1829, %v1828
      %v1858 = vpack.c.b16 %v1831, %v1830
      %v1859 = vpack.c.b16 %v1833, %v1832
      %v1860 = vpack.c.b16 %v1835, %v1834
      %v1887 = vsel %vm1137, %v1729, 0
      %1889 = vmatprep.subr.bf16.mxu0 0
      %1890 = vmatpush1.bf16.msra.mxu0 %v1836
      %1891 = vmatprep.subr.bf16.mxu0 0
      %1892 = vmatpush1.bf16.msra.mxu0 %v1837
      %1893 = vmatprep.subr.bf16.mxu0 0
      %1894 = vmatpush1.bf16.msra.mxu0 %v1838
      %1895 = vmatprep.subr.bf16.mxu0 0
      %1896 = vmatpush1.bf16.msra.mxu0 %v1839
      %1897 = vmatprep.subr.bf16.mxu0 0
      %1898 = vmatpush1.bf16.msra.mxu0 %v1840
      %1899 = vmatprep.subr.bf16.mxu0 0
      %1900 = vmatpush1.bf16.msra.mxu0 %v1841
      %1901 = vmatprep.subr.bf16.mxu0 0
      %1902 = vmatpush1.bf16.msra.mxu0 %v1842
      %1903 = vmatprep.subr.bf16.mxu0 0
      %1904 = vmatpush1.bf16.msra.mxu0 %v1843
      %1905 = vmatprep.subr.bf16.mxu0 0
      %1906 = vmatpush1.bf16.msra.mxu0 %v1844
      %1907 = vmatprep.subr.bf16.mxu0 0
      %1908 = vmatpush1.bf16.msra.mxu0 %v1845
      %1909 = vmatprep.subr.bf16.mxu0 0
      %1910 = vmatpush1.bf16.msra.mxu0 %v1846
      %1911 = vmatprep.subr.bf16.mxu0 0
      %1912 = vmatpush1.bf16.msra.mxu0 %v1847
      %1913 = vmatprep.subr.bf16.mxu0 0
      %1914 = vmatpush1.bf16.msra.mxu0 %v1848
      %1915 = vmatprep.subr.bf16.mxu0 0
      %1916 = vmatpush1.bf16.msra.mxu0 %v1849
      %1917 = vmatprep.subr.bf16.mxu0 0
      %1918 = vmatpush1.bf16.msra.mxu0 %v1850
      %1919 = vmatprep.subr.bf16.mxu0 0
      %1920 = vmatpush1.bf16.msra.mxu0 %v1851
      %1921 = vmatprep.mubr.bf16.mxu0 %v1727
      %1922 = vmatmul.mubr.bf16.gmra.mrb[0].mxu0 %v1726
      %v1923 = vpop.f32.mrb[0].mxu0
      %v1924 = vadd.f32 %v1734, %v1923
      %v1925 = vpop.f32.mrb[0].mxu0
      %v1926 = vpop.f32.mrb[0].mxu0
      %v1927 = vadd.f32 %v1734, %v1926
      %v1928 = vpop.f32.mrb[0].mxu0
      %1929 = vdwg.mxu0
      %1930 = vmatprep.subr.bf16.mxu0 0
      %1931 = vmatpush1.bf16.msra.mxu0 %v1852
      %1932 = vmatprep.subr.bf16.mxu0 0
      %1933 = vmatpush1.bf16.msra.mxu0 %v1853
      %1934 = vmatprep.subr.bf16.mxu0 0
      %1935 = vmatpush1.bf16.msra.mxu0 %v1854
      %1936 = vmatprep.subr.bf16.mxu0 0
      %1937 = vmatpush1.bf16.msra.mxu0 %v1855
      %1938 = vmatprep.subr.bf16.mxu0 0
      %1939 = vmatpush1.bf16.msra.mxu0 %v1856
      %1940 = vmatprep.subr.bf16.mxu0 0
      %1941 = vmatpush1.bf16.msra.mxu0 %v1857
      %1942 = vmatprep.subr.bf16.mxu0 0
      %1943 = vmatpush1.bf16.msra.mxu0 %v1858
      %1944 = vmatprep.subr.bf16.mxu0 0
      %1945 = vmatpush1.bf16.msra.mxu0 %v1859
      %1946 = vmatprep.subr.bf16.mxu0 0
      %1947 = vmatpush1.bf16.msra.mxu0 %v1860
      %1948 = vmatprep.subr.bf16.mxu0 0
      %1949 = vmatpush1.bf16.msra.mxu0 0
      %1950 = vmatprep.subr.bf16.mxu0 0
      %1951 = vmatpush1.bf16.msra.mxu0 0
      %1952 = vmatprep.subr.bf16.mxu0 0
      %1953 = vmatpush1.bf16.msra.mxu0 0
      %1954 = vmatprep.subr.bf16.mxu0 0
      %1955 = vmatpush1.bf16.msra.mxu0 0
      %1956 = vmatprep.subr.bf16.mxu0 0
      %1957 = vmatpush1.bf16.msra.mxu0 0
      %1958 = vmatprep.subr.bf16.mxu0 0
      %1959 = vmatpush1.bf16.msra.mxu0 0
      %1960 = vmatprep.subr.bf16.mxu0 0
      %1961 = vmatpush1.bf16.msra.mxu0 0
      %1962 = vmatprep.mubr.bf16.mxu0 %v1887
      %1963 = vmatmul.mubr.bf16.gmra.mrb[0].mxu0 %v1728
      %v1964 = vpop.f32.mrb[0].mxu0
      %v1965 = vadd.f32 %v1924, %v1964
      %v1966 = vpop.f32.mrb[0].mxu0
      %v1967 = vpop.f32.mrb[0].mxu0
      %v1968 = vadd.f32 %v1927, %v1967
      %v1969 = vpop.f32.mrb[0].mxu0
      %1970 = vdwg.mxu0
      %v1971 = vxor.u32 %v1965, 2147483648
      %v1972 = vxor.u32 %v1968, 2147483648
      %v1973 = vmul.f32 %v1971, 1.442695
      %v1974 = vpow.pop %v1973
      %v1975 = vmul.f32 %v1972, 1.442695
      %v1976 = vpow.pop %v1975
      %v1977 = vadd.f32 %v1974, 1.0
      %v1978 = vadd.f32 %v1976, 1.0
      %v1979 = vrcp.pop %v1977
      %v1980 = vmul.f32 1.0, %v1979
      %v1981 = vrcp.pop %v1978
      %v1982 = vmul.f32 1.0, %v1981
      %1985 = vrot.lane.b32.xlu0 %v1980, 32
      %v1986 = vpop.permute.xlu0 %1985
      %1987 = vrot.lane.b32.xlu0 %v1982, 32
      %v1988 = vpop.permute.xlu0 %1987
      %1991 = vrot.lane.b32.xlu0 %v1980, 64
      %v1992 = vpop.permute.xlu0 %1991
      %1993 = vrot.lane.b32.xlu0 %v1982, 64
      %v1994 = vpop.permute.xlu0 %1993
      %v1997 = vsel %vm1293, %v1980, %v1986
      %v1998 = vsel %vm1293, %v1982, %v1988
      %vm1999 = vcmask 523264
      %v2000 = vsel %vm1999, %v1997, %v1992
      %v2001 = vsel %vm1999, %v1998, %v1994
      %v2002 = vmul.f32 %v1720, %v2000
      %v2003 = vmul.f32 %v1723, %v2001
      %v2004 = vmax.f32 %v1636, 0.0
      %v2005 = vmax.f32 %v1637, 0.0
      %v2006 = vmax.f32 %v1638, 0.0
      %v2007 = vmax.f32 %v1639, 0.0
      %v2008 = vmax.f32 %v1640, 0.0
      %v2009 = vmax.f32 %v1641, 0.0
      %v2010 = vmax.f32 %v1642, 0.0
      %v2011 = vmax.f32 %v1643, 0.0
      %v2012 = vpack.c.bf16 %v2003, %v2002
      %v2025 = vunpack.c.l.b16 %v948
      %v2026 = vunpack.c.l.b16 %v949
      %v2027 = vunpack.c.l.b16 %v950
      %v2028 = vunpack.c.l.b16 %v951
      %v2029 = vunpack.c.l.b16 %v952
      %v2030 = vunpack.c.l.b16 %v953
      %v2031 = vunpack.c.l.b16 %v954
      %v2032 = vunpack.c.l.b16 %v955
      %v2033 = vunpack.c.l.b16 %v956
      %v2034 = vunpack.c.l.b16 %v957
      %v2035 = vunpack.c.l.b16 %v958
      %v2036 = vunpack.c.l.b16 %v959
      %v2037 = vpack.c.b16 %v2026, %v2025
      %v2038 = vpack.c.b16 %v2028, %v2027
      %v2039 = vpack.c.b16 %v2030, %v2029
      %v2040 = vpack.c.b16 %v2032, %v2031
      %v2041 = vpack.c.b16 %v2034, %v2033
      %v2042 = vpack.c.b16 %v2036, %v2035
      %v2050 = vsel %vm1681, %v2012, 0
      %2052 = vmatprep.subr.bf16.mxu0 0
      %2053 = vmatpush1.bf16.msra.mxu0 %v2037
      %2054 = vmatprep.subr.bf16.mxu0 0
      %2055 = vmatpush1.bf16.msra.mxu0 %v2038
      %2056 = vmatprep.subr.bf16.mxu0 0
      %2057 = vmatpush1.bf16.msra.mxu0 %v2039
      %2058 = vmatprep.subr.bf16.mxu0 0
      %2059 = vmatpush1.bf16.msra.mxu0 %v2040
      %2060 = vmatprep.subr.bf16.mxu0 0
      %2061 = vmatpush1.bf16.msra.mxu0 %v2041
      %2062 = vmatprep.subr.bf16.mxu0 0
      %2063 = vmatpush1.bf16.msra.mxu0 %v2042
      %2064 = vmatprep.subr.bf16.mxu0 0
      %2065 = vmatpush1.bf16.msra.mxu0 0
      %2066 = vmatprep.subr.bf16.mxu0 0
      %2067 = vmatpush1.bf16.msra.mxu0 0
      %2068 = vmatprep.subr.bf16.mxu0 0
      %2069 = vmatpush1.bf16.msra.mxu0 0
      %2070 = vmatprep.subr.bf16.mxu0 0
      %2071 = vmatpush1.bf16.msra.mxu0 0
      %2072 = vmatprep.subr.bf16.mxu0 0
      %2073 = vmatpush1.bf16.msra.mxu0 0
      %2074 = vmatprep.subr.bf16.mxu0 0
      %2075 = vmatpush1.bf16.msra.mxu0 0
      %2076 = vmatprep.subr.bf16.mxu0 0
      %2077 = vmatpush1.bf16.msra.mxu0 0
      %2078 = vmatprep.subr.bf16.mxu0 0
      %2079 = vmatpush1.bf16.msra.mxu0 0
      %2080 = vmatprep.subr.bf16.mxu0 0
      %2081 = vmatpush1.bf16.msra.mxu0 0
      %2082 = vmatprep.subr.bf16.mxu0 0
      %2083 = vmatpush1.bf16.msra.mxu0 0
      %2084 = vmatprep.mubr.bf16.mxu0 0
      %2085 = vmatmul.mubr.bf16.gmra.mrb[0].mxu0 %v2050
      %v2086 = vpop.f32.mrb[0].mxu0
      %v2087 = vadd.f32 0.0, %v2086
      %v2088 = vpop.f32.mrb[0].mxu0
      %v2089 = vpop.f32.mrb[0].mxu0
      %v2090 = vadd.f32 0.0, %v2089
      %v2091 = vpop.f32.mrb[0].mxu0
      %2092 = vdwg.mxu0
      %v2093 = vmul.f32 %v2087, %v2087
      %v2094 = vmul.f32 %v2090, %v2090
      %2097 = vrot.lane.b32.xlu0 %v2093, 96
      %v2098 = vpop.permute.xlu0 %2097
      %2099 = vrot.lane.b32.xlu0 %v2094, 96
      %v2100 = vpop.permute.xlu0 %2099
      %v2103 = vadd.f32 %v2093, %v2098
      %v2104 = vadd.f32 %v2094, %v2100
      %2105 = vrot.lane.b32.xlu0 %v2093, 64
      %v2106 = vpop.permute.xlu0 %2105
      %2107 = vrot.lane.b32.xlu0 %v2094, 64
      %v2108 = vpop.permute.xlu0 %2107
      %v2111 = vadd.f32 %v2103, %v2106
      %v2112 = vadd.f32 %v2104, %v2108
      %v2113 = vmax.f32 %v2111, 1e-08
      %v2114 = vmax.f32 %v2112, 1e-08
      %v2115 = vrsqrt.pop %v2113
      %v2116 = vmul.f32 %v2113, %v2115
      %vm2117 = vcmp.eq.f32.partialorder %v2113, inf
      %v2118 = vsel %vm2117, %v2113, %v2116
      %vm2119 = vcmp.eq.f32.partialorder %v2113, 0.0
      %v2120 = vand.u32 %v2113, 2147483648
      %v2121 = vsel %vm2119, %v2120, %v2118
      %v2122 = vrsqrt.pop %v2114
      %v2123 = vmul.f32 %v2114, %v2122
      %vm2124 = vcmp.eq.f32.partialorder %v2114, inf
      %v2125 = vsel %vm2124, %v2114, %v2123
      %vm2126 = vcmp.eq.f32.partialorder %v2114, 0.0
      %v2127 = vand.u32 %v2114, 2147483648
      %v2128 = vsel %vm2126, %v2127, %v2125
      %v2129 = vpack.c.bf16 %v2008, %v2004
      %v2130 = vpack.c.bf16 %v2009, %v2005
      %v2131 = vpack.c.bf16 %v2010, %v2006
      %v2132 = vpack.c.bf16 %v2011, %v2007
      %v2133 = vpack.c.bf16 %v2128, %v2121
      %v2138 = vunpack.c.l.b16 %v1010
      %v2139 = vunpack.c.l.b16 %v1011
      %v2140 = vunpack.c.l.b16 %v1012
      %v2141 = vunpack.c.l.b16 %v1013
      %v2142 = vpack.c.b16 %v2139, %v2138
      %v2143 = vpack.c.b16 %v2141, %v2140
      %v2147 = vsel %vm1293, %v2133, 0
      %2149 = vmatprep.subr.bf16.mxu0 0
      %2150 = vmatpush1.bf16.msra.mxu0 %v2142
      %2151 = vmatprep.subr.bf16.mxu0 0
      %2152 = vmatpush1.bf16.msra.mxu0 %v2143
      %2153 = vmatprep.subr.bf16.mxu0 0
      %2154 = vmatpush1.bf16.msra.mxu0 0
      %2155 = vmatprep.subr.bf16.mxu0 0
      %2156 = vmatpush1.bf16.msra.mxu0 0
      %2157 = vmatprep.subr.bf16.mxu0 0
      %2158 = vmatpush1.bf16.msra.mxu0 0
      %2159 = vmatprep.subr.bf16.mxu0 0
      %2160 = vmatpush1.bf16.msra.mxu0 0
      %2161 = vmatprep.subr.bf16.mxu0 0
      %2162 = vmatpush1.bf16.msra.mxu0 0
      %2163 = vmatprep.subr.bf16.mxu0 0
      %2164 = vmatpush1.bf16.msra.mxu0 0
      %2165 = vmatprep.subr.bf16.mxu0 0
      %2166 = vmatpush1.bf16.msra.mxu0 0
      %2167 = vmatprep.subr.bf16.mxu0 0
      %2168 = vmatpush1.bf16.msra.mxu0 0
      %2169 = vmatprep.subr.bf16.mxu0 0
      %2170 = vmatpush1.bf16.msra.mxu0 0
      %2171 = vmatprep.subr.bf16.mxu0 0
      %2172 = vmatpush1.bf16.msra.mxu0 0
      %2173 = vmatprep.subr.bf16.mxu0 0
      %2174 = vmatpush1.bf16.msra.mxu0 0
      %2175 = vmatprep.subr.bf16.mxu0 0
      %2176 = vmatpush1.bf16.msra.mxu0 0
      %2177 = vmatprep.subr.bf16.mxu0 0
      %2178 = vmatpush1.bf16.msra.mxu0 0
      %2179 = vmatprep.subr.bf16.mxu0 0
      %2180 = vmatpush1.bf16.msra.mxu0 0
      %2181 = vmatprep.mubr.bf16.mxu0 0
      %2182 = vmatmul.mubr.bf16.gmra.mrb[0].mxu0 %v2147
      %v2183 = vpop.f32.mrb[0].mxu0
      %v2184 = vadd.f32 0.0, %v2183
      %v2185 = vpop.f32.mrb[0].mxu0
      %v2186 = vpop.f32.mrb[0].mxu0
      %v2187 = vadd.f32 0.0, %v2186
      %v2188 = vpop.f32.mrb[0].mxu0
      %2189 = vdwg.mxu0
      %v2240 = vunpack.c.l.b16 %v960
      %v2241 = vunpack.c.l.b16 %v961
      %v2242 = vunpack.c.l.b16 %v962
      %v2243 = vunpack.c.l.b16 %v963
      %v2244 = vunpack.c.l.b16 %v964
      %v2245 = vunpack.c.l.b16 %v965
      %v2246 = vunpack.c.l.b16 %v966
      %v2247 = vunpack.c.l.b16 %v967
      %v2248 = vunpack.c.l.b16 %v968
      %v2249 = vunpack.c.l.b16 %v969
      %v2250 = vunpack.c.l.b16 %v970
      %v2251 = vunpack.c.l.b16 %v971
      %v2252 = vunpack.c.l.b16 %v972
      %v2253 = vunpack.c.l.b16 %v973
      %v2254 = vunpack.c.l.b16 %v974
      %v2255 = vunpack.c.l.b16 %v975
      %v2256 = vunpack.c.l.b16 %v976
      %v2257 = vunpack.c.l.b16 %v977
      %v2258 = vunpack.c.l.b16 %v978
      %v2259 = vunpack.c.l.b16 %v979
      %v2260 = vunpack.c.l.b16 %v980
      %v2261 = vunpack.c.l.b16 %v981
      %v2262 = vunpack.c.l.b16 %v982
      %v2263 = vunpack.c.l.b16 %v983
      %v2264 = vunpack.c.l.b16 %v984
      %v2265 = vunpack.c.l.b16 %v985
      %v2266 = vunpack.c.l.b16 %v986
      %v2267 = vunpack.c.l.b16 %v987
      %v2268 = vunpack.c.l.b16 %v988
      %v2269 = vunpack.c.l.b16 %v989
      %v2270 = vunpack.c.l.b16 %v990
      %v2271 = vunpack.c.l.b16 %v991
      %v2272 = vunpack.c.l.b16 %v992
      %v2273 = vunpack.c.l.b16 %v993
      %v2274 = vunpack.c.l.b16 %v994
      %v2275 = vunpack.c.l.b16 %v995
      %v2276 = vunpack.c.l.b16 %v996
      %v2277 = vunpack.c.l.b16 %v997
      %v2278 = vunpack.c.l.b16 %v998
      %v2279 = vunpack.c.l.b16 %v999
      %v2280 = vunpack.c.l.b16 %v1000
      %v2281 = vunpack.c.l.b16 %v1001
      %v2282 = vunpack.c.l.b16 %v1002
      %v2283 = vunpack.c.l.b16 %v1003
      %v2284 = vunpack.c.l.b16 %v1004
      %v2285 = vunpack.c.l.b16 %v1005
      %v2286 = vunpack.c.l.b16 %v1006
      %v2287 = vunpack.c.l.b16 %v1007
      %v2288 = vunpack.c.l.b16 %v1008
      %v2289 = vunpack.c.l.b16 %v1009
      %v2290 = vpack.c.b16 %v2241, %v2240
      %v2291 = vpack.c.b16 %v2243, %v2242
      %v2292 = vpack.c.b16 %v2245, %v2244
      %v2293 = vpack.c.b16 %v2247, %v2246
      %v2294 = vpack.c.b16 %v2249, %v2248
      %v2295 = vpack.c.b16 %v2251, %v2250
      %v2296 = vpack.c.b16 %v2253, %v2252
      %v2297 = vpack.c.b16 %v2255, %v2254
      %v2298 = vpack.c.b16 %v2257, %v2256
      %v2299 = vpack.c.b16 %v2259, %v2258
      %v2300 = vpack.c.b16 %v2261, %v2260
      %v2301 = vpack.c.b16 %v2263, %v2262
      %v2302 = vpack.c.b16 %v2265, %v2264
      %v2303 = vpack.c.b16 %v2267, %v2266
      %v2304 = vpack.c.b16 %v2269, %v2268
      %v2305 = vpack.c.b16 %v2271, %v2270
      %v2306 = vpack.c.b16 %v2273, %v2272
      %v2307 = vpack.c.b16 %v2275, %v2274
      %v2308 = vpack.c.b16 %v2277, %v2276
      %v2309 = vpack.c.b16 %v2279, %v2278
      %v2310 = vpack.c.b16 %v2281, %v2280
      %v2311 = vpack.c.b16 %v2283, %v2282
      %v2312 = vpack.c.b16 %v2285, %v2284
      %v2313 = vpack.c.b16 %v2287, %v2286
      %v2314 = vpack.c.b16 %v2289, %v2288
      %v2341 = vsel %vm1137, %v2132, 0
      %2343 = vmatprep.subr.bf16.mxu0 0
      %2344 = vmatpush1.bf16.msra.mxu0 %v2290
      %2345 = vmatprep.subr.bf16.mxu0 0
      %2346 = vmatpush1.bf16.msra.mxu0 %v2291
      %2347 = vmatprep.subr.bf16.mxu0 0
      %2348 = vmatpush1.bf16.msra.mxu0 %v2292
      %2349 = vmatprep.subr.bf16.mxu0 0
      %2350 = vmatpush1.bf16.msra.mxu0 %v2293
      %2351 = vmatprep.subr.bf16.mxu0 0
      %2352 = vmatpush1.bf16.msra.mxu0 %v2294
      %2353 = vmatprep.subr.bf16.mxu0 0
      %2354 = vmatpush1.bf16.msra.mxu0 %v2295
      %2355 = vmatprep.subr.bf16.mxu0 0
      %2356 = vmatpush1.bf16.msra.mxu0 %v2296
      %2357 = vmatprep.subr.bf16.mxu0 0
      %2358 = vmatpush1.bf16.msra.mxu0 %v2297
      %2359 = vmatprep.subr.bf16.mxu0 0
      %2360 = vmatpush1.bf16.msra.mxu0 %v2298
      %2361 = vmatprep.subr.bf16.mxu0 0
      %2362 = vmatpush1.bf16.msra.mxu0 %v2299
      %2363 = vmatprep.subr.bf16.mxu0 0
      %2364 = vmatpush1.bf16.msra.mxu0 %v2300
      %2365 = vmatprep.subr.bf16.mxu0 0
      %2366 = vmatpush1.bf16.msra.mxu0 %v2301
      %2367 = vmatprep.subr.bf16.mxu0 0
      %2368 = vmatpush1.bf16.msra.mxu0 %v2302
      %2369 = vmatprep.subr.bf16.mxu0 0
      %2370 = vmatpush1.bf16.msra.mxu0 %v2303
      %2371 = vmatprep.subr.bf16.mxu0 0
      %2372 = vmatpush1.bf16.msra.mxu0 %v2304
      %2373 = vmatprep.subr.bf16.mxu0 0
      %2374 = vmatpush1.bf16.msra.mxu0 %v2305
      %2375 = vmatprep.mubr.bf16.mxu0 %v2130
      %2376 = vmatmul.mubr.bf16.gmra.mrb[0].mxu0 %v2129
      %v2377 = vpop.f32.mrb[0].mxu0
      %v2378 = vadd.f32 %v2184, %v2377
      %v2379 = vpop.f32.mrb[0].mxu0
      %v2380 = vpop.f32.mrb[0].mxu0
      %v2381 = vadd.f32 %v2187, %v2380
      %v2382 = vpop.f32.mrb[0].mxu0
      %2383 = vdwg.mxu0
      %2384 = vmatprep.subr.bf16.mxu0 0
      %2385 = vmatpush1.bf16.msra.mxu0 %v2306
      %2386 = vmatprep.subr.bf16.mxu0 0
      %2387 = vmatpush1.bf16.msra.mxu0 %v2307
      %2388 = vmatprep.subr.bf16.mxu0 0
      %2389 = vmatpush1.bf16.msra.mxu0 %v2308
      %2390 = vmatprep.subr.bf16.mxu0 0
      %2391 = vmatpush1.bf16.msra.mxu0 %v2309
      %2392 = vmatprep.subr.bf16.mxu0 0
      %2393 = vmatpush1.bf16.msra.mxu0 %v2310
      %2394 = vmatprep.subr.bf16.mxu0 0
      %2395 = vmatpush1.bf16.msra.mxu0 %v2311
      %2396 = vmatprep.subr.bf16.mxu0 0
      %2397 = vmatpush1.bf16.msra.mxu0 %v2312
      %2398 = vmatprep.subr.bf16.mxu0 0
      %2399 = vmatpush1.bf16.msra.mxu0 %v2313
      %2400 = vmatprep.subr.bf16.mxu0 0
      %2401 = vmatpush1.bf16.msra.mxu0 %v2314
      %2402 = vmatprep.subr.bf16.mxu0 0
      %2403 = vmatpush1.bf16.msra.mxu0 0
      %2404 = vmatprep.subr.bf16.mxu0 0
      %2405 = vmatpush1.bf16.msra.mxu0 0
      %2406 = vmatprep.subr.bf16.mxu0 0
      %2407 = vmatpush1.bf16.msra.mxu0 0
      %2408 = vmatprep.subr.bf16.mxu0 0
      %2409 = vmatpush1.bf16.msra.mxu0 0
      %2410 = vmatprep.subr.bf16.mxu0 0
      %2411 = vmatpush1.bf16.msra.mxu0 0
      %2412 = vmatprep.subr.bf16.mxu0 0
      %2413 = vmatpush1.bf16.msra.mxu0 0
      %2414 = vmatprep.subr.bf16.mxu0 0
      %2415 = vmatpush1.bf16.msra.mxu0 0
      %2416 = vmatprep.mubr.bf16.mxu0 %v2341
      %2417 = vmatmul.mubr.bf16.gmra.mrb[0].mxu0 %v2131
      %v2418 = vpop.f32.mrb[0].mxu0
      %v2419 = vadd.f32 %v2378, %v2418
      %v2420 = vpop.f32.mrb[0].mxu0
      %v2421 = vpop.f32.mrb[0].mxu0
      %v2422 = vadd.f32 %v2381, %v2421
      %v2423 = vpop.f32.mrb[0].mxu0
      %2424 = vdwg.mxu0
      %v2426 = vlaneseq
      %v2427 = vshrl.u32 %v2426, 7
      %v2428 = vsub.s32 0, %v2427
      %v2429 = vrot.slane %v1014, %v2428
      %v2431 = vadd.f32 %v2419, %v2429
      %v2432 = vadd.f32 %v2422, %v2429
      %v2433 = vpack.c.bf16 %v2090, %v2087
      %v2446 = vunpack.c.l.b16 %v1015
      %v2447 = vunpack.c.l.b16 %v1016
      %v2448 = vunpack.c.l.b16 %v1017
      %v2449 = vunpack.c.l.b16 %v1018
      %v2450 = vunpack.c.l.b16 %v1019
      %v2451 = vunpack.c.l.b16 %v1020
      %v2452 = vunpack.c.l.b16 %v1021
      %v2453 = vunpack.c.l.b16 %v1022
      %v2454 = vunpack.c.l.b16 %v1023
      %v2455 = vunpack.c.l.b16 %v1024
      %v2456 = vunpack.c.l.b16 %v1025
      %v2457 = vunpack.c.l.b16 %v1026
      %v2458 = vpack.c.b16 %v2447, %v2446
      %v2459 = vpack.c.b16 %v2449, %v2448
      %v2460 = vpack.c.b16 %v2451, %v2450
      %v2461 = vpack.c.b16 %v2453, %v2452
      %v2462 = vpack.c.b16 %v2455, %v2454
      %v2463 = vpack.c.b16 %v2457, %v2456
      %v2471 = vsel %vm1681, %v2433, 0
      %2473 = vmatprep.subr.bf16.mxu0 0
      %2474 = vmatpush1.bf16.msra.mxu0 %v2458
      %2475 = vmatprep.subr.bf16.mxu0 0
      %2476 = vmatpush1.bf16.msra.mxu0 %v2459
      %2477 = vmatprep.subr.bf16.mxu0 0
      %2478 = vmatpush1.bf16.msra.mxu0 %v2460
      %2479 = vmatprep.subr.bf16.mxu0 0
      %2480 = vmatpush1.bf16.msra.mxu0 %v2461
      %2481 = vmatprep.subr.bf16.mxu0 0
      %2482 = vmatpush1.bf16.msra.mxu0 %v2462
      %2483 = vmatprep.subr.bf16.mxu0 0
      %2484 = vmatpush1.bf16.msra.mxu0 %v2463
      %2485 = vmatprep.subr.bf16.mxu0 0
      %2486 = vmatpush1.bf16.msra.mxu0 0
      %2487 = vmatprep.subr.bf16.mxu0 0
      %2488 = vmatpush1.bf16.msra.mxu0 0
      %2489 = vmatprep.subr.bf16.mxu0 0
      %2490 = vmatpush1.bf16.msra.mxu0 0
      %2491 = vmatprep.subr.bf16.mxu0 0
      %2492 = vmatpush1.bf16.msra.mxu0 0
      %2493 = vmatprep.subr.bf16.mxu0 0
      %2494 = vmatpush1.bf16.msra.mxu0 0
      %2495 = vmatprep.subr.bf16.mxu0 0
      %2496 = vmatpush1.bf16.msra.mxu0 0
      %2497 = vmatprep.subr.bf16.mxu0 0
      %2498 = vmatpush1.bf16.msra.mxu0 0
      %2499 = vmatprep.subr.bf16.mxu0 0
      %2500 = vmatpush1.bf16.msra.mxu0 0
      %2501 = vmatprep.subr.bf16.mxu0 0
      %2502 = vmatpush1.bf16.msra.mxu0 0
      %2503 = vmatprep.subr.bf16.mxu0 0
      %2504 = vmatpush1.bf16.msra.mxu0 0
      %2505 = vmatprep.mubr.bf16.mxu0 0
      %2506 = vmatmul.mubr.bf16.gmra.mrb[0].mxu0 %v2471
      %v2507 = vpop.f32.mrb[0].mxu0
      %v2508 = vadd.f32 0.0, %v2507
      %v2509 = vpop.f32.mrb[0].mxu0
      %v2510 = vpop.f32.mrb[0].mxu0
      %v2511 = vadd.f32 0.0, %v2510
      %v2512 = vpop.f32.mrb[0].mxu0
      %2513 = vdwg.mxu0
      %v2514 = vpack.c.bf16 %v2432, %v2431
      %v2516 = vlaneseq
      %v2517 = vshrl.u32 %v2516, 7
      %v2518 = vsub.s32 0, %v2517
      %v2519 = vrot.slane %v1040, %v2518
      %v2534 = vunpack.c.l.b16 %v1027
      %v2535 = vunpack.c.l.b16 %v1028
      %v2536 = vunpack.c.l.b16 %v1029
      %v2537 = vunpack.c.l.b16 %v1030
      %v2538 = vunpack.c.l.b16 %v1031
      %v2539 = vunpack.c.l.b16 %v1032
      %v2540 = vunpack.c.l.b16 %v1033
      %v2541 = vunpack.c.l.b16 %v1034
      %v2542 = vunpack.c.l.b16 %v1035
      %v2543 = vunpack.c.l.b16 %v1036
      %v2544 = vunpack.c.l.b16 %v1037
      %v2545 = vunpack.c.l.b16 %v1038
      %v2546 = vunpack.c.l.b16 %v1039
      %v2547 = vpack.c.b16 %v2535, %v2534
      %v2548 = vpack.c.b16 %v2537, %v2536
      %v2549 = vpack.c.b16 %v2539, %v2538
      %v2550 = vpack.c.b16 %v2541, %v2540
      %v2551 = vpack.c.b16 %v2543, %v2542
      %v2552 = vpack.c.b16 %v2545, %v2544
      %v2553 = vpack.c.b16 %v2546, %v2546
      %v2561 = vsel %vm1071, %v2514, 0
      %v2564 = vsel %vm1516, %v2553, 0
      %2566 = vmatprep.subr.bf16.mxu0 0
      %2567 = vmatpush1.bf16.msra.mxu0 %v2547
      %2568 = vmatprep.subr.bf16.mxu0 0
      %2569 = vmatpush1.bf16.msra.mxu0 %v2548
      %2570 = vmatprep.subr.bf16.mxu0 0
      %2571 = vmatpush1.bf16.msra.mxu0 %v2549
      %2572 = vmatprep.subr.bf16.mxu0 0
      %2573 = vmatpush1.bf16.msra.mxu0 %v2550
      %2574 = vmatprep.subr.bf16.mxu0 0
      %2575 = vmatpush1.bf16.msra.mxu0 %v2551
      %2576 = vmatprep.subr.bf16.mxu0 0
      %2577 = vmatpush1.bf16.msra.mxu0 %v2552
      %2578 = vmatprep.subr.bf16.mxu0 0
      %2579 = vmatpush1.bf16.msra.mxu0 %v2564
      %2580 = vmatprep.subr.bf16.mxu0 0
      %2581 = vmatpush1.bf16.msra.mxu0 0
      %2582 = vmatprep.subr.bf16.mxu0 0
      %2583 = vmatpush1.bf16.msra.mxu0 0
      %2584 = vmatprep.subr.bf16.mxu0 0
      %2585 = vmatpush1.bf16.msra.mxu0 0
      %2586 = vmatprep.subr.bf16.mxu0 0
      %2587 = vmatpush1.bf16.msra.mxu0 0
      %2588 = vmatprep.subr.bf16.mxu0 0
      %2589 = vmatpush1.bf16.msra.mxu0 0
      %2590 = vmatprep.subr.bf16.mxu0 0
      %2591 = vmatpush1.bf16.msra.mxu0 0
      %2592 = vmatprep.subr.bf16.mxu0 0
      %2593 = vmatpush1.bf16.msra.mxu0 0
      %2594 = vmatprep.subr.bf16.mxu0 0
      %2595 = vmatpush1.bf16.msra.mxu0 0
      %2596 = vmatprep.subr.bf16.mxu0 0
      %2597 = vmatpush1.bf16.msra.mxu0 0
      %2598 = vmatprep.mubr.bf16.mxu0 0
      %2599 = vmatmul.mubr.bf16.gmra.mrb[0].mxu0 %v2561
      %v2600 = vpop.f32.mrb[0].mxu0
      %v2601 = vadd.f32 %v2519, %v2600
      %v2602 = vpop.f32.mrb[0].mxu0
      %v2603 = vpop.f32.mrb[0].mxu0
      %v2604 = vadd.f32 %v2519, %v2603
      %v2605 = vpop.f32.mrb[0].mxu0
      %2606 = vdwg.mxu0
      %v2607 = vxor.u32 %v2601, 2147483648
      %v2608 = vxor.u32 %v2604, 2147483648
      %v2609 = vmul.f32 %v2607, 1.442695
      %v2610 = vpow.pop %v2609
      %v2611 = vmul.f32 %v2608, 1.442695
      %v2612 = vpow.pop %v2611
      %v2613 = vadd.f32 %v2610, 1.0
      %v2614 = vadd.f32 %v2612, 1.0
      %v2615 = vrcp.pop %v2613
      %v2616 = vmul.f32 1.0, %v2615
      %v2617 = vrcp.pop %v2614
      %v2618 = vmul.f32 1.0, %v2617
      %2621 = vrot.lane.b32.xlu0 %v2616, 16
      %v2622 = vpop.permute.xlu0 %2621
      %2623 = vrot.lane.b32.xlu0 %v2618, 16
      %v2624 = vpop.permute.xlu0 %2623
      %2627 = vrot.lane.b32.xlu0 %v2616, 32
      %v2628 = vpop.permute.xlu0 %2627
      %2629 = vrot.lane.b32.xlu0 %v2618, 32
      %v2630 = vpop.permute.xlu0 %2629
      %v2633 = vsel %vm1137, %v2616, %v2622
      %v2634 = vsel %vm1137, %v2618, %v2624
      %v2635 = vsel %vm1293, %v2633, %v2628
      %v2636 = vsel %vm1293, %v2634, %v2630
      %v2637 = vmul.f32 %v2508, %v2635
      %v2638 = vmul.f32 %v2511, %v2636
      %v2639 = vadd.f32 %v1113, %v2431
      %v2640 = vadd.f32 %v1114, %v2432
      %v2641 = vld [vmem:[%s21] sm:$0x1]
      %v2642 = vld [vmem:[%s22] sm:$0x1]
      %v2643 = vsel %vm1071, %v2639, 0.0
      %2644 = vadd.xlane.f32.xlu0 %v2643
      %v2645 = vpop.xlane.xlu0 %2644
      %v2646 = vsel %vm1071, %v2640, 0.0
      %2647 = vadd.xlane.f32.xlu0 %v2646
      %v2648 = vpop.xlane.xlu0 %2647
      %v2649 = vmul.f32 %v2645, %v1078
      %v2650 = vmul.f32 %v2648, %v1078
      %v2651 = vsub.f32 %v2639, %v2649
      %v2652 = vsub.f32 %v2640, %v2650
      %v2653 = vmul.f32 %v2651, %v2651
      %v2654 = vmul.f32 %v2652, %v2652
      %v2655 = vsel %vm1071, %v2653, 0.0
      %2656 = vadd.xlane.f32.xlu0 %v2655
      %v2657 = vpop.xlane.xlu0 %2656
      %v2658 = vsel %vm1071, %v2654, 0.0
      %2659 = vadd.xlane.f32.xlu0 %v2658
      %v2660 = vpop.xlane.xlu0 %2659
      %v2661 = vmul.f32 %v2657, %v1078
      %v2662 = vmul.f32 %v2660, %v1078
      %v2663 = vadd.f32 %v2661, 1e-05
      %v2664 = vadd.f32 %v2662, 1e-05
      %v2665 = vrsqrt.pop %v2663
      %v2666 = vrsqrt.pop %v2664
      %v2667 = vmul.f32 %v2651, %v2665
      %v2668 = vmul.f32 %v2652, %v2666
      %v2670 = vlaneseq
      %v2671 = vshrl.u32 %v2670, 7
      %v2672 = vsub.s32 0, %v2671
      %v2673 = vrot.slane %v2641, %v2672
      %v2675 = vmul.f32 %v2667, %v2673
      %v2676 = vmul.f32 %v2668, %v2673
      %v2678 = vlaneseq
      %v2679 = vshrl.u32 %v2678, 7
      %v2680 = vsub.s32 0, %v2679
      %v2681 = vrot.slane %v2642, %v2680
      %v2683 = vadd.f32 %v2675, %v2681
      %v2684 = vadd.f32 %v2676, %v2681
      %2685 = vst.msk [vmem:[%s835] sm:$0xff] %vm1071, %v2683
      %2686 = vst.msk [vmem:[%s835 + $0x8] sm:$0xff] %vm1071, %v2684
      %v2687 = vadd.f32 %v1149, %v2637
      %v2688 = vadd.f32 %v1150, %v2638
      %v2689 = vmul.f32 %v2687, %v2687
      %v2690 = vmul.f32 %v2688, %v2688
      %2693 = vrot.lane.b32.xlu0 %v2689, 112
      %v2694 = vpop.permute.xlu0 %2693
      %2695 = vrot.lane.b32.xlu0 %v2690, 112
      %v2696 = vpop.permute.xlu0 %2695
      %v2699 = vadd.f32 %v2689, %v2694
      %v2700 = vadd.f32 %v2690, %v2696
      %2701 = vrot.lane.b32.xlu0 %v2689, 96
      %v2702 = vpop.permute.xlu0 %2701
      %2703 = vrot.lane.b32.xlu0 %v2690, 96
      %v2704 = vpop.permute.xlu0 %2703
      %v2707 = vadd.f32 %v2699, %v2702
      %v2708 = vadd.f32 %v2700, %v2704
      %v2709 = vmax.f32 %v2707, 1e-08
      %v2710 = vmax.f32 %v2708, 1e-08
      %v2711 = vsel %vm1137, %v2709, 0.0
      %2712 = vadd.xlane.f32.xlu0 %v2711
      %v2713 = vpop.xlane.xlu0 %2712
      %v2714 = vsel %vm1137, %v2710, 0.0
      %2715 = vadd.xlane.f32.xlu0 %v2714
      %v2716 = vpop.xlane.xlu0 %2715
      %v2717 = vmul.f32 %v2713, %v1144
      %v2718 = vmul.f32 %v2716, %v1144
      %v2719 = vrsqrt.pop %v2717
      %v2720 = vrsqrt.pop %v2718
      %v2721 = vmul.f32 %v2687, %v2719
      %v2722 = vmul.f32 %v2688, %v2720
      %2723 = vst.msk [vmem:[%s841] sm:$0xff] %vm1170, %v2721
      %2724 = vst.msk [vmem:[%s841 + $0x8] sm:$0xff] %vm1170, %v2722
      %s2725 = smul.u32 2, %s36
      %p2726 = scmp.lt.s32.totalorder %s2725, 3
      %s2727 = scalar_select %p2726, %s2725, 3
      %s2728 = smul.addr %s2727, 8
      %s2729 = scalar_lea.vmem %s23, %s2728
      %s2730 = smul.u32 2, %s36
      %p2731 = scmp.lt.s32.totalorder %s2730, 3
      %s2732 = scalar_select %p2731, %s2730, 3
      %s2733 = smul.addr %s2732, 8
      %s2734 = scalar_lea.vmem %s24, %s2733
      // Predicated region
      $region113: #{base_model_forward.16} parent=111 // pred_check
        %p2735 = pneg %p562
      $region114: #{base_model_forward.16} parent=111 // pred_check_branch
        %2737 = sbr.rel (%p2735) target = $region116
      $region115: #{base_model_forward.16} parent=111 // pred_region
        %s2738 = smul.u32 2, %s36
      $region116: #{base_model_forward.16} parent=111 // pred_fallthru
        _
      // Predicated region
      $region117: #{base_model_forward.16} parent=111 // pred_check
        %p2739 = pneg %p588
      $region118: #{base_model_forward.16} parent=111 // pred_check_branch
        %2741 = sbr.rel (%p2739) target = $region120
      $region119: #{base_model_forward.16} parent=111 // pred_region
        %s2742 = smul.u32 2, %s36
      $region120: #{base_model_forward.16} parent=111 // pred_fallthru
        _
    $region112: #{base_model_forward.16} parent=5 // pred_fallthru
      _
    %p2743 = scmp.le.s32.totalorder 2, %s31
    // Predicated region
    $region121: #{base_model_forward.16} parent=5 // pred_check
      %p2744 = pneg %p2743
    $region122: #{base_model_forward.16} parent=5 // pred_check_branch
      %2746 = sbr.rel (%p2744) target = $region124
    $region123: #{base_model_forward.16} parent=5 // pred_region
      %s2747 = ssub.s32 %s31, 2
      // Predicated region
      $region125: #{base_model_forward.16} parent=123 // pred_check
        %p2748 = pneg %p568
      $region126: #{base_model_forward.16} parent=123 // pred_check_branch
        %2750 = sbr.rel (%p2748) target = $region128
      $region127: #{base_model_forward.16} parent=123 // pred_region
        %s2751 = smul.u32 2, %s37
        %p2752 = scmp.lt.s32.totalorder %s2751, 3
        %s2753 = scalar_select %p2752, %s2751, 3
        %s2754 = smul.addr %s2753, 8
        %s2755 = scalar_lea.vmem %s23, %s2754
      $region128: #{base_model_forward.16} parent=123 // pred_fallthru
        _
      // Predicated region
      $region129: #{base_model_forward.16} parent=123 // pred_check
        %p2756 = pneg %p594
      $region130: #{base_model_forward.16} parent=123 // pred_check_branch
        %2758 = sbr.rel (%p2756) target = $region132
      $region131: #{base_model_forward.16} parent=123 // pred_region
        %s2759 = smul.u32 2, %s37
        %p2760 = scmp.lt.s32.totalorder %s2759, 3
        %s2761 = scalar_select %p2760, %s2759, 3
        %s2762 = smul.addr %s2761, 8
        %s2763 = scalar_lea.vmem %s24, %s2762
      $region132: #{base_model_forward.16} parent=123 // pred_fallthru
        _
    $region124: #{base_model_forward.16} parent=5 // pred_fallthru
      _
  $region6: #{base_model_forward.16} parent=0 // loop_footer
    %s35 = sadd.s32 1, %s31
  $region7: #{base_model_forward.16} parent=0 // loop_footer_branch
    %30 = sbr.rel target = $region3
  $region8: #{base_model_forward.16} parent=0 // loop_exit
    _

</llo_original>
